<compile_context>
chip_gen: v7x
topology: tpu7x:2x2x1
jax: 0.10.0
libtpu: 0.0.40
codegen_flags: <defaults>
</compile_context>

<pallas_src>
import functools
import numpy as np

import jax
import jax.numpy as jnp
from jax.experimental import pallas as pl
from jax.experimental.pallas import tpu as pltpu


_GELU_C = 0.7978845608028654  # sqrt(2/pi)

# Explicit VMEM budget: fits v7x's 64 MiB physical VMEM; on v6e/v5e (128 MiB) raise it
# together with `batch_tile` to reach the ~85% HBM-roofline knee (>=512 rows per step).
_VMEM_LIMIT = 64 * 1024 * 1024


def _compiler_params():
    return pltpu.CompilerParams(dimension_semantics=("parallel",),
                                vmem_limit_bytes=_VMEM_LIMIT)


def _pick_tile(total, target):
    """Largest divisor of `total` not exceeding `target` (exact BlockSpecs, no masking)."""
    t = int(max(1, min(total, target)))
    while total % t:
        t -= 1
    return t


# ----------------------------- kernel bodies --------------------------------

def _store_stats(stat_ref, x2):
    """Per-tile BatchNorm partials.  stat_ref block: (1, 2, C); x2: (rows, C) f32."""
    stat_ref[:, 0:1, :] = jnp.sum(x2, axis=0, keepdims=True)[None]
    stat_ref[:, 1:2, :] = jnp.sum(x2 * x2, axis=0, keepdims=True)[None]


def _apply_bn(x2, n):
    """x2: (rows, C); n: (4, C) rows = [mean, rstd, gamma, beta]."""
    return (x2 - n[0:1]) * n[1:2] * n[2:3] + n[3:4]


def _window_attention(xs, wqkv, bqkv, wproj, bproj, bm, *, ws, n_heads):
    """Window attention for one batch tile.

    xs: (TB, Lr, C) f32, already padded/shifted in the wrapper (Lr % ws == 0).
    bm: (H, nW | 1, ws, ws) f32 relative-position bias (+ shift mask).
    """
    TB, Lr, C = xs.shape
    nW = Lr // ws
    hd = C // n_heads
    scale = hd ** (-0.5)
    rows = TB * Lr

    # One big QKV projection for every token of every window (bf16 MXU, f32 accumulate),
    # then a single bf16 cast of the result feeds all per-head contractions.
    qkv = jnp.dot(xs.reshape(rows, C).astype(jnp.bfloat16), wqkv,
                  preferred_element_type=jnp.float32) + bqkv            # (rows, 3C)
    qkv = qkv.astype(jnp.bfloat16).reshape(TB * nW, ws, 3 * C)

    # Per-head score/PV blocks are intrinsically tiny (ws x ws x hd) so the static head
    # loop stays, but the heads are lane-concatenated and the output projection is ONE
    # (rows, C) @ (C, C) matmul (K = C instead of K = head_dim).
    # TODO(synk): a single all-head 'bqhd,bkhd->bhqk' einsum needs a sublane-crossing
    # transpose / multi-batch-dim dot_general that Mosaic may reject; kept per-head.
    heads = []
    for h in range(n_heads):
        q = qkv[:, :, h * hd:(h + 1) * hd]
        k = qkv[:, :, C + h * hd:C + (h + 1) * hd]
        v = qkv[:, :, 2 * C + h * hd:2 * C + (h + 1) * hd]
        s = jnp.einsum('bqd,bkd->bqk', q, k,
                       preferred_element_type=jnp.float32) * scale      # (TB*nW, ws, ws)
        s = (s.reshape(TB, nW, ws, ws) + bm[h][None]).reshape(TB * nW, ws, ws)
        s = s - jnp.max(s, axis=-1, keepdims=True)
        e = jnp.exp(s)
        p = e / jnp.sum(e, axis=-1, keepdims=True)                       # exact softmax
        heads.append(jnp.einsum('bqk,bkd->bqd', p.astype(jnp.bfloat16), v,
                                preferred_element_type=jnp.float32))     # (TB*nW, ws, hd)
    pv = jnp.concatenate(heads, axis=-1).reshape(rows, C)                # lane concat
    out = jnp.dot(pv.astype(jnp.bfloat16), wproj,
                  preferred_element_type=jnp.float32) + bproj            # (rows, C)
    return out.reshape(TB, Lr, C)


def _embed_kernel(x_ref, w_ref, posb_ref, o_ref):
    """(TB, PN, PL) bf16 @ (PL, D) bf16 + (PN, D) f32 -> (TB, PN, D) f32."""
    x = x_ref[...]
    TB, PN, PL = x.shape
    D = posb_ref.shape[-1]
    y = jnp.dot(x.reshape(TB * PN, PL), w_ref[...], preferred_element_type=jnp.float32)
    o_ref[...] = y.reshape(TB, PN, D) + posb_ref[...][None]


def _attn_res_kernel(x_ref, *args, ws, n_heads, has_prenorm):
    """Per batch-tile: [deferred BatchNorm of the previous layer] + window attention +
    residual.  Emits y = src + attn and this tile's (sum, sumsq) BatchNorm partials."""
    if has_prenorm:
        (pre_ref, wqkv_ref, bqkv_ref, wproj_ref, bproj_ref, bm_ref,
         y_ref, stat_ref) = args
    else:
        (wqkv_ref, bqkv_ref, wproj_ref, bproj_ref, bm_ref, y_ref, stat_ref) = args

    x = x_ref[...]                                          # (TB, Lr, C) f32
    TB, Lr, C = x.shape
    if has_prenorm:                                         # previous layer's BatchNorm2
        src = _apply_bn(x.reshape(TB * Lr, C), pre_ref[...]).reshape(TB, Lr, C)
    else:
        src = x

    attn = _window_attention(src, wqkv_ref[...], bqkv_ref[...], wproj_ref[...],
                             bproj_ref[...], bm_ref[...], ws=ws, n_heads=n_heads)
    y = src + attn
    y_ref[...] = y
    _store_stats(stat_ref, y.reshape(TB * Lr, C))


def _ffn_res_kernel(y_ref, n1_ref, w1_ref, b1_ref, w2_ref, b2_ref, z_ref, stat_ref):
    """Per batch-tile: BatchNorm1 (global stats supplied) + FFN (Linear-GELU-Linear)
    + residual.  Emits z and its BatchNorm partials (for the deferred BatchNorm2)."""
    y = y_ref[...]
    TB, Lr, C = y.shape
    yn = _apply_bn(y.reshape(TB * Lr, C), n1_ref[...])
    h = jnp.dot(yn.astype(jnp.bfloat16), w1_ref[...],
                preferred_element_type=jnp.float32) + b1_ref[...]
    # TODO(synk): tanh-approx GELU; PyTorch nn.GELU() default is the exact erf form.
    h = 0.5 * h * (1.0 + jnp.tanh(_GELU_C * (h + 0.044715 * h * h * h)))
    f = jnp.dot(h.astype(jnp.bfloat16), w2_ref[...],
                preferred_element_type=jnp.float32) + b2_ref[...]
    z = yn + f
    z_ref[...] = z.reshape(TB, Lr, C)
    _store_stats(stat_ref, z)


def _bn_kernel(z_ref, n_ref, o_ref):
    """Standalone BatchNorm apply (last layer's BatchNorm2 / rare padded path)."""
    z = z_ref[...]
    TB, Lr, C = z.shape
    o_ref[...] = _apply_bn(z.reshape(TB * Lr, C), n_ref[...]).reshape(TB, Lr, C)


# ----------------------------- gridded wrappers -------------------------------

def embed_patches(x, w_p, posb, *, batch_tile):
    """x: (B, PN, PL) bf16 -> (B, PN, D) f32, one MXU matmul per batch tile."""
    B, PN, PL = x.shape
    D = posb.shape[-1]
    TB = _pick_tile(B, batch_tile)
    return pl.pallas_call(
        _embed_kernel,
        grid=(B // TB,),
        in_specs=[pl.BlockSpec((TB, PN, PL), lambda b: (b, 0, 0)),
                  pl.BlockSpec((PL, D), lambda b: (0, 0)),
                  pl.BlockSpec((PN, D), lambda b: (0, 0))],
        out_specs=pl.BlockSpec((TB, PN, D), lambda b: (b, 0, 0)),
        out_shape=jax.ShapeDtypeStruct((B, PN, D), jnp.float32),
        compiler_params=_compiler_params(),
    )(x, w_p, posb)


def attn_residual(x, pre, lp, bm, *, ws, n_heads, batch_tile):
    """Gridded call A.  Returns (y, per-tile BatchNorm partials)."""
    B, Lr, C = x.shape
    TB = _pick_tile(B, batch_tile)
    nt = B // TB
    H, nWm = bm.shape[0], bm.shape[1]
    has_prenorm = pre is not None

    operands = [x]
    in_specs = [pl.BlockSpec((TB, Lr, C), lambda b: (b, 0, 0))]
    if has_prenorm:
        operands.append(pre)
        in_specs.append(pl.BlockSpec((4, C), lambda b: (0, 0)))
    operands += [lp["Wqkv"], lp["bqkv"], lp["Wproj"], lp["bproj"], bm]
    in_specs += [pl.BlockSpec((C, 3 * C), lambda b: (0, 0)),
                 pl.BlockSpec((1, 3 * C), lambda b: (0, 0)),
                 pl.BlockSpec((C, C), lambda b: (0, 0)),
                 pl.BlockSpec((1, C), lambda b: (0, 0)),
                 pl.BlockSpec((H, nWm, ws, ws), lambda b: (0, 0, 0, 0))]

    kern = functools.partial(_attn_res_kernel, ws=ws, n_heads=n_heads,
                             has_prenorm=has_prenorm)
    return pl.pallas_call(
        kern,
        grid=(nt,),
        in_specs=in_specs,
        out_specs=(pl.BlockSpec((TB, Lr, C), lambda b: (b, 0, 0)),
                   pl.BlockSpec((1, 2, C), lambda b: (b, 0, 0))),
        out_shape=(jax.ShapeDtypeStruct((B, Lr, C), jnp.float32),
                   jax.ShapeDtypeStruct((nt, 2, C), jnp.float32)),
        compiler_params=_compiler_params(),
    )(*operands)


def ffn_residual(y, n1, lp, *, batch_tile):
    """Gridded call B.  Returns (z, per-tile BatchNorm partials)."""
    B, Lr, C = y.shape
    dff = lp["W1"].shape[-1]
    TB = _pick_tile(B, batch_tile)
    nt = B // TB
    return pl.pallas_call(
        _ffn_res_kernel,
        grid=(nt,),
        in_specs=[pl.BlockSpec((TB, Lr, C), lambda b: (b, 0, 0)),
                  pl.BlockSpec((4, C), lambda b: (0, 0)),
                  pl.BlockSpec((C, dff), lambda b: (0, 0)),
                  pl.BlockSpec((1, dff), lambda b: (0, 0)),
                  pl.BlockSpec((dff, C), lambda b: (0, 0)),
                  pl.BlockSpec((1, C), lambda b: (0, 0))],
        out_specs=(pl.BlockSpec((TB, Lr, C), lambda b: (b, 0, 0)),
                   pl.BlockSpec((1, 2, C), lambda b: (b, 0, 0))),
        out_shape=(jax.ShapeDtypeStruct((B, Lr, C), jnp.float32),
                   jax.ShapeDtypeStruct((nt, 2, C), jnp.float32)),
        compiler_params=_compiler_params(),
    )(y, n1, lp["W1"], lp["b1"], lp["W2"], lp["b2"])


def bn_apply(z, n, *, batch_tile):
    """Gridded standalone BatchNorm apply."""
    B, Lr, C = z.shape
    TB = _pick_tile(B, batch_tile)
    return pl.pallas_call(
        _bn_kernel,
        grid=(B // TB,),
        in_specs=[pl.BlockSpec((TB, Lr, C), lambda b: (b, 0, 0)),
                  pl.BlockSpec((4, C), lambda b: (0, 0))],
        out_specs=pl.BlockSpec((TB, Lr, C), lambda b: (b, 0, 0)),
        out_shape=jax.ShapeDtypeStruct((B, Lr, C), jnp.float32),
        compiler_params=_compiler_params(),
    )(z, n)


# ----------------------------- static setup & forward -------------------------

def compute_mask_np(L, window_size, shift_size):
    """Verbatim numpy port of the reference compute_mask (static setup)."""
    Lp = int(np.ceil(L / window_size)) * window_size
    img_mask = np.zeros((1, Lp, 1), dtype=np.float32)
    pad_size = int(Lp - L)
    if pad_size == 0 or pad_size + shift_size == window_size:
        segs = (slice(-window_size), slice(-window_size, -shift_size), slice(-shift_size, None))
    elif pad_size + shift_size > window_size:
        seg1 = int(window_size * 2 - L + shift_size)
        segs = (slice(-seg1), slice(-seg1, -window_size),
                slice(-window_size, -shift_size), slice(-shift_size, None))
    else:
        seg1 = int(window_size * 2 - L + shift_size)
        segs = (slice(-window_size), slice(-window_size, -seg1),
                slice(-seg1, -shift_size), slice(-shift_size, None))
    cnt = 0
    for d in segs:
        img_mask[:, d, :] = cnt
        cnt += 1
    mw = img_mask.reshape(1, Lp // window_size, window_size, 1).reshape(-1, window_size)
    attn_mask = mw[:, None, :] - mw[:, :, None]                           # (nW, ws, ws)
    attn_mask = np.where(attn_mask != 0, np.float32(-100.0), np.float32(0.0))
    return attn_mask


def _bn_params(stat_partial, n_rows, gamma, beta, eps=1e-5):
    """Reduce per-tile (sum, sumsq) partials into training-mode BatchNorm1d parameters
    packed as (4, C) = [mean, rstd, gamma, beta].  Tiny jnp reduction outside Pallas."""
    tot = jnp.sum(stat_partial, axis=0)                        # (2, C)
    mean = tot[0] / n_rows
    var = jnp.maximum(tot[1] / n_rows - mean * mean, 0.0)      # biased variance
    rstd = jax.lax.rsqrt(var + eps)
    return jnp.stack([mean, rstd, gamma.reshape(-1), beta.reshape(-1)], axis=0)


def _bn_params_direct(x, gamma, beta, eps=1e-5):
    """BatchNorm parameters straight from an activation (rare padded path only)."""
    mean = jnp.mean(x, axis=(0, 1))
    var = jnp.mean(jnp.square(x - mean), axis=(0, 1))
    return jnp.stack([mean, jax.lax.rsqrt(var + eps), gamma.reshape(-1),
                      beta.reshape(-1)], axis=0)


def tsti_encoder_forward(x, params, *, window_size, n_heads, d_model, batch_tile=64):
    """x: (bs, n_vars, patch_len, patch_num) -> (bs, n_vars, d_model, patch_num)."""
    bs, n_vars, patch_len, patch_num = x.shape
    B, L, ws = bs * n_vars, patch_num, window_size
    n_rows = B * L

    # channels-last; bf16 matmul-only operand halves the embedding DMA bytes
    xp = jnp.transpose(x, (0, 1, 3, 2)).reshape(B, L, patch_len).astype(jnp.bfloat16)
    posb = params["W_pos"] + params["b_P"]                     # fold linear bias into W_pos
    z = embed_patches(xp, params["W_P"], posb, batch_tile=batch_tile)     # (B, L, D) f32

    pad = (ws - L % ws) % ws
    pending = None       # previous layer's BatchNorm2, folded into the next attention call
    for i, lp in enumerate(params["layers"]):
        shifted = (i % 2 == 1)                                 # reference: odd layers shifted
        shift = (ws // 2) if shifted else 0
        if shifted:
            mask = jnp.asarray(compute_mask_np(L, ws, shift), jnp.float32)
            bm = lp["rel_bias"][:, None] + mask[None]          # (H, nW, ws, ws)
        else:
            bm = lp["rel_bias"][:, None]                       # (H, 1, ws, ws)

        if pad == 0:
            # fast path: whole layer evaluated in (optionally shifted) row coordinates;
            # residual / BatchNorm / FFN are row-permutation equivariant.
            zin = jnp.roll(z, -shift, axis=1) if shift else z
            y, st_y = attn_residual(zin, pending, lp, bm, ws=ws, n_heads=n_heads,
                                    batch_tile=batch_tile)
            n1 = _bn_params(st_y, n_rows, lp["bn1_w"], lp["bn1_b"])
            z, st_z = ffn_residual(y, n1, lp, batch_tile=batch_tile)
            pending = _bn_params(st_z, n_rows, lp["bn2_w"], lp["bn2_b"])
            if shift:
                z = jnp.roll(z, shift, axis=1)                 # back to true row order
        else:
            # rare path (L % window_size != 0): materialize the pending norm first, then
            # zero-pad the true src exactly like the reference (pad keys do attend).
            if pending is not None:
                z = bn_apply(z, pending, batch_tile=batch_tile)
                pending = None
            zp = jnp.pad(z, ((0, 0), (0, pad), (0, 0)))
            if shift:
                zp = jnp.roll(zp, -shift, axis=1)
            y, _ = attn_residual(zp, None, lp, bm, ws=ws, n_heads=n_heads,
                                 batch_tile=batch_tile)
            if shift:
                y = jnp.roll(y, shift, axis=1)
            y = y[:, :L, :]                                    # drop pad rows before BN/FFN
            n1 = _bn_params_direct(y, lp["bn1_w"], lp["bn1_b"])
            z, st_z = ffn_residual(y, n1, lp, batch_tile=batch_tile)
            pending = _bn_params(st_z, n_rows, lp["bn2_w"], lp["bn2_b"])

    if pending is not None:
        z = bn_apply(z, pending, batch_tile=batch_tile)        # last layer's BatchNorm2

    z = z.reshape(bs, n_vars, L, d_model)
    return jnp.transpose(z, (0, 1, 3, 2))                      # (bs, n_vars, d_model, patch_num)


# ----------------------------- parameters ------------------------------------

def init_params(key, *, patch_len, patch_num, d_model, n_heads, d_ff, window_size, n_layers):
    ks = jax.random.split(key, 3 + n_layers)
    p = {
        "W_P": (0.02 * jax.random.normal(ks[0], (patch_len, d_model), jnp.float32)
                ).astype(jnp.bfloat16),
        "b_P": 0.02 * jax.random.normal(ks[1], (1, d_model), jnp.float32),
        "W_pos": jax.random.uniform(ks[2], (patch_num, d_model), jnp.float32, -0.02, 0.02),
        "layers": [],
    }
    # relative-position index (static) -> precompute the (H, ws, ws) bias per layer
    idx = np.arange(window_size)
    rel_idx = (idx[:, None] - idx[None, :]) + window_size - 1              # (ws, ws)
    for i in range(n_layers):
        lk = jax.random.split(ks[3 + i], 9)
        rel_table = 0.02 * jax.random.normal(lk[4], (2 * window_size - 1, n_heads),
                                             jnp.float32)
        rel_bias = jnp.transpose(
            rel_table[rel_idx.reshape(-1)].reshape(window_size, window_size, n_heads),
            (2, 0, 1))                                                     # (H, ws, ws)
        lp = {
            "Wqkv": (0.02 * jax.random.normal(lk[0], (d_model, 3 * d_model), jnp.float32)
                     ).astype(jnp.bfloat16),
            "bqkv": 0.02 * jax.random.normal(lk[1], (1, 3 * d_model), jnp.float32),
            "Wproj": (0.02 * jax.random.normal(lk[2], (d_model, d_model), jnp.float32)
                      ).astype(jnp.bfloat16),
            "bproj": 0.02 * jax.random.normal(lk[3], (1, d_model), jnp.float32),
            "rel_bias": rel_bias,
            "W1": (0.02 * jax.random.normal(lk[5], (d_model, d_ff), jnp.float32)
                   ).astype(jnp.bfloat16),
            "b1": 0.02 * jax.random.normal(lk[6], (1, d_ff), jnp.float32),
            "W2": (0.02 * jax.random.normal(lk[7], (d_ff, d_model), jnp.float32)
                   ).astype(jnp.bfloat16),
            "b2": 0.02 * jax.random.normal(lk[8], (1, d_model), jnp.float32),
            "bn1_w": jnp.ones((1, d_model), jnp.float32),
            "bn1_b": jnp.zeros((1, d_model), jnp.float32),
            "bn2_w": jnp.ones((1, d_model), jnp.float32),
            "bn2_b": jnp.zeros((1, d_model), jnp.float32),
        }
        p["layers"].append(lp)
    return p


if __name__ == "__main__":
    # small config: bs=2, n_vars=3, patch_len=12, patch_num=16, d_model=32, n_heads=4,
    # d_ff=64, n_layers=2, window_size=8 (layer 0 un-shifted, layer 1 shifted)
    bs, n_vars, patch_len, patch_num = 2, 3, 12, 16
    d_model, n_heads, d_ff, n_layers, window_size = 32, 4, 64, 2, 8

    key = jax.random.PRNGKey(0)
    kx, kp = jax.random.split(key)
    x = jax.random.normal(kx, (bs, n_vars, patch_len, patch_num), jnp.float32)
    params = init_params(kp, patch_len=patch_len, patch_num=patch_num, d_model=d_model,
                         n_heads=n_heads, d_ff=d_ff, window_size=window_size,
                         n_layers=n_layers)

    # batch_tile=2 forces a multi-step grid (B = bs*n_vars = 6 -> 3 grid steps per call),
    # exercising the batch-tiled pipeline and the cross-tile BatchNorm statistics path.
    fwd = jax.jit(functools.partial(tsti_encoder_forward, window_size=window_size,
                                    n_heads=n_heads, d_model=d_model, batch_tile=2))
    z = jax.block_until_ready(fwd(x, params))
    assert z.shape == (bs, n_vars, d_model, patch_num), z.shape
    assert bool(jnp.all(jnp.isfinite(z)))
    print("KERNEL_OK")
</pallas_src>

<mosaic_0001>
module attributes {stable_mosaic.version = 11 : i64} {
  func.func @_embed_kernel(%arg0: i32, %arg1: memref<2x16x12xbf16, #tpu.memory_space<vmem>>, %arg2: memref<12x32xbf16, #tpu.memory_space<vmem>>, %arg3: memref<16x32xf32, #tpu.memory_space<vmem>>, %arg4: memref<2x16x32xf32, #tpu.memory_space<vmem>>) attributes {dimension_semantics = [#tpu.dimension_semantics<parallel>], iteration_bounds = array<i64: 3>, scalar_prefetch = 0 : i64, scratch_operands = 0 : i64, tpu.core_type = #tpu.core_type<tc>, window_params = [{transform_indices = @transform_0, window_bounds = array<i64: 2, 16, 12>}, {pipeline_mode = #tpu.pipeline_mode<synchronous>, transform_indices = @transform_1, window_bounds = array<i64: 12, 32>}, {pipeline_mode = #tpu.pipeline_mode<synchronous>, transform_indices = @transform_2, window_bounds = array<i64: 16, 32>}, {transform_indices = @transform_3, window_bounds = array<i64: 2, 16, 32>}]} {
    %c0 = arith.constant 0 : index
    %c0_0 = arith.constant 0 : index
    %c0_1 = arith.constant 0 : index
    %0 = vector.load %arg1[%c0, %c0_0, %c0_1] : memref<2x16x12xbf16, #tpu.memory_space<vmem>>, vector<2x16x12xbf16>
    %1 = vector.shape_cast %0 : vector<2x16x12xbf16> to vector<32x12xbf16>
    %c0_2 = arith.constant 0 : index
    %c0_3 = arith.constant 0 : index
    %2 = vector.load %arg2[%c0_2, %c0_3] : memref<12x32xbf16, #tpu.memory_space<vmem>>, vector<12x32xbf16>
    %cst = arith.constant dense<0.000000e+00> : vector<32x32xf32>
    %3 = tpu.matmul %1, %2, %cst {dimension_numbers = #tpu.dot_dimension_numbers<[1], [0], [0], [1], [0, 0, 1, 1], [], []>} : vector<32x12xbf16>, vector<12x32xbf16>, vector<32x32xf32> -> vector<32x32xf32>
    %4 = vector.shape_cast %3 : vector<32x32xf32> to vector<2x16x32xf32>
    %c0_4 = arith.constant 0 : index
    %c0_5 = arith.constant 0 : index
    %5 = vector.load %arg3[%c0_4, %c0_5] : memref<16x32xf32, #tpu.memory_space<vmem>>, vector<16x32xf32>
    %6 = vector.shape_cast %5 : vector<16x32xf32> to vector<1x16x32xf32>
    %7 = vector.broadcast %6 : vector<1x16x32xf32> to vector<2x16x32xf32>
    %8 = arith.addf %4, %7 : vector<2x16x32xf32>
    %c0_6 = arith.constant 0 : index
    %c0_7 = arith.constant 0 : index
    %c0_8 = arith.constant 0 : index
    %9 = vector.load %arg4[%c0_6, %c0_7, %c0_8] : memref<2x16x32xf32, #tpu.memory_space<vmem>>, vector<2x16x32xf32>
    tpu.vector_store %arg4[%c0_6, %c0_7, %c0_8], %8 {strides = array<i32>} : memref<2x16x32xf32, #tpu.memory_space<vmem>>, vector<2x16x32xf32>,
    return
  }
  func.func @transform_0(%arg0: i32) -> (i32, i32, i32) {
    %c0_i32 = arith.constant 0 : i32
    %c0_i32_0 = arith.constant 0 : i32
    %c0_i32_1 = arith.constant 0 : i32
    return %arg0, %c0_i32, %c0_i32_0 : i32, i32, i32
  }
  func.func @transform_1(%arg0: i32) -> (i32, i32) {
    %c0_i32 = arith.constant 0 : i32
    %c0_i32_0 = arith.constant 0 : i32
    %c0_i32_1 = arith.constant 0 : i32
    return %c0_i32, %c0_i32_0 : i32, i32
  }
  func.func @transform_2(%arg0: i32) -> (i32, i32) {
    %c0_i32 = arith.constant 0 : i32
    %c0_i32_0 = arith.constant 0 : i32
    %c0_i32_1 = arith.constant 0 : i32
    return %c0_i32, %c0_i32_0 : i32, i32
  }
  func.func @transform_3(%arg0: i32) -> (i32, i32, i32) {
    %c0_i32 = arith.constant 0 : i32
    %c0_i32_0 = arith.constant 0 : i32
    %c0_i32_1 = arith.constant 0 : i32
    return %arg0, %c0_i32, %c0_i32_0 : i32, i32, i32
  }
}

module attributes {stable_mosaic.version = 11 : i64} {
  func.func @_attn_res_kernel(%arg0: i32, %arg1: memref<2x16x32xf32, #tpu.memory_space<vmem>>, %arg2: memref<32x96xbf16, #tpu.memory_space<vmem>>, %arg3: memref<1x96xf32, #tpu.memory_space<vmem>>, %arg4: memref<32x32xbf16, #tpu.memory_space<vmem>>, %arg5: memref<1x32xf32, #tpu.memory_space<vmem>>, %arg6: memref<4x1x8x8xf32, #tpu.memory_space<vmem>>, %arg7: memref<2x16x32xf32, #tpu.memory_space<vmem>>, %arg8: memref<1x2x32xf32, #tpu.memory_space<vmem>>) attributes {dimension_semantics = [#tpu.dimension_semantics<parallel>], iteration_bounds = array<i64: 3>, scalar_prefetch = 0 : i64, scratch_operands = 0 : i64, tpu.core_type = #tpu.core_type<tc>, window_params = [{transform_indices = @transform_0, window_bounds = array<i64: 2, 16, 32>}, {pipeline_mode = #tpu.pipeline_mode<synchronous>, transform_indices = @transform_1, window_bounds = array<i64: 32, 96>}, {pipeline_mode = #tpu.pipeline_mode<synchronous>, transform_indices = @transform_2, window_bounds = array<i64: 1, 96>}, {pipeline_mode = #tpu.pipeline_mode<synchronous>, transform_indices = @transform_3, window_bounds = array<i64: 32, 32>}, {pipeline_mode = #tpu.pipeline_mode<synchronous>, transform_indices = @transform_4, window_bounds = array<i64: 1, 32>}, {pipeline_mode = #tpu.pipeline_mode<synchronous>, transform_indices = @transform_5, window_bounds = array<i64: 4, 1, 8, 8>}, {transform_indices = @transform_6, window_bounds = array<i64: 2, 16, 32>}, {transform_indices = @transform_7, window_bounds = array<i64: 1, 2, 32>}]} {
    %c0 = arith.constant 0 : index
    %c0_0 = arith.constant 0 : index
    %c0_1 = arith.constant 0 : index
    %0 = vector.load %arg1[%c0, %c0_0, %c0_1] : memref<2x16x32xf32, #tpu.memory_space<vmem>>, vector<2x16x32xf32>
    %c0_2 = arith.constant 0 : index
    %c0_3 = arith.constant 0 : index
    %1 = vector.load %arg2[%c0_2, %c0_3] : memref<32x96xbf16, #tpu.memory_space<vmem>>, vector<32x96xbf16>
    %c0_4 = arith.constant 0 : index
    %c0_5 = arith.constant 0 : index
    %2 = vector.load %arg3[%c0_4, %c0_5] : memref<1x96xf32, #tpu.memory_space<vmem>>, vector<1x96xf32>
    %c0_6 = arith.constant 0 : index
    %c0_7 = arith.constant 0 : index
    %3 = vector.load %arg4[%c0_6, %c0_7] : memref<32x32xbf16, #tpu.memory_space<vmem>>, vector<32x32xbf16>
    %c0_8 = arith.constant 0 : index
    %c0_9 = arith.constant 0 : index
    %4 = vector.load %arg5[%c0_8, %c0_9] : memref<1x32xf32, #tpu.memory_space<vmem>>, vector<1x32xf32>
    %c0_10 = arith.constant 0 : index
    %c0_11 = arith.constant 0 : index
    %c0_12 = arith.constant 0 : index
    %c0_13 = arith.constant 0 : index
    %5 = vector.load %arg6[%c0_10, %c0_11, %c0_12, %c0_13] : memref<4x1x8x8xf32, #tpu.memory_space<vmem>>, vector<4x1x8x8xf32>
    %6 = vector.shape_cast %0 : vector<2x16x32xf32> to vector<32x32xf32>
    %7 = arith.truncf %6 : vector<32x32xf32> to vector<32x32xbf16>
    %cst = arith.constant dense<0.000000e+00> : vector<32x96xf32>
    %8 = tpu.matmul %7, %1, %cst {dimension_numbers = #tpu.dot_dimension_numbers<[1], [0], [0], [1], [0, 0, 1, 1], [], []>} : vector<32x32xbf16>, vector<32x96xbf16>, vector<32x96xf32> -> vector<32x96xf32>
    %9 = vector.broadcast %2 : vector<1x96xf32> to vector<32x96xf32>
    %10 = arith.addf %8, %9 : vector<32x96xf32>
    %11 = arith.truncf %10 : vector<32x96xf32> to vector<32x96xbf16>
    %12 = vector.shape_cast %11 : vector<32x96xbf16> to vector<4x8x96xbf16>
    %13 = vector.extract_strided_slice %12 {offsets = [0, 0, 0], sizes = [4, 8, 8], strides = [1, 1, 1]} : vector<4x8x96xbf16> to vector<4x8x8xbf16>
    %14 = vector.extract_strided_slice %12 {offsets = [0, 0, 32], sizes = [4, 8, 8], strides = [1, 1, 1]} : vector<4x8x96xbf16> to vector<4x8x8xbf16>
    %15 = vector.extract_strided_slice %12 {offsets = [0, 0, 64], sizes = [4, 8, 8], strides = [1, 1, 1]} : vector<4x8x96xbf16> to vector<4x8x8xbf16>
    "tpu.trace_start"() <{level = 10 : i32, message = "bqd,bkd->bqk"}> : () -> ()
    %cst_14 = arith.constant dense<0.000000e+00> : vector<4x8x8xf32>
    %16 = tpu.matmul %13, %14, %cst_14 {dimension_numbers = #tpu.dot_dimension_numbers<[2], [2], [1], [1], [0, 0, 0, 1, 1, 1], [0], [0]>} : vector<4x8x8xbf16>, vector<4x8x8xbf16>, vector<4x8x8xf32> -> vector<4x8x8xf32>
    "tpu.trace_stop"() : () -> ()
    %cst_15 = arith.constant 0.353553385 : f32
    %17 = vector.broadcast %cst_15 : f32 to vector<4x8x8xf32>
    %18 = arith.mulf %16, %17 : vector<4x8x8xf32>
    %19 = vector.shape_cast %18 : vector<4x8x8xf32> to vector<2x2x8x8xf32>
    %20 = vector.extract_strided_slice %5 {offsets = [0, 0, 0, 0], sizes = [1, 1, 8, 8], strides = [1, 1, 1, 1]} : vector<4x1x8x8xf32> to vector<1x1x8x8xf32>
    %21 = vector.shape_cast %20 : vector<1x1x8x8xf32> to vector<1x8x8xf32>
    %22 = vector.shape_cast %21 : vector<1x8x8xf32> to vector<1x1x8x8xf32>
    %23 = vector.broadcast %22 : vector<1x1x8x8xf32> to vector<2x2x8x8xf32>
    %24 = arith.addf %19, %23 : vector<2x2x8x8xf32>
    %25 = vector.shape_cast %24 : vector<2x2x8x8xf32> to vector<4x8x8xf32>
    %cst_16 = arith.constant dense<0xFF800000> : vector<4x8xf32>
    %26 = vector.multi_reduction <maximumf>, %25, %cst_16 [2] : vector<4x8x8xf32> to vector<4x8xf32>
    %27 = vector.shape_cast %26 : vector<4x8xf32> to vector<4x8x1xf32>
    %28 = vector.broadcast %27 : vector<4x8x1xf32> to vector<4x8x8xf32>
    %29 = arith.subf %25, %28 : vector<4x8x8xf32>
    %30 = math.exp %29 : vector<4x8x8xf32>
    %cst_17 = arith.constant dense<0.000000e+00> : vector<4x8xf32>
    %31 = vector.multi_reduction <add>, %30, %cst_17 [2] : vector<4x8x8xf32> to vector<4x8xf32>
    %32 = vector.shape_cast %31 : vector<4x8xf32> to vector<4x8x1xf32>
    %33 = vector.broadcast %32 : vector<4x8x1xf32> to vector<4x8x8xf32>
    %34 = arith.divf %30, %33 : vector<4x8x8xf32>
    %35 = arith.truncf %34 : vector<4x8x8xf32> to vector<4x8x8xbf16>
    "tpu.trace_start"() <{level = 10 : i32, message = "bqk,bkd->bqd"}> : () -> ()
    %cst_18 = arith.constant dense<0.000000e+00> : vector<4x8x8xf32>
    %36 = tpu.matmul %35, %15, %cst_18 {dimension_numbers = #tpu.dot_dimension_numbers<[2], [1], [1], [2], [0, 0, 0, 1, 1, 2], [0], [0]>} : vector<4x8x8xbf16>, vector<4x8x8xbf16>, vector<4x8x8xf32> -> vector<4x8x8xf32>
    "tpu.trace_stop"() : () -> ()
    %37 = vector.extract_strided_slice %12 {offsets = [0, 0, 8], sizes = [4, 8, 8], strides = [1, 1, 1]} : vector<4x8x96xbf16> to vector<4x8x8xbf16>
    %38 = vector.extract_strided_slice %12 {offsets = [0, 0, 40], sizes = [4, 8, 8], strides = [1, 1, 1]} : vector<4x8x96xbf16> to vector<4x8x8xbf16>
    %39 = vector.extract_strided_slice %12 {offsets = [0, 0, 72], sizes = [4, 8, 8], strides = [1, 1, 1]} : vector<4x8x96xbf16> to vector<4x8x8xbf16>
    "tpu.trace_start"() <{level = 10 : i32, message = "bqd,bkd->bqk"}> : () -> ()
    %cst_19 = arith.constant dense<0.000000e+00> : vector<4x8x8xf32>
    %40 = tpu.matmul %37, %38, %cst_19 {dimension_numbers = #tpu.dot_dimension_numbers<[2], [2], [1], [1], [0, 0, 0, 1, 1, 1], [0], [0]>} : vector<4x8x8xbf16>, vector<4x8x8xbf16>, vector<4x8x8xf32> -> vector<4x8x8xf32>
    "tpu.trace_stop"() : () -> ()
    %cst_20 = arith.constant 0.353553385 : f32
    %41 = vector.broadcast %cst_20 : f32 to vector<4x8x8xf32>
    %42 = arith.mulf %40, %41 : vector<4x8x8xf32>
    %43 = vector.shape_cast %42 : vector<4x8x8xf32> to vector<2x2x8x8xf32>
    %44 = vector.extract_strided_slice %5 {offsets = [1, 0, 0, 0], sizes = [1, 1, 8, 8], strides = [1, 1, 1, 1]} : vector<4x1x8x8xf32> to vector<1x1x8x8xf32>
    %45 = vector.shape_cast %44 : vector<1x1x8x8xf32> to vector<1x8x8xf32>
    %46 = vector.shape_cast %45 : vector<1x8x8xf32> to vector<1x1x8x8xf32>
    %47 = vector.broadcast %46 : vector<1x1x8x8xf32> to vector<2x2x8x8xf32>
    %48 = arith.addf %43, %47 : vector<2x2x8x8xf32>
    %49 = vector.shape_cast %48 : vector<2x2x8x8xf32> to vector<4x8x8xf32>
    %cst_21 = arith.constant dense<0xFF800000> : vector<4x8xf32>
    %50 = vector.multi_reduction <maximumf>, %49, %cst_21 [2] : vector<4x8x8xf32> to vector<4x8xf32>
    %51 = vector.shape_cast %50 : vector<4x8xf32> to vector<4x8x1xf32>
    %52 = vector.broadcast %51 : vector<4x8x1xf32> to vector<4x8x8xf32>
    %53 = arith.subf %49, %52 : vector<4x8x8xf32>
    %54 = math.exp %53 : vector<4x8x8xf32>
    %cst_22 = arith.constant dense<0.000000e+00> : vector<4x8xf32>
    %55 = vector.multi_reduction <add>, %54, %cst_22 [2] : vector<4x8x8xf32> to vector<4x8xf32>
    %56 = vector.shape_cast %55 : vector<4x8xf32> to vector<4x8x1xf32>
    %57 = vector.broadcast %56 : vector<4x8x1xf32> to vector<4x8x8xf32>
    %58 = arith.divf %54, %57 : vector<4x8x8xf32>
    %59 = arith.truncf %58 : vector<4x8x8xf32> to vector<4x8x8xbf16>
    "tpu.trace_start"() <{level = 10 : i32, message = "bqk,bkd->bqd"}> : () -> ()
    %cst_23 = arith.constant dense<0.000000e+00> : vector<4x8x8xf32>
    %60 = tpu.matmul %59, %39, %cst_23 {dimension_numbers = #tpu.dot_dimension_numbers<[2], [1], [1], [2], [0, 0, 0, 1, 1, 2], [0], [0]>} : vector<4x8x8xbf16>, vector<4x8x8xbf16>, vector<4x8x8xf32> -> vector<4x8x8xf32>
    "tpu.trace_stop"() : () -> ()
    %61 = vector.extract_strided_slice %12 {offsets = [0, 0, 16], sizes = [4, 8, 8], strides = [1, 1, 1]} : vector<4x8x96xbf16> to vector<4x8x8xbf16>
    %62 = vector.extract_strided_slice %12 {offsets = [0, 0, 48], sizes = [4, 8, 8], strides = [1, 1, 1]} : vector<4x8x96xbf16> to vector<4x8x8xbf16>
    %63 = vector.extract_strided_slice %12 {offsets = [0, 0, 80], sizes = [4, 8, 8], strides = [1, 1, 1]} : vector<4x8x96xbf16> to vector<4x8x8xbf16>
    "tpu.trace_start"() <{level = 10 : i32, message = "bqd,bkd->bqk"}> : () -> ()
    %cst_24 = arith.constant dense<0.000000e+00> : vector<4x8x8xf32>
    %64 = tpu.matmul %61, %62, %cst_24 {dimension_numbers = #tpu.dot_dimension_numbers<[2], [2], [1], [1], [0, 0, 0, 1, 1, 1], [0], [0]>} : vector<4x8x8xbf16>, vector<4x8x8xbf16>, vector<4x8x8xf32> -> vector<4x8x8xf32>
    "tpu.trace_stop"() : () -> ()
    %cst_25 = arith.constant 0.353553385 : f32
    %65 = vector.broadcast %cst_25 : f32 to vector<4x8x8xf32>
    %66 = arith.mulf %64, %65 : vector<4x8x8xf32>
    %67 = vector.shape_cast %66 : vector<4x8x8xf32> to vector<2x2x8x8xf32>
    %68 = vector.extract_strided_slice %5 {offsets = [2, 0, 0, 0], sizes = [1, 1, 8, 8], strides = [1, 1, 1, 1]} : vector<4x1x8x8xf32> to vector<1x1x8x8xf32>
    %69 = vector.shape_cast %68 : vector<1x1x8x8xf32> to vector<1x8x8xf32>
    %70 = vector.shape_cast %69 : vector<1x8x8xf32> to vector<1x1x8x8xf32>
    %71 = vector.broadcast %70 : vector<1x1x8x8xf32> to vector<2x2x8x8xf32>
    %72 = arith.addf %67, %71 : vector<2x2x8x8xf32>
    %73 = vector.shape_cast %72 : vector<2x2x8x8xf32> to vector<4x8x8xf32>
    %cst_26 = arith.constant dense<0xFF800000> : vector<4x8xf32>
    %74 = vector.multi_reduction <maximumf>, %73, %cst_26 [2] : vector<4x8x8xf32> to vector<4x8xf32>
    %75 = vector.shape_cast %74 : vector<4x8xf32> to vector<4x8x1xf32>
    %76 = vector.broadcast %75 : vector<4x8x1xf32> to vector<4x8x8xf32>
    %77 = arith.subf %73, %76 : vector<4x8x8xf32>
    %78 = math.exp %77 : vector<4x8x8xf32>
    %cst_27 = arith.constant dense<0.000000e+00> : vector<4x8xf32>
    %79 = vector.multi_reduction <add>, %78, %cst_27 [2] : vector<4x8x8xf32> to vector<4x8xf32>
    %80 = vector.shape_cast %79 : vector<4x8xf32> to vector<4x8x1xf32>
    %81 = vector.broadcast %80 : vector<4x8x1xf32> to vector<4x8x8xf32>
    %82 = arith.divf %78, %81 : vector<4x8x8xf32>
    %83 = arith.truncf %82 : vector<4x8x8xf32> to vector<4x8x8xbf16>
    "tpu.trace_start"() <{level = 10 : i32, message = "bqk,bkd->bqd"}> : () -> ()
    %cst_28 = arith.constant dense<0.000000e+00> : vector<4x8x8xf32>
    %84 = tpu.matmul %83, %63, %cst_28 {dimension_numbers = #tpu.dot_dimension_numbers<[2], [1], [1], [2], [0, 0, 0, 1, 1, 2], [0], [0]>} : vector<4x8x8xbf16>, vector<4x8x8xbf16>, vector<4x8x8xf32> -> vector<4x8x8xf32>
    "tpu.trace_stop"() : () -> ()
    %85 = vector.extract_strided_slice %12 {offsets = [0, 0, 24], sizes = [4, 8, 8], strides = [1, 1, 1]} : vector<4x8x96xbf16> to vector<4x8x8xbf16>
    %86 = vector.extract_strided_slice %12 {offsets = [0, 0, 56], sizes = [4, 8, 8], strides = [1, 1, 1]} : vector<4x8x96xbf16> to vector<4x8x8xbf16>
    %87 = vector.extract_strided_slice %12 {offsets = [0, 0, 88], sizes = [4, 8, 8], strides = [1, 1, 1]} : vector<4x8x96xbf16> to vector<4x8x8xbf16>
    "tpu.trace_start"() <{level = 10 : i32, message = "bqd,bkd->bqk"}> : () -> ()
    %cst_29 = arith.constant dense<0.000000e+00> : vector<4x8x8xf32>
    %88 = tpu.matmul %85, %86, %cst_29 {dimension_numbers = #tpu.dot_dimension_numbers<[2], [2], [1], [1], [0, 0, 0, 1, 1, 1], [0], [0]>} : vector<4x8x8xbf16>, vector<4x8x8xbf16>, vector<4x8x8xf32> -> vector<4x8x8xf32>
    "tpu.trace_stop"() : () -> ()
    %cst_30 = arith.constant 0.353553385 : f32
    %89 = vector.broadcast %cst_30 : f32 to vector<4x8x8xf32>
    %90 = arith.mulf %88, %89 : vector<4x8x8xf32>
    %91 = vector.shape_cast %90 : vector<4x8x8xf32> to vector<2x2x8x8xf32>
    %92 = vector.extract_strided_slice %5 {offsets = [3, 0, 0, 0], sizes = [1, 1, 8, 8], strides = [1, 1, 1, 1]} : vector<4x1x8x8xf32> to vector<1x1x8x8xf32>
    %93 = vector.shape_cast %92 : vector<1x1x8x8xf32> to vector<1x8x8xf32>
    %94 = vector.shape_cast %93 : vector<1x8x8xf32> to vector<1x1x8x8xf32>
    %95 = vector.broadcast %94 : vector<1x1x8x8xf32> to vector<2x2x8x8xf32>
    %96 = arith.addf %91, %95 : vector<2x2x8x8xf32>
    %97 = vector.shape_cast %96 : vector<2x2x8x8xf32> to vector<4x8x8xf32>
    %cst_31 = arith.constant dense<0xFF800000> : vector<4x8xf32>
    %98 = vector.multi_reduction <maximumf>, %97, %cst_31 [2] : vector<4x8x8xf32> to vector<4x8xf32>
    %99 = vector.shape_cast %98 : vector<4x8xf32> to vector<4x8x1xf32>
    %100 = vector.broadcast %99 : vector<4x8x1xf32> to vector<4x8x8xf32>
    %101 = arith.subf %97, %100 : vector<4x8x8xf32>
    %102 = math.exp %101 : vector<4x8x8xf32>
    %cst_32 = arith.constant dense<0.000000e+00> : vector<4x8xf32>
    %103 = vector.multi_reduction <add>, %102, %cst_32 [2] : vector<4x8x8xf32> to vector<4x8xf32>
    %104 = vector.shape_cast %103 : vector<4x8xf32> to vector<4x8x1xf32>
    %105 = vector.broadcast %104 : vector<4x8x1xf32> to vector<4x8x8xf32>
    %106 = arith.divf %102, %105 : vector<4x8x8xf32>
    %107 = arith.truncf %106 : vector<4x8x8xf32> to vector<4x8x8xbf16>
    "tpu.trace_start"() <{level = 10 : i32, message = "bqk,bkd->bqd"}> : () -> ()
    %cst_33 = arith.constant dense<0.000000e+00> : vector<4x8x8xf32>
    %108 = tpu.matmul %107, %87, %cst_33 {dimension_numbers = #tpu.dot_dimension_numbers<[2], [1], [1], [2], [0, 0, 0, 1, 1, 2], [0], [0]>} : vector<4x8x8xbf16>, vector<4x8x8xbf16>, vector<4x8x8xf32> -> vector<4x8x8xf32>
    "tpu.trace_stop"() : () -> ()
    %109 = tpu.concatenate %36, %60, %84, %108 in 2 : vector<4x8x8xf32>, vector<4x8x8xf32>, vector<4x8x8xf32>, vector<4x8x8xf32> -> vector<4x8x32xf32>
    %110 = vector.shape_cast %109 : vector<4x8x32xf32> to vector<32x32xf32>
    %111 = arith.truncf %110 : vector<32x32xf32> to vector<32x32xbf16>
    %cst_34 = arith.constant dense<0.000000e+00> : vector<32x32xf32>
    %112 = tpu.matmul %111, %3, %cst_34 {dimension_numbers = #tpu.dot_dimension_numbers<[1], [0], [0], [1], [0, 0, 1, 1], [], []>} : vector<32x32xbf16>, vector<32x32xbf16>, vector<32x32xf32> -> vector<32x32xf32>
    %113 = vector.broadcast %4 : vector<1x32xf32> to vector<32x32xf32>
    %114 = arith.addf %112, %113 : vector<32x32xf32>
    %115 = vector.shape_cast %114 : vector<32x32xf32> to vector<2x16x32xf32>
    %116 = arith.addf %0, %115 : vector<2x16x32xf32>
    %c0_35 = arith.constant 0 : index
    %c0_36 = arith.constant 0 : index
    %c0_37 = arith.constant 0 : index
    %117 = vector.load %arg7[%c0_35, %c0_36, %c0_37] : memref<2x16x32xf32, #tpu.memory_space<vmem>>, vector<2x16x32xf32>
    tpu.vector_store %arg7[%c0_35, %c0_36, %c0_37], %116 {strides = array<i32>} : memref<2x16x32xf32, #tpu.memory_space<vmem>>, vector<2x16x32xf32>,
    %118 = vector.shape_cast %116 : vector<2x16x32xf32> to vector<32x32xf32>
    %cst_38 = arith.constant dense<0.000000e+00> : vector<32xf32>
    %119 = vector.multi_reduction <add>, %118, %cst_38 [0] : vector<32x32xf32> to vector<32xf32>
    %120 = vector.shape_cast %119 : vector<32xf32> to vector<1x32xf32>
    %121 = vector.shape_cast %120 : vector<1x32xf32> to vector<1x1x32xf32>
    %c0_39 = arith.constant 0 : index
    %c0_40 = arith.constant 0 : index
    %c0_41 = arith.constant 0 : index
    %122 = vector.load %arg8[%c0_39, %c0_40, %c0_41] : memref<1x2x32xf32, #tpu.memory_space<vmem>>, vector<1x1x32xf32>
    tpu.vector_store %arg8[%c0_39, %c0_40, %c0_41], %121 {strides = array<i32>} : memref<1x2x32xf32, #tpu.memory_space<vmem>>, vector<1x1x32xf32>,
    %123 = arith.mulf %118, %118 : vector<32x32xf32>
    %cst_42 = arith.constant dense<0.000000e+00> : vector<32xf32>
    %124 = vector.multi_reduction <add>, %123, %cst_42 [0] : vector<32x32xf32> to vector<32xf32>
    %125 = vector.shape_cast %124 : vector<32xf32> to vector<1x32xf32>
    %126 = vector.shape_cast %125 : vector<1x32xf32> to vector<1x1x32xf32>
    %c0_43 = arith.constant 0 : index
    %c1 = arith.constant 1 : index
    %c0_44 = arith.constant 0 : index
    %127 = vector.load %arg8[%c0_43, %c1, %c0_44] : memref<1x2x32xf32, #tpu.memory_space<vmem>>, vector<1x1x32xf32>
    tpu.vector_store %arg8[%c0_43, %c1, %c0_44], %126 {strides = array<i32>} : memref<1x2x32xf32, #tpu.memory_space<vmem>>, vector<1x1x32xf32>,
    return
  }
  func.func @transform_0(%arg0: i32) -> (i32, i32, i32) {
    %c0_i32 = arith.constant 0 : i32
    %c0_i32_0 = arith.constant 0 : i32
    %c0_i32_1 = arith.constant 0 : i32
    return %arg0, %c0_i32, %c0_i32_0 : i32, i32, i32
  }
  func.func @transform_1(%arg0: i32) -> (i32, i32) {
    %c0_i32 = arith.constant 0 : i32
    %c0_i32_0 = arith.constant 0 : i32
    %c0_i32_1 = arith.constant 0 : i32
    return %c0_i32, %c0_i32_0 : i32, i32
  }
  func.func @transform_2(%arg0: i32) -> (i32, i32) {
    %c0_i32 = arith.constant 0 : i32
    %c0_i32_0 = arith.constant 0 : i32
    %c0_i32_1 = arith.constant 0 : i32
    return %c0_i32, %c0_i32_0 : i32, i32
  }
  func.func @transform_3(%arg0: i32) -> (i32, i32) {
    %c0_i32 = arith.constant 0 : i32
    %c0_i32_0 = arith.constant 0 : i32
    %c0_i32_1 = arith.constant 0 : i32
    return %c0_i32, %c0_i32_0 : i32, i32
  }
  func.func @transform_4(%arg0: i32) -> (i32, i32) {
    %c0_i32 = arith.constant 0 : i32
    %c0_i32_0 = arith.constant 0 : i32
    %c0_i32_1 = arith.constant 0 : i32
    return %c0_i32, %c0_i32_0 : i32, i32
  }
  func.func @transform_5(%arg0: i32) -> (i32, i32, i32, i32) {
    %c0_i32 = arith.constant 0 : i32
    %c0_i32_0 = arith.constant 0 : i32
    %c0_i32_1 = arith.constant 0 : i32
    %c0_i32_2 = arith.constant 0 : i32
    %c0_i32_3 = arith.constant 0 : i32
    return %c0_i32, %c0_i32_0, %c0_i32_1, %c0_i32_2 : i32, i32, i32, i32
  }
  func.func @transform_6(%arg0: i32) -> (i32, i32, i32) {
    %c0_i32 = arith.constant 0 : i32
    %c0_i32_0 = arith.constant 0 : i32
    %c0_i32_1 = arith.constant 0 : i32
    return %arg0, %c0_i32, %c0_i32_0 : i32, i32, i32
  }
  func.func @transform_7(%arg0: i32) -> (i32, i32, i32) {
    %c0_i32 = arith.constant 0 : i32
    %c0_i32_0 = arith.constant 0 : i32
    %c0_i32_1 = arith.constant 0 : i32
    return %arg0, %c0_i32, %c0_i32_0 : i32, i32, i32
  }
}

module attributes {stable_mosaic.version = 11 : i64} {
  func.func @_ffn_res_kernel(%arg0: i32, %arg1: memref<2x16x32xf32, #tpu.memory_space<vmem>>, %arg2: memref<4x32xf32, #tpu.memory_space<vmem>>, %arg3: memref<32x64xbf16, #tpu.memory_space<vmem>>, %arg4: memref<1x64xf32, #tpu.memory_space<vmem>>, %arg5: memref<64x32xbf16, #tpu.memory_space<vmem>>, %arg6: memref<1x32xf32, #tpu.memory_space<vmem>>, %arg7: memref<2x16x32xf32, #tpu.memory_space<vmem>>, %arg8: memref<1x2x32xf32, #tpu.memory_space<vmem>>) attributes {dimension_semantics = [#tpu.dimension_semantics<parallel>], iteration_bounds = array<i64: 3>, scalar_prefetch = 0 : i64, scratch_operands = 0 : i64, tpu.core_type = #tpu.core_type<tc>, window_params = [{transform_indices = @transform_0, window_bounds = array<i64: 2, 16, 32>}, {pipeline_mode = #tpu.pipeline_mode<synchronous>, transform_indices = @transform_1, window_bounds = array<i64: 4, 32>}, {pipeline_mode = #tpu.pipeline_mode<synchronous>, transform_indices = @transform_2, window_bounds = array<i64: 32, 64>}, {pipeline_mode = #tpu.pipeline_mode<synchronous>, transform_indices = @transform_3, window_bounds = array<i64: 1, 64>}, {pipeline_mode = #tpu.pipeline_mode<synchronous>, transform_indices = @transform_4, window_bounds = array<i64: 64, 32>}, {pipeline_mode = #tpu.pipeline_mode<synchronous>, transform_indices = @transform_5, window_bounds = array<i64: 1, 32>}, {transform_indices = @transform_6, window_bounds = array<i64: 2, 16, 32>}, {transform_indices = @transform_7, window_bounds = array<i64: 1, 2, 32>}]} {
    %c0 = arith.constant 0 : index
    %c0_0 = arith.constant 0 : index
    %c0_1 = arith.constant 0 : index
    %0 = vector.load %arg1[%c0, %c0_0, %c0_1] : memref<2x16x32xf32, #tpu.memory_space<vmem>>, vector<2x16x32xf32>
    %1 = vector.shape_cast %0 : vector<2x16x32xf32> to vector<32x32xf32>
    %c0_2 = arith.constant 0 : index
    %c0_3 = arith.constant 0 : index
    %2 = vector.load %arg2[%c0_2, %c0_3] : memref<4x32xf32, #tpu.memory_space<vmem>>, vector<4x32xf32>
    %3 = vector.extract_strided_slice %2 {offsets = [0, 0], sizes = [1, 32], strides = [1, 1]} : vector<4x32xf32> to vector<1x32xf32>
    %4 = vector.broadcast %3 : vector<1x32xf32> to vector<32x32xf32>
    %5 = arith.subf %1, %4 : vector<32x32xf32>
    %6 = vector.extract_strided_slice %2 {offsets = [1, 0], sizes = [1, 32], strides = [1, 1]} : vector<4x32xf32> to vector<1x32xf32>
    %7 = vector.broadcast %6 : vector<1x32xf32> to vector<32x32xf32>
    %8 = arith.mulf %5, %7 : vector<32x32xf32>
    %9 = vector.extract_strided_slice %2 {offsets = [2, 0], sizes = [1, 32], strides = [1, 1]} : vector<4x32xf32> to vector<1x32xf32>
    %10 = vector.broadcast %9 : vector<1x32xf32> to vector<32x32xf32>
    %11 = arith.mulf %8, %10 : vector<32x32xf32>
    %12 = vector.extract_strided_slice %2 {offsets = [3, 0], sizes = [1, 32], strides = [1, 1]} : vector<4x32xf32> to vector<1x32xf32>
    %13 = vector.broadcast %12 : vector<1x32xf32> to vector<32x32xf32>
    %14 = arith.addf %11, %13 : vector<32x32xf32>
    %15 = arith.truncf %14 : vector<32x32xf32> to vector<32x32xbf16>
    %c0_4 = arith.constant 0 : index
    %c0_5 = arith.constant 0 : index
    %16 = vector.load %arg3[%c0_4, %c0_5] : memref<32x64xbf16, #tpu.memory_space<vmem>>, vector<32x64xbf16>
    %cst = arith.constant dense<0.000000e+00> : vector<32x64xf32>
    %17 = tpu.matmul %15, %16, %cst {dimension_numbers = #tpu.dot_dimension_numbers<[1], [0], [0], [1], [0, 0, 1, 1], [], []>} : vector<32x32xbf16>, vector<32x64xbf16>, vector<32x64xf32> -> vector<32x64xf32>
    %c0_6 = arith.constant 0 : index
    %c0_7 = arith.constant 0 : index
    %18 = vector.load %arg4[%c0_6, %c0_7] : memref<1x64xf32, #tpu.memory_space<vmem>>, vector<1x64xf32>
    %19 = vector.broadcast %18 : vector<1x64xf32> to vector<32x64xf32>
    %20 = arith.addf %17, %19 : vector<32x64xf32>
    %cst_8 = arith.constant 5.000000e-01 : f32
    %21 = vector.broadcast %cst_8 : f32 to vector<32x64xf32>
    %22 = arith.mulf %21, %20 : vector<32x64xf32>
    %cst_9 = arith.constant 4.471500e-02 : f32
    %23 = vector.broadcast %cst_9 : f32 to vector<32x64xf32>
    %24 = arith.mulf %23, %20 : vector<32x64xf32>
    %25 = arith.mulf %24, %20 : vector<32x64xf32>
    %26 = arith.mulf %25, %20 : vector<32x64xf32>
    %27 = arith.addf %20, %26 : vector<32x64xf32>
    %cst_10 = arith.constant 0.797884583 : f32
    %28 = vector.broadcast %cst_10 : f32 to vector<32x64xf32>
    %29 = arith.mulf %28, %27 : vector<32x64xf32>
    %30 = math.tanh %29 : vector<32x64xf32>
    %cst_11 = arith.constant 1.000000e+00 : f32
    %31 = vector.broadcast %cst_11 : f32 to vector<32x64xf32>
    %32 = arith.addf %31, %30 : vector<32x64xf32>
    %33 = arith.mulf %22, %32 : vector<32x64xf32>
    %34 = arith.truncf %33 : vector<32x64xf32> to vector<32x64xbf16>
    %c0_12 = arith.constant 0 : index
    %c0_13 = arith.constant 0 : index
    %35 = vector.load %arg5[%c0_12, %c0_13] : memref<64x32xbf16, #tpu.memory_space<vmem>>, vector<64x32xbf16>
    %cst_14 = arith.constant dense<0.000000e+00> : vector<32x32xf32>
    %36 = tpu.matmul %34, %35, %cst_14 {dimension_numbers = #tpu.dot_dimension_numbers<[1], [0], [0], [1], [0, 0, 1, 1], [], []>} : vector<32x64xbf16>, vector<64x32xbf16>, vector<32x32xf32> -> vector<32x32xf32>
    %c0_15 = arith.constant 0 : index
    %c0_16 = arith.constant 0 : index
    %37 = vector.load %arg6[%c0_15, %c0_16] : memref<1x32xf32, #tpu.memory_space<vmem>>, vector<1x32xf32>
    %38 = vector.broadcast %37 : vector<1x32xf32> to vector<32x32xf32>
    %39 = arith.addf %36, %38 : vector<32x32xf32>
    %40 = arith.addf %14, %39 : vector<32x32xf32>
    %41 = vector.shape_cast %40 : vector<32x32xf32> to vector<2x16x32xf32>
    %c0_17 = arith.constant 0 : index
    %c0_18 = arith.constant 0 : index
    %c0_19 = arith.constant 0 : index
    %42 = vector.load %arg7[%c0_17, %c0_18, %c0_19] : memref<2x16x32xf32, #tpu.memory_space<vmem>>, vector<2x16x32xf32>
    tpu.vector_store %arg7[%c0_17, %c0_18, %c0_19], %41 {strides = array<i32>} : memref<2x16x32xf32, #tpu.memory_space<vmem>>, vector<2x16x32xf32>,
    %cst_20 = arith.constant dense<0.000000e+00> : vector<32xf32>
    %43 = vector.multi_reduction <add>, %40, %cst_20 [0] : vector<32x32xf32> to vector<32xf32>
    %44 = vector.shape_cast %43 : vector<32xf32> to vector<1x32xf32>
    %45 = vector.shape_cast %44 : vector<1x32xf32> to vector<1x1x32xf32>
    %c0_21 = arith.constant 0 : index
    %c0_22 = arith.constant 0 : index
    %c0_23 = arith.constant 0 : index
    %46 = vector.load %arg8[%c0_21, %c0_22, %c0_23] : memref<1x2x32xf32, #tpu.memory_space<vmem>>, vector<1x1x32xf32>
    tpu.vector_store %arg8[%c0_21, %c0_22, %c0_23], %45 {strides = array<i32>} : memref<1x2x32xf32, #tpu.memory_space<vmem>>, vector<1x1x32xf32>,
    %47 = arith.mulf %40, %40 : vector<32x32xf32>
    %cst_24 = arith.constant dense<0.000000e+00> : vector<32xf32>
    %48 = vector.multi_reduction <add>, %47, %cst_24 [0] : vector<32x32xf32> to vector<32xf32>
    %49 = vector.shape_cast %48 : vector<32xf32> to vector<1x32xf32>
    %50 = vector.shape_cast %49 : vector<1x32xf32> to vector<1x1x32xf32>
    %c0_25 = arith.constant 0 : index
    %c1 = arith.constant 1 : index
    %c0_26 = arith.constant 0 : index
    %51 = vector.load %arg8[%c0_25, %c1, %c0_26] : memref<1x2x32xf32, #tpu.memory_space<vmem>>, vector<1x1x32xf32>
    tpu.vector_store %arg8[%c0_25, %c1, %c0_26], %50 {strides = array<i32>} : memref<1x2x32xf32, #tpu.memory_space<vmem>>, vector<1x1x32xf32>,
    return
  }
  func.func @transform_0(%arg0: i32) -> (i32, i32, i32) {
    %c0_i32 = arith.constant 0 : i32
    %c0_i32_0 = arith.constant 0 : i32
    %c0_i32_1 = arith.constant 0 : i32
    return %arg0, %c0_i32, %c0_i32_0 : i32, i32, i32
  }
  func.func @transform_1(%arg0: i32) -> (i32, i32) {
    %c0_i32 = arith.constant 0 : i32
    %c0_i32_0 = arith.constant 0 : i32
    %c0_i32_1 = arith.constant 0 : i32
    return %c0_i32, %c0_i32_0 : i32, i32
  }
  func.func @transform_2(%arg0: i32) -> (i32, i32) {
    %c0_i32 = arith.constant 0 : i32
    %c0_i32_0 = arith.constant 0 : i32
    %c0_i32_1 = arith.constant 0 : i32
    return %c0_i32, %c0_i32_0 : i32, i32
  }
  func.func @transform_3(%arg0: i32) -> (i32, i32) {
    %c0_i32 = arith.constant 0 : i32
    %c0_i32_0 = arith.constant 0 : i32
    %c0_i32_1 = arith.constant 0 : i32
    return %c0_i32, %c0_i32_0 : i32, i32
  }
  func.func @transform_4(%arg0: i32) -> (i32, i32) {
    %c0_i32 = arith.constant 0 : i32
    %c0_i32_0 = arith.constant 0 : i32
    %c0_i32_1 = arith.constant 0 : i32
    return %c0_i32, %c0_i32_0 : i32, i32
  }
  func.func @transform_5(%arg0: i32) -> (i32, i32) {
    %c0_i32 = arith.constant 0 : i32
    %c0_i32_0 = arith.constant 0 : i32
    %c0_i32_1 = arith.constant 0 : i32
    return %c0_i32, %c0_i32_0 : i32, i32
  }
  func.func @transform_6(%arg0: i32) -> (i32, i32, i32) {
    %c0_i32 = arith.constant 0 : i32
    %c0_i32_0 = arith.constant 0 : i32
    %c0_i32_1 = arith.constant 0 : i32
    return %arg0, %c0_i32, %c0_i32_0 : i32, i32, i32
  }
  func.func @transform_7(%arg0: i32) -> (i32, i32, i32) {
    %c0_i32 = arith.constant 0 : i32
    %c0_i32_0 = arith.constant 0 : i32
    %c0_i32_1 = arith.constant 0 : i32
    return %arg0, %c0_i32, %c0_i32_0 : i32, i32, i32
  }
}

module attributes {stable_mosaic.version = 11 : i64} {
  func.func @_bn_kernel(%arg0: i32, %arg1: memref<2x16x32xf32, #tpu.memory_space<vmem>>, %arg2: memref<4x32xf32, #tpu.memory_space<vmem>>, %arg3: memref<2x16x32xf32, #tpu.memory_space<vmem>>) attributes {dimension_semantics = [#tpu.dimension_semantics<parallel>], iteration_bounds = array<i64: 3>, scalar_prefetch = 0 : i64, scratch_operands = 0 : i64, tpu.core_type = #tpu.core_type<tc>, window_params = [{transform_indices = @transform_0, window_bounds = array<i64: 2, 16, 32>}, {pipeline_mode = #tpu.pipeline_mode<synchronous>, transform_indices = @transform_1, window_bounds = array<i64: 4, 32>}, {transform_indices = @transform_2, window_bounds = array<i64: 2, 16, 32>}]} {
    %c0 = arith.constant 0 : index
    %c0_0 = arith.constant 0 : index
    %c0_1 = arith.constant 0 : index
    %0 = vector.load %arg1[%c0, %c0_0, %c0_1] : memref<2x16x32xf32, #tpu.memory_space<vmem>>, vector<2x16x32xf32>
    %1 = vector.shape_cast %0 : vector<2x16x32xf32> to vector<32x32xf32>
    %c0_2 = arith.constant 0 : index
    %c0_3 = arith.constant 0 : index
    %2 = vector.load %arg2[%c0_2, %c0_3] : memref<4x32xf32, #tpu.memory_space<vmem>>, vector<4x32xf32>
    %3 = vector.extract_strided_slice %2 {offsets = [0, 0], sizes = [1, 32], strides = [1, 1]} : vector<4x32xf32> to vector<1x32xf32>
    %4 = vector.broadcast %3 : vector<1x32xf32> to vector<32x32xf32>
    %5 = arith.subf %1, %4 : vector<32x32xf32>
    %6 = vector.extract_strided_slice %2 {offsets = [1, 0], sizes = [1, 32], strides = [1, 1]} : vector<4x32xf32> to vector<1x32xf32>
    %7 = vector.broadcast %6 : vector<1x32xf32> to vector<32x32xf32>
    %8 = arith.mulf %5, %7 : vector<32x32xf32>
    %9 = vector.extract_strided_slice %2 {offsets = [2, 0], sizes = [1, 32], strides = [1, 1]} : vector<4x32xf32> to vector<1x32xf32>
    %10 = vector.broadcast %9 : vector<1x32xf32> to vector<32x32xf32>
    %11 = arith.mulf %8, %10 : vector<32x32xf32>
    %12 = vector.extract_strided_slice %2 {offsets = [3, 0], sizes = [1, 32], strides = [1, 1]} : vector<4x32xf32> to vector<1x32xf32>
    %13 = vector.broadcast %12 : vector<1x32xf32> to vector<32x32xf32>
    %14 = arith.addf %11, %13 : vector<32x32xf32>
    %15 = vector.shape_cast %14 : vector<32x32xf32> to vector<2x16x32xf32>
    %c0_4 = arith.constant 0 : index
    %c0_5 = arith.constant 0 : index
    %c0_6 = arith.constant 0 : index
    %16 = vector.load %arg3[%c0_4, %c0_5, %c0_6] : memref<2x16x32xf32, #tpu.memory_space<vmem>>, vector<2x16x32xf32>
    tpu.vector_store %arg3[%c0_4, %c0_5, %c0_6], %15 {strides = array<i32>} : memref<2x16x32xf32, #tpu.memory_space<vmem>>, vector<2x16x32xf32>,
    return
  }
  func.func @transform_0(%arg0: i32) -> (i32, i32, i32) {
    %c0_i32 = arith.constant 0 : i32
    %c0_i32_0 = arith.constant 0 : i32
    %c0_i32_1 = arith.constant 0 : i32
    return %arg0, %c0_i32, %c0_i32_0 : i32, i32, i32
  }
  func.func @transform_1(%arg0: i32) -> (i32, i32) {
    %c0_i32 = arith.constant 0 : i32
    %c0_i32_0 = arith.constant 0 : i32
    %c0_i32_1 = arith.constant 0 : i32
    return %c0_i32, %c0_i32_0 : i32, i32
  }
  func.func @transform_2(%arg0: i32) -> (i32, i32, i32) {
    %c0_i32 = arith.constant 0 : i32
    %c0_i32_0 = arith.constant 0 : i32
    %c0_i32_1 = arith.constant 0 : i32
    return %arg0, %c0_i32, %c0_i32_0 : i32, i32, i32
  }
}

module attributes {stable_mosaic.version = 11 : i64} {
  func.func @_attn_res_kernel(%arg0: i32, %arg1: memref<2x16x32xf32, #tpu.memory_space<vmem>>, %arg2: memref<4x32xf32, #tpu.memory_space<vmem>>, %arg3: memref<32x96xbf16, #tpu.memory_space<vmem>>, %arg4: memref<1x96xf32, #tpu.memory_space<vmem>>, %arg5: memref<32x32xbf16, #tpu.memory_space<vmem>>, %arg6: memref<1x32xf32, #tpu.memory_space<vmem>>, %arg7: memref<4x2x8x8xf32, #tpu.memory_space<vmem>>, %arg8: memref<2x16x32xf32, #tpu.memory_space<vmem>>, %arg9: memref<1x2x32xf32, #tpu.memory_space<vmem>>) attributes {dimension_semantics = [#tpu.dimension_semantics<parallel>], iteration_bounds = array<i64: 3>, scalar_prefetch = 0 : i64, scratch_operands = 0 : i64, tpu.core_type = #tpu.core_type<tc>, window_params = [{transform_indices = @transform_0, window_bounds = array<i64: 2, 16, 32>}, {pipeline_mode = #tpu.pipeline_mode<synchronous>, transform_indices = @transform_1, window_bounds = array<i64: 4, 32>}, {pipeline_mode = #tpu.pipeline_mode<synchronous>, transform_indices = @transform_2, window_bounds = array<i64: 32, 96>}, {pipeline_mode = #tpu.pipeline_mode<synchronous>, transform_indices = @transform_3, window_bounds = array<i64: 1, 96>}, {pipeline_mode = #tpu.pipeline_mode<synchronous>, transform_indices = @transform_4, window_bounds = array<i64: 32, 32>}, {pipeline_mode = #tpu.pipeline_mode<synchronous>, transform_indices = @transform_5, window_bounds = array<i64: 1, 32>}, {pipeline_mode = #tpu.pipeline_mode<synchronous>, transform_indices = @transform_6, window_bounds = array<i64: 4, 2, 8, 8>}, {transform_indices = @transform_7, window_bounds = array<i64: 2, 16, 32>}, {transform_indices = @transform_8, window_bounds = array<i64: 1, 2, 32>}]} {
    %c0 = arith.constant 0 : index
    %c0_0 = arith.constant 0 : index
    %c0_1 = arith.constant 0 : index
    %0 = vector.load %arg1[%c0, %c0_0, %c0_1] : memref<2x16x32xf32, #tpu.memory_space<vmem>>, vector<2x16x32xf32>
    %1 = vector.shape_cast %0 : vector<2x16x32xf32> to vector<32x32xf32>
    %c0_2 = arith.constant 0 : index
    %c0_3 = arith.constant 0 : index
    %2 = vector.load %arg2[%c0_2, %c0_3] : memref<4x32xf32, #tpu.memory_space<vmem>>, vector<4x32xf32>
    %3 = vector.extract_strided_slice %2 {offsets = [0, 0], sizes = [1, 32], strides = [1, 1]} : vector<4x32xf32> to vector<1x32xf32>
    %4 = vector.broadcast %3 : vector<1x32xf32> to vector<32x32xf32>
    %5 = arith.subf %1, %4 : vector<32x32xf32>
    %6 = vector.extract_strided_slice %2 {offsets = [1, 0], sizes = [1, 32], strides = [1, 1]} : vector<4x32xf32> to vector<1x32xf32>
    %7 = vector.broadcast %6 : vector<1x32xf32> to vector<32x32xf32>
    %8 = arith.mulf %5, %7 : vector<32x32xf32>
    %9 = vector.extract_strided_slice %2 {offsets = [2, 0], sizes = [1, 32], strides = [1, 1]} : vector<4x32xf32> to vector<1x32xf32>
    %10 = vector.broadcast %9 : vector<1x32xf32> to vector<32x32xf32>
    %11 = arith.mulf %8, %10 : vector<32x32xf32>
    %12 = vector.extract_strided_slice %2 {offsets = [3, 0], sizes = [1, 32], strides = [1, 1]} : vector<4x32xf32> to vector<1x32xf32>
    %13 = vector.broadcast %12 : vector<1x32xf32> to vector<32x32xf32>
    %14 = arith.addf %11, %13 : vector<32x32xf32>
    %15 = vector.shape_cast %14 : vector<32x32xf32> to vector<2x16x32xf32>
    %c0_4 = arith.constant 0 : index
    %c0_5 = arith.constant 0 : index
    %16 = vector.load %arg3[%c0_4, %c0_5] : memref<32x96xbf16, #tpu.memory_space<vmem>>, vector<32x96xbf16>
    %c0_6 = arith.constant 0 : index
    %c0_7 = arith.constant 0 : index
    %17 = vector.load %arg4[%c0_6, %c0_7] : memref<1x96xf32, #tpu.memory_space<vmem>>, vector<1x96xf32>
    %c0_8 = arith.constant 0 : index
    %c0_9 = arith.constant 0 : index
    %18 = vector.load %arg5[%c0_8, %c0_9] : memref<32x32xbf16, #tpu.memory_space<vmem>>, vector<32x32xbf16>
    %c0_10 = arith.constant 0 : index
    %c0_11 = arith.constant 0 : index
    %19 = vector.load %arg6[%c0_10, %c0_11] : memref<1x32xf32, #tpu.memory_space<vmem>>, vector<1x32xf32>
    %c0_12 = arith.constant 0 : index
    %c0_13 = arith.constant 0 : index
    %c0_14 = arith.constant 0 : index
    %c0_15 = arith.constant 0 : index
    %20 = vector.load %arg7[%c0_12, %c0_13, %c0_14, %c0_15] : memref<4x2x8x8xf32, #tpu.memory_space<vmem>>, vector<4x2x8x8xf32>
    %21 = vector.shape_cast %15 : vector<2x16x32xf32> to vector<32x32xf32>
    %22 = arith.truncf %21 : vector<32x32xf32> to vector<32x32xbf16>
    %cst = arith.constant dense<0.000000e+00> : vector<32x96xf32>
    %23 = tpu.matmul %22, %16, %cst {dimension_numbers = #tpu.dot_dimension_numbers<[1], [0], [0], [1], [0, 0, 1, 1], [], []>} : vector<32x32xbf16>, vector<32x96xbf16>, vector<32x96xf32> -> vector<32x96xf32>
    %24 = vector.broadcast %17 : vector<1x96xf32> to vector<32x96xf32>
    %25 = arith.addf %23, %24 : vector<32x96xf32>
    %26 = arith.truncf %25 : vector<32x96xf32> to vector<32x96xbf16>
    %27 = vector.shape_cast %26 : vector<32x96xbf16> to vector<4x8x96xbf16>
    %28 = vector.extract_strided_slice %27 {offsets = [0, 0, 0], sizes = [4, 8, 8], strides = [1, 1, 1]} : vector<4x8x96xbf16> to vector<4x8x8xbf16>
    %29 = vector.extract_strided_slice %27 {offsets = [0, 0, 32], sizes = [4, 8, 8], strides = [1, 1, 1]} : vector<4x8x96xbf16> to vector<4x8x8xbf16>
    %30 = vector.extract_strided_slice %27 {offsets = [0, 0, 64], sizes = [4, 8, 8], strides = [1, 1, 1]} : vector<4x8x96xbf16> to vector<4x8x8xbf16>
    "tpu.trace_start"() <{level = 10 : i32, message = "bqd,bkd->bqk"}> : () -> ()
    %cst_16 = arith.constant dense<0.000000e+00> : vector<4x8x8xf32>
    %31 = tpu.matmul %28, %29, %cst_16 {dimension_numbers = #tpu.dot_dimension_numbers<[2], [2], [1], [1], [0, 0, 0, 1, 1, 1], [0], [0]>} : vector<4x8x8xbf16>, vector<4x8x8xbf16>, vector<4x8x8xf32> -> vector<4x8x8xf32>
    "tpu.trace_stop"() : () -> ()
    %cst_17 = arith.constant 0.353553385 : f32
    %32 = vector.broadcast %cst_17 : f32 to vector<4x8x8xf32>
    %33 = arith.mulf %31, %32 : vector<4x8x8xf32>
    %34 = vector.shape_cast %33 : vector<4x8x8xf32> to vector<2x2x8x8xf32>
    %35 = vector.extract_strided_slice %20 {offsets = [0, 0, 0, 0], sizes = [1, 2, 8, 8], strides = [1, 1, 1, 1]} : vector<4x2x8x8xf32> to vector<1x2x8x8xf32>
    %36 = vector.shape_cast %35 : vector<1x2x8x8xf32> to vector<2x8x8xf32>
    %37 = vector.shape_cast %36 : vector<2x8x8xf32> to vector<1x2x8x8xf32>
    %38 = vector.broadcast %37 : vector<1x2x8x8xf32> to vector<2x2x8x8xf32>
    %39 = arith.addf %34, %38 : vector<2x2x8x8xf32>
    %40 = vector.shape_cast %39 : vector<2x2x8x8xf32> to vector<4x8x8xf32>
    %cst_18 = arith.constant dense<0xFF800000> : vector<4x8xf32>
    %41 = vector.multi_reduction <maximumf>, %40, %cst_18 [2] : vector<4x8x8xf32> to vector<4x8xf32>
    %42 = vector.shape_cast %41 : vector<4x8xf32> to vector<4x8x1xf32>
    %43 = vector.broadcast %42 : vector<4x8x1xf32> to vector<4x8x8xf32>
    %44 = arith.subf %40, %43 : vector<4x8x8xf32>
    %45 = math.exp %44 : vector<4x8x8xf32>
    %cst_19 = arith.constant dense<0.000000e+00> : vector<4x8xf32>
    %46 = vector.multi_reduction <add>, %45, %cst_19 [2] : vector<4x8x8xf32> to vector<4x8xf32>
    %47 = vector.shape_cast %46 : vector<4x8xf32> to vector<4x8x1xf32>
    %48 = vector.broadcast %47 : vector<4x8x1xf32> to vector<4x8x8xf32>
    %49 = arith.divf %45, %48 : vector<4x8x8xf32>
    %50 = arith.truncf %49 : vector<4x8x8xf32> to vector<4x8x8xbf16>
    "tpu.trace_start"() <{level = 10 : i32, message = "bqk,bkd->bqd"}> : () -> ()
    %cst_20 = arith.constant dense<0.000000e+00> : vector<4x8x8xf32>
    %51 = tpu.matmul %50, %30, %cst_20 {dimension_numbers = #tpu.dot_dimension_numbers<[2], [1], [1], [2], [0, 0, 0, 1, 1, 2], [0], [0]>} : vector<4x8x8xbf16>, vector<4x8x8xbf16>, vector<4x8x8xf32> -> vector<4x8x8xf32>
    "tpu.trace_stop"() : () -> ()
    %52 = vector.extract_strided_slice %27 {offsets = [0, 0, 8], sizes = [4, 8, 8], strides = [1, 1, 1]} : vector<4x8x96xbf16> to vector<4x8x8xbf16>
    %53 = vector.extract_strided_slice %27 {offsets = [0, 0, 40], sizes = [4, 8, 8], strides = [1, 1, 1]} : vector<4x8x96xbf16> to vector<4x8x8xbf16>
    %54 = vector.extract_strided_slice %27 {offsets = [0, 0, 72], sizes = [4, 8, 8], strides = [1, 1, 1]} : vector<4x8x96xbf16> to vector<4x8x8xbf16>
    "tpu.trace_start"() <{level = 10 : i32, message = "bqd,bkd->bqk"}> : () -> ()
    %cst_21 = arith.constant dense<0.000000e+00> : vector<4x8x8xf32>
    %55 = tpu.matmul %52, %53, %cst_21 {dimension_numbers = #tpu.dot_dimension_numbers<[2], [2], [1], [1], [0, 0, 0, 1, 1, 1], [0], [0]>} : vector<4x8x8xbf16>, vector<4x8x8xbf16>, vector<4x8x8xf32> -> vector<4x8x8xf32>
    "tpu.trace_stop"() : () -> ()
    %cst_22 = arith.constant 0.353553385 : f32
    %56 = vector.broadcast %cst_22 : f32 to vector<4x8x8xf32>
    %57 = arith.mulf %55, %56 : vector<4x8x8xf32>
    %58 = vector.shape_cast %57 : vector<4x8x8xf32> to vector<2x2x8x8xf32>
    %59 = vector.extract_strided_slice %20 {offsets = [1, 0, 0, 0], sizes = [1, 2, 8, 8], strides = [1, 1, 1, 1]} : vector<4x2x8x8xf32> to vector<1x2x8x8xf32>
    %60 = vector.shape_cast %59 : vector<1x2x8x8xf32> to vector<2x8x8xf32>
    %61 = vector.shape_cast %60 : vector<2x8x8xf32> to vector<1x2x8x8xf32>
    %62 = vector.broadcast %61 : vector<1x2x8x8xf32> to vector<2x2x8x8xf32>
    %63 = arith.addf %58, %62 : vector<2x2x8x8xf32>
    %64 = vector.shape_cast %63 : vector<2x2x8x8xf32> to vector<4x8x8xf32>
    %cst_23 = arith.constant dense<0xFF800000> : vector<4x8xf32>
    %65 = vector.multi_reduction <maximumf>, %64, %cst_23 [2] : vector<4x8x8xf32> to vector<4x8xf32>
    %66 = vector.shape_cast %65 : vector<4x8xf32> to vector<4x8x1xf32>
    %67 = vector.broadcast %66 : vector<4x8x1xf32> to vector<4x8x8xf32>
    %68 = arith.subf %64, %67 : vector<4x8x8xf32>
    %69 = math.exp %68 : vector<4x8x8xf32>
    %cst_24 = arith.constant dense<0.000000e+00> : vector<4x8xf32>
    %70 = vector.multi_reduction <add>, %69, %cst_24 [2] : vector<4x8x8xf32> to vector<4x8xf32>
    %71 = vector.shape_cast %70 : vector<4x8xf32> to vector<4x8x1xf32>
    %72 = vector.broadcast %71 : vector<4x8x1xf32> to vector<4x8x8xf32>
    %73 = arith.divf %69, %72 : vector<4x8x8xf32>
    %74 = arith.truncf %73 : vector<4x8x8xf32> to vector<4x8x8xbf16>
    "tpu.trace_start"() <{level = 10 : i32, message = "bqk,bkd->bqd"}> : () -> ()
    %cst_25 = arith.constant dense<0.000000e+00> : vector<4x8x8xf32>
    %75 = tpu.matmul %74, %54, %cst_25 {dimension_numbers = #tpu.dot_dimension_numbers<[2], [1], [1], [2], [0, 0, 0, 1, 1, 2], [0], [0]>} : vector<4x8x8xbf16>, vector<4x8x8xbf16>, vector<4x8x8xf32> -> vector<4x8x8xf32>
    "tpu.trace_stop"() : () -> ()
    %76 = vector.extract_strided_slice %27 {offsets = [0, 0, 16], sizes = [4, 8, 8], strides = [1, 1, 1]} : vector<4x8x96xbf16> to vector<4x8x8xbf16>
    %77 = vector.extract_strided_slice %27 {offsets = [0, 0, 48], sizes = [4, 8, 8], strides = [1, 1, 1]} : vector<4x8x96xbf16> to vector<4x8x8xbf16>
    %78 = vector.extract_strided_slice %27 {offsets = [0, 0, 80], sizes = [4, 8, 8], strides = [1, 1, 1]} : vector<4x8x96xbf16> to vector<4x8x8xbf16>
    "tpu.trace_start"() <{level = 10 : i32, message = "bqd,bkd->bqk"}> : () -> ()
    %cst_26 = arith.constant dense<0.000000e+00> : vector<4x8x8xf32>
    %79 = tpu.matmul %76, %77, %cst_26 {dimension_numbers = #tpu.dot_dimension_numbers<[2], [2], [1], [1], [0, 0, 0, 1, 1, 1], [0], [0]>} : vector<4x8x8xbf16>, vector<4x8x8xbf16>, vector<4x8x8xf32> -> vector<4x8x8xf32>
    "tpu.trace_stop"() : () -> ()
    %cst_27 = arith.constant 0.353553385 : f32
    %80 = vector.broadcast %cst_27 : f32 to vector<4x8x8xf32>
    %81 = arith.mulf %79, %80 : vector<4x8x8xf32>
    %82 = vector.shape_cast %81 : vector<4x8x8xf32> to vector<2x2x8x8xf32>
    %83 = vector.extract_strided_slice %20 {offsets = [2, 0, 0, 0], sizes = [1, 2, 8, 8], strides = [1, 1, 1, 1]} : vector<4x2x8x8xf32> to vector<1x2x8x8xf32>
    %84 = vector.shape_cast %83 : vector<1x2x8x8xf32> to vector<2x8x8xf32>
    %85 = vector.shape_cast %84 : vector<2x8x8xf32> to vector<1x2x8x8xf32>
    %86 = vector.broadcast %85 : vector<1x2x8x8xf32> to vector<2x2x8x8xf32>
    %87 = arith.addf %82, %86 : vector<2x2x8x8xf32>
    %88 = vector.shape_cast %87 : vector<2x2x8x8xf32> to vector<4x8x8xf32>
    %cst_28 = arith.constant dense<0xFF800000> : vector<4x8xf32>
    %89 = vector.multi_reduction <maximumf>, %88, %cst_28 [2] : vector<4x8x8xf32> to vector<4x8xf32>
    %90 = vector.shape_cast %89 : vector<4x8xf32> to vector<4x8x1xf32>
    %91 = vector.broadcast %90 : vector<4x8x1xf32> to vector<4x8x8xf32>
    %92 = arith.subf %88, %91 : vector<4x8x8xf32>
    %93 = math.exp %92 : vector<4x8x8xf32>
    %cst_29 = arith.constant dense<0.000000e+00> : vector<4x8xf32>
    %94 = vector.multi_reduction <add>, %93, %cst_29 [2] : vector<4x8x8xf32> to vector<4x8xf32>
    %95 = vector.shape_cast %94 : vector<4x8xf32> to vector<4x8x1xf32>
    %96 = vector.broadcast %95 : vector<4x8x1xf32> to vector<4x8x8xf32>
    %97 = arith.divf %93, %96 : vector<4x8x8xf32>
    %98 = arith.truncf %97 : vector<4x8x8xf32> to vector<4x8x8xbf16>
    "tpu.trace_start"() <{level = 10 : i32, message = "bqk,bkd->bqd"}> : () -> ()
    %cst_30 = arith.constant dense<0.000000e+00> : vector<4x8x8xf32>
    %99 = tpu.matmul %98, %78, %cst_30 {dimension_numbers = #tpu.dot_dimension_numbers<[2], [1], [1], [2], [0, 0, 0, 1, 1, 2], [0], [0]>} : vector<4x8x8xbf16>, vector<4x8x8xbf16>, vector<4x8x8xf32> -> vector<4x8x8xf32>
    "tpu.trace_stop"() : () -> ()
    %100 = vector.extract_strided_slice %27 {offsets = [0, 0, 24], sizes = [4, 8, 8], strides = [1, 1, 1]} : vector<4x8x96xbf16> to vector<4x8x8xbf16>
    %101 = vector.extract_strided_slice %27 {offsets = [0, 0, 56], sizes = [4, 8, 8], strides = [1, 1, 1]} : vector<4x8x96xbf16> to vector<4x8x8xbf16>
    %102 = vector.extract_strided_slice %27 {offsets = [0, 0, 88], sizes = [4, 8, 8], strides = [1, 1, 1]} : vector<4x8x96xbf16> to vector<4x8x8xbf16>
    "tpu.trace_start"() <{level = 10 : i32, message = "bqd,bkd->bqk"}> : () -> ()
    %cst_31 = arith.constant dense<0.000000e+00> : vector<4x8x8xf32>
    %103 = tpu.matmul %100, %101, %cst_31 {dimension_numbers = #tpu.dot_dimension_numbers<[2], [2], [1], [1], [0, 0, 0, 1, 1, 1], [0], [0]>} : vector<4x8x8xbf16>, vector<4x8x8xbf16>, vector<4x8x8xf32> -> vector<4x8x8xf32>
    "tpu.trace_stop"() : () -> ()
    %cst_32 = arith.constant 0.353553385 : f32
    %104 = vector.broadcast %cst_32 : f32 to vector<4x8x8xf32>
    %105 = arith.mulf %103, %104 : vector<4x8x8xf32>
    %106 = vector.shape_cast %105 : vector<4x8x8xf32> to vector<2x2x8x8xf32>
    %107 = vector.extract_strided_slice %20 {offsets = [3, 0, 0, 0], sizes = [1, 2, 8, 8], strides = [1, 1, 1, 1]} : vector<4x2x8x8xf32> to vector<1x2x8x8xf32>
    %108 = vector.shape_cast %107 : vector<1x2x8x8xf32> to vector<2x8x8xf32>
    %109 = vector.shape_cast %108 : vector<2x8x8xf32> to vector<1x2x8x8xf32>
    %110 = vector.broadcast %109 : vector<1x2x8x8xf32> to vector<2x2x8x8xf32>
    %111 = arith.addf %106, %110 : vector<2x2x8x8xf32>
    %112 = vector.shape_cast %111 : vector<2x2x8x8xf32> to vector<4x8x8xf32>
    %cst_33 = arith.constant dense<0xFF800000> : vector<4x8xf32>
    %113 = vector.multi_reduction <maximumf>, %112, %cst_33 [2] : vector<4x8x8xf32> to vector<4x8xf32>
    %114 = vector.shape_cast %113 : vector<4x8xf32> to vector<4x8x1xf32>
    %115 = vector.broadcast %114 : vector<4x8x1xf32> to vector<4x8x8xf32>
    %116 = arith.subf %112, %115 : vector<4x8x8xf32>
    %117 = math.exp %116 : vector<4x8x8xf32>
    %cst_34 = arith.constant dense<0.000000e+00> : vector<4x8xf32>
    %118 = vector.multi_reduction <add>, %117, %cst_34 [2] : vector<4x8x8xf32> to vector<4x8xf32>
    %119 = vector.shape_cast %118 : vector<4x8xf32> to vector<4x8x1xf32>
    %120 = vector.broadcast %119 : vector<4x8x1xf32> to vector<4x8x8xf32>
    %121 = arith.divf %117, %120 : vector<4x8x8xf32>
    %122 = arith.truncf %121 : vector<4x8x8xf32> to vector<4x8x8xbf16>
    "tpu.trace_start"() <{level = 10 : i32, message = "bqk,bkd->bqd"}> : () -> ()
    %cst_35 = arith.constant dense<0.000000e+00> : vector<4x8x8xf32>
    %123 = tpu.matmul %122, %102, %cst_35 {dimension_numbers = #tpu.dot_dimension_numbers<[2], [1], [1], [2], [0, 0, 0, 1, 1, 2], [0], [0]>} : vector<4x8x8xbf16>, vector<4x8x8xbf16>, vector<4x8x8xf32> -> vector<4x8x8xf32>
    "tpu.trace_stop"() : () -> ()
    %124 = tpu.concatenate %51, %75, %99, %123 in 2 : vector<4x8x8xf32>, vector<4x8x8xf32>, vector<4x8x8xf32>, vector<4x8x8xf32> -> vector<4x8x32xf32>
    %125 = vector.shape_cast %124 : vector<4x8x32xf32> to vector<32x32xf32>
    %126 = arith.truncf %125 : vector<32x32xf32> to vector<32x32xbf16>
    %cst_36 = arith.constant dense<0.000000e+00> : vector<32x32xf32>
    %127 = tpu.matmul %126, %18, %cst_36 {dimension_numbers = #tpu.dot_dimension_numbers<[1], [0], [0], [1], [0, 0, 1, 1], [], []>} : vector<32x32xbf16>, vector<32x32xbf16>, vector<32x32xf32> -> vector<32x32xf32>
    %128 = vector.broadcast %19 : vector<1x32xf32> to vector<32x32xf32>
    %129 = arith.addf %127, %128 : vector<32x32xf32>
    %130 = vector.shape_cast %129 : vector<32x32xf32> to vector<2x16x32xf32>
    %131 = arith.addf %15, %130 : vector<2x16x32xf32>
    %c0_37 = arith.constant 0 : index
    %c0_38 = arith.constant 0 : index
    %c0_39 = arith.constant 0 : index
    %132 = vector.load %arg8[%c0_37, %c0_38, %c0_39] : memref<2x16x32xf32, #tpu.memory_space<vmem>>, vector<2x16x32xf32>
    tpu.vector_store %arg8[%c0_37, %c0_38, %c0_39], %131 {strides = array<i32>} : memref<2x16x32xf32, #tpu.memory_space<vmem>>, vector<2x16x32xf32>,
    %133 = vector.shape_cast %131 : vector<2x16x32xf32> to vector<32x32xf32>
    %cst_40 = arith.constant dense<0.000000e+00> : vector<32xf32>
    %134 = vector.multi_reduction <add>, %133, %cst_40 [0] : vector<32x32xf32> to vector<32xf32>
    %135 = vector.shape_cast %134 : vector<32xf32> to vector<1x32xf32>
    %136 = vector.shape_cast %135 : vector<1x32xf32> to vector<1x1x32xf32>
    %c0_41 = arith.constant 0 : index
    %c0_42 = arith.constant 0 : index
    %c0_43 = arith.constant 0 : index
    %137 = vector.load %arg9[%c0_41, %c0_42, %c0_43] : memref<1x2x32xf32, #tpu.memory_space<vmem>>, vector<1x1x32xf32>
    tpu.vector_store %arg9[%c0_41, %c0_42, %c0_43], %136 {strides = array<i32>} : memref<1x2x32xf32, #tpu.memory_space<vmem>>, vector<1x1x32xf32>,
    %138 = arith.mulf %133, %133 : vector<32x32xf32>
    %cst_44 = arith.constant dense<0.000000e+00> : vector<32xf32>
    %139 = vector.multi_reduction <add>, %138, %cst_44 [0] : vector<32x32xf32> to vector<32xf32>
    %140 = vector.shape_cast %139 : vector<32xf32> to vector<1x32xf32>
    %141 = vector.shape_cast %140 : vector<1x32xf32> to vector<1x1x32xf32>
    %c0_45 = arith.constant 0 : index
    %c1 = arith.constant 1 : index
    %c0_46 = arith.constant 0 : index
    %142 = vector.load %arg9[%c0_45, %c1, %c0_46] : memref<1x2x32xf32, #tpu.memory_space<vmem>>, vector<1x1x32xf32>
    tpu.vector_store %arg9[%c0_45, %c1, %c0_46], %141 {strides = array<i32>} : memref<1x2x32xf32, #tpu.memory_space<vmem>>, vector<1x1x32xf32>,
    return
  }
  func.func @transform_0(%arg0: i32) -> (i32, i32, i32) {
    %c0_i32 = arith.constant 0 : i32
    %c0_i32_0 = arith.constant 0 : i32
    %c0_i32_1 = arith.constant 0 : i32
    return %arg0, %c0_i32, %c0_i32_0 : i32, i32, i32
  }
  func.func @transform_1(%arg0: i32) -> (i32, i32) {
    %c0_i32 = arith.constant 0 : i32
    %c0_i32_0 = arith.constant 0 : i32
    %c0_i32_1 = arith.constant 0 : i32
    return %c0_i32, %c0_i32_0 : i32, i32
  }
  func.func @transform_2(%arg0: i32) -> (i32, i32) {
    %c0_i32 = arith.constant 0 : i32
    %c0_i32_0 = arith.constant 0 : i32
    %c0_i32_1 = arith.constant 0 : i32
    return %c0_i32, %c0_i32_0 : i32, i32
  }
  func.func @transform_3(%arg0: i32) -> (i32, i32) {
    %c0_i32 = arith.constant 0 : i32
    %c0_i32_0 = arith.constant 0 : i32
    %c0_i32_1 = arith.constant 0 : i32
    return %c0_i32, %c0_i32_0 : i32, i32
  }
  func.func @transform_4(%arg0: i32) -> (i32, i32) {
    %c0_i32 = arith.constant 0 : i32
    %c0_i32_0 = arith.constant 0 : i32
    %c0_i32_1 = arith.constant 0 : i32
    return %c0_i32, %c0_i32_0 : i32, i32
  }
  func.func @transform_5(%arg0: i32) -> (i32, i32) {
    %c0_i32 = arith.constant 0 : i32
    %c0_i32_0 = arith.constant 0 : i32
    %c0_i32_1 = arith.constant 0 : i32
    return %c0_i32, %c0_i32_0 : i32, i32
  }
  func.func @transform_6(%arg0: i32) -> (i32, i32, i32, i32) {
    %c0_i32 = arith.constant 0 : i32
    %c0_i32_0 = arith.constant 0 : i32
    %c0_i32_1 = arith.constant 0 : i32
    %c0_i32_2 = arith.constant 0 : i32
    %c0_i32_3 = arith.constant 0 : i32
    return %c0_i32, %c0_i32_0, %c0_i32_1, %c0_i32_2 : i32, i32, i32, i32
  }
  func.func @transform_7(%arg0: i32) -> (i32, i32, i32) {
    %c0_i32 = arith.constant 0 : i32
    %c0_i32_0 = arith.constant 0 : i32
    %c0_i32_1 = arith.constant 0 : i32
    return %arg0, %c0_i32, %c0_i32_0 : i32, i32, i32
  }
  func.func @transform_8(%arg0: i32) -> (i32, i32, i32) {
    %c0_i32 = arith.constant 0 : i32
    %c0_i32_0 = arith.constant 0 : i32
    %c0_i32_1 = arith.constant 0 : i32
    return %arg0, %c0_i32, %c0_i32_0 : i32, i32, i32
  }
}

</mosaic_0001>

<llo_original>
// kernel: tsti_encoder_forward.6
$region0: #{tsti_encoder_forward.6}
  #allocation0 [shape = 'u32[]', space=smem, size = 0x4, offset = 0x4, fixed_abs, tag = 'smem constant byte address 0x4 - core index']
  #allocation1 [shape = 'u32[144,128]{1,0:T(1,128)}', space=vmem, size = 0x12000, scoped, tag = 'internal scratch']
  %s0 = inlined_call_operand.hbm [shape: bf16[6,16,12], index: 0, kind: input, shape index: {}]
  %s1 = inlined_call_operand.hbm [shape: bf16[12,32], index: 1, kind: input, shape index: {}]
  %s2 = inlined_call_operand.hbm [shape: f32[16,32], index: 2, kind: input, shape index: {}]
  %s3 = inlined_call_operand.hbm [shape: f32[6,16,32], index: 3, kind: output, shape index: {}]
  %s4 = sld [smem:[#allocation0]]
  $region57: #{tsti_encoder_forward.6} parent=0
    _
  %s6 = ssub.s32 1, %s4
  %s7 = scalar_select 0, %s6, %s4
  $region1: #{tsti_encoder_forward.6} parent=0
    #allocation2 [shape = 'u8[16384]{0}', space=vmem, size = 0x4000, scoped, tag = 'input window, operand 0']
    #allocation3 [shape = 's32[2]{0}', space=sflag, size = 0x8, scoped, tag = 'scoped memory for tsti_encoder_forward.6']
    #allocation4 [shape = 's32[2]{0}', space=sflag, size = 0x8, scoped, tag = 'scoped memory for tsti_encoder_forward.6']
    #allocation5 [shape = 'u8[4096]{0}', space=vmem, size = 0x1000, scoped, tag = 'input window, operand 1, single buffered']
    #allocation6 [shape = 's32[1]{0}', space=sflag, size = 0x4, scoped, tag = 'scoped memory for tsti_encoder_forward.6']
    #allocation7 [shape = 'u8[8192]{0}', space=vmem, size = 0x2000, scoped, tag = 'input window, operand 2, single buffered']
    #allocation8 [shape = 'u8[32768]{0}', space=vmem, size = 0x8000, scoped, tag = 'output window, operand 0']
    %8 = vsyncpa [#allocation3], 0
    %s9 = scalar_lea.sflag [#allocation3], 1
    %10 = vsyncpa %s9, 0
    %11 = vsyncpa [#allocation6], 0
    %12 = vsyncpa [#allocation4], 0
    %s13 = scalar_lea.sflag [#allocation4], 1
    %14 = vsyncpa %s13, 0
    loop: start=0, step=1, limit=5
    $region2: #{tsti_encoder_forward.6} parent=1 // loop_pre_header
      _
    $region3: #{tsti_encoder_forward.6} parent=1 // loop_header
      %s16 = sphi 0, %s20
      %p17 = scmp.ge.s32.totalorder %s16, 5
      %s26 = sphi 0, %s28
      %s29 = sphi 0, %s26
      %s30 = sphi 0, %s29
      %s46 = sphi 0, %s30
      %s50 = sphi 0, %s50
      %s52 = sphi 0, %s50
      %s53 = sphi 0, %s52
      %s67 = sphi 0, %s53
      %s71 = sphi 0, %s71
      %s73 = sphi 0, %s71
      %s74 = sphi 0, %s73
      %s88 = sphi 0, %s74
      %s94 = sphi 0, %s96
      %s97 = sphi 0, %s94
      %s98 = sphi 0, %s97
      %s114 = sphi 0, %s98
    $region4: #{tsti_encoder_forward.6} parent=1 // loop_header_branch
      %19 = sbr.rel (%p17) target = $region8
    $region5: #{tsti_encoder_forward.6} parent=1 // loop_body
      %s21 = ssub.s32 %s16, 1
      %s22 = ssub.s32 %s16, 2
      %s23 = sadd.s32 %s16, 1
      %s24 = ssub.s32 %s16, %s23
      %p25 = scmp.eq.s32.totalorder %s24, 0
      %s27 = sadd.s32 %s26, 1
      %s28 = scalar_select %p25, %s26, %s27
      %p31 = pneg %p25
      %p32 = scmp.eq.s32.totalorder %s16, 2
      %p33 = por %p31, %p32
      %p34 = scmp.ne.s32.totalorder %s26, %s29
      %p35 = scmp.eq.s32.totalorder %s16, 0
      %p36 = por %p34, %p35
      %p37 = scmp.ne.s32.totalorder %s26, %s29
      %p38 = scmp.eq.s32.totalorder %s21, 2
      %p39 = por %p37, %p38
      %p40 = scmp.ne.s32.totalorder %s29, %s30
      %p41 = scmp.eq.s32.totalorder %s21, 0
      %p42 = por %p40, %p41
      %p43 = scmp.ne.s32.totalorder %s29, %s30
      %p44 = scmp.eq.s32.totalorder %s22, 2
      %p45 = por %p43, %p44
      %p47 = scmp.ne.s32.totalorder %s30, %s46
      %p48 = scmp.eq.s32.totalorder %s22, 0
      %p49 = por %p47, %p48
      %s51 = sadd.s32 %s50, 1
      %p54 = scmp.eq.s32.totalorder %s16, 2
      %p55 = scmp.ne.s32.totalorder %s50, %s52
      %p56 = scmp.eq.s32.totalorder %s16, 0
      %p57 = por %p55, %p56
      %p58 = scmp.ne.s32.totalorder %s50, %s52
      %p59 = scmp.eq.s32.totalorder %s21, 2
      %p60 = por %p58, %p59
      %p61 = scmp.ne.s32.totalorder %s52, %s53
      %p62 = scmp.eq.s32.totalorder %s21, 0
      %p63 = por %p61, %p62
      %p64 = scmp.ne.s32.totalorder %s52, %s53
      %p65 = scmp.eq.s32.totalorder %s22, 2
      %p66 = por %p64, %p65
      %p68 = scmp.ne.s32.totalorder %s53, %s67
      %p69 = scmp.eq.s32.totalorder %s22, 0
      %p70 = por %p68, %p69
      %s72 = sadd.s32 %s71, 1
      %p75 = scmp.eq.s32.totalorder %s16, 2
      %p76 = scmp.ne.s32.totalorder %s71, %s73
      %p77 = scmp.eq.s32.totalorder %s16, 0
      %p78 = por %p76, %p77
      %p79 = scmp.ne.s32.totalorder %s71, %s73
      %p80 = scmp.eq.s32.totalorder %s21, 2
      %p81 = por %p79, %p80
      %p82 = scmp.ne.s32.totalorder %s73, %s74
      %p83 = scmp.eq.s32.totalorder %s21, 0
      %p84 = por %p82, %p83
      %p85 = scmp.ne.s32.totalorder %s73, %s74
      %p86 = scmp.eq.s32.totalorder %s22, 2
      %p87 = por %p85, %p86
      %p89 = scmp.ne.s32.totalorder %s74, %s88
      %p90 = scmp.eq.s32.totalorder %s22, 0
      %p91 = por %p89, %p90
      %s92 = ssub.s32 %s16, %s23
      %p93 = scmp.eq.s32.totalorder %s92, 0
      %s95 = sadd.s32 %s94, 1
      %s96 = scalar_select %p93, %s94, %s95
      %p99 = pneg %p93
      %p100 = scmp.eq.s32.totalorder %s16, 2
      %p101 = por %p99, %p100
      %p102 = scmp.ne.s32.totalorder %s94, %s97
      %p103 = scmp.eq.s32.totalorder %s16, 0
      %p104 = por %p102, %p103
      %p105 = scmp.ne.s32.totalorder %s94, %s97
      %p106 = scmp.eq.s32.totalorder %s21, 2
      %p107 = por %p105, %p106
      %p108 = scmp.ne.s32.totalorder %s97, %s98
      %p109 = scmp.eq.s32.totalorder %s21, 0
      %p110 = por %p108, %p109
      %p111 = scmp.ne.s32.totalorder %s97, %s98
      %p112 = scmp.eq.s32.totalorder %s22, 2
      %p113 = por %p111, %p112
      %p115 = scmp.ne.s32.totalorder %s98, %s114
      %p116 = scmp.eq.s32.totalorder %s22, 0
      %p117 = por %p115, %p116
      %p118 = scmp.le.s32.totalorder 1, %s16
      %p119 = scmp.lt.s32.totalorder %s16, 4
      %p120 = pnand %p118, %p119
      %p121 = pneg %p120
      // Predicated region
      $region9: #{tsti_encoder_forward.6} parent=5 // pred_check
        _
      $region10: #{tsti_encoder_forward.6} parent=5 // pred_check_branch
        %123 = sbr.rel (%p120) target = $region12
      $region11: #{tsti_encoder_forward.6} parent=5 // pred_region
        %s124 = ssub.s32 %s16, 1
        // Predicated region
        $region13: #{tsti_encoder_forward.6} parent=11 // pred_check
          %p125 = pneg %p63
        $region14: #{tsti_encoder_forward.6} parent=11 // pred_check_branch
          %127 = sbr.rel (%p125) target = $region16
        $region15: #{tsti_encoder_forward.6} parent=11 // pred_region
          %s129 = ssub.s32 128, 128
          %130 = vsyncadd [#allocation6], %s129
          %s131 = sshll.u32 [#allocation5], 4
          %s132 = int_to_ptr.vmem [resolvable:$true] %s131
          %137 = dma.hbm_to_vmem [thread:$0]  %s1, 128, %s132, [#allocation6], 64, 64, 4
        $region16: #{tsti_encoder_forward.6} parent=11 // pred_fallthru
          _
        // Predicated region
        $region17: #{tsti_encoder_forward.6} parent=11 // pred_check
          %p138 = pneg %p84
        $region18: #{tsti_encoder_forward.6} parent=11 // pred_check_branch
          %140 = sbr.rel (%p138) target = $region20
        $region19: #{tsti_encoder_forward.6} parent=11 // pred_region
          %s142 = ssub.s32 256, 256
          %143 = vsyncadd [#allocation6], %s142
          %s144 = sshll.u32 [#allocation7], 4
          %s145 = int_to_ptr.vmem [resolvable:$true] %s144
          %150 = dma.hbm_to_vmem [thread:$0]  %s2, 256, %s145, [#allocation6], 128, 128, 8
        $region20: #{tsti_encoder_forward.6} parent=11 // pred_fallthru
          _
      $region12: #{tsti_encoder_forward.6} parent=5 // pred_fallthru
        _
      %p151 = scmp.lt.s32.totalorder %s16, 3
      // Predicated region
      $region21: #{tsti_encoder_forward.6} parent=5 // pred_check
        %p152 = pneg %p151
      $region22: #{tsti_encoder_forward.6} parent=5 // pred_check_branch
        %154 = sbr.rel (%p152) target = $region24
      $region23: #{tsti_encoder_forward.6} parent=5 // pred_region
        // Predicated region
        $region25: #{tsti_encoder_forward.6} parent=23 // pred_check
          %p155 = pneg %p36
        $region26: #{tsti_encoder_forward.6} parent=23 // pred_check_branch
          %157 = sbr.rel (%p155) target = $region28
        $region27: #{tsti_encoder_forward.6} parent=23 // pred_region
          %s158 = sand.u32 %s26, 1
          %s159 = scalar_lea.sflag [#allocation3], %s158
          %s160 = sand.u32 %s26, 1
          %s161 = smul.addr %s160, 16
          %s162 = scalar_lea.vmem [#allocation2], %s161
          %s163 = smul.u32 2, %s16
          %s165 = ssub.s32 256, 256
          %166 = vsyncadd %s159, %s165
          %s167 = smul.addr %s163, 2
          %s168 = smul.addr %s167, 64
          %s169 = scalar_lea.hbm %s0, %s168
          %s170 = sshll.u32 %s162, 4
          %s171 = int_to_ptr.vmem [resolvable:$true] %s170
          %176 = dma.hbm_to_vmem [thread:$0]  %s169, 256, %s171, %s159, 64, 64, 4
        $region28: #{tsti_encoder_forward.6} parent=23 // pred_fallthru
          _
      $region24: #{tsti_encoder_forward.6} parent=5 // pred_fallthru
        _
      %p177 = scmp.le.s32.totalorder 1, %s16
      %p178 = scmp.lt.s32.totalorder %s16, 4
      %p179 = pnand %p177, %p178
      %p180 = pneg %p179
      // Predicated region
      $region29: #{tsti_encoder_forward.6} parent=5 // pred_check
        _
      $region30: #{tsti_encoder_forward.6} parent=5 // pred_check_branch
        %182 = sbr.rel (%p179) target = $region32
      $region31: #{tsti_encoder_forward.6} parent=5 // pred_region
        %s183 = ssub.s32 %s16, 1
        %s184 = sand.u32 %s29, 1
        %s185 = scalar_lea.sflag [#allocation3], %s184
        %s186 = sand.u32 %s29, 1
        %s187 = smul.addr %s186, 16
        %s188 = scalar_lea.vmem [#allocation2], %s187
        // Predicated region
        $region33: #{tsti_encoder_forward.6} parent=31 // pred_check
          %p189 = pneg %p42
        $region34: #{tsti_encoder_forward.6} parent=31 // pred_check_branch
          %191 = sbr.rel (%p189) target = $region36
        $region35: #{tsti_encoder_forward.6} parent=31 // pred_region
          %192 = dma.done %s185, 256
        $region36: #{tsti_encoder_forward.6} parent=31 // pred_fallthru
          _
        // Predicated region
        $region37: #{tsti_encoder_forward.6} parent=31 // pred_check
          %p193 = pneg %p63
        $region38: #{tsti_encoder_forward.6} parent=31 // pred_check_branch
          %195 = sbr.rel (%p193) target = $region40
        $region39: #{tsti_encoder_forward.6} parent=31 // pred_region
          %196 = dma.done [#allocation6], 128
        $region40: #{tsti_encoder_forward.6} parent=31 // pred_fallthru
          _
        // Predicated region
        $region41: #{tsti_encoder_forward.6} parent=31 // pred_check
          %p197 = pneg %p84
        $region42: #{tsti_encoder_forward.6} parent=31 // pred_check_branch
          %199 = sbr.rel (%p197) target = $region44
        $region43: #{tsti_encoder_forward.6} parent=31 // pred_region
          %200 = dma.done [#allocation6], 256
        $region44: #{tsti_encoder_forward.6} parent=31 // pred_fallthru
          _
        %s201 = sand.u32 %s29, 1
        %s202 = scalar_lea.sflag [#allocation3], %s201
        %s203 = sand.u32 %s29, 1
        %s204 = smul.addr %s203, 16
        %s205 = scalar_lea.vmem [#allocation2], %s204
        %p206 = pneg %p42
        %p207 = pneg %p39
        %p208 = pneg %p63
        %p209 = pneg %p60
        %p210 = pneg %p84
        %p211 = pneg %p81
        %p212 = pneg %p110
        %p213 = pneg %p107
        %s214 = sand.u32 %s97, 1
        %s215 = scalar_lea.sflag [#allocation4], %s214
        %s216 = sand.u32 %s97, 1
        %s217 = smul.addr %s216, 32
        %s218 = scalar_lea.vmem [#allocation8], %s217
        %s219 = smul.u32 2, %s21
        %s220 = smul.u32 2, %s21
        %v222 = vld [vmem:[%s188] sm:$0xf]
        %v223 = vld [vmem:[%s188 + $0x4] sm:$0xf]
        %v224 = vld [vmem:[%s188 + $0x8] sm:$0xf]
        %v225 = vld [vmem:[%s188 + $0xc] sm:$0xf]
        %v226 = vld [vmem:[#allocation5] sm:$0xf]
        %v227 = vld [vmem:[#allocation5 + $0x4] sm:$0x3]
        %v232 = vunpack.c.l.b16 %v222
        %v233 = vunpack.c.l.b16 %v223
        %v234 = vunpack.c.l.b16 %v224
        %v235 = vunpack.c.l.b16 %v225
        %v236 = vpack.c.b16 %v233, %v232
        %v237 = vpack.c.b16 %v235, %v234
        %v240 = vunpack.c.l.b16 %v226
        %v241 = vunpack.c.l.b16 %v227
        %v242 = vpack.c.b16 %v241, %v240
        %vm243 = vcmask 97280
        %v245 = vsel %vm243, %v236, 0
        %v248 = vsel %vm243, %v237, 0
        %vm250 = vcmask 1045504
        %v252 = vsel %vm250, %v242, 0
        %254 = vmatprep.subr.bf16.mxu0 0
        %255 = vmatpush1.bf16.msra.mxu0 %v252
        %256 = vmatprep.subr.bf16.mxu0 0
        %257 = vmatpush1.bf16.msra.mxu0 0
        %258 = vmatprep.subr.bf16.mxu0 0
        %259 = vmatpush1.bf16.msra.mxu0 0
        %260 = vmatprep.subr.bf16.mxu0 0
        %261 = vmatpush1.bf16.msra.mxu0 0
        %262 = vmatprep.subr.bf16.mxu0 0
        %263 = vmatpush1.bf16.msra.mxu0 0
        %264 = vmatprep.subr.bf16.mxu0 0
        %265 = vmatpush1.bf16.msra.mxu0 0
        %266 = vmatprep.subr.bf16.mxu0 0
        %267 = vmatpush1.bf16.msra.mxu0 0
        %268 = vmatprep.subr.bf16.mxu0 0
        %269 = vmatpush1.bf16.msra.mxu0 0
        %270 = vmatprep.subr.bf16.mxu0 0
        %271 = vmatpush1.bf16.msra.mxu0 0
        %272 = vmatprep.subr.bf16.mxu0 0
        %273 = vmatpush1.bf16.msra.mxu0 0
        %274 = vmatprep.subr.bf16.mxu0 0
        %275 = vmatpush1.bf16.msra.mxu0 0
        %276 = vmatprep.subr.bf16.mxu0 0
        %277 = vmatpush1.bf16.msra.mxu0 0
        %278 = vmatprep.subr.bf16.mxu0 0
        %279 = vmatpush1.bf16.msra.mxu0 0
        %280 = vmatprep.subr.bf16.mxu0 0
        %281 = vmatpush1.bf16.msra.mxu0 0
        %282 = vmatprep.subr.bf16.mxu0 0
        %283 = vmatpush1.bf16.msra.mxu0 0
        %284 = vmatprep.subr.bf16.mxu0 0
        %285 = vmatpush1.bf16.msra.mxu0 0
        %286 = vmatprep.mubr.bf16.mxu0 0
        %287 = vmatmul.mubr.bf16.gmra.mrb[0].mxu0 %v245
        %v288 = vpop.f32.mrb[0].mxu0
        %v289 = vadd.f32 0.0, %v288
        %v290 = vpop.f32.mrb[0].mxu0
        %v291 = vpop.f32.mrb[0].mxu0
        %v292 = vadd.f32 0.0, %v291
        %v293 = vpop.f32.mrb[0].mxu0
        %294 = vmatprep.mubr.bf16.mxu0 0
        %295 = vmatmul.mubr.bf16.gmra.mrb[0].mxu0 %v248
        %v296 = vpop.f32.mrb[0].mxu0
        %v297 = vadd.f32 0.0, %v296
        %v298 = vpop.f32.mrb[0].mxu0
        %v299 = vpop.f32.mrb[0].mxu0
        %v300 = vadd.f32 0.0, %v299
        %v301 = vpop.f32.mrb[0].mxu0
        %302 = vdwg.mxu0
        %v303 = vld [vmem:[#allocation7] sm:$0xff]
        %v304 = vld [vmem:[#allocation7 + $0x8] sm:$0xff]
        %v305 = vadd.f32 %v289, %v303
        %v306 = vadd.f32 %v292, %v304
        %v307 = vadd.f32 %v297, %v303
        %v308 = vadd.f32 %v300, %v304
        %vm309 = vcmask 261120
        %310 = vst.msk [vmem:[%s218] sm:$0xff] %vm309, %v305
        %311 = vst.msk [vmem:[%s218 + $0x8] sm:$0xff] %vm309, %v306
        %312 = vst.msk [vmem:[%s218 + $0x10] sm:$0xff] %vm309, %v307
        %313 = vst.msk [vmem:[%s218 + $0x18] sm:$0xff] %vm309, %v308
        %s314 = sand.u32 %s97, 1
        %s315 = scalar_lea.sflag [#allocation4], %s314
        %s316 = sand.u32 %s97, 1
        %s317 = smul.addr %s316, 32
        %s318 = scalar_lea.vmem [#allocation8], %s317
        // Predicated region
        $region45: #{tsti_encoder_forward.6} parent=31 // pred_check
          %p319 = pneg %p107
        $region46: #{tsti_encoder_forward.6} parent=31 // pred_check_branch
          %321 = sbr.rel (%p319) target = $region48
        $region47: #{tsti_encoder_forward.6} parent=31 // pred_region
          %s322 = smul.u32 2, %s21
          %s324 = ssub.s32 512, 512
          %325 = vsyncadd %s315, %s324
          %s326 = smul.addr %s322, 2
          %s327 = smul.addr %s326, 128
          %s328 = scalar_lea.hbm %s3, %s327
          %s329 = sshll.u32 %s318, 4
          %s330 = int_to_ptr.vmem [resolvable:$true] %s329
          %335 = dma.vmem_to_hbm [thread:$0]  %s330, 512, %s328, %s315, 128, 128, 8
        $region48: #{tsti_encoder_forward.6} parent=31 // pred_fallthru
          _
      $region32: #{tsti_encoder_forward.6} parent=5 // pred_fallthru
        _
      %p336 = scmp.le.s32.totalorder 2, %s16
      // Predicated region
      $region49: #{tsti_encoder_forward.6} parent=5 // pred_check
        %p337 = pneg %p336
      $region50: #{tsti_encoder_forward.6} parent=5 // pred_check_branch
        %339 = sbr.rel (%p337) target = $region52
      $region51: #{tsti_encoder_forward.6} parent=5 // pred_region
        %s340 = ssub.s32 %s16, 2
        // Predicated region
        $region53: #{tsti_encoder_forward.6} parent=51 // pred_check
          %p341 = pneg %p113
        $region54: #{tsti_encoder_forward.6} parent=51 // pred_check_branch
          %343 = sbr.rel (%p341) target = $region56
        $region55: #{tsti_encoder_forward.6} parent=51 // pred_region
          %s344 = sand.u32 %s98, 1
          %s345 = scalar_lea.sflag [#allocation4], %s344
          %s346 = sand.u32 %s98, 1
          %s347 = smul.addr %s346, 32
          %s348 = scalar_lea.vmem [#allocation8], %s347
          %349 = dma.done %s345, 512
        $region56: #{tsti_encoder_forward.6} parent=51 // pred_fallthru
          _
      $region52: #{tsti_encoder_forward.6} parent=5 // pred_fallthru
        _
    $region6: #{tsti_encoder_forward.6} parent=1 // loop_footer
      %s20 = sadd.s32 1, %s16
    $region7: #{tsti_encoder_forward.6} parent=1 // loop_footer_branch
      %15 = sbr.rel target = $region3
    $region8: #{tsti_encoder_forward.6} parent=1 // loop_exit
      _
    %350 = vsyncpa [#allocation3], 1
    %s351 = scalar_lea.sflag [#allocation3], 1
    %352 = vsyncpa %s351, 1
    %353 = vsyncpa [#allocation6], 1
    %354 = vsyncpa [#allocation4], 1
    %s355 = scalar_lea.sflag [#allocation4], 1
    %356 = vsyncpa %s355, 1

// kernel: tsti_encoder_forward.8
$region0: #{tsti_encoder_forward.8}
  #allocation0 [shape = 'u32[]', space=smem, size = 0x4, offset = 0x4, fixed_abs, tag = 'smem constant byte address 0x4 - core index']
  #allocation1 [shape = 'u32[144,128]{1,0:T(1,128)}', space=vmem, size = 0x12000, scoped, tag = 'internal scratch']
  %s0 = inlined_call_operand.hbm [shape: f32[6,16,32], index: 0, kind: input, shape index: {}]
  %s1 = inlined_call_operand.hbm [shape: f32[4,32], index: 1, kind: input, shape index: {}]
  %s2 = inlined_call_operand.hbm [shape: bf16[32,64], index: 2, kind: input, shape index: {}]
  %s3 = inlined_call_operand.hbm [shape: f32[1,64], index: 3, kind: input, shape index: {}]
  %s4 = inlined_call_operand.hbm [shape: bf16[64,32], index: 4, kind: input, shape index: {}]
  %s5 = inlined_call_operand.hbm [shape: f32[1,32], index: 5, kind: input, shape index: {}]
  %s6 = inlined_call_operand.hbm [shape: f32[6,16,32], index: 6, kind: output, shape index: {0}]
  %s7 = inlined_call_operand.hbm [shape: f32[3,2,32], index: 7, kind: output, shape index: {1}]
  %8 = xla_tuple %s6, %s7
  %s9 = sld [smem:[#allocation0]]
  $region89: #{tsti_encoder_forward.8} parent=0
    _
  %s11 = ssub.s32 1, %s9
  %s12 = scalar_select 0, %s11, %s9
  $region1: #{tsti_encoder_forward.8} parent=0
    #allocation2 [shape = 'u8[32768]{0}', space=vmem, size = 0x8000, scoped, tag = 'input window, operand 0']
    #allocation3 [shape = 's32[2]{0}', space=sflag, size = 0x8, scoped, tag = 'scoped memory for tsti_encoder_forward.8']
    #allocation4 [shape = 's32[2]{0}', space=sflag, size = 0x8, scoped, tag = 'scoped memory for tsti_encoder_forward.8']
    #allocation5 [shape = 'u8[2048]{0}', space=vmem, size = 0x800, scoped, tag = 'input window, operand 1, single buffered']
    #allocation6 [shape = 's32[1]{0}', space=sflag, size = 0x4, scoped, tag = 'scoped memory for tsti_encoder_forward.8']
    #allocation7 [shape = 'u8[8192]{0}', space=vmem, size = 0x2000, scoped, tag = 'input window, operand 2, single buffered']
    #allocation8 [shape = 'u8[512]{0}', space=vmem, size = 0x400, scoped, tag = 'input window, operand 3, single buffered']
    #allocation9 [shape = 's32[1]{0}', space=sflag, size = 0x4, scoped, tag = 'scoped memory for tsti_encoder_forward.8']
    #allocation10 [shape = 'u8[16384]{0}', space=vmem, size = 0x4000, scoped, tag = 'input window, operand 4, single buffered']
    #allocation11 [shape = 'u8[512]{0}', space=vmem, size = 0x400, scoped, tag = 'input window, operand 5, single buffered']
    #allocation12 [shape = 's32[1]{0}', space=sflag, size = 0x4, scoped, tag = 'scoped memory for tsti_encoder_forward.8']
    #allocation13 [shape = 'u8[32768]{0}', space=vmem, size = 0x8000, scoped, tag = 'output window, operand 0']
    #allocation14 [shape = 'u8[2048]{0}', space=vmem, size = 0x800, scoped, tag = 'output window, operand 1']
    #allocation15 [shape = 's32[2]{0}', space=sflag, size = 0x8, scoped, tag = 'scoped memory for tsti_encoder_forward.8']
    %13 = vsyncpa [#allocation3], 0
    %s14 = scalar_lea.sflag [#allocation3], 1
    %15 = vsyncpa %s14, 0
    %16 = vsyncpa [#allocation6], 0
    %17 = vsyncpa [#allocation9], 0
    %18 = vsyncpa [#allocation12], 0
    %19 = vsyncpa [#allocation4], 0
    %s20 = scalar_lea.sflag [#allocation4], 1
    %21 = vsyncpa %s20, 0
    %22 = vsyncpa [#allocation15], 0
    %s23 = scalar_lea.sflag [#allocation15], 1
    %24 = vsyncpa %s23, 0
    loop: start=0, step=1, limit=5
    $region2: #{tsti_encoder_forward.8} parent=1 // loop_pre_header
      _
    $region3: #{tsti_encoder_forward.8} parent=1 // loop_header
      %s26 = sphi 0, %s30
      %p27 = scmp.ge.s32.totalorder %s26, 5
      %s36 = sphi 0, %s38
      %s39 = sphi 0, %s36
      %s40 = sphi 0, %s39
      %s56 = sphi 0, %s40
      %s60 = sphi 0, %s60
      %s62 = sphi 0, %s60
      %s63 = sphi 0, %s62
      %s77 = sphi 0, %s63
      %s81 = sphi 0, %s81
      %s83 = sphi 0, %s81
      %s84 = sphi 0, %s83
      %s98 = sphi 0, %s84
      %s102 = sphi 0, %s102
      %s104 = sphi 0, %s102
      %s105 = sphi 0, %s104
      %s119 = sphi 0, %s105
      %s123 = sphi 0, %s123
      %s125 = sphi 0, %s123
      %s126 = sphi 0, %s125
      %s140 = sphi 0, %s126
      %s144 = sphi 0, %s144
      %s146 = sphi 0, %s144
      %s147 = sphi 0, %s146
      %s161 = sphi 0, %s147
      %s167 = sphi 0, %s169
      %s170 = sphi 0, %s167
      %s171 = sphi 0, %s170
      %s187 = sphi 0, %s171
      %s193 = sphi 0, %s195
      %s196 = sphi 0, %s193
      %s197 = sphi 0, %s196
      %s213 = sphi 0, %s197
    $region4: #{tsti_encoder_forward.8} parent=1 // loop_header_branch
      %29 = sbr.rel (%p27) target = $region8
    $region5: #{tsti_encoder_forward.8} parent=1 // loop_body
      %s31 = ssub.s32 %s26, 1
      %s32 = ssub.s32 %s26, 2
      %s33 = sadd.s32 %s26, 1
      %s34 = ssub.s32 %s26, %s33
      %p35 = scmp.eq.s32.totalorder %s34, 0
      %s37 = sadd.s32 %s36, 1
      %s38 = scalar_select %p35, %s36, %s37
      %p41 = pneg %p35
      %p42 = scmp.eq.s32.totalorder %s26, 2
      %p43 = por %p41, %p42
      %p44 = scmp.ne.s32.totalorder %s36, %s39
      %p45 = scmp.eq.s32.totalorder %s26, 0
      %p46 = por %p44, %p45
      %p47 = scmp.ne.s32.totalorder %s36, %s39
      %p48 = scmp.eq.s32.totalorder %s31, 2
      %p49 = por %p47, %p48
      %p50 = scmp.ne.s32.totalorder %s39, %s40
      %p51 = scmp.eq.s32.totalorder %s31, 0
      %p52 = por %p50, %p51
      %p53 = scmp.ne.s32.totalorder %s39, %s40
      %p54 = scmp.eq.s32.totalorder %s32, 2
      %p55 = por %p53, %p54
      %p57 = scmp.ne.s32.totalorder %s40, %s56
      %p58 = scmp.eq.s32.totalorder %s32, 0
      %p59 = por %p57, %p58
      %s61 = sadd.s32 %s60, 1
      %p64 = scmp.eq.s32.totalorder %s26, 2
      %p65 = scmp.ne.s32.totalorder %s60, %s62
      %p66 = scmp.eq.s32.totalorder %s26, 0
      %p67 = por %p65, %p66
      %p68 = scmp.ne.s32.totalorder %s60, %s62
      %p69 = scmp.eq.s32.totalorder %s31, 2
      %p70 = por %p68, %p69
      %p71 = scmp.ne.s32.totalorder %s62, %s63
      %p72 = scmp.eq.s32.totalorder %s31, 0
      %p73 = por %p71, %p72
      %p74 = scmp.ne.s32.totalorder %s62, %s63
      %p75 = scmp.eq.s32.totalorder %s32, 2
      %p76 = por %p74, %p75
      %p78 = scmp.ne.s32.totalorder %s63, %s77
      %p79 = scmp.eq.s32.totalorder %s32, 0
      %p80 = por %p78, %p79
      %s82 = sadd.s32 %s81, 1
      %p85 = scmp.eq.s32.totalorder %s26, 2
      %p86 = scmp.ne.s32.totalorder %s81, %s83
      %p87 = scmp.eq.s32.totalorder %s26, 0
      %p88 = por %p86, %p87
      %p89 = scmp.ne.s32.totalorder %s81, %s83
      %p90 = scmp.eq.s32.totalorder %s31, 2
      %p91 = por %p89, %p90
      %p92 = scmp.ne.s32.totalorder %s83, %s84
      %p93 = scmp.eq.s32.totalorder %s31, 0
      %p94 = por %p92, %p93
      %p95 = scmp.ne.s32.totalorder %s83, %s84
      %p96 = scmp.eq.s32.totalorder %s32, 2
      %p97 = por %p95, %p96
      %p99 = scmp.ne.s32.totalorder %s84, %s98
      %p100 = scmp.eq.s32.totalorder %s32, 0
      %p101 = por %p99, %p100
      %s103 = sadd.s32 %s102, 1
      %p106 = scmp.eq.s32.totalorder %s26, 2
      %p107 = scmp.ne.s32.totalorder %s102, %s104
      %p108 = scmp.eq.s32.totalorder %s26, 0
      %p109 = por %p107, %p108
      %p110 = scmp.ne.s32.totalorder %s102, %s104
      %p111 = scmp.eq.s32.totalorder %s31, 2
      %p112 = por %p110, %p111
      %p113 = scmp.ne.s32.totalorder %s104, %s105
      %p114 = scmp.eq.s32.totalorder %s31, 0
      %p115 = por %p113, %p114
      %p116 = scmp.ne.s32.totalorder %s104, %s105
      %p117 = scmp.eq.s32.totalorder %s32, 2
      %p118 = por %p116, %p117
      %p120 = scmp.ne.s32.totalorder %s105, %s119
      %p121 = scmp.eq.s32.totalorder %s32, 0
      %p122 = por %p120, %p121
      %s124 = sadd.s32 %s123, 1
      %p127 = scmp.eq.s32.totalorder %s26, 2
      %p128 = scmp.ne.s32.totalorder %s123, %s125
      %p129 = scmp.eq.s32.totalorder %s26, 0
      %p130 = por %p128, %p129
      %p131 = scmp.ne.s32.totalorder %s123, %s125
      %p132 = scmp.eq.s32.totalorder %s31, 2
      %p133 = por %p131, %p132
      %p134 = scmp.ne.s32.totalorder %s125, %s126
      %p135 = scmp.eq.s32.totalorder %s31, 0
      %p136 = por %p134, %p135
      %p137 = scmp.ne.s32.totalorder %s125, %s126
      %p138 = scmp.eq.s32.totalorder %s32, 2
      %p139 = por %p137, %p138
      %p141 = scmp.ne.s32.totalorder %s126, %s140
      %p142 = scmp.eq.s32.totalorder %s32, 0
      %p143 = por %p141, %p142
      %s145 = sadd.s32 %s144, 1
      %p148 = scmp.eq.s32.totalorder %s26, 2
      %p149 = scmp.ne.s32.totalorder %s144, %s146
      %p150 = scmp.eq.s32.totalorder %s26, 0
      %p151 = por %p149, %p150
      %p152 = scmp.ne.s32.totalorder %s144, %s146
      %p153 = scmp.eq.s32.totalorder %s31, 2
      %p154 = por %p152, %p153
      %p155 = scmp.ne.s32.totalorder %s146, %s147
      %p156 = scmp.eq.s32.totalorder %s31, 0
      %p157 = por %p155, %p156
      %p158 = scmp.ne.s32.totalorder %s146, %s147
      %p159 = scmp.eq.s32.totalorder %s32, 2
      %p160 = por %p158, %p159
      %p162 = scmp.ne.s32.totalorder %s147, %s161
      %p163 = scmp.eq.s32.totalorder %s32, 0
      %p164 = por %p162, %p163
      %s165 = ssub.s32 %s26, %s33
      %p166 = scmp.eq.s32.totalorder %s165, 0
      %s168 = sadd.s32 %s167, 1
      %s169 = scalar_select %p166, %s167, %s168
      %p172 = pneg %p166
      %p173 = scmp.eq.s32.totalorder %s26, 2
      %p174 = por %p172, %p173
      %p175 = scmp.ne.s32.totalorder %s167, %s170
      %p176 = scmp.eq.s32.totalorder %s26, 0
      %p177 = por %p175, %p176
      %p178 = scmp.ne.s32.totalorder %s167, %s170
      %p179 = scmp.eq.s32.totalorder %s31, 2
      %p180 = por %p178, %p179
      %p181 = scmp.ne.s32.totalorder %s170, %s171
      %p182 = scmp.eq.s32.totalorder %s31, 0
      %p183 = por %p181, %p182
      %p184 = scmp.ne.s32.totalorder %s170, %s171
      %p185 = scmp.eq.s32.totalorder %s32, 2
      %p186 = por %p184, %p185
      %p188 = scmp.ne.s32.totalorder %s171, %s187
      %p189 = scmp.eq.s32.totalorder %s32, 0
      %p190 = por %p188, %p189
      %s191 = ssub.s32 %s26, %s33
      %p192 = scmp.eq.s32.totalorder %s191, 0
      %s194 = sadd.s32 %s193, 1
      %s195 = scalar_select %p192, %s193, %s194
      %p198 = pneg %p192
      %p199 = scmp.eq.s32.totalorder %s26, 2
      %p200 = por %p198, %p199
      %p201 = scmp.ne.s32.totalorder %s193, %s196
      %p202 = scmp.eq.s32.totalorder %s26, 0
      %p203 = por %p201, %p202
      %p204 = scmp.ne.s32.totalorder %s193, %s196
      %p205 = scmp.eq.s32.totalorder %s31, 2
      %p206 = por %p204, %p205
      %p207 = scmp.ne.s32.totalorder %s196, %s197
      %p208 = scmp.eq.s32.totalorder %s31, 0
      %p209 = por %p207, %p208
      %p210 = scmp.ne.s32.totalorder %s196, %s197
      %p211 = scmp.eq.s32.totalorder %s32, 2
      %p212 = por %p210, %p211
      %p214 = scmp.ne.s32.totalorder %s197, %s213
      %p215 = scmp.eq.s32.totalorder %s32, 0
      %p216 = por %p214, %p215
      %p217 = scmp.le.s32.totalorder 1, %s26
      %p218 = scmp.lt.s32.totalorder %s26, 4
      %p219 = pnand %p217, %p218
      %p220 = pneg %p219
      // Predicated region
      $region9: #{tsti_encoder_forward.8} parent=5 // pred_check
        _
      $region10: #{tsti_encoder_forward.8} parent=5 // pred_check_branch
        %222 = sbr.rel (%p219) target = $region12
      $region11: #{tsti_encoder_forward.8} parent=5 // pred_region
        %s223 = ssub.s32 %s26, 1
        // Predicated region
        $region13: #{tsti_encoder_forward.8} parent=11 // pred_check
          %p224 = pneg %p73
        $region14: #{tsti_encoder_forward.8} parent=11 // pred_check_branch
          %226 = sbr.rel (%p224) target = $region16
        $region15: #{tsti_encoder_forward.8} parent=11 // pred_region
          %s228 = ssub.s32 64, 64
          %229 = vsyncadd [#allocation6], %s228
          %s231 = sshll.u32 [#allocation5], 4
          %s232 = int_to_ptr.vmem [resolvable:$true] %s231
          %234 = dma.hbm_to_vmem [thread:$0]  %s1, 64, %s232, [#allocation6]
        $region16: #{tsti_encoder_forward.8} parent=11 // pred_fallthru
          _
        // Predicated region
        $region17: #{tsti_encoder_forward.8} parent=11 // pred_check
          %p235 = pneg %p94
        $region18: #{tsti_encoder_forward.8} parent=11 // pred_check_branch
          %237 = sbr.rel (%p235) target = $region20
        $region19: #{tsti_encoder_forward.8} parent=11 // pred_region
          %s239 = ssub.s32 256, 256
          %240 = vsyncadd [#allocation6], %s239
          %s241 = sshll.u32 [#allocation7], 4
          %s242 = int_to_ptr.vmem [resolvable:$true] %s241
          %247 = dma.hbm_to_vmem [thread:$0]  %s2, 256, %s242, [#allocation6], 64, 64, 4
        $region20: #{tsti_encoder_forward.8} parent=11 // pred_fallthru
          _
        // Predicated region
        $region21: #{tsti_encoder_forward.8} parent=11 // pred_check
          %p248 = pneg %p115
        $region22: #{tsti_encoder_forward.8} parent=11 // pred_check_branch
          %250 = sbr.rel (%p248) target = $region24
        $region23: #{tsti_encoder_forward.8} parent=11 // pred_region
          %s252 = ssub.s32 16, 16
          %253 = vsyncadd [#allocation9], %s252
          %s255 = sshll.u32 [#allocation8], 4
          %s256 = int_to_ptr.vmem [resolvable:$true] %s255
          %258 = dma.hbm_to_vmem [thread:$0]  %s3, 16, %s256, [#allocation9]
        $region24: #{tsti_encoder_forward.8} parent=11 // pred_fallthru
          _
        // Predicated region
        $region25: #{tsti_encoder_forward.8} parent=11 // pred_check
          %p259 = pneg %p136
        $region26: #{tsti_encoder_forward.8} parent=11 // pred_check_branch
          %261 = sbr.rel (%p259) target = $region28
        $region27: #{tsti_encoder_forward.8} parent=11 // pred_region
          %s263 = ssub.s32 512, 512
          %264 = vsyncadd [#allocation9], %s263
          %s265 = sshll.u32 [#allocation10], 4
          %s266 = int_to_ptr.vmem [resolvable:$true] %s265
          %271 = dma.hbm_to_vmem [thread:$0]  %s4, 512, %s266, [#allocation9], 64, 64, 4
        $region28: #{tsti_encoder_forward.8} parent=11 // pred_fallthru
          _
        // Predicated region
        $region29: #{tsti_encoder_forward.8} parent=11 // pred_check
          %p272 = pneg %p157
        $region30: #{tsti_encoder_forward.8} parent=11 // pred_check_branch
          %274 = sbr.rel (%p272) target = $region32
        $region31: #{tsti_encoder_forward.8} parent=11 // pred_region
          %s276 = ssub.s32 16, 16
          %277 = vsyncadd [#allocation12], %s276
          %s279 = sshll.u32 [#allocation11], 4
          %s280 = int_to_ptr.vmem [resolvable:$true] %s279
          %282 = dma.hbm_to_vmem [thread:$0]  %s5, 16, %s280, [#allocation12]
        $region32: #{tsti_encoder_forward.8} parent=11 // pred_fallthru
          _
      $region12: #{tsti_encoder_forward.8} parent=5 // pred_fallthru
        _
      %p283 = scmp.lt.s32.totalorder %s26, 3
      // Predicated region
      $region33: #{tsti_encoder_forward.8} parent=5 // pred_check
        %p284 = pneg %p283
      $region34: #{tsti_encoder_forward.8} parent=5 // pred_check_branch
        %286 = sbr.rel (%p284) target = $region36
      $region35: #{tsti_encoder_forward.8} parent=5 // pred_region
        // Predicated region
        $region37: #{tsti_encoder_forward.8} parent=35 // pred_check
          %p287 = pneg %p46
        $region38: #{tsti_encoder_forward.8} parent=35 // pred_check_branch
          %289 = sbr.rel (%p287) target = $region40
        $region39: #{tsti_encoder_forward.8} parent=35 // pred_region
          %s290 = sand.u32 %s36, 1
          %s291 = scalar_lea.sflag [#allocation3], %s290
          %s292 = sand.u32 %s36, 1
          %s293 = smul.addr %s292, 32
          %s294 = scalar_lea.vmem [#allocation2], %s293
          %s295 = smul.u32 2, %s26
          %s297 = ssub.s32 512, 512
          %298 = vsyncadd %s291, %s297
          %s299 = smul.addr %s295, 2
          %s300 = smul.addr %s299, 128
          %s301 = scalar_lea.hbm %s0, %s300
          %s302 = sshll.u32 %s294, 4
          %s303 = int_to_ptr.vmem [resolvable:$true] %s302
          %308 = dma.hbm_to_vmem [thread:$0]  %s301, 512, %s303, %s291, 128, 128, 8
        $region40: #{tsti_encoder_forward.8} parent=35 // pred_fallthru
          _
      $region36: #{tsti_encoder_forward.8} parent=5 // pred_fallthru
        _
      %p309 = scmp.le.s32.totalorder 1, %s26
      %p310 = scmp.lt.s32.totalorder %s26, 4
      %p311 = pnand %p309, %p310
      %p312 = pneg %p311
      // Predicated region
      $region41: #{tsti_encoder_forward.8} parent=5 // pred_check
        _
      $region42: #{tsti_encoder_forward.8} parent=5 // pred_check_branch
        %314 = sbr.rel (%p311) target = $region44
      $region43: #{tsti_encoder_forward.8} parent=5 // pred_region
        %s315 = ssub.s32 %s26, 1
        %s316 = sand.u32 %s39, 1
        %s317 = scalar_lea.sflag [#allocation3], %s316
        %s318 = sand.u32 %s39, 1
        %s319 = smul.addr %s318, 32
        %s320 = scalar_lea.vmem [#allocation2], %s319
        // Predicated region
        $region45: #{tsti_encoder_forward.8} parent=43 // pred_check
          %p321 = pneg %p52
        $region46: #{tsti_encoder_forward.8} parent=43 // pred_check_branch
          %323 = sbr.rel (%p321) target = $region48
        $region47: #{tsti_encoder_forward.8} parent=43 // pred_region
          %324 = dma.done %s317, 512
        $region48: #{tsti_encoder_forward.8} parent=43 // pred_fallthru
          _
        // Predicated region
        $region49: #{tsti_encoder_forward.8} parent=43 // pred_check
          %p325 = pneg %p73
        $region50: #{tsti_encoder_forward.8} parent=43 // pred_check_branch
          %327 = sbr.rel (%p325) target = $region52
        $region51: #{tsti_encoder_forward.8} parent=43 // pred_region
          %328 = dma.done [#allocation6], 64
        $region52: #{tsti_encoder_forward.8} parent=43 // pred_fallthru
          _
        // Predicated region
        $region53: #{tsti_encoder_forward.8} parent=43 // pred_check
          %p329 = pneg %p94
        $region54: #{tsti_encoder_forward.8} parent=43 // pred_check_branch
          %331 = sbr.rel (%p329) target = $region56
        $region55: #{tsti_encoder_forward.8} parent=43 // pred_region
          %332 = dma.done [#allocation6], 256
        $region56: #{tsti_encoder_forward.8} parent=43 // pred_fallthru
          _
        // Predicated region
        $region57: #{tsti_encoder_forward.8} parent=43 // pred_check
          %p333 = pneg %p115
        $region58: #{tsti_encoder_forward.8} parent=43 // pred_check_branch
          %335 = sbr.rel (%p333) target = $region60
        $region59: #{tsti_encoder_forward.8} parent=43 // pred_region
          %336 = dma.done [#allocation9], 16
        $region60: #{tsti_encoder_forward.8} parent=43 // pred_fallthru
          _
        // Predicated region
        $region61: #{tsti_encoder_forward.8} parent=43 // pred_check
          %p337 = pneg %p136
        $region62: #{tsti_encoder_forward.8} parent=43 // pred_check_branch
          %339 = sbr.rel (%p337) target = $region64
        $region63: #{tsti_encoder_forward.8} parent=43 // pred_region
          %340 = dma.done [#allocation9], 512
        $region64: #{tsti_encoder_forward.8} parent=43 // pred_fallthru
          _
        // Predicated region
        $region65: #{tsti_encoder_forward.8} parent=43 // pred_check
          %p341 = pneg %p157
        $region66: #{tsti_encoder_forward.8} parent=43 // pred_check_branch
          %343 = sbr.rel (%p341) target = $region68
        $region67: #{tsti_encoder_forward.8} parent=43 // pred_region
          %344 = dma.done [#allocation12], 16
        $region68: #{tsti_encoder_forward.8} parent=43 // pred_fallthru
          _
        %s345 = sand.u32 %s39, 1
        %s346 = scalar_lea.sflag [#allocation3], %s345
        %s347 = sand.u32 %s39, 1
        %s348 = smul.addr %s347, 32
        %s349 = scalar_lea.vmem [#allocation2], %s348
        %p350 = pneg %p52
        %p351 = pneg %p49
        %p352 = pneg %p73
        %p353 = pneg %p70
        %p354 = pneg %p94
        %p355 = pneg %p91
        %p356 = pneg %p115
        %p357 = pneg %p112
        %p358 = pneg %p136
        %p359 = pneg %p133
        %p360 = pneg %p157
        %p361 = pneg %p154
        %p362 = pneg %p183
        %p363 = pneg %p180
        %s364 = sand.u32 %s170, 1
        %s365 = scalar_lea.sflag [#allocation4], %s364
        %s366 = sand.u32 %s170, 1
        %s367 = smul.addr %s366, 32
        %s368 = scalar_lea.vmem [#allocation13], %s367
        %p369 = pneg %p209
        %p370 = pneg %p206
        %s371 = sand.u32 %s196, 1
        %s372 = scalar_lea.sflag [#allocation15], %s371
        %s373 = sand.u32 %s196, 1
        %s374 = smul.addr %s373, 2
        %s375 = scalar_lea.vmem [#allocation14], %s374
        %s376 = smul.u32 2, %s31
        %s377 = smul.u32 2, %s31
        %v379 = vld [vmem:[%s320] sm:$0xff]
        %v380 = vld [vmem:[%s320 + $0x8] sm:$0xff]
        %v381 = vld [vmem:[%s320 + $0x10] sm:$0xff]
        %v382 = vld [vmem:[%s320 + $0x18] sm:$0xff]
        %v383 = vld [vmem:[#allocation5] sm:$0xf]
        %v384 = vlaneseq
        %v385 = vshrl.u32 %v384, 7
        %v386 = vsub.s32 0, %v385
        %v387 = vrot.slane %v383, %v386
        %v388 = vsub.f32 %v379, %v387
        %v389 = vsub.f32 %v380, %v387
        %v390 = vsub.f32 %v381, %v387
        %v391 = vsub.f32 %v382, %v387
        %v392 = vlaneseq
        %v393 = vshrl.u32 %v392, 7
        %v394 = vsub.s32 1, %v393
        %v395 = vrot.slane %v383, %v394
        %v396 = vmul.f32 %v388, %v395
        %v397 = vmul.f32 %v389, %v395
        %v398 = vmul.f32 %v390, %v395
        %v399 = vmul.f32 %v391, %v395
        %v400 = vlaneseq
        %v401 = vshrl.u32 %v400, 7
        %v402 = vsub.s32 2, %v401
        %v403 = vrot.slane %v383, %v402
        %v404 = vmul.f32 %v396, %v403
        %v405 = vmul.f32 %v397, %v403
        %v406 = vmul.f32 %v398, %v403
        %v407 = vmul.f32 %v399, %v403
        %v408 = vlaneseq
        %v409 = vshrl.u32 %v408, 7
        %v410 = vsub.s32 3, %v409
        %v411 = vrot.slane %v383, %v410
        %v412 = vadd.f32 %v404, %v411
        %v413 = vadd.f32 %v405, %v411
        %v414 = vadd.f32 %v406, %v411
        %v415 = vadd.f32 %v407, %v411
        %v416 = vpack.c.bf16 %v413, %v412
        %v417 = vpack.c.bf16 %v415, %v414
        %v418 = vld [vmem:[#allocation7] sm:$0xf]
        %v419 = vld [vmem:[#allocation7 + $0x4] sm:$0xf]
        %v420 = vld [vmem:[#allocation7 + $0x8] sm:$0xf]
        %v421 = vld [vmem:[#allocation7 + $0xc] sm:$0xf]
        %v422 = vld [vmem:[#allocation8] sm:$0x1]
        %v424 = vlaneseq
        %v425 = vshrl.u32 %v424, 7
        %v426 = vsub.s32 0, %v425
        %v427 = vrot.slane %v422, %v426
        %v433 = vunpack.c.l.b16 %v418
        %v434 = vunpack.c.l.b16 %v419
        %v435 = vunpack.c.l.b16 %v420
        %v436 = vunpack.c.l.b16 %v421
        %v437 = vpack.c.b16 %v434, %v433
        %v438 = vpack.c.b16 %v436, %v435
        %vm441 = vcmask 261120
        %v443 = vsel %vm441, %v416, 0
        %v446 = vsel %vm441, %v417, 0
        %448 = vmatprep.subr.bf16.mxu0 0
        %449 = vmatpush1.bf16.msra.mxu0 %v437
        %450 = vmatprep.subr.bf16.mxu0 0
        %451 = vmatpush1.bf16.msra.mxu0 %v438
        %452 = vmatprep.subr.bf16.mxu0 0
        %453 = vmatpush1.bf16.msra.mxu0 0
        %454 = vmatprep.subr.bf16.mxu0 0
        %455 = vmatpush1.bf16.msra.mxu0 0
        %456 = vmatprep.subr.bf16.mxu0 0
        %457 = vmatpush1.bf16.msra.mxu0 0
        %458 = vmatprep.subr.bf16.mxu0 0
        %459 = vmatpush1.bf16.msra.mxu0 0
        %460 = vmatprep.subr.bf16.mxu0 0
        %461 = vmatpush1.bf16.msra.mxu0 0
        %462 = vmatprep.subr.bf16.mxu0 0
        %463 = vmatpush1.bf16.msra.mxu0 0
        %464 = vmatprep.subr.bf16.mxu0 0
        %465 = vmatpush1.bf16.msra.mxu0 0
        %466 = vmatprep.subr.bf16.mxu0 0
        %467 = vmatpush1.bf16.msra.mxu0 0
        %468 = vmatprep.subr.bf16.mxu0 0
        %469 = vmatpush1.bf16.msra.mxu0 0
        %470 = vmatprep.subr.bf16.mxu0 0
        %471 = vmatpush1.bf16.msra.mxu0 0
        %472 = vmatprep.subr.bf16.mxu0 0
        %473 = vmatpush1.bf16.msra.mxu0 0
        %474 = vmatprep.subr.bf16.mxu0 0
        %475 = vmatpush1.bf16.msra.mxu0 0
        %476 = vmatprep.subr.bf16.mxu0 0
        %477 = vmatpush1.bf16.msra.mxu0 0
        %478 = vmatprep.subr.bf16.mxu0 0
        %479 = vmatpush1.bf16.msra.mxu0 0
        %480 = vmatprep.mubr.bf16.mxu0 0
        %481 = vmatmul.mubr.bf16.gmra.mrb[0].mxu0 %v443
        %v482 = vpop.f32.mrb[0].mxu0
        %v483 = vadd.f32 %v427, %v482
        %v484 = vpop.f32.mrb[0].mxu0
        %v485 = vpop.f32.mrb[0].mxu0
        %v486 = vadd.f32 %v427, %v485
        %v487 = vpop.f32.mrb[0].mxu0
        %488 = vmatprep.mubr.bf16.mxu0 0
        %489 = vmatmul.mubr.bf16.gmra.mrb[0].mxu0 %v446
        %v490 = vpop.f32.mrb[0].mxu0
        %v491 = vadd.f32 %v427, %v490
        %v492 = vpop.f32.mrb[0].mxu0
        %v493 = vpop.f32.mrb[0].mxu0
        %v494 = vadd.f32 %v427, %v493
        %v495 = vpop.f32.mrb[0].mxu0
        %496 = vdwg.mxu0
        %v497 = vmul.f32 %v483, 0.5
        %v498 = vmul.f32 %v486, 0.5
        %v499 = vmul.f32 %v491, 0.5
        %v500 = vmul.f32 %v494, 0.5
        %v501 = vmul.f32 %v483, 0.044715
        %v502 = vmul.f32 %v486, 0.044715
        %v503 = vmul.f32 %v491, 0.044715
        %v504 = vmul.f32 %v494, 0.044715
        %v505 = vmul.f32 %v501, %v483
        %v506 = vmul.f32 %v502, %v486
        %v507 = vmul.f32 %v503, %v491
        %v508 = vmul.f32 %v504, %v494
        %v509 = vmul.f32 %v505, %v483
        %v510 = vmul.f32 %v506, %v486
        %v511 = vmul.f32 %v507, %v491
        %v512 = vmul.f32 %v508, %v494
        %v513 = vadd.f32 %v483, %v509
        %v514 = vadd.f32 %v486, %v510
        %v515 = vadd.f32 %v491, %v511
        %v516 = vadd.f32 %v494, %v512
        %v517 = vmul.f32 %v513, 0.7978846
        %v518 = vmul.f32 %v514, 0.7978846
        %v519 = vmul.f32 %v515, 0.7978846
        %v520 = vmul.f32 %v516, 0.7978846
        %v521 = vtanh.pop %v517
        %v522 = vtanh.pop %v518
        %v523 = vtanh.pop %v519
        %v524 = vtanh.pop %v520
        %v525 = vadd.f32 %v521, 1.0
        %v526 = vadd.f32 %v522, 1.0
        %v527 = vadd.f32 %v523, 1.0
        %v528 = vadd.f32 %v524, 1.0
        %v529 = vmul.f32 %v497, %v525
        %v530 = vmul.f32 %v498, %v526
        %v531 = vmul.f32 %v499, %v527
        %v532 = vmul.f32 %v500, %v528
        %v533 = vpack.c.bf16 %v530, %v529
        %v534 = vpack.c.bf16 %v532, %v531
        %v535 = vld [vmem:[#allocation10] sm:$0xf]
        %v536 = vld [vmem:[#allocation10 + $0x4] sm:$0xf]
        %v537 = vld [vmem:[#allocation10 + $0x8] sm:$0xf]
        %v538 = vld [vmem:[#allocation10 + $0xc] sm:$0xf]
        %v539 = vld [vmem:[#allocation10 + $0x10] sm:$0xf]
        %v540 = vld [vmem:[#allocation10 + $0x14] sm:$0xf]
        %v541 = vld [vmem:[#allocation10 + $0x18] sm:$0xf]
        %v542 = vld [vmem:[#allocation10 + $0x1c] sm:$0xf]
        %v543 = vld [vmem:[#allocation11] sm:$0x1]
        %v545 = vlaneseq
        %v546 = vshrl.u32 %v545, 7
        %v547 = vsub.s32 0, %v546
        %v548 = vrot.slane %v543, %v547
        %v558 = vunpack.c.l.b16 %v535
        %v559 = vunpack.c.l.b16 %v536
        %v560 = vunpack.c.l.b16 %v537
        %v561 = vunpack.c.l.b16 %v538
        %v562 = vunpack.c.l.b16 %v539
        %v563 = vunpack.c.l.b16 %v540
        %v564 = vunpack.c.l.b16 %v541
        %v565 = vunpack.c.l.b16 %v542
        %v566 = vpack.c.b16 %v559, %v558
        %v567 = vpack.c.b16 %v561, %v560
        %v568 = vpack.c.b16 %v563, %v562
        %v569 = vpack.c.b16 %v565, %v564
        %vm574 = vcmask 523264
        %v576 = vsel %vm574, %v533, 0
        %v579 = vsel %vm574, %v534, 0
        %581 = vmatprep.subr.bf16.mxu0 0
        %582 = vmatpush1.bf16.msra.mxu0 %v566
        %583 = vmatprep.subr.bf16.mxu0 0
        %584 = vmatpush1.bf16.msra.mxu0 %v567
        %585 = vmatprep.subr.bf16.mxu0 0
        %586 = vmatpush1.bf16.msra.mxu0 %v568
        %587 = vmatprep.subr.bf16.mxu0 0
        %588 = vmatpush1.bf16.msra.mxu0 %v569
        %589 = vmatprep.subr.bf16.mxu0 0
        %590 = vmatpush1.bf16.msra.mxu0 0
        %591 = vmatprep.subr.bf16.mxu0 0
        %592 = vmatpush1.bf16.msra.mxu0 0
        %593 = vmatprep.subr.bf16.mxu0 0
        %594 = vmatpush1.bf16.msra.mxu0 0
        %595 = vmatprep.subr.bf16.mxu0 0
        %596 = vmatpush1.bf16.msra.mxu0 0
        %597 = vmatprep.subr.bf16.mxu0 0
        %598 = vmatpush1.bf16.msra.mxu0 0
        %599 = vmatprep.subr.bf16.mxu0 0
        %600 = vmatpush1.bf16.msra.mxu0 0
        %601 = vmatprep.subr.bf16.mxu0 0
        %602 = vmatpush1.bf16.msra.mxu0 0
        %603 = vmatprep.subr.bf16.mxu0 0
        %604 = vmatpush1.bf16.msra.mxu0 0
        %605 = vmatprep.subr.bf16.mxu0 0
        %606 = vmatpush1.bf16.msra.mxu0 0
        %607 = vmatprep.subr.bf16.mxu0 0
        %608 = vmatpush1.bf16.msra.mxu0 0
        %609 = vmatprep.subr.bf16.mxu0 0
        %610 = vmatpush1.bf16.msra.mxu0 0
        %611 = vmatprep.subr.bf16.mxu0 0
        %612 = vmatpush1.bf16.msra.mxu0 0
        %613 = vmatprep.mubr.bf16.mxu0 0
        %614 = vmatmul.mubr.bf16.gmra.mrb[0].mxu0 %v576
        %v615 = vpop.f32.mrb[0].mxu0
        %v616 = vadd.f32 %v548, %v615
        %v617 = vpop.f32.mrb[0].mxu0
        %v618 = vpop.f32.mrb[0].mxu0
        %v619 = vadd.f32 %v548, %v618
        %v620 = vpop.f32.mrb[0].mxu0
        %621 = vmatprep.mubr.bf16.mxu0 0
        %622 = vmatmul.mubr.bf16.gmra.mrb[0].mxu0 %v579
        %v623 = vpop.f32.mrb[0].mxu0
        %v624 = vadd.f32 %v548, %v623
        %v625 = vpop.f32.mrb[0].mxu0
        %v626 = vpop.f32.mrb[0].mxu0
        %v627 = vadd.f32 %v548, %v626
        %v628 = vpop.f32.mrb[0].mxu0
        %629 = vdwg.mxu0
        %v630 = vadd.f32 %v412, %v616
        %v631 = vadd.f32 %v413, %v619
        %v632 = vadd.f32 %v414, %v624
        %v633 = vadd.f32 %v415, %v627
        %634 = vst.msk [vmem:[%s368] sm:$0xff] %vm441, %v630
        %635 = vst.msk [vmem:[%s368 + $0x8] sm:$0xff] %vm441, %v631
        %636 = vst.msk [vmem:[%s368 + $0x10] sm:$0xff] %vm441, %v632
        %637 = vst.msk [vmem:[%s368 + $0x18] sm:$0xff] %vm441, %v633
        %v638 = vsel %vm441, %v630, 0.0
        %v639 = vsel %vm441, %v631, 0.0
        %v640 = vadd.f32 %v638, %v639
        %v641 = vsel %vm441, %v632, 0.0
        %v642 = vadd.f32 %v640, %v641
        %v643 = vsel %vm441, %v633, 0.0
        %v644 = vadd.f32 %v642, %v643
        %v645 = vrot.slane %v644, 4
        %v646 = vadd.f32 %v644, %v645
        %v647 = vrot.slane %v646, 2
        %v648 = vadd.f32 %v646, %v647
        %v649 = vrot.slane %v648, 1
        %v650 = vadd.f32 %v648, %v649
        %vm651 = vcmask 253952
        %652 = vst.msk [vmem:[%s375] sm:$0x1] %vm651, %v650
        %v653 = vmul.f32 %v630, %v630
        %v654 = vmul.f32 %v631, %v631
        %v655 = vmul.f32 %v632, %v632
        %v656 = vmul.f32 %v633, %v633
        %v657 = vsel %vm441, %v653, 0.0
        %v658 = vsel %vm441, %v654, 0.0
        %v659 = vadd.f32 %v657, %v658
        %v660 = vsel %vm441, %v655, 0.0
        %v661 = vadd.f32 %v659, %v660
        %v662 = vsel %vm441, %v656, 0.0
        %v663 = vadd.f32 %v661, %v662
        %v664 = vrot.slane %v663, 4
        %v665 = vadd.f32 %v663, %v664
        %v666 = vrot.slane %v665, 2
        %v667 = vadd.f32 %v665, %v666
        %v668 = vrot.slane %v667, 1
        %v669 = vadd.f32 %v667, %v668
        %670 = vst.msk [vmem:[%s375 + $0x1] sm:$0x1] %vm651, %v669
        %s671 = sand.u32 %s170, 1
        %s672 = scalar_lea.sflag [#allocation4], %s671
        %s673 = sand.u32 %s170, 1
        %s674 = smul.addr %s673, 32
        %s675 = scalar_lea.vmem [#allocation13], %s674
        %s676 = sand.u32 %s196, 1
        %s677 = scalar_lea.sflag [#allocation15], %s676
        %s678 = sand.u32 %s196, 1
        %s679 = smul.addr %s678, 2
        %s680 = scalar_lea.vmem [#allocation14], %s679
        // Predicated region
        $region69: #{tsti_encoder_forward.8} parent=43 // pred_check
          %p681 = pneg %p180
        $region70: #{tsti_encoder_forward.8} parent=43 // pred_check_branch
          %683 = sbr.rel (%p681) target = $region72
        $region71: #{tsti_encoder_forward.8} parent=43 // pred_region
          %s684 = smul.u32 2, %s31
          %s686 = ssub.s32 512, 512
          %687 = vsyncadd %s672, %s686
          %s688 = smul.addr %s684, 2
          %s689 = smul.addr %s688, 128
          %s690 = scalar_lea.hbm %s6, %s689
          %s691 = sshll.u32 %s675, 4
          %s692 = int_to_ptr.vmem [resolvable:$true] %s691
          %697 = dma.vmem_to_hbm [thread:$0]  %s692, 512, %s690, %s672, 128, 128, 8
        $region72: #{tsti_encoder_forward.8} parent=43 // pred_fallthru
          _
        // Predicated region
        $region73: #{tsti_encoder_forward.8} parent=43 // pred_check
          %p698 = pneg %p206
        $region74: #{tsti_encoder_forward.8} parent=43 // pred_check_branch
          %700 = sbr.rel (%p698) target = $region76
        $region75: #{tsti_encoder_forward.8} parent=43 // pred_region
          %s702 = ssub.s32 32, 32
          %703 = vsyncadd %s677, %s702
          %s704 = smul.addr %s31, 32
          %s705 = scalar_lea.hbm %s7, %s704
          %s707 = sshll.u32 %s680, 4
          %s708 = int_to_ptr.vmem [resolvable:$true] %s707
          %710 = dma.vmem_to_hbm [thread:$0]  %s708, 32, %s705, %s677
        $region76: #{tsti_encoder_forward.8} parent=43 // pred_fallthru
          _
      $region44: #{tsti_encoder_forward.8} parent=5 // pred_fallthru
        _
      %p711 = scmp.le.s32.totalorder 2, %s26
      // Predicated region
      $region77: #{tsti_encoder_forward.8} parent=5 // pred_check
        %p712 = pneg %p711
      $region78: #{tsti_encoder_forward.8} parent=5 // pred_check_branch
        %714 = sbr.rel (%p712) target = $region80
      $region79: #{tsti_encoder_forward.8} parent=5 // pred_region
        %s715 = ssub.s32 %s26, 2
        // Predicated region
        $region81: #{tsti_encoder_forward.8} parent=79 // pred_check
          %p716 = pneg %p186
        $region82: #{tsti_encoder_forward.8} parent=79 // pred_check_branch
          %718 = sbr.rel (%p716) target = $region84
        $region83: #{tsti_encoder_forward.8} parent=79 // pred_region
          %s719 = sand.u32 %s171, 1
          %s720 = scalar_lea.sflag [#allocation4], %s719
          %s721 = sand.u32 %s171, 1
          %s722 = smul.addr %s721, 32
          %s723 = scalar_lea.vmem [#allocation13], %s722
          %724 = dma.done %s720, 512
        $region84: #{tsti_encoder_forward.8} parent=79 // pred_fallthru
          _
        // Predicated region
        $region85: #{tsti_encoder_forward.8} parent=79 // pred_check
          %p725 = pneg %p212
        $region86: #{tsti_encoder_forward.8} parent=79 // pred_check_branch
          %727 = sbr.rel (%p725) target = $region88
        $region87: #{tsti_encoder_forward.8} parent=79 // pred_region
          %s728 = sand.u32 %s197, 1
          %s729 = scalar_lea.sflag [#allocation15], %s728
          %s730 = sand.u32 %s197, 1
          %s731 = smul.addr %s730, 2
          %s732 = scalar_lea.vmem [#allocation14], %s731
          %733 = dma.done %s729, 32
        $region88: #{tsti_encoder_forward.8} parent=79 // pred_fallthru
          _
      $region80: #{tsti_encoder_forward.8} parent=5 // pred_fallthru
        _
    $region6: #{tsti_encoder_forward.8} parent=1 // loop_footer
      %s30 = sadd.s32 1, %s26
    $region7: #{tsti_encoder_forward.8} parent=1 // loop_footer_branch
      %25 = sbr.rel target = $region3
    $region8: #{tsti_encoder_forward.8} parent=1 // loop_exit
      _
    %734 = vsyncpa [#allocation3], 1
    %s735 = scalar_lea.sflag [#allocation3], 1
    %736 = vsyncpa %s735, 1
    %737 = vsyncpa [#allocation6], 1
    %738 = vsyncpa [#allocation9], 1
    %739 = vsyncpa [#allocation12], 1
    %740 = vsyncpa [#allocation4], 1
    %s741 = scalar_lea.sflag [#allocation4], 1
    %742 = vsyncpa %s741, 1
    %743 = vsyncpa [#allocation15], 1
    %s744 = scalar_lea.sflag [#allocation15], 1
    %745 = vsyncpa %s744, 1

// kernel: tsti_encoder_forward.11
$region0: #{tsti_encoder_forward.11}
  #allocation0 [shape = 'u32[]', space=smem, size = 0x4, offset = 0x4, fixed_abs, tag = 'smem constant byte address 0x4 - core index']
  #allocation1 [shape = 'u32[144,128]{1,0:T(1,128)}', space=vmem, size = 0x12000, scoped, tag = 'internal scratch']
  %s0 = inlined_call_operand.hbm [shape: f32[6,16,32], index: 0, kind: input, shape index: {}]
  %s1 = inlined_call_operand.hbm [shape: f32[4,32], index: 1, kind: input, shape index: {}]
  %s2 = inlined_call_operand.hbm [shape: f32[6,16,32], index: 2, kind: output, shape index: {}]
  %s3 = sld [smem:[#allocation0]]
  $region49: #{tsti_encoder_forward.11} parent=0
    _
  %s5 = ssub.s32 1, %s3
  %s6 = scalar_select 0, %s5, %s3
  $region1: #{tsti_encoder_forward.11} parent=0
    #allocation2 [shape = 'u8[32768]{0}', space=vmem, size = 0x8000, scoped, tag = 'input window, operand 0']
    #allocation3 [shape = 's32[2]{0}', space=sflag, size = 0x8, scoped, tag = 'scoped memory for tsti_encoder_forward.11']
    #allocation4 [shape = 's32[2]{0}', space=sflag, size = 0x8, scoped, tag = 'scoped memory for tsti_encoder_forward.11']
    #allocation5 [shape = 'u8[2048]{0}', space=vmem, size = 0x800, scoped, tag = 'input window, operand 1, single buffered']
    #allocation6 [shape = 's32[1]{0}', space=sflag, size = 0x4, scoped, tag = 'scoped memory for tsti_encoder_forward.11']
    #allocation7 [shape = 'u8[32768]{0}', space=vmem, size = 0x8000, scoped, tag = 'output window, operand 0']
    %7 = vsyncpa [#allocation3], 0
    %s8 = scalar_lea.sflag [#allocation3], 1
    %9 = vsyncpa %s8, 0
    %10 = vsyncpa [#allocation6], 0
    %11 = vsyncpa [#allocation4], 0
    %s12 = scalar_lea.sflag [#allocation4], 1
    %13 = vsyncpa %s12, 0
    loop: start=0, step=1, limit=5
    $region2: #{tsti_encoder_forward.11} parent=1 // loop_pre_header
      _
    $region3: #{tsti_encoder_forward.11} parent=1 // loop_header
      %s15 = sphi 0, %s19
      %p16 = scmp.ge.s32.totalorder %s15, 5
      %s25 = sphi 0, %s27
      %s28 = sphi 0, %s25
      %s29 = sphi 0, %s28
      %s45 = sphi 0, %s29
      %s49 = sphi 0, %s49
      %s51 = sphi 0, %s49
      %s52 = sphi 0, %s51
      %s66 = sphi 0, %s52
      %s72 = sphi 0, %s74
      %s75 = sphi 0, %s72
      %s76 = sphi 0, %s75
      %s92 = sphi 0, %s76
    $region4: #{tsti_encoder_forward.11} parent=1 // loop_header_branch
      %18 = sbr.rel (%p16) target = $region8
    $region5: #{tsti_encoder_forward.11} parent=1 // loop_body
      %s20 = ssub.s32 %s15, 1
      %s21 = ssub.s32 %s15, 2
      %s22 = sadd.s32 %s15, 1
      %s23 = ssub.s32 %s15, %s22
      %p24 = scmp.eq.s32.totalorder %s23, 0
      %s26 = sadd.s32 %s25, 1
      %s27 = scalar_select %p24, %s25, %s26
      %p30 = pneg %p24
      %p31 = scmp.eq.s32.totalorder %s15, 2
      %p32 = por %p30, %p31
      %p33 = scmp.ne.s32.totalorder %s25, %s28
      %p34 = scmp.eq.s32.totalorder %s15, 0
      %p35 = por %p33, %p34
      %p36 = scmp.ne.s32.totalorder %s25, %s28
      %p37 = scmp.eq.s32.totalorder %s20, 2
      %p38 = por %p36, %p37
      %p39 = scmp.ne.s32.totalorder %s28, %s29
      %p40 = scmp.eq.s32.totalorder %s20, 0
      %p41 = por %p39, %p40
      %p42 = scmp.ne.s32.totalorder %s28, %s29
      %p43 = scmp.eq.s32.totalorder %s21, 2
      %p44 = por %p42, %p43
      %p46 = scmp.ne.s32.totalorder %s29, %s45
      %p47 = scmp.eq.s32.totalorder %s21, 0
      %p48 = por %p46, %p47
      %s50 = sadd.s32 %s49, 1
      %p53 = scmp.eq.s32.totalorder %s15, 2
      %p54 = scmp.ne.s32.totalorder %s49, %s51
      %p55 = scmp.eq.s32.totalorder %s15, 0
      %p56 = por %p54, %p55
      %p57 = scmp.ne.s32.totalorder %s49, %s51
      %p58 = scmp.eq.s32.totalorder %s20, 2
      %p59 = por %p57, %p58
      %p60 = scmp.ne.s32.totalorder %s51, %s52
      %p61 = scmp.eq.s32.totalorder %s20, 0
      %p62 = por %p60, %p61
      %p63 = scmp.ne.s32.totalorder %s51, %s52
      %p64 = scmp.eq.s32.totalorder %s21, 2
      %p65 = por %p63, %p64
      %p67 = scmp.ne.s32.totalorder %s52, %s66
      %p68 = scmp.eq.s32.totalorder %s21, 0
      %p69 = por %p67, %p68
      %s70 = ssub.s32 %s15, %s22
      %p71 = scmp.eq.s32.totalorder %s70, 0
      %s73 = sadd.s32 %s72, 1
      %s74 = scalar_select %p71, %s72, %s73
      %p77 = pneg %p71
      %p78 = scmp.eq.s32.totalorder %s15, 2
      %p79 = por %p77, %p78
      %p80 = scmp.ne.s32.totalorder %s72, %s75
      %p81 = scmp.eq.s32.totalorder %s15, 0
      %p82 = por %p80, %p81
      %p83 = scmp.ne.s32.totalorder %s72, %s75
      %p84 = scmp.eq.s32.totalorder %s20, 2
      %p85 = por %p83, %p84
      %p86 = scmp.ne.s32.totalorder %s75, %s76
      %p87 = scmp.eq.s32.totalorder %s20, 0
      %p88 = por %p86, %p87
      %p89 = scmp.ne.s32.totalorder %s75, %s76
      %p90 = scmp.eq.s32.totalorder %s21, 2
      %p91 = por %p89, %p90
      %p93 = scmp.ne.s32.totalorder %s76, %s92
      %p94 = scmp.eq.s32.totalorder %s21, 0
      %p95 = por %p93, %p94
      %p96 = scmp.le.s32.totalorder 1, %s15
      %p97 = scmp.lt.s32.totalorder %s15, 4
      %p98 = pnand %p96, %p97
      %p99 = pneg %p98
      // Predicated region
      $region9: #{tsti_encoder_forward.11} parent=5 // pred_check
        _
      $region10: #{tsti_encoder_forward.11} parent=5 // pred_check_branch
        %101 = sbr.rel (%p98) target = $region12
      $region11: #{tsti_encoder_forward.11} parent=5 // pred_region
        %s102 = ssub.s32 %s15, 1
        // Predicated region
        $region13: #{tsti_encoder_forward.11} parent=11 // pred_check
          %p103 = pneg %p62
        $region14: #{tsti_encoder_forward.11} parent=11 // pred_check_branch
          %105 = sbr.rel (%p103) target = $region16
        $region15: #{tsti_encoder_forward.11} parent=11 // pred_region
          %s107 = ssub.s32 64, 64
          %108 = vsyncadd [#allocation6], %s107
          %s110 = sshll.u32 [#allocation5], 4
          %s111 = int_to_ptr.vmem [resolvable:$true] %s110
          %113 = dma.hbm_to_vmem [thread:$0]  %s1, 64, %s111, [#allocation6]
        $region16: #{tsti_encoder_forward.11} parent=11 // pred_fallthru
          _
      $region12: #{tsti_encoder_forward.11} parent=5 // pred_fallthru
        _
      %p114 = scmp.lt.s32.totalorder %s15, 3
      // Predicated region
      $region17: #{tsti_encoder_forward.11} parent=5 // pred_check
        %p115 = pneg %p114
      $region18: #{tsti_encoder_forward.11} parent=5 // pred_check_branch
        %117 = sbr.rel (%p115) target = $region20
      $region19: #{tsti_encoder_forward.11} parent=5 // pred_region
        // Predicated region
        $region21: #{tsti_encoder_forward.11} parent=19 // pred_check
          %p118 = pneg %p35
        $region22: #{tsti_encoder_forward.11} parent=19 // pred_check_branch
          %120 = sbr.rel (%p118) target = $region24
        $region23: #{tsti_encoder_forward.11} parent=19 // pred_region
          %s121 = sand.u32 %s25, 1
          %s122 = scalar_lea.sflag [#allocation3], %s121
          %s123 = sand.u32 %s25, 1
          %s124 = smul.addr %s123, 32
          %s125 = scalar_lea.vmem [#allocation2], %s124
          %s126 = smul.u32 2, %s15
          %s128 = ssub.s32 512, 512
          %129 = vsyncadd %s122, %s128
          %s130 = smul.addr %s126, 2
          %s131 = smul.addr %s130, 128
          %s132 = scalar_lea.hbm %s0, %s131
          %s133 = sshll.u32 %s125, 4
          %s134 = int_to_ptr.vmem [resolvable:$true] %s133
          %139 = dma.hbm_to_vmem [thread:$0]  %s132, 512, %s134, %s122, 128, 128, 8
        $region24: #{tsti_encoder_forward.11} parent=19 // pred_fallthru
          _
      $region20: #{tsti_encoder_forward.11} parent=5 // pred_fallthru
        _
      %p140 = scmp.le.s32.totalorder 1, %s15
      %p141 = scmp.lt.s32.totalorder %s15, 4
      %p142 = pnand %p140, %p141
      %p143 = pneg %p142
      // Predicated region
      $region25: #{tsti_encoder_forward.11} parent=5 // pred_check
        _
      $region26: #{tsti_encoder_forward.11} parent=5 // pred_check_branch
        %145 = sbr.rel (%p142) target = $region28
      $region27: #{tsti_encoder_forward.11} parent=5 // pred_region
        %s146 = ssub.s32 %s15, 1
        %s147 = sand.u32 %s28, 1
        %s148 = scalar_lea.sflag [#allocation3], %s147
        %s149 = sand.u32 %s28, 1
        %s150 = smul.addr %s149, 32
        %s151 = scalar_lea.vmem [#allocation2], %s150
        // Predicated region
        $region29: #{tsti_encoder_forward.11} parent=27 // pred_check
          %p152 = pneg %p41
        $region30: #{tsti_encoder_forward.11} parent=27 // pred_check_branch
          %154 = sbr.rel (%p152) target = $region32
        $region31: #{tsti_encoder_forward.11} parent=27 // pred_region
          %155 = dma.done %s148, 512
        $region32: #{tsti_encoder_forward.11} parent=27 // pred_fallthru
          _
        // Predicated region
        $region33: #{tsti_encoder_forward.11} parent=27 // pred_check
          %p156 = pneg %p62
        $region34: #{tsti_encoder_forward.11} parent=27 // pred_check_branch
          %158 = sbr.rel (%p156) target = $region36
        $region35: #{tsti_encoder_forward.11} parent=27 // pred_region
          %159 = dma.done [#allocation6], 64
        $region36: #{tsti_encoder_forward.11} parent=27 // pred_fallthru
          _
        %s160 = sand.u32 %s28, 1
        %s161 = scalar_lea.sflag [#allocation3], %s160
        %s162 = sand.u32 %s28, 1
        %s163 = smul.addr %s162, 32
        %s164 = scalar_lea.vmem [#allocation2], %s163
        %p165 = pneg %p41
        %p166 = pneg %p38
        %p167 = pneg %p62
        %p168 = pneg %p59
        %p169 = pneg %p88
        %p170 = pneg %p85
        %s171 = sand.u32 %s75, 1
        %s172 = scalar_lea.sflag [#allocation4], %s171
        %s173 = sand.u32 %s75, 1
        %s174 = smul.addr %s173, 32
        %s175 = scalar_lea.vmem [#allocation7], %s174
        %s176 = smul.u32 2, %s20
        %s177 = smul.u32 2, %s20
        %v178 = vld [vmem:[%s151] sm:$0xff]
        %v179 = vld [vmem:[%s151 + $0x8] sm:$0xff]
        %v180 = vld [vmem:[%s151 + $0x10] sm:$0xff]
        %v181 = vld [vmem:[%s151 + $0x18] sm:$0xff]
        %v182 = vld [vmem:[#allocation5] sm:$0xf]
        %v183 = vlaneseq
        %v184 = vshrl.u32 %v183, 7
        %v185 = vsub.s32 0, %v184
        %v186 = vrot.slane %v182, %v185
        %v187 = vsub.f32 %v178, %v186
        %v188 = vsub.f32 %v179, %v186
        %v189 = vsub.f32 %v180, %v186
        %v190 = vsub.f32 %v181, %v186
        %v191 = vlaneseq
        %v192 = vshrl.u32 %v191, 7
        %v193 = vsub.s32 1, %v192
        %v194 = vrot.slane %v182, %v193
        %v195 = vmul.f32 %v187, %v194
        %v196 = vmul.f32 %v188, %v194
        %v197 = vmul.f32 %v189, %v194
        %v198 = vmul.f32 %v190, %v194
        %v199 = vlaneseq
        %v200 = vshrl.u32 %v199, 7
        %v201 = vsub.s32 2, %v200
        %v202 = vrot.slane %v182, %v201
        %v203 = vmul.f32 %v195, %v202
        %v204 = vmul.f32 %v196, %v202
        %v205 = vmul.f32 %v197, %v202
        %v206 = vmul.f32 %v198, %v202
        %v207 = vlaneseq
        %v208 = vshrl.u32 %v207, 7
        %v209 = vsub.s32 3, %v208
        %v210 = vrot.slane %v182, %v209
        %v211 = vadd.f32 %v203, %v210
        %v212 = vadd.f32 %v204, %v210
        %v213 = vadd.f32 %v205, %v210
        %v214 = vadd.f32 %v206, %v210
        %vm215 = vcmask 261120
        %216 = vst.msk [vmem:[%s175] sm:$0xff] %vm215, %v211
        %217 = vst.msk [vmem:[%s175 + $0x8] sm:$0xff] %vm215, %v212
        %218 = vst.msk [vmem:[%s175 + $0x10] sm:$0xff] %vm215, %v213
        %219 = vst.msk [vmem:[%s175 + $0x18] sm:$0xff] %vm215, %v214
        %s220 = sand.u32 %s75, 1
        %s221 = scalar_lea.sflag [#allocation4], %s220
        %s222 = sand.u32 %s75, 1
        %s223 = smul.addr %s222, 32
        %s224 = scalar_lea.vmem [#allocation7], %s223
        // Predicated region
        $region37: #{tsti_encoder_forward.11} parent=27 // pred_check
          %p225 = pneg %p85
        $region38: #{tsti_encoder_forward.11} parent=27 // pred_check_branch
          %227 = sbr.rel (%p225) target = $region40
        $region39: #{tsti_encoder_forward.11} parent=27 // pred_region
          %s228 = smul.u32 2, %s20
          %s230 = ssub.s32 512, 512
          %231 = vsyncadd %s221, %s230
          %s232 = smul.addr %s228, 2
          %s233 = smul.addr %s232, 128
          %s234 = scalar_lea.hbm %s2, %s233
          %s235 = sshll.u32 %s224, 4
          %s236 = int_to_ptr.vmem [resolvable:$true] %s235
          %241 = dma.vmem_to_hbm [thread:$0]  %s236, 512, %s234, %s221, 128, 128, 8
        $region40: #{tsti_encoder_forward.11} parent=27 // pred_fallthru
          _
      $region28: #{tsti_encoder_forward.11} parent=5 // pred_fallthru
        _
      %p242 = scmp.le.s32.totalorder 2, %s15
      // Predicated region
      $region41: #{tsti_encoder_forward.11} parent=5 // pred_check
        %p243 = pneg %p242
      $region42: #{tsti_encoder_forward.11} parent=5 // pred_check_branch
        %245 = sbr.rel (%p243) target = $region44
      $region43: #{tsti_encoder_forward.11} parent=5 // pred_region
        %s246 = ssub.s32 %s15, 2
        // Predicated region
        $region45: #{tsti_encoder_forward.11} parent=43 // pred_check
          %p247 = pneg %p91
        $region46: #{tsti_encoder_forward.11} parent=43 // pred_check_branch
          %249 = sbr.rel (%p247) target = $region48
        $region47: #{tsti_encoder_forward.11} parent=43 // pred_region
          %s250 = sand.u32 %s76, 1
          %s251 = scalar_lea.sflag [#allocation4], %s250
          %s252 = sand.u32 %s76, 1
          %s253 = smul.addr %s252, 32
          %s254 = scalar_lea.vmem [#allocation7], %s253
          %255 = dma.done %s251, 512
        $region48: #{tsti_encoder_forward.11} parent=43 // pred_fallthru
          _
      $region44: #{tsti_encoder_forward.11} parent=5 // pred_fallthru
        _
    $region6: #{tsti_encoder_forward.11} parent=1 // loop_footer
      %s19 = sadd.s32 1, %s15
    $region7: #{tsti_encoder_forward.11} parent=1 // loop_footer_branch
      %14 = sbr.rel target = $region3
    $region8: #{tsti_encoder_forward.11} parent=1 // loop_exit
      _
    %256 = vsyncpa [#allocation3], 1
    %s257 = scalar_lea.sflag [#allocation3], 1
    %258 = vsyncpa %s257, 1
    %259 = vsyncpa [#allocation6], 1
    %260 = vsyncpa [#allocation4], 1
    %s261 = scalar_lea.sflag [#allocation4], 1
    %262 = vsyncpa %s261, 1

// kernel: tsti_encoder_forward.7
$region0: #{tsti_encoder_forward.7}
  #allocation0 [shape = 'u32[]', space=smem, size = 0x4, offset = 0x4, fixed_abs, tag = 'smem constant byte address 0x4 - core index']
  #allocation1 [shape = 'u32[144,128]{1,0:T(1,128)}', space=vmem, size = 0x12000, scoped, tag = 'internal scratch']
  %s0 = inlined_call_operand.hbm [shape: f32[6,16,32], index: 0, kind: input, shape index: {}]
  %s1 = inlined_call_operand.hbm [shape: bf16[32,96], index: 1, kind: input, shape index: {}]
  %s2 = inlined_call_operand.hbm [shape: f32[1,96], index: 2, kind: input, shape index: {}]
  %s3 = inlined_call_operand.hbm [shape: bf16[32,32], index: 3, kind: input, shape index: {}]
  %s4 = inlined_call_operand.hbm [shape: f32[1,32], index: 4, kind: input, shape index: {}]
  %s5 = inlined_call_operand.hbm [shape: f32[4,1,8,8], index: 5, kind: input, shape index: {}]
  %s6 = inlined_call_operand.hbm [shape: f32[6,16,32], index: 6, kind: output, shape index: {0}]
  %s7 = inlined_call_operand.hbm [shape: f32[3,2,32], index: 7, kind: output, shape index: {1}]
  %8 = xla_tuple %s6, %s7
  %s9 = sld [smem:[#allocation0]]
  $region89: #{tsti_encoder_forward.7} parent=0
    _
  %s11 = ssub.s32 1, %s9
  %s12 = scalar_select 0, %s11, %s9
  $region1: #{tsti_encoder_forward.7} parent=0
    #allocation2 [shape = 'u8[32768]{0}', space=vmem, size = 0x8000, scoped, tag = 'input window, operand 0']
    #allocation3 [shape = 's32[2]{0}', space=sflag, size = 0x8, scoped, tag = 'scoped memory for tsti_encoder_forward.7']
    #allocation4 [shape = 's32[2]{0}', space=sflag, size = 0x8, scoped, tag = 'scoped memory for tsti_encoder_forward.7']
    #allocation5 [shape = 'u8[8192]{0}', space=vmem, size = 0x2000, scoped, tag = 'input window, operand 1, single buffered']
    #allocation6 [shape = 's32[1]{0}', space=sflag, size = 0x4, scoped, tag = 'scoped memory for tsti_encoder_forward.7']
    #allocation7 [shape = 'u8[512]{0}', space=vmem, size = 0x400, scoped, tag = 'input window, operand 2, single buffered']
    #allocation8 [shape = 'u8[8192]{0}', space=vmem, size = 0x2000, scoped, tag = 'input window, operand 3, single buffered']
    #allocation9 [shape = 's32[1]{0}', space=sflag, size = 0x4, scoped, tag = 'scoped memory for tsti_encoder_forward.7']
    #allocation10 [shape = 'u8[512]{0}', space=vmem, size = 0x400, scoped, tag = 'input window, operand 4, single buffered']
    #allocation11 [shape = 'u8[16384]{0}', space=vmem, size = 0x4000, scoped, tag = 'input window, operand 5, single buffered']
    #allocation12 [shape = 's32[1]{0}', space=sflag, size = 0x4, scoped, tag = 'scoped memory for tsti_encoder_forward.7']
    #allocation13 [shape = 'u8[32768]{0}', space=vmem, size = 0x8000, scoped, tag = 'output window, operand 0']
    #allocation14 [shape = 'u8[2048]{0}', space=vmem, size = 0x800, scoped, tag = 'output window, operand 1']
    #allocation15 [shape = 's32[2]{0}', space=sflag, size = 0x8, scoped, tag = 'scoped memory for tsti_encoder_forward.7']
    %13 = vsyncpa [#allocation3], 0
    %s14 = scalar_lea.sflag [#allocation3], 1
    %15 = vsyncpa %s14, 0
    %16 = vsyncpa [#allocation6], 0
    %17 = vsyncpa [#allocation9], 0
    %18 = vsyncpa [#allocation12], 0
    %19 = vsyncpa [#allocation4], 0
    %s20 = scalar_lea.sflag [#allocation4], 1
    %21 = vsyncpa %s20, 0
    %22 = vsyncpa [#allocation15], 0
    %s23 = scalar_lea.sflag [#allocation15], 1
    %24 = vsyncpa %s23, 0
    loop: start=0, step=1, limit=5
    $region2: #{tsti_encoder_forward.7} parent=1 // loop_pre_header
      _
    $region3: #{tsti_encoder_forward.7} parent=1 // loop_header
      %s26 = sphi 0, %s30
      %p27 = scmp.ge.s32.totalorder %s26, 5
      %s36 = sphi 0, %s38
      %s39 = sphi 0, %s36
      %s40 = sphi 0, %s39
      %s56 = sphi 0, %s40
      %s60 = sphi 0, %s60
      %s62 = sphi 0, %s60
      %s63 = sphi 0, %s62
      %s77 = sphi 0, %s63
      %s81 = sphi 0, %s81
      %s83 = sphi 0, %s81
      %s84 = sphi 0, %s83
      %s98 = sphi 0, %s84
      %s102 = sphi 0, %s102
      %s104 = sphi 0, %s102
      %s105 = sphi 0, %s104
      %s119 = sphi 0, %s105
      %s123 = sphi 0, %s123
      %s125 = sphi 0, %s123
      %s126 = sphi 0, %s125
      %s140 = sphi 0, %s126
      %s144 = sphi 0, %s144
      %s146 = sphi 0, %s144
      %s147 = sphi 0, %s146
      %s161 = sphi 0, %s147
      %s167 = sphi 0, %s169
      %s170 = sphi 0, %s167
      %s171 = sphi 0, %s170
      %s187 = sphi 0, %s171
      %s193 = sphi 0, %s195
      %s196 = sphi 0, %s193
      %s197 = sphi 0, %s196
      %s213 = sphi 0, %s197
    $region4: #{tsti_encoder_forward.7} parent=1 // loop_header_branch
      %29 = sbr.rel (%p27) target = $region8
    $region5: #{tsti_encoder_forward.7} parent=1 // loop_body
      %s31 = ssub.s32 %s26, 1
      %s32 = ssub.s32 %s26, 2
      %s33 = sadd.s32 %s26, 1
      %s34 = ssub.s32 %s26, %s33
      %p35 = scmp.eq.s32.totalorder %s34, 0
      %s37 = sadd.s32 %s36, 1
      %s38 = scalar_select %p35, %s36, %s37
      %p41 = pneg %p35
      %p42 = scmp.eq.s32.totalorder %s26, 2
      %p43 = por %p41, %p42
      %p44 = scmp.ne.s32.totalorder %s36, %s39
      %p45 = scmp.eq.s32.totalorder %s26, 0
      %p46 = por %p44, %p45
      %p47 = scmp.ne.s32.totalorder %s36, %s39
      %p48 = scmp.eq.s32.totalorder %s31, 2
      %p49 = por %p47, %p48
      %p50 = scmp.ne.s32.totalorder %s39, %s40
      %p51 = scmp.eq.s32.totalorder %s31, 0
      %p52 = por %p50, %p51
      %p53 = scmp.ne.s32.totalorder %s39, %s40
      %p54 = scmp.eq.s32.totalorder %s32, 2
      %p55 = por %p53, %p54
      %p57 = scmp.ne.s32.totalorder %s40, %s56
      %p58 = scmp.eq.s32.totalorder %s32, 0
      %p59 = por %p57, %p58
      %s61 = sadd.s32 %s60, 1
      %p64 = scmp.eq.s32.totalorder %s26, 2
      %p65 = scmp.ne.s32.totalorder %s60, %s62
      %p66 = scmp.eq.s32.totalorder %s26, 0
      %p67 = por %p65, %p66
      %p68 = scmp.ne.s32.totalorder %s60, %s62
      %p69 = scmp.eq.s32.totalorder %s31, 2
      %p70 = por %p68, %p69
      %p71 = scmp.ne.s32.totalorder %s62, %s63
      %p72 = scmp.eq.s32.totalorder %s31, 0
      %p73 = por %p71, %p72
      %p74 = scmp.ne.s32.totalorder %s62, %s63
      %p75 = scmp.eq.s32.totalorder %s32, 2
      %p76 = por %p74, %p75
      %p78 = scmp.ne.s32.totalorder %s63, %s77
      %p79 = scmp.eq.s32.totalorder %s32, 0
      %p80 = por %p78, %p79
      %s82 = sadd.s32 %s81, 1
      %p85 = scmp.eq.s32.totalorder %s26, 2
      %p86 = scmp.ne.s32.totalorder %s81, %s83
      %p87 = scmp.eq.s32.totalorder %s26, 0
      %p88 = por %p86, %p87
      %p89 = scmp.ne.s32.totalorder %s81, %s83
      %p90 = scmp.eq.s32.totalorder %s31, 2
      %p91 = por %p89, %p90
      %p92 = scmp.ne.s32.totalorder %s83, %s84
      %p93 = scmp.eq.s32.totalorder %s31, 0
      %p94 = por %p92, %p93
      %p95 = scmp.ne.s32.totalorder %s83, %s84
      %p96 = scmp.eq.s32.totalorder %s32, 2
      %p97 = por %p95, %p96
      %p99 = scmp.ne.s32.totalorder %s84, %s98
      %p100 = scmp.eq.s32.totalorder %s32, 0
      %p101 = por %p99, %p100
      %s103 = sadd.s32 %s102, 1
      %p106 = scmp.eq.s32.totalorder %s26, 2
      %p107 = scmp.ne.s32.totalorder %s102, %s104
      %p108 = scmp.eq.s32.totalorder %s26, 0
      %p109 = por %p107, %p108
      %p110 = scmp.ne.s32.totalorder %s102, %s104
      %p111 = scmp.eq.s32.totalorder %s31, 2
      %p112 = por %p110, %p111
      %p113 = scmp.ne.s32.totalorder %s104, %s105
      %p114 = scmp.eq.s32.totalorder %s31, 0
      %p115 = por %p113, %p114
      %p116 = scmp.ne.s32.totalorder %s104, %s105
      %p117 = scmp.eq.s32.totalorder %s32, 2
      %p118 = por %p116, %p117
      %p120 = scmp.ne.s32.totalorder %s105, %s119
      %p121 = scmp.eq.s32.totalorder %s32, 0
      %p122 = por %p120, %p121
      %s124 = sadd.s32 %s123, 1
      %p127 = scmp.eq.s32.totalorder %s26, 2
      %p128 = scmp.ne.s32.totalorder %s123, %s125
      %p129 = scmp.eq.s32.totalorder %s26, 0
      %p130 = por %p128, %p129
      %p131 = scmp.ne.s32.totalorder %s123, %s125
      %p132 = scmp.eq.s32.totalorder %s31, 2
      %p133 = por %p131, %p132
      %p134 = scmp.ne.s32.totalorder %s125, %s126
      %p135 = scmp.eq.s32.totalorder %s31, 0
      %p136 = por %p134, %p135
      %p137 = scmp.ne.s32.totalorder %s125, %s126
      %p138 = scmp.eq.s32.totalorder %s32, 2
      %p139 = por %p137, %p138
      %p141 = scmp.ne.s32.totalorder %s126, %s140
      %p142 = scmp.eq.s32.totalorder %s32, 0
      %p143 = por %p141, %p142
      %s145 = sadd.s32 %s144, 1
      %p148 = scmp.eq.s32.totalorder %s26, 2
      %p149 = scmp.ne.s32.totalorder %s144, %s146
      %p150 = scmp.eq.s32.totalorder %s26, 0
      %p151 = por %p149, %p150
      %p152 = scmp.ne.s32.totalorder %s144, %s146
      %p153 = scmp.eq.s32.totalorder %s31, 2
      %p154 = por %p152, %p153
      %p155 = scmp.ne.s32.totalorder %s146, %s147
      %p156 = scmp.eq.s32.totalorder %s31, 0
      %p157 = por %p155, %p156
      %p158 = scmp.ne.s32.totalorder %s146, %s147
      %p159 = scmp.eq.s32.totalorder %s32, 2
      %p160 = por %p158, %p159
      %p162 = scmp.ne.s32.totalorder %s147, %s161
      %p163 = scmp.eq.s32.totalorder %s32, 0
      %p164 = por %p162, %p163
      %s165 = ssub.s32 %s26, %s33
      %p166 = scmp.eq.s32.totalorder %s165, 0
      %s168 = sadd.s32 %s167, 1
      %s169 = scalar_select %p166, %s167, %s168
      %p172 = pneg %p166
      %p173 = scmp.eq.s32.totalorder %s26, 2
      %p174 = por %p172, %p173
      %p175 = scmp.ne.s32.totalorder %s167, %s170
      %p176 = scmp.eq.s32.totalorder %s26, 0
      %p177 = por %p175, %p176
      %p178 = scmp.ne.s32.totalorder %s167, %s170
      %p179 = scmp.eq.s32.totalorder %s31, 2
      %p180 = por %p178, %p179
      %p181 = scmp.ne.s32.totalorder %s170, %s171
      %p182 = scmp.eq.s32.totalorder %s31, 0
      %p183 = por %p181, %p182
      %p184 = scmp.ne.s32.totalorder %s170, %s171
      %p185 = scmp.eq.s32.totalorder %s32, 2
      %p186 = por %p184, %p185
      %p188 = scmp.ne.s32.totalorder %s171, %s187
      %p189 = scmp.eq.s32.totalorder %s32, 0
      %p190 = por %p188, %p189
      %s191 = ssub.s32 %s26, %s33
      %p192 = scmp.eq.s32.totalorder %s191, 0
      %s194 = sadd.s32 %s193, 1
      %s195 = scalar_select %p192, %s193, %s194
      %p198 = pneg %p192
      %p199 = scmp.eq.s32.totalorder %s26, 2
      %p200 = por %p198, %p199
      %p201 = scmp.ne.s32.totalorder %s193, %s196
      %p202 = scmp.eq.s32.totalorder %s26, 0
      %p203 = por %p201, %p202
      %p204 = scmp.ne.s32.totalorder %s193, %s196
      %p205 = scmp.eq.s32.totalorder %s31, 2
      %p206 = por %p204, %p205
      %p207 = scmp.ne.s32.totalorder %s196, %s197
      %p208 = scmp.eq.s32.totalorder %s31, 0
      %p209 = por %p207, %p208
      %p210 = scmp.ne.s32.totalorder %s196, %s197
      %p211 = scmp.eq.s32.totalorder %s32, 2
      %p212 = por %p210, %p211
      %p214 = scmp.ne.s32.totalorder %s197, %s213
      %p215 = scmp.eq.s32.totalorder %s32, 0
      %p216 = por %p214, %p215
      %p217 = scmp.le.s32.totalorder 1, %s26
      %p218 = scmp.lt.s32.totalorder %s26, 4
      %p219 = pnand %p217, %p218
      %p220 = pneg %p219
      // Predicated region
      $region9: #{tsti_encoder_forward.7} parent=5 // pred_check
        _
      $region10: #{tsti_encoder_forward.7} parent=5 // pred_check_branch
        %222 = sbr.rel (%p219) target = $region12
      $region11: #{tsti_encoder_forward.7} parent=5 // pred_region
        %s223 = ssub.s32 %s26, 1
        // Predicated region
        $region13: #{tsti_encoder_forward.7} parent=11 // pred_check
          %p224 = pneg %p73
        $region14: #{tsti_encoder_forward.7} parent=11 // pred_check_branch
          %226 = sbr.rel (%p224) target = $region16
        $region15: #{tsti_encoder_forward.7} parent=11 // pred_region
          %s228 = ssub.s32 256, 256
          %229 = vsyncadd [#allocation6], %s228
          %s230 = sshll.u32 [#allocation5], 4
          %s231 = int_to_ptr.vmem [resolvable:$true] %s230
          %236 = dma.hbm_to_vmem [thread:$0]  %s1, 256, %s231, [#allocation6], 64, 64, 4
        $region16: #{tsti_encoder_forward.7} parent=11 // pred_fallthru
          _
        // Predicated region
        $region17: #{tsti_encoder_forward.7} parent=11 // pred_check
          %p237 = pneg %p94
        $region18: #{tsti_encoder_forward.7} parent=11 // pred_check_branch
          %239 = sbr.rel (%p237) target = $region20
        $region19: #{tsti_encoder_forward.7} parent=11 // pred_region
          %s241 = ssub.s32 16, 16
          %242 = vsyncadd [#allocation6], %s241
          %s244 = sshll.u32 [#allocation7], 4
          %s245 = int_to_ptr.vmem [resolvable:$true] %s244
          %247 = dma.hbm_to_vmem [thread:$0]  %s2, 16, %s245, [#allocation6]
        $region20: #{tsti_encoder_forward.7} parent=11 // pred_fallthru
          _
        // Predicated region
        $region21: #{tsti_encoder_forward.7} parent=11 // pred_check
          %p248 = pneg %p115
        $region22: #{tsti_encoder_forward.7} parent=11 // pred_check_branch
          %250 = sbr.rel (%p248) target = $region24
        $region23: #{tsti_encoder_forward.7} parent=11 // pred_region
          %s252 = ssub.s32 256, 256
          %253 = vsyncadd [#allocation9], %s252
          %s254 = sshll.u32 [#allocation8], 4
          %s255 = int_to_ptr.vmem [resolvable:$true] %s254
          %260 = dma.hbm_to_vmem [thread:$0]  %s3, 256, %s255, [#allocation9], 64, 64, 4
        $region24: #{tsti_encoder_forward.7} parent=11 // pred_fallthru
          _
        // Predicated region
        $region25: #{tsti_encoder_forward.7} parent=11 // pred_check
          %p261 = pneg %p136
        $region26: #{tsti_encoder_forward.7} parent=11 // pred_check_branch
          %263 = sbr.rel (%p261) target = $region28
        $region27: #{tsti_encoder_forward.7} parent=11 // pred_region
          %s265 = ssub.s32 16, 16
          %266 = vsyncadd [#allocation9], %s265
          %s268 = sshll.u32 [#allocation10], 4
          %s269 = int_to_ptr.vmem [resolvable:$true] %s268
          %271 = dma.hbm_to_vmem [thread:$0]  %s4, 16, %s269, [#allocation9]
        $region28: #{tsti_encoder_forward.7} parent=11 // pred_fallthru
          _
        // Predicated region
        $region29: #{tsti_encoder_forward.7} parent=11 // pred_check
          %p272 = pneg %p157
        $region30: #{tsti_encoder_forward.7} parent=11 // pred_check_branch
          %274 = sbr.rel (%p272) target = $region32
        $region31: #{tsti_encoder_forward.7} parent=11 // pred_region
          %s276 = ssub.s32 512, 512
          %277 = vsyncadd [#allocation12], %s276
          %s278 = sshll.u32 [#allocation11], 4
          %s279 = int_to_ptr.vmem [resolvable:$true] %s278
          %284 = dma.hbm_to_vmem [thread:$0]  %s5, 512, %s279, [#allocation12], 128, 128, 8
        $region32: #{tsti_encoder_forward.7} parent=11 // pred_fallthru
          _
      $region12: #{tsti_encoder_forward.7} parent=5 // pred_fallthru
        _
      %p285 = scmp.lt.s32.totalorder %s26, 3
      // Predicated region
      $region33: #{tsti_encoder_forward.7} parent=5 // pred_check
        %p286 = pneg %p285
      $region34: #{tsti_encoder_forward.7} parent=5 // pred_check_branch
        %288 = sbr.rel (%p286) target = $region36
      $region35: #{tsti_encoder_forward.7} parent=5 // pred_region
        // Predicated region
        $region37: #{tsti_encoder_forward.7} parent=35 // pred_check
          %p289 = pneg %p46
        $region38: #{tsti_encoder_forward.7} parent=35 // pred_check_branch
          %291 = sbr.rel (%p289) target = $region40
        $region39: #{tsti_encoder_forward.7} parent=35 // pred_region
          %s292 = sand.u32 %s36, 1
          %s293 = scalar_lea.sflag [#allocation3], %s292
          %s294 = sand.u32 %s36, 1
          %s295 = smul.addr %s294, 32
          %s296 = scalar_lea.vmem [#allocation2], %s295
          %s297 = smul.u32 2, %s26
          %s299 = ssub.s32 512, 512
          %300 = vsyncadd %s293, %s299
          %s301 = smul.addr %s297, 2
          %s302 = smul.addr %s301, 128
          %s303 = scalar_lea.hbm %s0, %s302
          %s304 = sshll.u32 %s296, 4
          %s305 = int_to_ptr.vmem [resolvable:$true] %s304
          %310 = dma.hbm_to_vmem [thread:$0]  %s303, 512, %s305, %s293, 128, 128, 8
        $region40: #{tsti_encoder_forward.7} parent=35 // pred_fallthru
          _
      $region36: #{tsti_encoder_forward.7} parent=5 // pred_fallthru
        _
      %p311 = scmp.le.s32.totalorder 1, %s26
      %p312 = scmp.lt.s32.totalorder %s26, 4
      %p313 = pnand %p311, %p312
      %p314 = pneg %p313
      // Predicated region
      $region41: #{tsti_encoder_forward.7} parent=5 // pred_check
        _
      $region42: #{tsti_encoder_forward.7} parent=5 // pred_check_branch
        %316 = sbr.rel (%p313) target = $region44
      $region43: #{tsti_encoder_forward.7} parent=5 // pred_region
        %s317 = ssub.s32 %s26, 1
        %s318 = sand.u32 %s39, 1
        %s319 = scalar_lea.sflag [#allocation3], %s318
        %s320 = sand.u32 %s39, 1
        %s321 = smul.addr %s320, 32
        %s322 = scalar_lea.vmem [#allocation2], %s321
        // Predicated region
        $region45: #{tsti_encoder_forward.7} parent=43 // pred_check
          %p323 = pneg %p52
        $region46: #{tsti_encoder_forward.7} parent=43 // pred_check_branch
          %325 = sbr.rel (%p323) target = $region48
        $region47: #{tsti_encoder_forward.7} parent=43 // pred_region
          %326 = dma.done %s319, 512
        $region48: #{tsti_encoder_forward.7} parent=43 // pred_fallthru
          _
        // Predicated region
        $region49: #{tsti_encoder_forward.7} parent=43 // pred_check
          %p327 = pneg %p73
        $region50: #{tsti_encoder_forward.7} parent=43 // pred_check_branch
          %329 = sbr.rel (%p327) target = $region52
        $region51: #{tsti_encoder_forward.7} parent=43 // pred_region
          %330 = dma.done [#allocation6], 256
        $region52: #{tsti_encoder_forward.7} parent=43 // pred_fallthru
          _
        // Predicated region
        $region53: #{tsti_encoder_forward.7} parent=43 // pred_check
          %p331 = pneg %p94
        $region54: #{tsti_encoder_forward.7} parent=43 // pred_check_branch
          %333 = sbr.rel (%p331) target = $region56
        $region55: #{tsti_encoder_forward.7} parent=43 // pred_region
          %334 = dma.done [#allocation6], 16
        $region56: #{tsti_encoder_forward.7} parent=43 // pred_fallthru
          _
        // Predicated region
        $region57: #{tsti_encoder_forward.7} parent=43 // pred_check
          %p335 = pneg %p115
        $region58: #{tsti_encoder_forward.7} parent=43 // pred_check_branch
          %337 = sbr.rel (%p335) target = $region60
        $region59: #{tsti_encoder_forward.7} parent=43 // pred_region
          %338 = dma.done [#allocation9], 256
        $region60: #{tsti_encoder_forward.7} parent=43 // pred_fallthru
          _
        // Predicated region
        $region61: #{tsti_encoder_forward.7} parent=43 // pred_check
          %p339 = pneg %p136
        $region62: #{tsti_encoder_forward.7} parent=43 // pred_check_branch
          %341 = sbr.rel (%p339) target = $region64
        $region63: #{tsti_encoder_forward.7} parent=43 // pred_region
          %342 = dma.done [#allocation9], 16
        $region64: #{tsti_encoder_forward.7} parent=43 // pred_fallthru
          _
        // Predicated region
        $region65: #{tsti_encoder_forward.7} parent=43 // pred_check
          %p343 = pneg %p157
        $region66: #{tsti_encoder_forward.7} parent=43 // pred_check_branch
          %345 = sbr.rel (%p343) target = $region68
        $region67: #{tsti_encoder_forward.7} parent=43 // pred_region
          %346 = dma.done [#allocation12], 512
        $region68: #{tsti_encoder_forward.7} parent=43 // pred_fallthru
          _
        %s347 = sand.u32 %s39, 1
        %s348 = scalar_lea.sflag [#allocation3], %s347
        %s349 = sand.u32 %s39, 1
        %s350 = smul.addr %s349, 32
        %s351 = scalar_lea.vmem [#allocation2], %s350
        %p352 = pneg %p52
        %p353 = pneg %p49
        %p354 = pneg %p73
        %p355 = pneg %p70
        %p356 = pneg %p94
        %p357 = pneg %p91
        %p358 = pneg %p115
        %p359 = pneg %p112
        %p360 = pneg %p136
        %p361 = pneg %p133
        %p362 = pneg %p157
        %p363 = pneg %p154
        %p364 = pneg %p183
        %p365 = pneg %p180
        %s366 = sand.u32 %s170, 1
        %s367 = scalar_lea.sflag [#allocation4], %s366
        %s368 = sand.u32 %s170, 1
        %s369 = smul.addr %s368, 32
        %s370 = scalar_lea.vmem [#allocation13], %s369
        %p371 = pneg %p209
        %p372 = pneg %p206
        %s373 = sand.u32 %s196, 1
        %s374 = scalar_lea.sflag [#allocation15], %s373
        %s375 = sand.u32 %s196, 1
        %s376 = smul.addr %s375, 2
        %s377 = scalar_lea.vmem [#allocation14], %s376
        %s378 = smul.u32 2, %s31
        %s379 = smul.u32 2, %s31
        %v381 = vld [vmem:[%s322] sm:$0xff]
        %v382 = vld [vmem:[%s322 + $0x8] sm:$0xff]
        %v383 = vld [vmem:[%s322 + $0x10] sm:$0xff]
        %v384 = vld [vmem:[%s322 + $0x18] sm:$0xff]
        %v385 = vld [vmem:[#allocation5] sm:$0xf]
        %v386 = vld [vmem:[#allocation5 + $0x4] sm:$0xf]
        %v387 = vld [vmem:[#allocation5 + $0x8] sm:$0xf]
        %v388 = vld [vmem:[#allocation5 + $0xc] sm:$0xf]
        %v389 = vld [vmem:[#allocation7] sm:$0x1]
        %v390 = vld [vmem:[#allocation8] sm:$0xf]
        %v391 = vld [vmem:[#allocation8 + $0x4] sm:$0xf]
        %v392 = vld [vmem:[#allocation8 + $0x8] sm:$0xf]
        %v393 = vld [vmem:[#allocation8 + $0xc] sm:$0xf]
        %v394 = vld [vmem:[#allocation10] sm:$0x1]
        %v395 = vld [vmem:[#allocation11] sm:$0xff]
        %v396 = vld [vmem:[#allocation11 + $0x8] sm:$0xff]
        %v397 = vld [vmem:[#allocation11 + $0x10] sm:$0xff]
        %v398 = vld [vmem:[#allocation11 + $0x18] sm:$0xff]
        %v399 = vpack.c.bf16 %v382, %v381
        %v400 = vpack.c.bf16 %v384, %v383
        %v402 = vlaneseq
        %v403 = vshrl.u32 %v402, 7
        %v404 = vsub.s32 0, %v403
        %v405 = vrot.slane %v389, %v404
        %v411 = vunpack.c.l.b16 %v385
        %v412 = vunpack.c.l.b16 %v386
        %v413 = vunpack.c.l.b16 %v387
        %v414 = vunpack.c.l.b16 %v388
        %v415 = vpack.c.b16 %v412, %v411
        %v416 = vpack.c.b16 %v414, %v413
        %vm419 = vcmask 261120
        %v421 = vsel %vm419, %v399, 0
        %v424 = vsel %vm419, %v400, 0
        %426 = vmatprep.subr.bf16.mxu0 0
        %427 = vmatpush1.bf16.msra.mxu0 %v415
        %428 = vmatprep.subr.bf16.mxu0 0
        %429 = vmatpush1.bf16.msra.mxu0 %v416
        %430 = vmatprep.subr.bf16.mxu0 0
        %431 = vmatpush1.bf16.msra.mxu0 0
        %432 = vmatprep.subr.bf16.mxu0 0
        %433 = vmatpush1.bf16.msra.mxu0 0
        %434 = vmatprep.subr.bf16.mxu0 0
        %435 = vmatpush1.bf16.msra.mxu0 0
        %436 = vmatprep.subr.bf16.mxu0 0
        %437 = vmatpush1.bf16.msra.mxu0 0
        %438 = vmatprep.subr.bf16.mxu0 0
        %439 = vmatpush1.bf16.msra.mxu0 0
        %440 = vmatprep.subr.bf16.mxu0 0
        %441 = vmatpush1.bf16.msra.mxu0 0
        %442 = vmatprep.subr.bf16.mxu0 0
        %443 = vmatpush1.bf16.msra.mxu0 0
        %444 = vmatprep.subr.bf16.mxu0 0
        %445 = vmatpush1.bf16.msra.mxu0 0
        %446 = vmatprep.subr.bf16.mxu0 0
        %447 = vmatpush1.bf16.msra.mxu0 0
        %448 = vmatprep.subr.bf16.mxu0 0
        %449 = vmatpush1.bf16.msra.mxu0 0
        %450 = vmatprep.subr.bf16.mxu0 0
        %451 = vmatpush1.bf16.msra.mxu0 0
        %452 = vmatprep.subr.bf16.mxu0 0
        %453 = vmatpush1.bf16.msra.mxu0 0
        %454 = vmatprep.subr.bf16.mxu0 0
        %455 = vmatpush1.bf16.msra.mxu0 0
        %456 = vmatprep.subr.bf16.mxu0 0
        %457 = vmatpush1.bf16.msra.mxu0 0
        %458 = vmatprep.mubr.bf16.mxu0 0
        %459 = vmatmul.mubr.bf16.gmra.mrb[0].mxu0 %v421
        %v460 = vpop.f32.mrb[0].mxu0
        %v461 = vadd.f32 %v405, %v460
        %v462 = vpop.f32.mrb[0].mxu0
        %v463 = vpop.f32.mrb[0].mxu0
        %v464 = vadd.f32 %v405, %v463
        %v465 = vpop.f32.mrb[0].mxu0
        %466 = vmatprep.mubr.bf16.mxu0 0
        %467 = vmatmul.mubr.bf16.gmra.mrb[0].mxu0 %v424
        %v468 = vpop.f32.mrb[0].mxu0
        %v469 = vadd.f32 %v405, %v468
        %v470 = vpop.f32.mrb[0].mxu0
        %v471 = vpop.f32.mrb[0].mxu0
        %v472 = vadd.f32 %v405, %v471
        %v473 = vpop.f32.mrb[0].mxu0
        %474 = vdwg.mxu0
        %v475 = vpack.c.bf16 %v464, %v461
        %v476 = vpack.c.bf16 %v472, %v469
        %v479 = vunpack.c.l.b16 %v475
        %v480 = vunpack.c.h.b16 %v475
        %v481 = vunpack.c.l.b16 %v476
        %v482 = vunpack.c.h.b16 %v476
        %v483 = vpack.c.b16 %v479, %v479
        %v484 = vpack.c.b16 %v480, %v480
        %v485 = vpack.c.b16 %v481, %v481
        %v486 = vpack.c.b16 %v482, %v482
        %487 = vrot.lane.b32.xlu0 %v483, 96
        %v488 = vpop.permute.xlu0 %487
        %vm489 = vcmask 64512
        %v491 = vsel %vm489, %v483, 0
        %v494 = vsel %vm489, %v488, 0
        %496 = vmatprep.subr.bf16.mxu0 0
        %497 = vmatpush1.bf16.xpose.msra.mxu0 %v494
        %498 = vmatprep.subr.bf16.mxu0 0
        %499 = vmatpush1.bf16.xpose.msra.mxu0 0
        %500 = vmatprep.subr.bf16.mxu0 0
        %501 = vmatpush1.bf16.xpose.msra.mxu0 0
        %502 = vmatprep.subr.bf16.mxu0 0
        %503 = vmatpush1.bf16.xpose.msra.mxu0 0
        %504 = vmatprep.subr.bf16.mxu0 0
        %505 = vmatpush1.bf16.xpose.msra.mxu0 0
        %506 = vmatprep.subr.bf16.mxu0 0
        %507 = vmatpush1.bf16.xpose.msra.mxu0 0
        %508 = vmatprep.subr.bf16.mxu0 0
        %509 = vmatpush1.bf16.xpose.msra.mxu0 0
        %510 = vmatprep.subr.bf16.mxu0 0
        %511 = vmatpush1.bf16.xpose.msra.mxu0 0
        %512 = vmatprep.subr.bf16.mxu0 0
        %513 = vmatpush1.bf16.xpose.msra.mxu0 0
        %514 = vmatprep.subr.bf16.mxu0 0
        %515 = vmatpush1.bf16.xpose.msra.mxu0 0
        %516 = vmatprep.subr.bf16.mxu0 0
        %517 = vmatpush1.bf16.xpose.msra.mxu0 0
        %518 = vmatprep.subr.bf16.mxu0 0
        %519 = vmatpush1.bf16.xpose.msra.mxu0 0
        %520 = vmatprep.subr.bf16.mxu0 0
        %521 = vmatpush1.bf16.xpose.msra.mxu0 0
        %522 = vmatprep.subr.bf16.mxu0 0
        %523 = vmatpush1.bf16.xpose.msra.mxu0 0
        %524 = vmatprep.subr.bf16.mxu0 0
        %525 = vmatpush1.bf16.xpose.msra.mxu0 0
        %526 = vmatprep.subr.bf16.mxu0 0
        %527 = vmatpush1.bf16.xpose.msra.mxu0 0
        %528 = vmatprep.mubr.bf16.mxu0 0
        %529 = vmatmul.mubr.bf16.gmra.mrb[0].mxu0 %v491
        %v530 = vpop.f32.mrb[0].mxu0
        %v531 = vadd.f32 0.0, %v530
        %v532 = vpop.f32.mrb[0].mxu0
        %v533 = vpop.f32.mrb[0].mxu0
        %v534 = vpop.f32.mrb[0].mxu0
        %535 = vdwg.mxu0
        %536 = vrot.lane.b32.xlu0 %v484, 96
        %v537 = vpop.permute.xlu0 %536
        %v539 = vsel %vm489, %v484, 0
        %v542 = vsel %vm489, %v537, 0
        %544 = vmatprep.subr.bf16.mxu0 0
        %545 = vmatpush1.bf16.xpose.msra.mxu0 %v542
        %546 = vmatprep.subr.bf16.mxu0 0
        %547 = vmatpush1.bf16.xpose.msra.mxu0 0
        %548 = vmatprep.subr.bf16.mxu0 0
        %549 = vmatpush1.bf16.xpose.msra.mxu0 0
        %550 = vmatprep.subr.bf16.mxu0 0
        %551 = vmatpush1.bf16.xpose.msra.mxu0 0
        %552 = vmatprep.subr.bf16.mxu0 0
        %553 = vmatpush1.bf16.xpose.msra.mxu0 0
        %554 = vmatprep.subr.bf16.mxu0 0
        %555 = vmatpush1.bf16.xpose.msra.mxu0 0
        %556 = vmatprep.subr.bf16.mxu0 0
        %557 = vmatpush1.bf16.xpose.msra.mxu0 0
        %558 = vmatprep.subr.bf16.mxu0 0
        %559 = vmatpush1.bf16.xpose.msra.mxu0 0
        %560 = vmatprep.subr.bf16.mxu0 0
        %561 = vmatpush1.bf16.xpose.msra.mxu0 0
        %562 = vmatprep.subr.bf16.mxu0 0
        %563 = vmatpush1.bf16.xpose.msra.mxu0 0
        %564 = vmatprep.subr.bf16.mxu0 0
        %565 = vmatpush1.bf16.xpose.msra.mxu0 0
        %566 = vmatprep.subr.bf16.mxu0 0
        %567 = vmatpush1.bf16.xpose.msra.mxu0 0
        %568 = vmatprep.subr.bf16.mxu0 0
        %569 = vmatpush1.bf16.xpose.msra.mxu0 0
        %570 = vmatprep.subr.bf16.mxu0 0
        %571 = vmatpush1.bf16.xpose.msra.mxu0 0
        %572 = vmatprep.subr.bf16.mxu0 0
        %573 = vmatpush1.bf16.xpose.msra.mxu0 0
        %574 = vmatprep.subr.bf16.mxu0 0
        %575 = vmatpush1.bf16.xpose.msra.mxu0 0
        %576 = vmatprep.mubr.bf16.mxu0 0
        %577 = vmatmul.mubr.bf16.gmra.mrb[0].mxu0 %v539
        %v578 = vpop.f32.mrb[0].mxu0
        %v579 = vadd.f32 0.0, %v578
        %v580 = vpop.f32.mrb[0].mxu0
        %v581 = vpop.f32.mrb[0].mxu0
        %v582 = vpop.f32.mrb[0].mxu0
        %583 = vdwg.mxu0
        %584 = vrot.lane.b32.xlu0 %v485, 96
        %v585 = vpop.permute.xlu0 %584
        %v587 = vsel %vm489, %v485, 0
        %v590 = vsel %vm489, %v585, 0
        %592 = vmatprep.subr.bf16.mxu0 0
        %593 = vmatpush1.bf16.xpose.msra.mxu0 %v590
        %594 = vmatprep.subr.bf16.mxu0 0
        %595 = vmatpush1.bf16.xpose.msra.mxu0 0
        %596 = vmatprep.subr.bf16.mxu0 0
        %597 = vmatpush1.bf16.xpose.msra.mxu0 0
        %598 = vmatprep.subr.bf16.mxu0 0
        %599 = vmatpush1.bf16.xpose.msra.mxu0 0
        %600 = vmatprep.subr.bf16.mxu0 0
        %601 = vmatpush1.bf16.xpose.msra.mxu0 0
        %602 = vmatprep.subr.bf16.mxu0 0
        %603 = vmatpush1.bf16.xpose.msra.mxu0 0
        %604 = vmatprep.subr.bf16.mxu0 0
        %605 = vmatpush1.bf16.xpose.msra.mxu0 0
        %606 = vmatprep.subr.bf16.mxu0 0
        %607 = vmatpush1.bf16.xpose.msra.mxu0 0
        %608 = vmatprep.subr.bf16.mxu0 0
        %609 = vmatpush1.bf16.xpose.msra.mxu0 0
        %610 = vmatprep.subr.bf16.mxu0 0
        %611 = vmatpush1.bf16.xpose.msra.mxu0 0
        %612 = vmatprep.subr.bf16.mxu0 0
        %613 = vmatpush1.bf16.xpose.msra.mxu0 0
        %614 = vmatprep.subr.bf16.mxu0 0
        %615 = vmatpush1.bf16.xpose.msra.mxu0 0
        %616 = vmatprep.subr.bf16.mxu0 0
        %617 = vmatpush1.bf16.xpose.msra.mxu0 0
        %618 = vmatprep.subr.bf16.mxu0 0
        %619 = vmatpush1.bf16.xpose.msra.mxu0 0
        %620 = vmatprep.subr.bf16.mxu0 0
        %621 = vmatpush1.bf16.xpose.msra.mxu0 0
        %622 = vmatprep.subr.bf16.mxu0 0
        %623 = vmatpush1.bf16.xpose.msra.mxu0 0
        %624 = vmatprep.mubr.bf16.mxu0 0
        %625 = vmatmul.mubr.bf16.gmra.mrb[0].mxu0 %v587
        %v626 = vpop.f32.mrb[0].mxu0
        %v627 = vadd.f32 0.0, %v626
        %v628 = vpop.f32.mrb[0].mxu0
        %v629 = vpop.f32.mrb[0].mxu0
        %v630 = vpop.f32.mrb[0].mxu0
        %631 = vdwg.mxu0
        %632 = vrot.lane.b32.xlu0 %v486, 96
        %v633 = vpop.permute.xlu0 %632
        %v635 = vsel %vm489, %v486, 0
        %v638 = vsel %vm489, %v633, 0
        %640 = vmatprep.subr.bf16.mxu0 0
        %641 = vmatpush1.bf16.xpose.msra.mxu0 %v638
        %642 = vmatprep.subr.bf16.mxu0 0
        %643 = vmatpush1.bf16.xpose.msra.mxu0 0
        %644 = vmatprep.subr.bf16.mxu0 0
        %645 = vmatpush1.bf16.xpose.msra.mxu0 0
        %646 = vmatprep.subr.bf16.mxu0 0
        %647 = vmatpush1.bf16.xpose.msra.mxu0 0
        %648 = vmatprep.subr.bf16.mxu0 0
        %649 = vmatpush1.bf16.xpose.msra.mxu0 0
        %650 = vmatprep.subr.bf16.mxu0 0
        %651 = vmatpush1.bf16.xpose.msra.mxu0 0
        %652 = vmatprep.subr.bf16.mxu0 0
        %653 = vmatpush1.bf16.xpose.msra.mxu0 0
        %654 = vmatprep.subr.bf16.mxu0 0
        %655 = vmatpush1.bf16.xpose.msra.mxu0 0
        %656 = vmatprep.subr.bf16.mxu0 0
        %657 = vmatpush1.bf16.xpose.msra.mxu0 0
        %658 = vmatprep.subr.bf16.mxu0 0
        %659 = vmatpush1.bf16.xpose.msra.mxu0 0
        %660 = vmatprep.subr.bf16.mxu0 0
        %661 = vmatpush1.bf16.xpose.msra.mxu0 0
        %662 = vmatprep.subr.bf16.mxu0 0
        %663 = vmatpush1.bf16.xpose.msra.mxu0 0
        %664 = vmatprep.subr.bf16.mxu0 0
        %665 = vmatpush1.bf16.xpose.msra.mxu0 0
        %666 = vmatprep.subr.bf16.mxu0 0
        %667 = vmatpush1.bf16.xpose.msra.mxu0 0
        %668 = vmatprep.subr.bf16.mxu0 0
        %669 = vmatpush1.bf16.xpose.msra.mxu0 0
        %670 = vmatprep.subr.bf16.mxu0 0
        %671 = vmatpush1.bf16.xpose.msra.mxu0 0
        %672 = vmatprep.mubr.bf16.mxu0 0
        %673 = vmatmul.mubr.bf16.gmra.mrb[0].mxu0 %v635
        %v674 = vpop.f32.mrb[0].mxu0
        %v675 = vadd.f32 0.0, %v674
        %v676 = vpop.f32.mrb[0].mxu0
        %v677 = vpop.f32.mrb[0].mxu0
        %v678 = vpop.f32.mrb[0].mxu0
        %679 = vdwg.mxu0
        %v680 = vmul.f32 %v531, 0.35355338
        %v681 = vmul.f32 %v579, 0.35355338
        %v682 = vmul.f32 %v627, 0.35355338
        %v683 = vmul.f32 %v675, 0.35355338
        %v684 = vadd.f32 %v680, %v395
        %v685 = vadd.f32 %v681, %v395
        %v686 = vadd.f32 %v682, %v395
        %v687 = vadd.f32 %v683, %v395
        %v688 = vsel %vm489, %v684, -inf
        %689 = vmax.xlane.f32.xlu0 %v688
        %v690 = vpop.xlane.xlu0 %689
        %v691 = vsel %vm489, %v685, -inf
        %692 = vmax.xlane.f32.xlu0 %v691
        %v693 = vpop.xlane.xlu0 %692
        %v694 = vsel %vm489, %v686, -inf
        %695 = vmax.xlane.f32.xlu0 %v694
        %v696 = vpop.xlane.xlu0 %695
        %v697 = vsel %vm489, %v687, -inf
        %698 = vmax.xlane.f32.xlu0 %v697
        %v699 = vpop.xlane.xlu0 %698
        %v700 = vsub.f32 %v684, %v690
        %v701 = vsub.f32 %v685, %v693
        %v702 = vsub.f32 %v686, %v696
        %v703 = vsub.f32 %v687, %v699
        %v704 = vmul.f32 %v700, 1.442695
        %v705 = vpow.pop %v704
        %v706 = vmul.f32 %v701, 1.442695
        %v707 = vpow.pop %v706
        %v708 = vmul.f32 %v702, 1.442695
        %v709 = vpow.pop %v708
        %v710 = vmul.f32 %v703, 1.442695
        %v711 = vpow.pop %v710
        %v712 = vsel %vm489, %v705, 0.0
        %713 = vadd.xlane.f32.xlu0 %v712
        %v714 = vpop.xlane.xlu0 %713
        %v715 = vsel %vm489, %v707, 0.0
        %716 = vadd.xlane.f32.xlu0 %v715
        %v717 = vpop.xlane.xlu0 %716
        %v718 = vsel %vm489, %v709, 0.0
        %719 = vadd.xlane.f32.xlu0 %v718
        %v720 = vpop.xlane.xlu0 %719
        %v721 = vsel %vm489, %v711, 0.0
        %722 = vadd.xlane.f32.xlu0 %v721
        %v723 = vpop.xlane.xlu0 %722
        %v724 = vrcp.pop %v714
        %v725 = vmul.f32 %v705, %v724
        %v726 = vrcp.pop %v717
        %v727 = vmul.f32 %v707, %v726
        %v728 = vrcp.pop %v720
        %v729 = vmul.f32 %v709, %v728
        %v730 = vrcp.pop %v723
        %v731 = vmul.f32 %v711, %v730
        %v732 = vpack.c.bf16 %v725, %v725
        %v733 = vpack.c.bf16 %v727, %v727
        %v734 = vpack.c.bf16 %v729, %v729
        %v735 = vpack.c.bf16 %v731, %v731
        %736 = vrot.lane.b32.xlu0 %v483, 64
        %v737 = vpop.permute.xlu0 %736
        %v739 = vsel %vm489, %v732, 0
        %vm741 = vcmask 1043456
        %v743 = vsel %vm741, %v737, 0
        %745 = vmatprep.subr.bf16.mxu0 0
        %746 = vmatpush1.bf16.msra.mxu0 %v743
        %747 = vmatprep.subr.bf16.mxu0 0
        %748 = vmatpush1.bf16.msra.mxu0 0
        %749 = vmatprep.subr.bf16.mxu0 0
        %750 = vmatpush1.bf16.msra.mxu0 0
        %751 = vmatprep.subr.bf16.mxu0 0
        %752 = vmatpush1.bf16.msra.mxu0 0
        %753 = vmatprep.subr.bf16.mxu0 0
        %754 = vmatpush1.bf16.msra.mxu0 0
        %755 = vmatprep.subr.bf16.mxu0 0
        %756 = vmatpush1.bf16.msra.mxu0 0
        %757 = vmatprep.subr.bf16.mxu0 0
        %758 = vmatpush1.bf16.msra.mxu0 0
        %759 = vmatprep.subr.bf16.mxu0 0
        %760 = vmatpush1.bf16.msra.mxu0 0
        %761 = vmatprep.subr.bf16.mxu0 0
        %762 = vmatpush1.bf16.msra.mxu0 0
        %763 = vmatprep.subr.bf16.mxu0 0
        %764 = vmatpush1.bf16.msra.mxu0 0
        %765 = vmatprep.subr.bf16.mxu0 0
        %766 = vmatpush1.bf16.msra.mxu0 0
        %767 = vmatprep.subr.bf16.mxu0 0
        %768 = vmatpush1.bf16.msra.mxu0 0
        %769 = vmatprep.subr.bf16.mxu0 0
        %770 = vmatpush1.bf16.msra.mxu0 0
        %771 = vmatprep.subr.bf16.mxu0 0
        %772 = vmatpush1.bf16.msra.mxu0 0
        %773 = vmatprep.subr.bf16.mxu0 0
        %774 = vmatpush1.bf16.msra.mxu0 0
        %775 = vmatprep.subr.bf16.mxu0 0
        %776 = vmatpush1.bf16.msra.mxu0 0
        %777 = vmatprep.mubr.bf16.mxu0 0
        %778 = vmatmul.mubr.bf16.gmra.mrb[0].mxu0 %v739
        %v779 = vpop.f32.mrb[0].mxu0
        %v780 = vadd.f32 0.0, %v779
        %v781 = vpop.f32.mrb[0].mxu0
        %v782 = vpop.f32.mrb[0].mxu0
        %v783 = vpop.f32.mrb[0].mxu0
        %784 = vdwg.mxu0
        %785 = vrot.lane.b32.xlu0 %v484, 64
        %v786 = vpop.permute.xlu0 %785
        %v788 = vsel %vm489, %v733, 0
        %v791 = vsel %vm741, %v786, 0
        %793 = vmatprep.subr.bf16.mxu0 0
        %794 = vmatpush1.bf16.msra.mxu0 %v791
        %795 = vmatprep.subr.bf16.mxu0 0
        %796 = vmatpush1.bf16.msra.mxu0 0
        %797 = vmatprep.subr.bf16.mxu0 0
        %798 = vmatpush1.bf16.msra.mxu0 0
        %799 = vmatprep.subr.bf16.mxu0 0
        %800 = vmatpush1.bf16.msra.mxu0 0
        %801 = vmatprep.subr.bf16.mxu0 0
        %802 = vmatpush1.bf16.msra.mxu0 0
        %803 = vmatprep.subr.bf16.mxu0 0
        %804 = vmatpush1.bf16.msra.mxu0 0
        %805 = vmatprep.subr.bf16.mxu0 0
        %806 = vmatpush1.bf16.msra.mxu0 0
        %807 = vmatprep.subr.bf16.mxu0 0
        %808 = vmatpush1.bf16.msra.mxu0 0
        %809 = vmatprep.subr.bf16.mxu0 0
        %810 = vmatpush1.bf16.msra.mxu0 0
        %811 = vmatprep.subr.bf16.mxu0 0
        %812 = vmatpush1.bf16.msra.mxu0 0
        %813 = vmatprep.subr.bf16.mxu0 0
        %814 = vmatpush1.bf16.msra.mxu0 0
        %815 = vmatprep.subr.bf16.mxu0 0
        %816 = vmatpush1.bf16.msra.mxu0 0
        %817 = vmatprep.subr.bf16.mxu0 0
        %818 = vmatpush1.bf16.msra.mxu0 0
        %819 = vmatprep.subr.bf16.mxu0 0
        %820 = vmatpush1.bf16.msra.mxu0 0
        %821 = vmatprep.subr.bf16.mxu0 0
        %822 = vmatpush1.bf16.msra.mxu0 0
        %823 = vmatprep.subr.bf16.mxu0 0
        %824 = vmatpush1.bf16.msra.mxu0 0
        %825 = vmatprep.mubr.bf16.mxu0 0
        %826 = vmatmul.mubr.bf16.gmra.mrb[0].mxu0 %v788
        %v827 = vpop.f32.mrb[0].mxu0
        %v828 = vadd.f32 0.0, %v827
        %v829 = vpop.f32.mrb[0].mxu0
        %v830 = vpop.f32.mrb[0].mxu0
        %v831 = vpop.f32.mrb[0].mxu0
        %832 = vdwg.mxu0
        %833 = vrot.lane.b32.xlu0 %v485, 64
        %v834 = vpop.permute.xlu0 %833
        %v836 = vsel %vm489, %v734, 0
        %v839 = vsel %vm741, %v834, 0
        %841 = vmatprep.subr.bf16.mxu0 0
        %842 = vmatpush1.bf16.msra.mxu0 %v839
        %843 = vmatprep.subr.bf16.mxu0 0
        %844 = vmatpush1.bf16.msra.mxu0 0
        %845 = vmatprep.subr.bf16.mxu0 0
        %846 = vmatpush1.bf16.msra.mxu0 0
        %847 = vmatprep.subr.bf16.mxu0 0
        %848 = vmatpush1.bf16.msra.mxu0 0
        %849 = vmatprep.subr.bf16.mxu0 0
        %850 = vmatpush1.bf16.msra.mxu0 0
        %851 = vmatprep.subr.bf16.mxu0 0
        %852 = vmatpush1.bf16.msra.mxu0 0
        %853 = vmatprep.subr.bf16.mxu0 0
        %854 = vmatpush1.bf16.msra.mxu0 0
        %855 = vmatprep.subr.bf16.mxu0 0
        %856 = vmatpush1.bf16.msra.mxu0 0
        %857 = vmatprep.subr.bf16.mxu0 0
        %858 = vmatpush1.bf16.msra.mxu0 0
        %859 = vmatprep.subr.bf16.mxu0 0
        %860 = vmatpush1.bf16.msra.mxu0 0
        %861 = vmatprep.subr.bf16.mxu0 0
        %862 = vmatpush1.bf16.msra.mxu0 0
        %863 = vmatprep.subr.bf16.mxu0 0
        %864 = vmatpush1.bf16.msra.mxu0 0
        %865 = vmatprep.subr.bf16.mxu0 0
        %866 = vmatpush1.bf16.msra.mxu0 0
        %867 = vmatprep.subr.bf16.mxu0 0
        %868 = vmatpush1.bf16.msra.mxu0 0
        %869 = vmatprep.subr.bf16.mxu0 0
        %870 = vmatpush1.bf16.msra.mxu0 0
        %871 = vmatprep.subr.bf16.mxu0 0
        %872 = vmatpush1.bf16.msra.mxu0 0
        %873 = vmatprep.mubr.bf16.mxu0 0
        %874 = vmatmul.mubr.bf16.gmra.mrb[0].mxu0 %v836
        %v875 = vpop.f32.mrb[0].mxu0
        %v876 = vadd.f32 0.0, %v875
        %v877 = vpop.f32.mrb[0].mxu0
        %v878 = vpop.f32.mrb[0].mxu0
        %v879 = vpop.f32.mrb[0].mxu0
        %880 = vdwg.mxu0
        %881 = vrot.lane.b32.xlu0 %v486, 64
        %v882 = vpop.permute.xlu0 %881
        %v884 = vsel %vm489, %v735, 0
        %v887 = vsel %vm741, %v882, 0
        %889 = vmatprep.subr.bf16.mxu0 0
        %890 = vmatpush1.bf16.msra.mxu0 %v887
        %891 = vmatprep.subr.bf16.mxu0 0
        %892 = vmatpush1.bf16.msra.mxu0 0
        %893 = vmatprep.subr.bf16.mxu0 0
        %894 = vmatpush1.bf16.msra.mxu0 0
        %895 = vmatprep.subr.bf16.mxu0 0
        %896 = vmatpush1.bf16.msra.mxu0 0
        %897 = vmatprep.subr.bf16.mxu0 0
        %898 = vmatpush1.bf16.msra.mxu0 0
        %899 = vmatprep.subr.bf16.mxu0 0
        %900 = vmatpush1.bf16.msra.mxu0 0
        %901 = vmatprep.subr.bf16.mxu0 0
        %902 = vmatpush1.bf16.msra.mxu0 0
        %903 = vmatprep.subr.bf16.mxu0 0
        %904 = vmatpush1.bf16.msra.mxu0 0
        %905 = vmatprep.subr.bf16.mxu0 0
        %906 = vmatpush1.bf16.msra.mxu0 0
        %907 = vmatprep.subr.bf16.mxu0 0
        %908 = vmatpush1.bf16.msra.mxu0 0
        %909 = vmatprep.subr.bf16.mxu0 0
        %910 = vmatpush1.bf16.msra.mxu0 0
        %911 = vmatprep.subr.bf16.mxu0 0
        %912 = vmatpush1.bf16.msra.mxu0 0
        %913 = vmatprep.subr.bf16.mxu0 0
        %914 = vmatpush1.bf16.msra.mxu0 0
        %915 = vmatprep.subr.bf16.mxu0 0
        %916 = vmatpush1.bf16.msra.mxu0 0
        %917 = vmatprep.subr.bf16.mxu0 0
        %918 = vmatpush1.bf16.msra.mxu0 0
        %919 = vmatprep.subr.bf16.mxu0 0
        %920 = vmatpush1.bf16.msra.mxu0 0
        %921 = vmatprep.mubr.bf16.mxu0 0
        %922 = vmatmul.mubr.bf16.gmra.mrb[0].mxu0 %v884
        %v923 = vpop.f32.mrb[0].mxu0
        %v924 = vadd.f32 0.0, %v923
        %v925 = vpop.f32.mrb[0].mxu0
        %v926 = vpop.f32.mrb[0].mxu0
        %v927 = vpop.f32.mrb[0].mxu0
        %928 = vdwg.mxu0
        %929 = vrot.lane.b32.xlu0 %v483, 120
        %v930 = vpop.permute.xlu0 %929
        %931 = vrot.lane.b32.xlu0 %v483, 88
        %v932 = vpop.permute.xlu0 %931
        %v934 = vsel %vm489, %v930, 0
        %v937 = vsel %vm489, %v932, 0
        %939 = vmatprep.subr.bf16.mxu0 0
        %940 = vmatpush1.bf16.xpose.msra.mxu0 %v937
        %941 = vmatprep.subr.bf16.mxu0 0
        %942 = vmatpush1.bf16.xpose.msra.mxu0 0
        %943 = vmatprep.subr.bf16.mxu0 0
        %944 = vmatpush1.bf16.xpose.msra.mxu0 0
        %945 = vmatprep.subr.bf16.mxu0 0
        %946 = vmatpush1.bf16.xpose.msra.mxu0 0
        %947 = vmatprep.subr.bf16.mxu0 0
        %948 = vmatpush1.bf16.xpose.msra.mxu0 0
        %949 = vmatprep.subr.bf16.mxu0 0
        %950 = vmatpush1.bf16.xpose.msra.mxu0 0
        %951 = vmatprep.subr.bf16.mxu0 0
        %952 = vmatpush1.bf16.xpose.msra.mxu0 0
        %953 = vmatprep.subr.bf16.mxu0 0
        %954 = vmatpush1.bf16.xpose.msra.mxu0 0
        %955 = vmatprep.subr.bf16.mxu0 0
        %956 = vmatpush1.bf16.xpose.msra.mxu0 0
        %957 = vmatprep.subr.bf16.mxu0 0
        %958 = vmatpush1.bf16.xpose.msra.mxu0 0
        %959 = vmatprep.subr.bf16.mxu0 0
        %960 = vmatpush1.bf16.xpose.msra.mxu0 0
        %961 = vmatprep.subr.bf16.mxu0 0
        %962 = vmatpush1.bf16.xpose.msra.mxu0 0
        %963 = vmatprep.subr.bf16.mxu0 0
        %964 = vmatpush1.bf16.xpose.msra.mxu0 0
        %965 = vmatprep.subr.bf16.mxu0 0
        %966 = vmatpush1.bf16.xpose.msra.mxu0 0
        %967 = vmatprep.subr.bf16.mxu0 0
        %968 = vmatpush1.bf16.xpose.msra.mxu0 0
        %969 = vmatprep.subr.bf16.mxu0 0
        %970 = vmatpush1.bf16.xpose.msra.mxu0 0
        %971 = vmatprep.mubr.bf16.mxu0 0
        %972 = vmatmul.mubr.bf16.gmra.mrb[0].mxu0 %v934
        %v973 = vpop.f32.mrb[0].mxu0
        %v974 = vadd.f32 0.0, %v973
        %v975 = vpop.f32.mrb[0].mxu0
        %v976 = vpop.f32.mrb[0].mxu0
        %v977 = vpop.f32.mrb[0].mxu0
        %978 = vdwg.mxu0
        %979 = vrot.lane.b32.xlu0 %v484, 120
        %v980 = vpop.permute.xlu0 %979
        %981 = vrot.lane.b32.xlu0 %v484, 88
        %v982 = vpop.permute.xlu0 %981
        %v984 = vsel %vm489, %v980, 0
        %v987 = vsel %vm489, %v982, 0
        %989 = vmatprep.subr.bf16.mxu0 0
        %990 = vmatpush1.bf16.xpose.msra.mxu0 %v987
        %991 = vmatprep.subr.bf16.mxu0 0
        %992 = vmatpush1.bf16.xpose.msra.mxu0 0
        %993 = vmatprep.subr.bf16.mxu0 0
        %994 = vmatpush1.bf16.xpose.msra.mxu0 0
        %995 = vmatprep.subr.bf16.mxu0 0
        %996 = vmatpush1.bf16.xpose.msra.mxu0 0
        %997 = vmatprep.subr.bf16.mxu0 0
        %998 = vmatpush1.bf16.xpose.msra.mxu0 0
        %999 = vmatprep.subr.bf16.mxu0 0
        %1000 = vmatpush1.bf16.xpose.msra.mxu0 0
        %1001 = vmatprep.subr.bf16.mxu0 0
        %1002 = vmatpush1.bf16.xpose.msra.mxu0 0
        %1003 = vmatprep.subr.bf16.mxu0 0
        %1004 = vmatpush1.bf16.xpose.msra.mxu0 0
        %1005 = vmatprep.subr.bf16.mxu0 0
        %1006 = vmatpush1.bf16.xpose.msra.mxu0 0
        %1007 = vmatprep.subr.bf16.mxu0 0
        %1008 = vmatpush1.bf16.xpose.msra.mxu0 0
        %1009 = vmatprep.subr.bf16.mxu0 0
        %1010 = vmatpush1.bf16.xpose.msra.mxu0 0
        %1011 = vmatprep.subr.bf16.mxu0 0
        %1012 = vmatpush1.bf16.xpose.msra.mxu0 0
        %1013 = vmatprep.subr.bf16.mxu0 0
        %1014 = vmatpush1.bf16.xpose.msra.mxu0 0
        %1015 = vmatprep.subr.bf16.mxu0 0
        %1016 = vmatpush1.bf16.xpose.msra.mxu0 0
        %1017 = vmatprep.subr.bf16.mxu0 0
        %1018 = vmatpush1.bf16.xpose.msra.mxu0 0
        %1019 = vmatprep.subr.bf16.mxu0 0
        %1020 = vmatpush1.bf16.xpose.msra.mxu0 0
        %1021 = vmatprep.mubr.bf16.mxu0 0
        %1022 = vmatmul.mubr.bf16.gmra.mrb[0].mxu0 %v984
        %v1023 = vpop.f32.mrb[0].mxu0
        %v1024 = vadd.f32 0.0, %v1023
        %v1025 = vpop.f32.mrb[0].mxu0
        %v1026 = vpop.f32.mrb[0].mxu0
        %v1027 = vpop.f32.mrb[0].mxu0
        %1028 = vdwg.mxu0
        %1029 = vrot.lane.b32.xlu0 %v485, 120
        %v1030 = vpop.permute.xlu0 %1029
        %1031 = vrot.lane.b32.xlu0 %v485, 88
        %v1032 = vpop.permute.xlu0 %1031
        %v1034 = vsel %vm489, %v1030, 0
        %v1037 = vsel %vm489, %v1032, 0
        %1039 = vmatprep.subr.bf16.mxu0 0
        %1040 = vmatpush1.bf16.xpose.msra.mxu0 %v1037
        %1041 = vmatprep.subr.bf16.mxu0 0
        %1042 = vmatpush1.bf16.xpose.msra.mxu0 0
        %1043 = vmatprep.subr.bf16.mxu0 0
        %1044 = vmatpush1.bf16.xpose.msra.mxu0 0
        %1045 = vmatprep.subr.bf16.mxu0 0
        %1046 = vmatpush1.bf16.xpose.msra.mxu0 0
        %1047 = vmatprep.subr.bf16.mxu0 0
        %1048 = vmatpush1.bf16.xpose.msra.mxu0 0
        %1049 = vmatprep.subr.bf16.mxu0 0
        %1050 = vmatpush1.bf16.xpose.msra.mxu0 0
        %1051 = vmatprep.subr.bf16.mxu0 0
        %1052 = vmatpush1.bf16.xpose.msra.mxu0 0
        %1053 = vmatprep.subr.bf16.mxu0 0
        %1054 = vmatpush1.bf16.xpose.msra.mxu0 0
        %1055 = vmatprep.subr.bf16.mxu0 0
        %1056 = vmatpush1.bf16.xpose.msra.mxu0 0
        %1057 = vmatprep.subr.bf16.mxu0 0
        %1058 = vmatpush1.bf16.xpose.msra.mxu0 0
        %1059 = vmatprep.subr.bf16.mxu0 0
        %1060 = vmatpush1.bf16.xpose.msra.mxu0 0
        %1061 = vmatprep.subr.bf16.mxu0 0
        %1062 = vmatpush1.bf16.xpose.msra.mxu0 0
        %1063 = vmatprep.subr.bf16.mxu0 0
        %1064 = vmatpush1.bf16.xpose.msra.mxu0 0
        %1065 = vmatprep.subr.bf16.mxu0 0
        %1066 = vmatpush1.bf16.xpose.msra.mxu0 0
        %1067 = vmatprep.subr.bf16.mxu0 0
        %1068 = vmatpush1.bf16.xpose.msra.mxu0 0
        %1069 = vmatprep.subr.bf16.mxu0 0
        %1070 = vmatpush1.bf16.xpose.msra.mxu0 0
        %1071 = vmatprep.mubr.bf16.mxu0 0
        %1072 = vmatmul.mubr.bf16.gmra.mrb[0].mxu0 %v1034
        %v1073 = vpop.f32.mrb[0].mxu0
        %v1074 = vadd.f32 0.0, %v1073
        %v1075 = vpop.f32.mrb[0].mxu0
        %v1076 = vpop.f32.mrb[0].mxu0
        %v1077 = vpop.f32.mrb[0].mxu0
        %1078 = vdwg.mxu0
        %1079 = vrot.lane.b32.xlu0 %v486, 120
        %v1080 = vpop.permute.xlu0 %1079
        %1081 = vrot.lane.b32.xlu0 %v486, 88
        %v1082 = vpop.permute.xlu0 %1081
        %v1084 = vsel %vm489, %v1080, 0
        %v1087 = vsel %vm489, %v1082, 0
        %1089 = vmatprep.subr.bf16.mxu0 0
        %1090 = vmatpush1.bf16.xpose.msra.mxu0 %v1087
        %1091 = vmatprep.subr.bf16.mxu0 0
        %1092 = vmatpush1.bf16.xpose.msra.mxu0 0
        %1093 = vmatprep.subr.bf16.mxu0 0
        %1094 = vmatpush1.bf16.xpose.msra.mxu0 0
        %1095 = vmatprep.subr.bf16.mxu0 0
        %1096 = vmatpush1.bf16.xpose.msra.mxu0 0
        %1097 = vmatprep.subr.bf16.mxu0 0
        %1098 = vmatpush1.bf16.xpose.msra.mxu0 0
        %1099 = vmatprep.subr.bf16.mxu0 0
        %1100 = vmatpush1.bf16.xpose.msra.mxu0 0
        %1101 = vmatprep.subr.bf16.mxu0 0
        %1102 = vmatpush1.bf16.xpose.msra.mxu0 0
        %1103 = vmatprep.subr.bf16.mxu0 0
        %1104 = vmatpush1.bf16.xpose.msra.mxu0 0
        %1105 = vmatprep.subr.bf16.mxu0 0
        %1106 = vmatpush1.bf16.xpose.msra.mxu0 0
        %1107 = vmatprep.subr.bf16.mxu0 0
        %1108 = vmatpush1.bf16.xpose.msra.mxu0 0
        %1109 = vmatprep.subr.bf16.mxu0 0
        %1110 = vmatpush1.bf16.xpose.msra.mxu0 0
        %1111 = vmatprep.subr.bf16.mxu0 0
        %1112 = vmatpush1.bf16.xpose.msra.mxu0 0
        %1113 = vmatprep.subr.bf16.mxu0 0
        %1114 = vmatpush1.bf16.xpose.msra.mxu0 0
        %1115 = vmatprep.subr.bf16.mxu0 0
        %1116 = vmatpush1.bf16.xpose.msra.mxu0 0
        %1117 = vmatprep.subr.bf16.mxu0 0
        %1118 = vmatpush1.bf16.xpose.msra.mxu0 0
        %1119 = vmatprep.subr.bf16.mxu0 0
        %1120 = vmatpush1.bf16.xpose.msra.mxu0 0
        %1121 = vmatprep.mubr.bf16.mxu0 0
        %1122 = vmatmul.mubr.bf16.gmra.mrb[0].mxu0 %v1084
        %v1123 = vpop.f32.mrb[0].mxu0
        %v1124 = vadd.f32 0.0, %v1123
        %v1125 = vpop.f32.mrb[0].mxu0
        %v1126 = vpop.f32.mrb[0].mxu0
        %v1127 = vpop.f32.mrb[0].mxu0
        %1128 = vdwg.mxu0
        %v1129 = vmul.f32 %v974, 0.35355338
        %v1130 = vmul.f32 %v1024, 0.35355338
        %v1131 = vmul.f32 %v1074, 0.35355338
        %v1132 = vmul.f32 %v1124, 0.35355338
        %v1133 = vadd.f32 %v1129, %v396
        %v1134 = vadd.f32 %v1130, %v396
        %v1135 = vadd.f32 %v1131, %v396
        %v1136 = vadd.f32 %v1132, %v396
        %v1137 = vsel %vm489, %v1133, -inf
        %1138 = vmax.xlane.f32.xlu0 %v1137
        %v1139 = vpop.xlane.xlu0 %1138
        %v1140 = vsel %vm489, %v1134, -inf
        %1141 = vmax.xlane.f32.xlu0 %v1140
        %v1142 = vpop.xlane.xlu0 %1141
        %v1143 = vsel %vm489, %v1135, -inf
        %1144 = vmax.xlane.f32.xlu0 %v1143
        %v1145 = vpop.xlane.xlu0 %1144
        %v1146 = vsel %vm489, %v1136, -inf
        %1147 = vmax.xlane.f32.xlu0 %v1146
        %v1148 = vpop.xlane.xlu0 %1147
        %v1149 = vsub.f32 %v1133, %v1139
        %v1150 = vsub.f32 %v1134, %v1142
        %v1151 = vsub.f32 %v1135, %v1145
        %v1152 = vsub.f32 %v1136, %v1148
        %v1153 = vmul.f32 %v1149, 1.442695
        %v1154 = vpow.pop %v1153
        %v1155 = vmul.f32 %v1150, 1.442695
        %v1156 = vpow.pop %v1155
        %v1157 = vmul.f32 %v1151, 1.442695
        %v1158 = vpow.pop %v1157
        %v1159 = vmul.f32 %v1152, 1.442695
        %v1160 = vpow.pop %v1159
        %v1161 = vsel %vm489, %v1154, 0.0
        %1162 = vadd.xlane.f32.xlu0 %v1161
        %v1163 = vpop.xlane.xlu0 %1162
        %v1164 = vsel %vm489, %v1156, 0.0
        %1165 = vadd.xlane.f32.xlu0 %v1164
        %v1166 = vpop.xlane.xlu0 %1165
        %v1167 = vsel %vm489, %v1158, 0.0
        %1168 = vadd.xlane.f32.xlu0 %v1167
        %v1169 = vpop.xlane.xlu0 %1168
        %v1170 = vsel %vm489, %v1160, 0.0
        %1171 = vadd.xlane.f32.xlu0 %v1170
        %v1172 = vpop.xlane.xlu0 %1171
        %v1173 = vrcp.pop %v1163
        %v1174 = vmul.f32 %v1154, %v1173
        %v1175 = vrcp.pop %v1166
        %v1176 = vmul.f32 %v1156, %v1175
        %v1177 = vrcp.pop %v1169
        %v1178 = vmul.f32 %v1158, %v1177
        %v1179 = vrcp.pop %v1172
        %v1180 = vmul.f32 %v1160, %v1179
        %v1181 = vpack.c.bf16 %v1174, %v1174
        %v1182 = vpack.c.bf16 %v1176, %v1176
        %v1183 = vpack.c.bf16 %v1178, %v1178
        %v1184 = vpack.c.bf16 %v1180, %v1180
        %1185 = vrot.lane.b32.xlu0 %v483, 56
        %v1186 = vpop.permute.xlu0 %1185
        %v1188 = vsel %vm489, %v1181, 0
        %v1191 = vsel %vm741, %v1186, 0
        %1193 = vmatprep.subr.bf16.mxu0 0
        %1194 = vmatpush1.bf16.msra.mxu0 %v1191
        %1195 = vmatprep.subr.bf16.mxu0 0
        %1196 = vmatpush1.bf16.msra.mxu0 0
        %1197 = vmatprep.subr.bf16.mxu0 0
        %1198 = vmatpush1.bf16.msra.mxu0 0
        %1199 = vmatprep.subr.bf16.mxu0 0
        %1200 = vmatpush1.bf16.msra.mxu0 0
        %1201 = vmatprep.subr.bf16.mxu0 0
        %1202 = vmatpush1.bf16.msra.mxu0 0
        %1203 = vmatprep.subr.bf16.mxu0 0
        %1204 = vmatpush1.bf16.msra.mxu0 0
        %1205 = vmatprep.subr.bf16.mxu0 0
        %1206 = vmatpush1.bf16.msra.mxu0 0
        %1207 = vmatprep.subr.bf16.mxu0 0
        %1208 = vmatpush1.bf16.msra.mxu0 0
        %1209 = vmatprep.subr.bf16.mxu0 0
        %1210 = vmatpush1.bf16.msra.mxu0 0
        %1211 = vmatprep.subr.bf16.mxu0 0
        %1212 = vmatpush1.bf16.msra.mxu0 0
        %1213 = vmatprep.subr.bf16.mxu0 0
        %1214 = vmatpush1.bf16.msra.mxu0 0
        %1215 = vmatprep.subr.bf16.mxu0 0
        %1216 = vmatpush1.bf16.msra.mxu0 0
        %1217 = vmatprep.subr.bf16.mxu0 0
        %1218 = vmatpush1.bf16.msra.mxu0 0
        %1219 = vmatprep.subr.bf16.mxu0 0
        %1220 = vmatpush1.bf16.msra.mxu0 0
        %1221 = vmatprep.subr.bf16.mxu0 0
        %1222 = vmatpush1.bf16.msra.mxu0 0
        %1223 = vmatprep.subr.bf16.mxu0 0
        %1224 = vmatpush1.bf16.msra.mxu0 0
        %1225 = vmatprep.mubr.bf16.mxu0 0
        %1226 = vmatmul.mubr.bf16.gmra.mrb[0].mxu0 %v1188
        %v1227 = vpop.f32.mrb[0].mxu0
        %v1228 = vadd.f32 0.0, %v1227
        %v1229 = vpop.f32.mrb[0].mxu0
        %v1230 = vpop.f32.mrb[0].mxu0
        %v1231 = vpop.f32.mrb[0].mxu0
        %1232 = vdwg.mxu0
        %1233 = vrot.lane.b32.xlu0 %v484, 56
        %v1234 = vpop.permute.xlu0 %1233
        %v1236 = vsel %vm489, %v1182, 0
        %v1239 = vsel %vm741, %v1234, 0
        %1241 = vmatprep.subr.bf16.mxu0 0
        %1242 = vmatpush1.bf16.msra.mxu0 %v1239
        %1243 = vmatprep.subr.bf16.mxu0 0
        %1244 = vmatpush1.bf16.msra.mxu0 0
        %1245 = vmatprep.subr.bf16.mxu0 0
        %1246 = vmatpush1.bf16.msra.mxu0 0
        %1247 = vmatprep.subr.bf16.mxu0 0
        %1248 = vmatpush1.bf16.msra.mxu0 0
        %1249 = vmatprep.subr.bf16.mxu0 0
        %1250 = vmatpush1.bf16.msra.mxu0 0
        %1251 = vmatprep.subr.bf16.mxu0 0
        %1252 = vmatpush1.bf16.msra.mxu0 0
        %1253 = vmatprep.subr.bf16.mxu0 0
        %1254 = vmatpush1.bf16.msra.mxu0 0
        %1255 = vmatprep.subr.bf16.mxu0 0
        %1256 = vmatpush1.bf16.msra.mxu0 0
        %1257 = vmatprep.subr.bf16.mxu0 0
        %1258 = vmatpush1.bf16.msra.mxu0 0
        %1259 = vmatprep.subr.bf16.mxu0 0
        %1260 = vmatpush1.bf16.msra.mxu0 0
        %1261 = vmatprep.subr.bf16.mxu0 0
        %1262 = vmatpush1.bf16.msra.mxu0 0
        %1263 = vmatprep.subr.bf16.mxu0 0
        %1264 = vmatpush1.bf16.msra.mxu0 0
        %1265 = vmatprep.subr.bf16.mxu0 0
        %1266 = vmatpush1.bf16.msra.mxu0 0
        %1267 = vmatprep.subr.bf16.mxu0 0
        %1268 = vmatpush1.bf16.msra.mxu0 0
        %1269 = vmatprep.subr.bf16.mxu0 0
        %1270 = vmatpush1.bf16.msra.mxu0 0
        %1271 = vmatprep.subr.bf16.mxu0 0
        %1272 = vmatpush1.bf16.msra.mxu0 0
        %1273 = vmatprep.mubr.bf16.mxu0 0
        %1274 = vmatmul.mubr.bf16.gmra.mrb[0].mxu0 %v1236
        %v1275 = vpop.f32.mrb[0].mxu0
        %v1276 = vadd.f32 0.0, %v1275
        %v1277 = vpop.f32.mrb[0].mxu0
        %v1278 = vpop.f32.mrb[0].mxu0
        %v1279 = vpop.f32.mrb[0].mxu0
        %1280 = vdwg.mxu0
        %1281 = vrot.lane.b32.xlu0 %v485, 56
        %v1282 = vpop.permute.xlu0 %1281
        %v1284 = vsel %vm489, %v1183, 0
        %v1287 = vsel %vm741, %v1282, 0
        %1289 = vmatprep.subr.bf16.mxu0 0
        %1290 = vmatpush1.bf16.msra.mxu0 %v1287
        %1291 = vmatprep.subr.bf16.mxu0 0
        %1292 = vmatpush1.bf16.msra.mxu0 0
        %1293 = vmatprep.subr.bf16.mxu0 0
        %1294 = vmatpush1.bf16.msra.mxu0 0
        %1295 = vmatprep.subr.bf16.mxu0 0
        %1296 = vmatpush1.bf16.msra.mxu0 0
        %1297 = vmatprep.subr.bf16.mxu0 0
        %1298 = vmatpush1.bf16.msra.mxu0 0
        %1299 = vmatprep.subr.bf16.mxu0 0
        %1300 = vmatpush1.bf16.msra.mxu0 0
        %1301 = vmatprep.subr.bf16.mxu0 0
        %1302 = vmatpush1.bf16.msra.mxu0 0
        %1303 = vmatprep.subr.bf16.mxu0 0
        %1304 = vmatpush1.bf16.msra.mxu0 0
        %1305 = vmatprep.subr.bf16.mxu0 0
        %1306 = vmatpush1.bf16.msra.mxu0 0
        %1307 = vmatprep.subr.bf16.mxu0 0
        %1308 = vmatpush1.bf16.msra.mxu0 0
        %1309 = vmatprep.subr.bf16.mxu0 0
        %1310 = vmatpush1.bf16.msra.mxu0 0
        %1311 = vmatprep.subr.bf16.mxu0 0
        %1312 = vmatpush1.bf16.msra.mxu0 0
        %1313 = vmatprep.subr.bf16.mxu0 0
        %1314 = vmatpush1.bf16.msra.mxu0 0
        %1315 = vmatprep.subr.bf16.mxu0 0
        %1316 = vmatpush1.bf16.msra.mxu0 0
        %1317 = vmatprep.subr.bf16.mxu0 0
        %1318 = vmatpush1.bf16.msra.mxu0 0
        %1319 = vmatprep.subr.bf16.mxu0 0
        %1320 = vmatpush1.bf16.msra.mxu0 0
        %1321 = vmatprep.mubr.bf16.mxu0 0
        %1322 = vmatmul.mubr.bf16.gmra.mrb[0].mxu0 %v1284
        %v1323 = vpop.f32.mrb[0].mxu0
        %v1324 = vadd.f32 0.0, %v1323
        %v1325 = vpop.f32.mrb[0].mxu0
        %v1326 = vpop.f32.mrb[0].mxu0
        %v1327 = vpop.f32.mrb[0].mxu0
        %1328 = vdwg.mxu0
        %1329 = vrot.lane.b32.xlu0 %v486, 56
        %v1330 = vpop.permute.xlu0 %1329
        %v1332 = vsel %vm489, %v1184, 0
        %v1335 = vsel %vm741, %v1330, 0
        %1337 = vmatprep.subr.bf16.mxu0 0
        %1338 = vmatpush1.bf16.msra.mxu0 %v1335
        %1339 = vmatprep.subr.bf16.mxu0 0
        %1340 = vmatpush1.bf16.msra.mxu0 0
        %1341 = vmatprep.subr.bf16.mxu0 0
        %1342 = vmatpush1.bf16.msra.mxu0 0
        %1343 = vmatprep.subr.bf16.mxu0 0
        %1344 = vmatpush1.bf16.msra.mxu0 0
        %1345 = vmatprep.subr.bf16.mxu0 0
        %1346 = vmatpush1.bf16.msra.mxu0 0
        %1347 = vmatprep.subr.bf16.mxu0 0
        %1348 = vmatpush1.bf16.msra.mxu0 0
        %1349 = vmatprep.subr.bf16.mxu0 0
        %1350 = vmatpush1.bf16.msra.mxu0 0
        %1351 = vmatprep.subr.bf16.mxu0 0
        %1352 = vmatpush1.bf16.msra.mxu0 0
        %1353 = vmatprep.subr.bf16.mxu0 0
        %1354 = vmatpush1.bf16.msra.mxu0 0
        %1355 = vmatprep.subr.bf16.mxu0 0
        %1356 = vmatpush1.bf16.msra.mxu0 0
        %1357 = vmatprep.subr.bf16.mxu0 0
        %1358 = vmatpush1.bf16.msra.mxu0 0
        %1359 = vmatprep.subr.bf16.mxu0 0
        %1360 = vmatpush1.bf16.msra.mxu0 0
        %1361 = vmatprep.subr.bf16.mxu0 0
        %1362 = vmatpush1.bf16.msra.mxu0 0
        %1363 = vmatprep.subr.bf16.mxu0 0
        %1364 = vmatpush1.bf16.msra.mxu0 0
        %1365 = vmatprep.subr.bf16.mxu0 0
        %1366 = vmatpush1.bf16.msra.mxu0 0
        %1367 = vmatprep.subr.bf16.mxu0 0
        %1368 = vmatpush1.bf16.msra.mxu0 0
        %1369 = vmatprep.mubr.bf16.mxu0 0
        %1370 = vmatmul.mubr.bf16.gmra.mrb[0].mxu0 %v1332
        %v1371 = vpop.f32.mrb[0].mxu0
        %v1372 = vadd.f32 0.0, %v1371
        %v1373 = vpop.f32.mrb[0].mxu0
        %v1374 = vpop.f32.mrb[0].mxu0
        %v1375 = vpop.f32.mrb[0].mxu0
        %1376 = vdwg.mxu0
        %1377 = vrot.lane.b32.xlu0 %v483, 112
        %v1378 = vpop.permute.xlu0 %1377
        %1379 = vrot.lane.b32.xlu0 %v483, 80
        %v1380 = vpop.permute.xlu0 %1379
        %v1382 = vsel %vm489, %v1378, 0
        %v1385 = vsel %vm489, %v1380, 0
        %1387 = vmatprep.subr.bf16.mxu0 0
        %1388 = vmatpush1.bf16.xpose.msra.mxu0 %v1385
        %1389 = vmatprep.subr.bf16.mxu0 0
        %1390 = vmatpush1.bf16.xpose.msra.mxu0 0
        %1391 = vmatprep.subr.bf16.mxu0 0
        %1392 = vmatpush1.bf16.xpose.msra.mxu0 0
        %1393 = vmatprep.subr.bf16.mxu0 0
        %1394 = vmatpush1.bf16.xpose.msra.mxu0 0
        %1395 = vmatprep.subr.bf16.mxu0 0
        %1396 = vmatpush1.bf16.xpose.msra.mxu0 0
        %1397 = vmatprep.subr.bf16.mxu0 0
        %1398 = vmatpush1.bf16.xpose.msra.mxu0 0
        %1399 = vmatprep.subr.bf16.mxu0 0
        %1400 = vmatpush1.bf16.xpose.msra.mxu0 0
        %1401 = vmatprep.subr.bf16.mxu0 0
        %1402 = vmatpush1.bf16.xpose.msra.mxu0 0
        %1403 = vmatprep.subr.bf16.mxu0 0
        %1404 = vmatpush1.bf16.xpose.msra.mxu0 0
        %1405 = vmatprep.subr.bf16.mxu0 0
        %1406 = vmatpush1.bf16.xpose.msra.mxu0 0
        %1407 = vmatprep.subr.bf16.mxu0 0
        %1408 = vmatpush1.bf16.xpose.msra.mxu0 0
        %1409 = vmatprep.subr.bf16.mxu0 0
        %1410 = vmatpush1.bf16.xpose.msra.mxu0 0
        %1411 = vmatprep.subr.bf16.mxu0 0
        %1412 = vmatpush1.bf16.xpose.msra.mxu0 0
        %1413 = vmatprep.subr.bf16.mxu0 0
        %1414 = vmatpush1.bf16.xpose.msra.mxu0 0
        %1415 = vmatprep.subr.bf16.mxu0 0
        %1416 = vmatpush1.bf16.xpose.msra.mxu0 0
        %1417 = vmatprep.subr.bf16.mxu0 0
        %1418 = vmatpush1.bf16.xpose.msra.mxu0 0
        %1419 = vmatprep.mubr.bf16.mxu0 0
        %1420 = vmatmul.mubr.bf16.gmra.mrb[0].mxu0 %v1382
        %v1421 = vpop.f32.mrb[0].mxu0
        %v1422 = vadd.f32 0.0, %v1421
        %v1423 = vpop.f32.mrb[0].mxu0
        %v1424 = vpop.f32.mrb[0].mxu0
        %v1425 = vpop.f32.mrb[0].mxu0
        %1426 = vdwg.mxu0
        %1427 = vrot.lane.b32.xlu0 %v484, 112
        %v1428 = vpop.permute.xlu0 %1427
        %1429 = vrot.lane.b32.xlu0 %v484, 80
        %v1430 = vpop.permute.xlu0 %1429
        %v1432 = vsel %vm489, %v1428, 0
        %v1435 = vsel %vm489, %v1430, 0
        %1437 = vmatprep.subr.bf16.mxu0 0
        %1438 = vmatpush1.bf16.xpose.msra.mxu0 %v1435
        %1439 = vmatprep.subr.bf16.mxu0 0
        %1440 = vmatpush1.bf16.xpose.msra.mxu0 0
        %1441 = vmatprep.subr.bf16.mxu0 0
        %1442 = vmatpush1.bf16.xpose.msra.mxu0 0
        %1443 = vmatprep.subr.bf16.mxu0 0
        %1444 = vmatpush1.bf16.xpose.msra.mxu0 0
        %1445 = vmatprep.subr.bf16.mxu0 0
        %1446 = vmatpush1.bf16.xpose.msra.mxu0 0
        %1447 = vmatprep.subr.bf16.mxu0 0
        %1448 = vmatpush1.bf16.xpose.msra.mxu0 0
        %1449 = vmatprep.subr.bf16.mxu0 0
        %1450 = vmatpush1.bf16.xpose.msra.mxu0 0
        %1451 = vmatprep.subr.bf16.mxu0 0
        %1452 = vmatpush1.bf16.xpose.msra.mxu0 0
        %1453 = vmatprep.subr.bf16.mxu0 0
        %1454 = vmatpush1.bf16.xpose.msra.mxu0 0
        %1455 = vmatprep.subr.bf16.mxu0 0
        %1456 = vmatpush1.bf16.xpose.msra.mxu0 0
        %1457 = vmatprep.subr.bf16.mxu0 0
        %1458 = vmatpush1.bf16.xpose.msra.mxu0 0
        %1459 = vmatprep.subr.bf16.mxu0 0
        %1460 = vmatpush1.bf16.xpose.msra.mxu0 0
        %1461 = vmatprep.subr.bf16.mxu0 0
        %1462 = vmatpush1.bf16.xpose.msra.mxu0 0
        %1463 = vmatprep.subr.bf16.mxu0 0
        %1464 = vmatpush1.bf16.xpose.msra.mxu0 0
        %1465 = vmatprep.subr.bf16.mxu0 0
        %1466 = vmatpush1.bf16.xpose.msra.mxu0 0
        %1467 = vmatprep.subr.bf16.mxu0 0
        %1468 = vmatpush1.bf16.xpose.msra.mxu0 0
        %1469 = vmatprep.mubr.bf16.mxu0 0
        %1470 = vmatmul.mubr.bf16.gmra.mrb[0].mxu0 %v1432
        %v1471 = vpop.f32.mrb[0].mxu0
        %v1472 = vadd.f32 0.0, %v1471
        %v1473 = vpop.f32.mrb[0].mxu0
        %v1474 = vpop.f32.mrb[0].mxu0
        %v1475 = vpop.f32.mrb[0].mxu0
        %1476 = vdwg.mxu0
        %1477 = vrot.lane.b32.xlu0 %v485, 112
        %v1478 = vpop.permute.xlu0 %1477
        %1479 = vrot.lane.b32.xlu0 %v485, 80
        %v1480 = vpop.permute.xlu0 %1479
        %v1482 = vsel %vm489, %v1478, 0
        %v1485 = vsel %vm489, %v1480, 0
        %1487 = vmatprep.subr.bf16.mxu0 0
        %1488 = vmatpush1.bf16.xpose.msra.mxu0 %v1485
        %1489 = vmatprep.subr.bf16.mxu0 0
        %1490 = vmatpush1.bf16.xpose.msra.mxu0 0
        %1491 = vmatprep.subr.bf16.mxu0 0
        %1492 = vmatpush1.bf16.xpose.msra.mxu0 0
        %1493 = vmatprep.subr.bf16.mxu0 0
        %1494 = vmatpush1.bf16.xpose.msra.mxu0 0
        %1495 = vmatprep.subr.bf16.mxu0 0
        %1496 = vmatpush1.bf16.xpose.msra.mxu0 0
        %1497 = vmatprep.subr.bf16.mxu0 0
        %1498 = vmatpush1.bf16.xpose.msra.mxu0 0
        %1499 = vmatprep.subr.bf16.mxu0 0
        %1500 = vmatpush1.bf16.xpose.msra.mxu0 0
        %1501 = vmatprep.subr.bf16.mxu0 0
        %1502 = vmatpush1.bf16.xpose.msra.mxu0 0
        %1503 = vmatprep.subr.bf16.mxu0 0
        %1504 = vmatpush1.bf16.xpose.msra.mxu0 0
        %1505 = vmatprep.subr.bf16.mxu0 0
        %1506 = vmatpush1.bf16.xpose.msra.mxu0 0
        %1507 = vmatprep.subr.bf16.mxu0 0
        %1508 = vmatpush1.bf16.xpose.msra.mxu0 0
        %1509 = vmatprep.subr.bf16.mxu0 0
        %1510 = vmatpush1.bf16.xpose.msra.mxu0 0
        %1511 = vmatprep.subr.bf16.mxu0 0
        %1512 = vmatpush1.bf16.xpose.msra.mxu0 0
        %1513 = vmatprep.subr.bf16.mxu0 0
        %1514 = vmatpush1.bf16.xpose.msra.mxu0 0
        %1515 = vmatprep.subr.bf16.mxu0 0
        %1516 = vmatpush1.bf16.xpose.msra.mxu0 0
        %1517 = vmatprep.subr.bf16.mxu0 0
        %1518 = vmatpush1.bf16.xpose.msra.mxu0 0
        %1519 = vmatprep.mubr.bf16.mxu0 0
        %1520 = vmatmul.mubr.bf16.gmra.mrb[0].mxu0 %v1482
        %v1521 = vpop.f32.mrb[0].mxu0
        %v1522 = vadd.f32 0.0, %v1521
        %v1523 = vpop.f32.mrb[0].mxu0
        %v1524 = vpop.f32.mrb[0].mxu0
        %v1525 = vpop.f32.mrb[0].mxu0
        %1526 = vdwg.mxu0
        %1527 = vrot.lane.b32.xlu0 %v486, 112
        %v1528 = vpop.permute.xlu0 %1527
        %1529 = vrot.lane.b32.xlu0 %v486, 80
        %v1530 = vpop.permute.xlu0 %1529
        %v1532 = vsel %vm489, %v1528, 0
        %v1535 = vsel %vm489, %v1530, 0
        %1537 = vmatprep.subr.bf16.mxu0 0
        %1538 = vmatpush1.bf16.xpose.msra.mxu0 %v1535
        %1539 = vmatprep.subr.bf16.mxu0 0
        %1540 = vmatpush1.bf16.xpose.msra.mxu0 0
        %1541 = vmatprep.subr.bf16.mxu0 0
        %1542 = vmatpush1.bf16.xpose.msra.mxu0 0
        %1543 = vmatprep.subr.bf16.mxu0 0
        %1544 = vmatpush1.bf16.xpose.msra.mxu0 0
        %1545 = vmatprep.subr.bf16.mxu0 0
        %1546 = vmatpush1.bf16.xpose.msra.mxu0 0
        %1547 = vmatprep.subr.bf16.mxu0 0
        %1548 = vmatpush1.bf16.xpose.msra.mxu0 0
        %1549 = vmatprep.subr.bf16.mxu0 0
        %1550 = vmatpush1.bf16.xpose.msra.mxu0 0
        %1551 = vmatprep.subr.bf16.mxu0 0
        %1552 = vmatpush1.bf16.xpose.msra.mxu0 0
        %1553 = vmatprep.subr.bf16.mxu0 0
        %1554 = vmatpush1.bf16.xpose.msra.mxu0 0
        %1555 = vmatprep.subr.bf16.mxu0 0
        %1556 = vmatpush1.bf16.xpose.msra.mxu0 0
        %1557 = vmatprep.subr.bf16.mxu0 0
        %1558 = vmatpush1.bf16.xpose.msra.mxu0 0
        %1559 = vmatprep.subr.bf16.mxu0 0
        %1560 = vmatpush1.bf16.xpose.msra.mxu0 0
        %1561 = vmatprep.subr.bf16.mxu0 0
        %1562 = vmatpush1.bf16.xpose.msra.mxu0 0
        %1563 = vmatprep.subr.bf16.mxu0 0
        %1564 = vmatpush1.bf16.xpose.msra.mxu0 0
        %1565 = vmatprep.subr.bf16.mxu0 0
        %1566 = vmatpush1.bf16.xpose.msra.mxu0 0
        %1567 = vmatprep.subr.bf16.mxu0 0
        %1568 = vmatpush1.bf16.xpose.msra.mxu0 0
        %1569 = vmatprep.mubr.bf16.mxu0 0
        %1570 = vmatmul.mubr.bf16.gmra.mrb[0].mxu0 %v1532
        %v1571 = vpop.f32.mrb[0].mxu0
        %v1572 = vadd.f32 0.0, %v1571
        %v1573 = vpop.f32.mrb[0].mxu0
        %v1574 = vpop.f32.mrb[0].mxu0
        %v1575 = vpop.f32.mrb[0].mxu0
        %1576 = vdwg.mxu0
        %v1577 = vmul.f32 %v1422, 0.35355338
        %v1578 = vmul.f32 %v1472, 0.35355338
        %v1579 = vmul.f32 %v1522, 0.35355338
        %v1580 = vmul.f32 %v1572, 0.35355338
        %v1581 = vadd.f32 %v1577, %v397
        %v1582 = vadd.f32 %v1578, %v397
        %v1583 = vadd.f32 %v1579, %v397
        %v1584 = vadd.f32 %v1580, %v397
        %v1585 = vsel %vm489, %v1581, -inf
        %1586 = vmax.xlane.f32.xlu0 %v1585
        %v1587 = vpop.xlane.xlu0 %1586
        %v1588 = vsel %vm489, %v1582, -inf
        %1589 = vmax.xlane.f32.xlu0 %v1588
        %v1590 = vpop.xlane.xlu0 %1589
        %v1591 = vsel %vm489, %v1583, -inf
        %1592 = vmax.xlane.f32.xlu0 %v1591
        %v1593 = vpop.xlane.xlu0 %1592
        %v1594 = vsel %vm489, %v1584, -inf
        %1595 = vmax.xlane.f32.xlu0 %v1594
        %v1596 = vpop.xlane.xlu0 %1595
        %v1597 = vsub.f32 %v1581, %v1587
        %v1598 = vsub.f32 %v1582, %v1590
        %v1599 = vsub.f32 %v1583, %v1593
        %v1600 = vsub.f32 %v1584, %v1596
        %v1601 = vmul.f32 %v1597, 1.442695
        %v1602 = vpow.pop %v1601
        %v1603 = vmul.f32 %v1598, 1.442695
        %v1604 = vpow.pop %v1603
        %v1605 = vmul.f32 %v1599, 1.442695
        %v1606 = vpow.pop %v1605
        %v1607 = vmul.f32 %v1600, 1.442695
        %v1608 = vpow.pop %v1607
        %v1609 = vsel %vm489, %v1602, 0.0
        %1610 = vadd.xlane.f32.xlu0 %v1609
        %v1611 = vpop.xlane.xlu0 %1610
        %v1612 = vsel %vm489, %v1604, 0.0
        %1613 = vadd.xlane.f32.xlu0 %v1612
        %v1614 = vpop.xlane.xlu0 %1613
        %v1615 = vsel %vm489, %v1606, 0.0
        %1616 = vadd.xlane.f32.xlu0 %v1615
        %v1617 = vpop.xlane.xlu0 %1616
        %v1618 = vsel %vm489, %v1608, 0.0
        %1619 = vadd.xlane.f32.xlu0 %v1618
        %v1620 = vpop.xlane.xlu0 %1619
        %v1621 = vrcp.pop %v1611
        %v1622 = vmul.f32 %v1602, %v1621
        %v1623 = vrcp.pop %v1614
        %v1624 = vmul.f32 %v1604, %v1623
        %v1625 = vrcp.pop %v1617
        %v1626 = vmul.f32 %v1606, %v1625
        %v1627 = vrcp.pop %v1620
        %v1628 = vmul.f32 %v1608, %v1627
        %v1629 = vpack.c.bf16 %v1622, %v1622
        %v1630 = vpack.c.bf16 %v1624, %v1624
        %v1631 = vpack.c.bf16 %v1626, %v1626
        %v1632 = vpack.c.bf16 %v1628, %v1628
        %1633 = vrot.lane.b32.xlu0 %v483, 48
        %v1634 = vpop.permute.xlu0 %1633
        %v1636 = vsel %vm489, %v1629, 0
        %v1639 = vsel %vm741, %v1634, 0
        %1641 = vmatprep.subr.bf16.mxu0 0
        %1642 = vmatpush1.bf16.msra.mxu0 %v1639
        %1643 = vmatprep.subr.bf16.mxu0 0
        %1644 = vmatpush1.bf16.msra.mxu0 0
        %1645 = vmatprep.subr.bf16.mxu0 0
        %1646 = vmatpush1.bf16.msra.mxu0 0
        %1647 = vmatprep.subr.bf16.mxu0 0
        %1648 = vmatpush1.bf16.msra.mxu0 0
        %1649 = vmatprep.subr.bf16.mxu0 0
        %1650 = vmatpush1.bf16.msra.mxu0 0
        %1651 = vmatprep.subr.bf16.mxu0 0
        %1652 = vmatpush1.bf16.msra.mxu0 0
        %1653 = vmatprep.subr.bf16.mxu0 0
        %1654 = vmatpush1.bf16.msra.mxu0 0
        %1655 = vmatprep.subr.bf16.mxu0 0
        %1656 = vmatpush1.bf16.msra.mxu0 0
        %1657 = vmatprep.subr.bf16.mxu0 0
        %1658 = vmatpush1.bf16.msra.mxu0 0
        %1659 = vmatprep.subr.bf16.mxu0 0
        %1660 = vmatpush1.bf16.msra.mxu0 0
        %1661 = vmatprep.subr.bf16.mxu0 0
        %1662 = vmatpush1.bf16.msra.mxu0 0
        %1663 = vmatprep.subr.bf16.mxu0 0
        %1664 = vmatpush1.bf16.msra.mxu0 0
        %1665 = vmatprep.subr.bf16.mxu0 0
        %1666 = vmatpush1.bf16.msra.mxu0 0
        %1667 = vmatprep.subr.bf16.mxu0 0
        %1668 = vmatpush1.bf16.msra.mxu0 0
        %1669 = vmatprep.subr.bf16.mxu0 0
        %1670 = vmatpush1.bf16.msra.mxu0 0
        %1671 = vmatprep.subr.bf16.mxu0 0
        %1672 = vmatpush1.bf16.msra.mxu0 0
        %1673 = vmatprep.mubr.bf16.mxu0 0
        %1674 = vmatmul.mubr.bf16.gmra.mrb[0].mxu0 %v1636
        %v1675 = vpop.f32.mrb[0].mxu0
        %v1676 = vadd.f32 0.0, %v1675
        %v1677 = vpop.f32.mrb[0].mxu0
        %v1678 = vpop.f32.mrb[0].mxu0
        %v1679 = vpop.f32.mrb[0].mxu0
        %1680 = vdwg.mxu0
        %1681 = vrot.lane.b32.xlu0 %v484, 48
        %v1682 = vpop.permute.xlu0 %1681
        %v1684 = vsel %vm489, %v1630, 0
        %v1687 = vsel %vm741, %v1682, 0
        %1689 = vmatprep.subr.bf16.mxu0 0
        %1690 = vmatpush1.bf16.msra.mxu0 %v1687
        %1691 = vmatprep.subr.bf16.mxu0 0
        %1692 = vmatpush1.bf16.msra.mxu0 0
        %1693 = vmatprep.subr.bf16.mxu0 0
        %1694 = vmatpush1.bf16.msra.mxu0 0
        %1695 = vmatprep.subr.bf16.mxu0 0
        %1696 = vmatpush1.bf16.msra.mxu0 0
        %1697 = vmatprep.subr.bf16.mxu0 0
        %1698 = vmatpush1.bf16.msra.mxu0 0
        %1699 = vmatprep.subr.bf16.mxu0 0
        %1700 = vmatpush1.bf16.msra.mxu0 0
        %1701 = vmatprep.subr.bf16.mxu0 0
        %1702 = vmatpush1.bf16.msra.mxu0 0
        %1703 = vmatprep.subr.bf16.mxu0 0
        %1704 = vmatpush1.bf16.msra.mxu0 0
        %1705 = vmatprep.subr.bf16.mxu0 0
        %1706 = vmatpush1.bf16.msra.mxu0 0
        %1707 = vmatprep.subr.bf16.mxu0 0
        %1708 = vmatpush1.bf16.msra.mxu0 0
        %1709 = vmatprep.subr.bf16.mxu0 0
        %1710 = vmatpush1.bf16.msra.mxu0 0
        %1711 = vmatprep.subr.bf16.mxu0 0
        %1712 = vmatpush1.bf16.msra.mxu0 0
        %1713 = vmatprep.subr.bf16.mxu0 0
        %1714 = vmatpush1.bf16.msra.mxu0 0
        %1715 = vmatprep.subr.bf16.mxu0 0
        %1716 = vmatpush1.bf16.msra.mxu0 0
        %1717 = vmatprep.subr.bf16.mxu0 0
        %1718 = vmatpush1.bf16.msra.mxu0 0
        %1719 = vmatprep.subr.bf16.mxu0 0
        %1720 = vmatpush1.bf16.msra.mxu0 0
        %1721 = vmatprep.mubr.bf16.mxu0 0
        %1722 = vmatmul.mubr.bf16.gmra.mrb[0].mxu0 %v1684
        %v1723 = vpop.f32.mrb[0].mxu0
        %v1724 = vadd.f32 0.0, %v1723
        %v1725 = vpop.f32.mrb[0].mxu0
        %v1726 = vpop.f32.mrb[0].mxu0
        %v1727 = vpop.f32.mrb[0].mxu0
        %1728 = vdwg.mxu0
        %1729 = vrot.lane.b32.xlu0 %v485, 48
        %v1730 = vpop.permute.xlu0 %1729
        %v1732 = vsel %vm489, %v1631, 0
        %v1735 = vsel %vm741, %v1730, 0
        %1737 = vmatprep.subr.bf16.mxu0 0
        %1738 = vmatpush1.bf16.msra.mxu0 %v1735
        %1739 = vmatprep.subr.bf16.mxu0 0
        %1740 = vmatpush1.bf16.msra.mxu0 0
        %1741 = vmatprep.subr.bf16.mxu0 0
        %1742 = vmatpush1.bf16.msra.mxu0 0
        %1743 = vmatprep.subr.bf16.mxu0 0
        %1744 = vmatpush1.bf16.msra.mxu0 0
        %1745 = vmatprep.subr.bf16.mxu0 0
        %1746 = vmatpush1.bf16.msra.mxu0 0
        %1747 = vmatprep.subr.bf16.mxu0 0
        %1748 = vmatpush1.bf16.msra.mxu0 0
        %1749 = vmatprep.subr.bf16.mxu0 0
        %1750 = vmatpush1.bf16.msra.mxu0 0
        %1751 = vmatprep.subr.bf16.mxu0 0
        %1752 = vmatpush1.bf16.msra.mxu0 0
        %1753 = vmatprep.subr.bf16.mxu0 0
        %1754 = vmatpush1.bf16.msra.mxu0 0
        %1755 = vmatprep.subr.bf16.mxu0 0
        %1756 = vmatpush1.bf16.msra.mxu0 0
        %1757 = vmatprep.subr.bf16.mxu0 0
        %1758 = vmatpush1.bf16.msra.mxu0 0
        %1759 = vmatprep.subr.bf16.mxu0 0
        %1760 = vmatpush1.bf16.msra.mxu0 0
        %1761 = vmatprep.subr.bf16.mxu0 0
        %1762 = vmatpush1.bf16.msra.mxu0 0
        %1763 = vmatprep.subr.bf16.mxu0 0
        %1764 = vmatpush1.bf16.msra.mxu0 0
        %1765 = vmatprep.subr.bf16.mxu0 0
        %1766 = vmatpush1.bf16.msra.mxu0 0
        %1767 = vmatprep.subr.bf16.mxu0 0
        %1768 = vmatpush1.bf16.msra.mxu0 0
        %1769 = vmatprep.mubr.bf16.mxu0 0
        %1770 = vmatmul.mubr.bf16.gmra.mrb[0].mxu0 %v1732
        %v1771 = vpop.f32.mrb[0].mxu0
        %v1772 = vadd.f32 0.0, %v1771
        %v1773 = vpop.f32.mrb[0].mxu0
        %v1774 = vpop.f32.mrb[0].mxu0
        %v1775 = vpop.f32.mrb[0].mxu0
        %1776 = vdwg.mxu0
        %1777 = vrot.lane.b32.xlu0 %v486, 48
        %v1778 = vpop.permute.xlu0 %1777
        %v1780 = vsel %vm489, %v1632, 0
        %v1783 = vsel %vm741, %v1778, 0
        %1785 = vmatprep.subr.bf16.mxu0 0
        %1786 = vmatpush1.bf16.msra.mxu0 %v1783
        %1787 = vmatprep.subr.bf16.mxu0 0
        %1788 = vmatpush1.bf16.msra.mxu0 0
        %1789 = vmatprep.subr.bf16.mxu0 0
        %1790 = vmatpush1.bf16.msra.mxu0 0
        %1791 = vmatprep.subr.bf16.mxu0 0
        %1792 = vmatpush1.bf16.msra.mxu0 0
        %1793 = vmatprep.subr.bf16.mxu0 0
        %1794 = vmatpush1.bf16.msra.mxu0 0
        %1795 = vmatprep.subr.bf16.mxu0 0
        %1796 = vmatpush1.bf16.msra.mxu0 0
        %1797 = vmatprep.subr.bf16.mxu0 0
        %1798 = vmatpush1.bf16.msra.mxu0 0
        %1799 = vmatprep.subr.bf16.mxu0 0
        %1800 = vmatpush1.bf16.msra.mxu0 0
        %1801 = vmatprep.subr.bf16.mxu0 0
        %1802 = vmatpush1.bf16.msra.mxu0 0
        %1803 = vmatprep.subr.bf16.mxu0 0
        %1804 = vmatpush1.bf16.msra.mxu0 0
        %1805 = vmatprep.subr.bf16.mxu0 0
        %1806 = vmatpush1.bf16.msra.mxu0 0
        %1807 = vmatprep.subr.bf16.mxu0 0
        %1808 = vmatpush1.bf16.msra.mxu0 0
        %1809 = vmatprep.subr.bf16.mxu0 0
        %1810 = vmatpush1.bf16.msra.mxu0 0
        %1811 = vmatprep.subr.bf16.mxu0 0
        %1812 = vmatpush1.bf16.msra.mxu0 0
        %1813 = vmatprep.subr.bf16.mxu0 0
        %1814 = vmatpush1.bf16.msra.mxu0 0
        %1815 = vmatprep.subr.bf16.mxu0 0
        %1816 = vmatpush1.bf16.msra.mxu0 0
        %1817 = vmatprep.mubr.bf16.mxu0 0
        %1818 = vmatmul.mubr.bf16.gmra.mrb[0].mxu0 %v1780
        %v1819 = vpop.f32.mrb[0].mxu0
        %v1820 = vadd.f32 0.0, %v1819
        %v1821 = vpop.f32.mrb[0].mxu0
        %v1822 = vpop.f32.mrb[0].mxu0
        %v1823 = vpop.f32.mrb[0].mxu0
        %1824 = vdwg.mxu0
        %1825 = vrot.lane.b32.xlu0 %v483, 104
        %v1826 = vpop.permute.xlu0 %1825
        %1827 = vrot.lane.b32.xlu0 %v483, 72
        %v1828 = vpop.permute.xlu0 %1827
        %v1830 = vsel %vm489, %v1826, 0
        %v1833 = vsel %vm489, %v1828, 0
        %1835 = vmatprep.subr.bf16.mxu0 0
        %1836 = vmatpush1.bf16.xpose.msra.mxu0 %v1833
        %1837 = vmatprep.subr.bf16.mxu0 0
        %1838 = vmatpush1.bf16.xpose.msra.mxu0 0
        %1839 = vmatprep.subr.bf16.mxu0 0
        %1840 = vmatpush1.bf16.xpose.msra.mxu0 0
        %1841 = vmatprep.subr.bf16.mxu0 0
        %1842 = vmatpush1.bf16.xpose.msra.mxu0 0
        %1843 = vmatprep.subr.bf16.mxu0 0
        %1844 = vmatpush1.bf16.xpose.msra.mxu0 0
        %1845 = vmatprep.subr.bf16.mxu0 0
        %1846 = vmatpush1.bf16.xpose.msra.mxu0 0
        %1847 = vmatprep.subr.bf16.mxu0 0
        %1848 = vmatpush1.bf16.xpose.msra.mxu0 0
        %1849 = vmatprep.subr.bf16.mxu0 0
        %1850 = vmatpush1.bf16.xpose.msra.mxu0 0
        %1851 = vmatprep.subr.bf16.mxu0 0
        %1852 = vmatpush1.bf16.xpose.msra.mxu0 0
        %1853 = vmatprep.subr.bf16.mxu0 0
        %1854 = vmatpush1.bf16.xpose.msra.mxu0 0
        %1855 = vmatprep.subr.bf16.mxu0 0
        %1856 = vmatpush1.bf16.xpose.msra.mxu0 0
        %1857 = vmatprep.subr.bf16.mxu0 0
        %1858 = vmatpush1.bf16.xpose.msra.mxu0 0
        %1859 = vmatprep.subr.bf16.mxu0 0
        %1860 = vmatpush1.bf16.xpose.msra.mxu0 0
        %1861 = vmatprep.subr.bf16.mxu0 0
        %1862 = vmatpush1.bf16.xpose.msra.mxu0 0
        %1863 = vmatprep.subr.bf16.mxu0 0
        %1864 = vmatpush1.bf16.xpose.msra.mxu0 0
        %1865 = vmatprep.subr.bf16.mxu0 0
        %1866 = vmatpush1.bf16.xpose.msra.mxu0 0
        %1867 = vmatprep.mubr.bf16.mxu0 0
        %1868 = vmatmul.mubr.bf16.gmra.mrb[0].mxu0 %v1830
        %v1869 = vpop.f32.mrb[0].mxu0
        %v1870 = vadd.f32 0.0, %v1869
        %v1871 = vpop.f32.mrb[0].mxu0
        %v1872 = vpop.f32.mrb[0].mxu0
        %v1873 = vpop.f32.mrb[0].mxu0
        %1874 = vdwg.mxu0
        %1875 = vrot.lane.b32.xlu0 %v484, 104
        %v1876 = vpop.permute.xlu0 %1875
        %1877 = vrot.lane.b32.xlu0 %v484, 72
        %v1878 = vpop.permute.xlu0 %1877
        %v1880 = vsel %vm489, %v1876, 0
        %v1883 = vsel %vm489, %v1878, 0
        %1885 = vmatprep.subr.bf16.mxu0 0
        %1886 = vmatpush1.bf16.xpose.msra.mxu0 %v1883
        %1887 = vmatprep.subr.bf16.mxu0 0
        %1888 = vmatpush1.bf16.xpose.msra.mxu0 0
        %1889 = vmatprep.subr.bf16.mxu0 0
        %1890 = vmatpush1.bf16.xpose.msra.mxu0 0
        %1891 = vmatprep.subr.bf16.mxu0 0
        %1892 = vmatpush1.bf16.xpose.msra.mxu0 0
        %1893 = vmatprep.subr.bf16.mxu0 0
        %1894 = vmatpush1.bf16.xpose.msra.mxu0 0
        %1895 = vmatprep.subr.bf16.mxu0 0
        %1896 = vmatpush1.bf16.xpose.msra.mxu0 0
        %1897 = vmatprep.subr.bf16.mxu0 0
        %1898 = vmatpush1.bf16.xpose.msra.mxu0 0
        %1899 = vmatprep.subr.bf16.mxu0 0
        %1900 = vmatpush1.bf16.xpose.msra.mxu0 0
        %1901 = vmatprep.subr.bf16.mxu0 0
        %1902 = vmatpush1.bf16.xpose.msra.mxu0 0
        %1903 = vmatprep.subr.bf16.mxu0 0
        %1904 = vmatpush1.bf16.xpose.msra.mxu0 0
        %1905 = vmatprep.subr.bf16.mxu0 0
        %1906 = vmatpush1.bf16.xpose.msra.mxu0 0
        %1907 = vmatprep.subr.bf16.mxu0 0
        %1908 = vmatpush1.bf16.xpose.msra.mxu0 0
        %1909 = vmatprep.subr.bf16.mxu0 0
        %1910 = vmatpush1.bf16.xpose.msra.mxu0 0
        %1911 = vmatprep.subr.bf16.mxu0 0
        %1912 = vmatpush1.bf16.xpose.msra.mxu0 0
        %1913 = vmatprep.subr.bf16.mxu0 0
        %1914 = vmatpush1.bf16.xpose.msra.mxu0 0
        %1915 = vmatprep.subr.bf16.mxu0 0
        %1916 = vmatpush1.bf16.xpose.msra.mxu0 0
        %1917 = vmatprep.mubr.bf16.mxu0 0
        %1918 = vmatmul.mubr.bf16.gmra.mrb[0].mxu0 %v1880
        %v1919 = vpop.f32.mrb[0].mxu0
        %v1920 = vadd.f32 0.0, %v1919
        %v1921 = vpop.f32.mrb[0].mxu0
        %v1922 = vpop.f32.mrb[0].mxu0
        %v1923 = vpop.f32.mrb[0].mxu0
        %1924 = vdwg.mxu0
        %1925 = vrot.lane.b32.xlu0 %v485, 104
        %v1926 = vpop.permute.xlu0 %1925
        %1927 = vrot.lane.b32.xlu0 %v485, 72
        %v1928 = vpop.permute.xlu0 %1927
        %v1930 = vsel %vm489, %v1926, 0
        %v1933 = vsel %vm489, %v1928, 0
        %1935 = vmatprep.subr.bf16.mxu0 0
        %1936 = vmatpush1.bf16.xpose.msra.mxu0 %v1933
        %1937 = vmatprep.subr.bf16.mxu0 0
        %1938 = vmatpush1.bf16.xpose.msra.mxu0 0
        %1939 = vmatprep.subr.bf16.mxu0 0
        %1940 = vmatpush1.bf16.xpose.msra.mxu0 0
        %1941 = vmatprep.subr.bf16.mxu0 0
        %1942 = vmatpush1.bf16.xpose.msra.mxu0 0
        %1943 = vmatprep.subr.bf16.mxu0 0
        %1944 = vmatpush1.bf16.xpose.msra.mxu0 0
        %1945 = vmatprep.subr.bf16.mxu0 0
        %1946 = vmatpush1.bf16.xpose.msra.mxu0 0
        %1947 = vmatprep.subr.bf16.mxu0 0
        %1948 = vmatpush1.bf16.xpose.msra.mxu0 0
        %1949 = vmatprep.subr.bf16.mxu0 0
        %1950 = vmatpush1.bf16.xpose.msra.mxu0 0
        %1951 = vmatprep.subr.bf16.mxu0 0
        %1952 = vmatpush1.bf16.xpose.msra.mxu0 0
        %1953 = vmatprep.subr.bf16.mxu0 0
        %1954 = vmatpush1.bf16.xpose.msra.mxu0 0
        %1955 = vmatprep.subr.bf16.mxu0 0
        %1956 = vmatpush1.bf16.xpose.msra.mxu0 0
        %1957 = vmatprep.subr.bf16.mxu0 0
        %1958 = vmatpush1.bf16.xpose.msra.mxu0 0
        %1959 = vmatprep.subr.bf16.mxu0 0
        %1960 = vmatpush1.bf16.xpose.msra.mxu0 0
        %1961 = vmatprep.subr.bf16.mxu0 0
        %1962 = vmatpush1.bf16.xpose.msra.mxu0 0
        %1963 = vmatprep.subr.bf16.mxu0 0
        %1964 = vmatpush1.bf16.xpose.msra.mxu0 0
        %1965 = vmatprep.subr.bf16.mxu0 0
        %1966 = vmatpush1.bf16.xpose.msra.mxu0 0
        %1967 = vmatprep.mubr.bf16.mxu0 0
        %1968 = vmatmul.mubr.bf16.gmra.mrb[0].mxu0 %v1930
        %v1969 = vpop.f32.mrb[0].mxu0
        %v1970 = vadd.f32 0.0, %v1969
        %v1971 = vpop.f32.mrb[0].mxu0
        %v1972 = vpop.f32.mrb[0].mxu0
        %v1973 = vpop.f32.mrb[0].mxu0
        %1974 = vdwg.mxu0
        %1975 = vrot.lane.b32.xlu0 %v486, 104
        %v1976 = vpop.permute.xlu0 %1975
        %1977 = vrot.lane.b32.xlu0 %v486, 72
        %v1978 = vpop.permute.xlu0 %1977
        %v1980 = vsel %vm489, %v1976, 0
        %v1983 = vsel %vm489, %v1978, 0
        %1985 = vmatprep.subr.bf16.mxu0 0
        %1986 = vmatpush1.bf16.xpose.msra.mxu0 %v1983
        %1987 = vmatprep.subr.bf16.mxu0 0
        %1988 = vmatpush1.bf16.xpose.msra.mxu0 0
        %1989 = vmatprep.subr.bf16.mxu0 0
        %1990 = vmatpush1.bf16.xpose.msra.mxu0 0
        %1991 = vmatprep.subr.bf16.mxu0 0
        %1992 = vmatpush1.bf16.xpose.msra.mxu0 0
        %1993 = vmatprep.subr.bf16.mxu0 0
        %1994 = vmatpush1.bf16.xpose.msra.mxu0 0
        %1995 = vmatprep.subr.bf16.mxu0 0
        %1996 = vmatpush1.bf16.xpose.msra.mxu0 0
        %1997 = vmatprep.subr.bf16.mxu0 0
        %1998 = vmatpush1.bf16.xpose.msra.mxu0 0
        %1999 = vmatprep.subr.bf16.mxu0 0
        %2000 = vmatpush1.bf16.xpose.msra.mxu0 0
        %2001 = vmatprep.subr.bf16.mxu0 0
        %2002 = vmatpush1.bf16.xpose.msra.mxu0 0
        %2003 = vmatprep.subr.bf16.mxu0 0
        %2004 = vmatpush1.bf16.xpose.msra.mxu0 0
        %2005 = vmatprep.subr.bf16.mxu0 0
        %2006 = vmatpush1.bf16.xpose.msra.mxu0 0
        %2007 = vmatprep.subr.bf16.mxu0 0
        %2008 = vmatpush1.bf16.xpose.msra.mxu0 0
        %2009 = vmatprep.subr.bf16.mxu0 0
        %2010 = vmatpush1.bf16.xpose.msra.mxu0 0
        %2011 = vmatprep.subr.bf16.mxu0 0
        %2012 = vmatpush1.bf16.xpose.msra.mxu0 0
        %2013 = vmatprep.subr.bf16.mxu0 0
        %2014 = vmatpush1.bf16.xpose.msra.mxu0 0
        %2015 = vmatprep.subr.bf16.mxu0 0
        %2016 = vmatpush1.bf16.xpose.msra.mxu0 0
        %2017 = vmatprep.mubr.bf16.mxu0 0
        %2018 = vmatmul.mubr.bf16.gmra.mrb[0].mxu0 %v1980
        %v2019 = vpop.f32.mrb[0].mxu0
        %v2020 = vadd.f32 0.0, %v2019
        %v2021 = vpop.f32.mrb[0].mxu0
        %v2022 = vpop.f32.mrb[0].mxu0
        %v2023 = vpop.f32.mrb[0].mxu0
        %2024 = vdwg.mxu0
        %v2025 = vmul.f32 %v1870, 0.35355338
        %v2026 = vmul.f32 %v1920, 0.35355338
        %v2027 = vmul.f32 %v1970, 0.35355338
        %v2028 = vmul.f32 %v2020, 0.35355338
        %v2029 = vadd.f32 %v2025, %v398
        %v2030 = vadd.f32 %v2026, %v398
        %v2031 = vadd.f32 %v2027, %v398
        %v2032 = vadd.f32 %v2028, %v398
        %v2033 = vsel %vm489, %v2029, -inf
        %2034 = vmax.xlane.f32.xlu0 %v2033
        %v2035 = vpop.xlane.xlu0 %2034
        %v2036 = vsel %vm489, %v2030, -inf
        %2037 = vmax.xlane.f32.xlu0 %v2036
        %v2038 = vpop.xlane.xlu0 %2037
        %v2039 = vsel %vm489, %v2031, -inf
        %2040 = vmax.xlane.f32.xlu0 %v2039
        %v2041 = vpop.xlane.xlu0 %2040
        %v2042 = vsel %vm489, %v2032, -inf
        %2043 = vmax.xlane.f32.xlu0 %v2042
        %v2044 = vpop.xlane.xlu0 %2043
        %v2045 = vsub.f32 %v2029, %v2035
        %v2046 = vsub.f32 %v2030, %v2038
        %v2047 = vsub.f32 %v2031, %v2041
        %v2048 = vsub.f32 %v2032, %v2044
        %v2049 = vmul.f32 %v2045, 1.442695
        %v2050 = vpow.pop %v2049
        %v2051 = vmul.f32 %v2046, 1.442695
        %v2052 = vpow.pop %v2051
        %v2053 = vmul.f32 %v2047, 1.442695
        %v2054 = vpow.pop %v2053
        %v2055 = vmul.f32 %v2048, 1.442695
        %v2056 = vpow.pop %v2055
        %v2057 = vsel %vm489, %v2050, 0.0
        %2058 = vadd.xlane.f32.xlu0 %v2057
        %v2059 = vpop.xlane.xlu0 %2058
        %v2060 = vsel %vm489, %v2052, 0.0
        %2061 = vadd.xlane.f32.xlu0 %v2060
        %v2062 = vpop.xlane.xlu0 %2061
        %v2063 = vsel %vm489, %v2054, 0.0
        %2064 = vadd.xlane.f32.xlu0 %v2063
        %v2065 = vpop.xlane.xlu0 %2064
        %v2066 = vsel %vm489, %v2056, 0.0
        %2067 = vadd.xlane.f32.xlu0 %v2066
        %v2068 = vpop.xlane.xlu0 %2067
        %v2069 = vrcp.pop %v2059
        %v2070 = vmul.f32 %v2050, %v2069
        %v2071 = vrcp.pop %v2062
        %v2072 = vmul.f32 %v2052, %v2071
        %v2073 = vrcp.pop %v2065
        %v2074 = vmul.f32 %v2054, %v2073
        %v2075 = vrcp.pop %v2068
        %v2076 = vmul.f32 %v2056, %v2075
        %v2077 = vpack.c.bf16 %v2070, %v2070
        %v2078 = vpack.c.bf16 %v2072, %v2072
        %v2079 = vpack.c.bf16 %v2074, %v2074
        %v2080 = vpack.c.bf16 %v2076, %v2076
        %2081 = vrot.lane.b32.xlu0 %v483, 40
        %v2082 = vpop.permute.xlu0 %2081
        %v2084 = vsel %vm489, %v2077, 0
        %v2087 = vsel %vm741, %v2082, 0
        %2089 = vmatprep.subr.bf16.mxu0 0
        %2090 = vmatpush1.bf16.msra.mxu0 %v2087
        %2091 = vmatprep.subr.bf16.mxu0 0
        %2092 = vmatpush1.bf16.msra.mxu0 0
        %2093 = vmatprep.subr.bf16.mxu0 0
        %2094 = vmatpush1.bf16.msra.mxu0 0
        %2095 = vmatprep.subr.bf16.mxu0 0
        %2096 = vmatpush1.bf16.msra.mxu0 0
        %2097 = vmatprep.subr.bf16.mxu0 0
        %2098 = vmatpush1.bf16.msra.mxu0 0
        %2099 = vmatprep.subr.bf16.mxu0 0
        %2100 = vmatpush1.bf16.msra.mxu0 0
        %2101 = vmatprep.subr.bf16.mxu0 0
        %2102 = vmatpush1.bf16.msra.mxu0 0
        %2103 = vmatprep.subr.bf16.mxu0 0
        %2104 = vmatpush1.bf16.msra.mxu0 0
        %2105 = vmatprep.subr.bf16.mxu0 0
        %2106 = vmatpush1.bf16.msra.mxu0 0
        %2107 = vmatprep.subr.bf16.mxu0 0
        %2108 = vmatpush1.bf16.msra.mxu0 0
        %2109 = vmatprep.subr.bf16.mxu0 0
        %2110 = vmatpush1.bf16.msra.mxu0 0
        %2111 = vmatprep.subr.bf16.mxu0 0
        %2112 = vmatpush1.bf16.msra.mxu0 0
        %2113 = vmatprep.subr.bf16.mxu0 0
        %2114 = vmatpush1.bf16.msra.mxu0 0
        %2115 = vmatprep.subr.bf16.mxu0 0
        %2116 = vmatpush1.bf16.msra.mxu0 0
        %2117 = vmatprep.subr.bf16.mxu0 0
        %2118 = vmatpush1.bf16.msra.mxu0 0
        %2119 = vmatprep.subr.bf16.mxu0 0
        %2120 = vmatpush1.bf16.msra.mxu0 0
        %2121 = vmatprep.mubr.bf16.mxu0 0
        %2122 = vmatmul.mubr.bf16.gmra.mrb[0].mxu0 %v2084
        %v2123 = vpop.f32.mrb[0].mxu0
        %v2124 = vadd.f32 0.0, %v2123
        %v2125 = vpop.f32.mrb[0].mxu0
        %v2126 = vpop.f32.mrb[0].mxu0
        %v2127 = vpop.f32.mrb[0].mxu0
        %2128 = vdwg.mxu0
        %2129 = vrot.lane.b32.xlu0 %v484, 40
        %v2130 = vpop.permute.xlu0 %2129
        %v2132 = vsel %vm489, %v2078, 0
        %v2135 = vsel %vm741, %v2130, 0
        %2137 = vmatprep.subr.bf16.mxu0 0
        %2138 = vmatpush1.bf16.msra.mxu0 %v2135
        %2139 = vmatprep.subr.bf16.mxu0 0
        %2140 = vmatpush1.bf16.msra.mxu0 0
        %2141 = vmatprep.subr.bf16.mxu0 0
        %2142 = vmatpush1.bf16.msra.mxu0 0
        %2143 = vmatprep.subr.bf16.mxu0 0
        %2144 = vmatpush1.bf16.msra.mxu0 0
        %2145 = vmatprep.subr.bf16.mxu0 0
        %2146 = vmatpush1.bf16.msra.mxu0 0
        %2147 = vmatprep.subr.bf16.mxu0 0
        %2148 = vmatpush1.bf16.msra.mxu0 0
        %2149 = vmatprep.subr.bf16.mxu0 0
        %2150 = vmatpush1.bf16.msra.mxu0 0
        %2151 = vmatprep.subr.bf16.mxu0 0
        %2152 = vmatpush1.bf16.msra.mxu0 0
        %2153 = vmatprep.subr.bf16.mxu0 0
        %2154 = vmatpush1.bf16.msra.mxu0 0
        %2155 = vmatprep.subr.bf16.mxu0 0
        %2156 = vmatpush1.bf16.msra.mxu0 0
        %2157 = vmatprep.subr.bf16.mxu0 0
        %2158 = vmatpush1.bf16.msra.mxu0 0
        %2159 = vmatprep.subr.bf16.mxu0 0
        %2160 = vmatpush1.bf16.msra.mxu0 0
        %2161 = vmatprep.subr.bf16.mxu0 0
        %2162 = vmatpush1.bf16.msra.mxu0 0
        %2163 = vmatprep.subr.bf16.mxu0 0
        %2164 = vmatpush1.bf16.msra.mxu0 0
        %2165 = vmatprep.subr.bf16.mxu0 0
        %2166 = vmatpush1.bf16.msra.mxu0 0
        %2167 = vmatprep.subr.bf16.mxu0 0
        %2168 = vmatpush1.bf16.msra.mxu0 0
        %2169 = vmatprep.mubr.bf16.mxu0 0
        %2170 = vmatmul.mubr.bf16.gmra.mrb[0].mxu0 %v2132
        %v2171 = vpop.f32.mrb[0].mxu0
        %v2172 = vadd.f32 0.0, %v2171
        %v2173 = vpop.f32.mrb[0].mxu0
        %v2174 = vpop.f32.mrb[0].mxu0
        %v2175 = vpop.f32.mrb[0].mxu0
        %2176 = vdwg.mxu0
        %2177 = vrot.lane.b32.xlu0 %v485, 40
        %v2178 = vpop.permute.xlu0 %2177
        %v2180 = vsel %vm489, %v2079, 0
        %v2183 = vsel %vm741, %v2178, 0
        %2185 = vmatprep.subr.bf16.mxu0 0
        %2186 = vmatpush1.bf16.msra.mxu0 %v2183
        %2187 = vmatprep.subr.bf16.mxu0 0
        %2188 = vmatpush1.bf16.msra.mxu0 0
        %2189 = vmatprep.subr.bf16.mxu0 0
        %2190 = vmatpush1.bf16.msra.mxu0 0
        %2191 = vmatprep.subr.bf16.mxu0 0
        %2192 = vmatpush1.bf16.msra.mxu0 0
        %2193 = vmatprep.subr.bf16.mxu0 0
        %2194 = vmatpush1.bf16.msra.mxu0 0
        %2195 = vmatprep.subr.bf16.mxu0 0
        %2196 = vmatpush1.bf16.msra.mxu0 0
        %2197 = vmatprep.subr.bf16.mxu0 0
        %2198 = vmatpush1.bf16.msra.mxu0 0
        %2199 = vmatprep.subr.bf16.mxu0 0
        %2200 = vmatpush1.bf16.msra.mxu0 0
        %2201 = vmatprep.subr.bf16.mxu0 0
        %2202 = vmatpush1.bf16.msra.mxu0 0
        %2203 = vmatprep.subr.bf16.mxu0 0
        %2204 = vmatpush1.bf16.msra.mxu0 0
        %2205 = vmatprep.subr.bf16.mxu0 0
        %2206 = vmatpush1.bf16.msra.mxu0 0
        %2207 = vmatprep.subr.bf16.mxu0 0
        %2208 = vmatpush1.bf16.msra.mxu0 0
        %2209 = vmatprep.subr.bf16.mxu0 0
        %2210 = vmatpush1.bf16.msra.mxu0 0
        %2211 = vmatprep.subr.bf16.mxu0 0
        %2212 = vmatpush1.bf16.msra.mxu0 0
        %2213 = vmatprep.subr.bf16.mxu0 0
        %2214 = vmatpush1.bf16.msra.mxu0 0
        %2215 = vmatprep.subr.bf16.mxu0 0
        %2216 = vmatpush1.bf16.msra.mxu0 0
        %2217 = vmatprep.mubr.bf16.mxu0 0
        %2218 = vmatmul.mubr.bf16.gmra.mrb[0].mxu0 %v2180
        %v2219 = vpop.f32.mrb[0].mxu0
        %v2220 = vadd.f32 0.0, %v2219
        %v2221 = vpop.f32.mrb[0].mxu0
        %v2222 = vpop.f32.mrb[0].mxu0
        %v2223 = vpop.f32.mrb[0].mxu0
        %2224 = vdwg.mxu0
        %2225 = vrot.lane.b32.xlu0 %v486, 40
        %v2226 = vpop.permute.xlu0 %2225
        %v2228 = vsel %vm489, %v2080, 0
        %v2231 = vsel %vm741, %v2226, 0
        %2233 = vmatprep.subr.bf16.mxu0 0
        %2234 = vmatpush1.bf16.msra.mxu0 %v2231
        %2235 = vmatprep.subr.bf16.mxu0 0
        %2236 = vmatpush1.bf16.msra.mxu0 0
        %2237 = vmatprep.subr.bf16.mxu0 0
        %2238 = vmatpush1.bf16.msra.mxu0 0
        %2239 = vmatprep.subr.bf16.mxu0 0
        %2240 = vmatpush1.bf16.msra.mxu0 0
        %2241 = vmatprep.subr.bf16.mxu0 0
        %2242 = vmatpush1.bf16.msra.mxu0 0
        %2243 = vmatprep.subr.bf16.mxu0 0
        %2244 = vmatpush1.bf16.msra.mxu0 0
        %2245 = vmatprep.subr.bf16.mxu0 0
        %2246 = vmatpush1.bf16.msra.mxu0 0
        %2247 = vmatprep.subr.bf16.mxu0 0
        %2248 = vmatpush1.bf16.msra.mxu0 0
        %2249 = vmatprep.subr.bf16.mxu0 0
        %2250 = vmatpush1.bf16.msra.mxu0 0
        %2251 = vmatprep.subr.bf16.mxu0 0
        %2252 = vmatpush1.bf16.msra.mxu0 0
        %2253 = vmatprep.subr.bf16.mxu0 0
        %2254 = vmatpush1.bf16.msra.mxu0 0
        %2255 = vmatprep.subr.bf16.mxu0 0
        %2256 = vmatpush1.bf16.msra.mxu0 0
        %2257 = vmatprep.subr.bf16.mxu0 0
        %2258 = vmatpush1.bf16.msra.mxu0 0
        %2259 = vmatprep.subr.bf16.mxu0 0
        %2260 = vmatpush1.bf16.msra.mxu0 0
        %2261 = vmatprep.subr.bf16.mxu0 0
        %2262 = vmatpush1.bf16.msra.mxu0 0
        %2263 = vmatprep.subr.bf16.mxu0 0
        %2264 = vmatpush1.bf16.msra.mxu0 0
        %2265 = vmatprep.mubr.bf16.mxu0 0
        %2266 = vmatmul.mubr.bf16.gmra.mrb[0].mxu0 %v2228
        %v2267 = vpop.f32.mrb[0].mxu0
        %v2268 = vadd.f32 0.0, %v2267
        %v2269 = vpop.f32.mrb[0].mxu0
        %v2270 = vpop.f32.mrb[0].mxu0
        %v2271 = vpop.f32.mrb[0].mxu0
        %2272 = vdwg.mxu0
        %2277 = vrot.lane.b32.xlu0 %v1228, 8
        %v2278 = vpop.permute.xlu0 %2277
        %2279 = vrot.lane.b32.xlu0 %v1276, 8
        %v2280 = vpop.permute.xlu0 %2279
        %2281 = vrot.lane.b32.xlu0 %v1324, 8
        %v2282 = vpop.permute.xlu0 %2281
        %2283 = vrot.lane.b32.xlu0 %v1372, 8
        %v2284 = vpop.permute.xlu0 %2283
        %2293 = vrot.lane.b32.xlu0 %v1676, 16
        %v2294 = vpop.permute.xlu0 %2293
        %2295 = vrot.lane.b32.xlu0 %v1724, 16
        %v2296 = vpop.permute.xlu0 %2295
        %2297 = vrot.lane.b32.xlu0 %v1772, 16
        %v2298 = vpop.permute.xlu0 %2297
        %2299 = vrot.lane.b32.xlu0 %v1820, 16
        %v2300 = vpop.permute.xlu0 %2299
        %2309 = vrot.lane.b32.xlu0 %v2124, 24
        %v2310 = vpop.permute.xlu0 %2309
        %2311 = vrot.lane.b32.xlu0 %v2172, 24
        %v2312 = vpop.permute.xlu0 %2311
        %2313 = vrot.lane.b32.xlu0 %v2220, 24
        %v2314 = vpop.permute.xlu0 %2313
        %2315 = vrot.lane.b32.xlu0 %v2268, 24
        %v2316 = vpop.permute.xlu0 %2315
        %v2321 = vsel %vm489, %v780, %v2278
        %v2322 = vsel %vm489, %v828, %v2280
        %v2323 = vsel %vm489, %v876, %v2282
        %v2324 = vsel %vm489, %v924, %v2284
        %vm2325 = vcmask 130048
        %v2326 = vsel %vm2325, %v2321, %v2294
        %v2327 = vsel %vm2325, %v2322, %v2296
        %v2328 = vsel %vm2325, %v2323, %v2298
        %v2329 = vsel %vm2325, %v2324, %v2300
        %vm2330 = vcmask 195584
        %v2331 = vsel %vm2330, %v2326, %v2310
        %v2332 = vsel %vm2330, %v2327, %v2312
        %v2333 = vsel %vm2330, %v2328, %v2314
        %v2334 = vsel %vm2330, %v2329, %v2316
        %v2335 = vpack.c.bf16 %v2332, %v2331
        %v2336 = vpack.c.bf16 %v2334, %v2333
        %v2338 = vlaneseq
        %v2339 = vshrl.u32 %v2338, 7
        %v2340 = vsub.s32 0, %v2339
        %v2341 = vrot.slane %v394, %v2340
        %v2347 = vunpack.c.l.b16 %v390
        %v2348 = vunpack.c.l.b16 %v391
        %v2349 = vunpack.c.l.b16 %v392
        %v2350 = vunpack.c.l.b16 %v393
        %v2351 = vpack.c.b16 %v2348, %v2347
        %v2352 = vpack.c.b16 %v2350, %v2349
        %v2356 = vsel %vm419, %v2335, 0
        %v2359 = vsel %vm419, %v2336, 0
        %2361 = vmatprep.subr.bf16.mxu0 0
        %2362 = vmatpush1.bf16.msra.mxu0 %v2351
        %2363 = vmatprep.subr.bf16.mxu0 0
        %2364 = vmatpush1.bf16.msra.mxu0 %v2352
        %2365 = vmatprep.subr.bf16.mxu0 0
        %2366 = vmatpush1.bf16.msra.mxu0 0
        %2367 = vmatprep.subr.bf16.mxu0 0
        %2368 = vmatpush1.bf16.msra.mxu0 0
        %2369 = vmatprep.subr.bf16.mxu0 0
        %2370 = vmatpush1.bf16.msra.mxu0 0
        %2371 = vmatprep.subr.bf16.mxu0 0
        %2372 = vmatpush1.bf16.msra.mxu0 0
        %2373 = vmatprep.subr.bf16.mxu0 0
        %2374 = vmatpush1.bf16.msra.mxu0 0
        %2375 = vmatprep.subr.bf16.mxu0 0
        %2376 = vmatpush1.bf16.msra.mxu0 0
        %2377 = vmatprep.subr.bf16.mxu0 0
        %2378 = vmatpush1.bf16.msra.mxu0 0
        %2379 = vmatprep.subr.bf16.mxu0 0
        %2380 = vmatpush1.bf16.msra.mxu0 0
        %2381 = vmatprep.subr.bf16.mxu0 0
        %2382 = vmatpush1.bf16.msra.mxu0 0
        %2383 = vmatprep.subr.bf16.mxu0 0
        %2384 = vmatpush1.bf16.msra.mxu0 0
        %2385 = vmatprep.subr.bf16.mxu0 0
        %2386 = vmatpush1.bf16.msra.mxu0 0
        %2387 = vmatprep.subr.bf16.mxu0 0
        %2388 = vmatpush1.bf16.msra.mxu0 0
        %2389 = vmatprep.subr.bf16.mxu0 0
        %2390 = vmatpush1.bf16.msra.mxu0 0
        %2391 = vmatprep.subr.bf16.mxu0 0
        %2392 = vmatpush1.bf16.msra.mxu0 0
        %2393 = vmatprep.mubr.bf16.mxu0 0
        %2394 = vmatmul.mubr.bf16.gmra.mrb[0].mxu0 %v2356
        %v2395 = vpop.f32.mrb[0].mxu0
        %v2396 = vadd.f32 %v2341, %v2395
        %v2397 = vpop.f32.mrb[0].mxu0
        %v2398 = vpop.f32.mrb[0].mxu0
        %v2399 = vadd.f32 %v2341, %v2398
        %v2400 = vpop.f32.mrb[0].mxu0
        %2401 = vmatprep.mubr.bf16.mxu0 0
        %2402 = vmatmul.mubr.bf16.gmra.mrb[0].mxu0 %v2359
        %v2403 = vpop.f32.mrb[0].mxu0
        %v2404 = vadd.f32 %v2341, %v2403
        %v2405 = vpop.f32.mrb[0].mxu0
        %v2406 = vpop.f32.mrb[0].mxu0
        %v2407 = vadd.f32 %v2341, %v2406
        %v2408 = vpop.f32.mrb[0].mxu0
        %2409 = vdwg.mxu0
        %v2410 = vadd.f32 %v381, %v2396
        %v2411 = vadd.f32 %v382, %v2399
        %v2412 = vadd.f32 %v383, %v2404
        %v2413 = vadd.f32 %v384, %v2407
        %2414 = vst.msk [vmem:[%s370] sm:$0xff] %vm419, %v2410
        %2415 = vst.msk [vmem:[%s370 + $0x8] sm:$0xff] %vm419, %v2411
        %2416 = vst.msk [vmem:[%s370 + $0x10] sm:$0xff] %vm419, %v2412
        %2417 = vst.msk [vmem:[%s370 + $0x18] sm:$0xff] %vm419, %v2413
        %v2418 = vsel %vm419, %v2410, 0.0
        %v2419 = vsel %vm419, %v2411, 0.0
        %v2420 = vadd.f32 %v2418, %v2419
        %v2421 = vsel %vm419, %v2412, 0.0
        %v2422 = vadd.f32 %v2420, %v2421
        %v2423 = vsel %vm419, %v2413, 0.0
        %v2424 = vadd.f32 %v2422, %v2423
        %v2425 = vrot.slane %v2424, 4
        %v2426 = vadd.f32 %v2424, %v2425
        %v2427 = vrot.slane %v2426, 2
        %v2428 = vadd.f32 %v2426, %v2427
        %v2429 = vrot.slane %v2428, 1
        %v2430 = vadd.f32 %v2428, %v2429
        %vm2431 = vcmask 253952
        %2432 = vst.msk [vmem:[%s377] sm:$0x1] %vm2431, %v2430
        %v2433 = vmul.f32 %v2410, %v2410
        %v2434 = vmul.f32 %v2411, %v2411
        %v2435 = vmul.f32 %v2412, %v2412
        %v2436 = vmul.f32 %v2413, %v2413
        %v2437 = vsel %vm419, %v2433, 0.0
        %v2438 = vsel %vm419, %v2434, 0.0
        %v2439 = vadd.f32 %v2437, %v2438
        %v2440 = vsel %vm419, %v2435, 0.0
        %v2441 = vadd.f32 %v2439, %v2440
        %v2442 = vsel %vm419, %v2436, 0.0
        %v2443 = vadd.f32 %v2441, %v2442
        %v2444 = vrot.slane %v2443, 4
        %v2445 = vadd.f32 %v2443, %v2444
        %v2446 = vrot.slane %v2445, 2
        %v2447 = vadd.f32 %v2445, %v2446
        %v2448 = vrot.slane %v2447, 1
        %v2449 = vadd.f32 %v2447, %v2448
        %2450 = vst.msk [vmem:[%s377 + $0x1] sm:$0x1] %vm2431, %v2449
        %s2451 = sand.u32 %s170, 1
        %s2452 = scalar_lea.sflag [#allocation4], %s2451
        %s2453 = sand.u32 %s170, 1
        %s2454 = smul.addr %s2453, 32
        %s2455 = scalar_lea.vmem [#allocation13], %s2454
        %s2456 = sand.u32 %s196, 1
        %s2457 = scalar_lea.sflag [#allocation15], %s2456
        %s2458 = sand.u32 %s196, 1
        %s2459 = smul.addr %s2458, 2
        %s2460 = scalar_lea.vmem [#allocation14], %s2459
        // Predicated region
        $region69: #{tsti_encoder_forward.7} parent=43 // pred_check
          %p2461 = pneg %p180
        $region70: #{tsti_encoder_forward.7} parent=43 // pred_check_branch
          %2463 = sbr.rel (%p2461) target = $region72
        $region71: #{tsti_encoder_forward.7} parent=43 // pred_region
          %s2464 = smul.u32 2, %s31
          %s2466 = ssub.s32 512, 512
          %2467 = vsyncadd %s2452, %s2466
          %s2468 = smul.addr %s2464, 2
          %s2469 = smul.addr %s2468, 128
          %s2470 = scalar_lea.hbm %s6, %s2469
          %s2471 = sshll.u32 %s2455, 4
          %s2472 = int_to_ptr.vmem [resolvable:$true] %s2471
          %2477 = dma.vmem_to_hbm [thread:$0]  %s2472, 512, %s2470, %s2452, 128, 128, 8
        $region72: #{tsti_encoder_forward.7} parent=43 // pred_fallthru
          _
        // Predicated region
        $region73: #{tsti_encoder_forward.7} parent=43 // pred_check
          %p2478 = pneg %p206
        $region74: #{tsti_encoder_forward.7} parent=43 // pred_check_branch
          %2480 = sbr.rel (%p2478) target = $region76
        $region75: #{tsti_encoder_forward.7} parent=43 // pred_region
          %s2482 = ssub.s32 32, 32
          %2483 = vsyncadd %s2457, %s2482
          %s2484 = smul.addr %s31, 32
          %s2485 = scalar_lea.hbm %s7, %s2484
          %s2487 = sshll.u32 %s2460, 4
          %s2488 = int_to_ptr.vmem [resolvable:$true] %s2487
          %2490 = dma.vmem_to_hbm [thread:$0]  %s2488, 32, %s2485, %s2457
        $region76: #{tsti_encoder_forward.7} parent=43 // pred_fallthru
          _
      $region44: #{tsti_encoder_forward.7} parent=5 // pred_fallthru
        _
      %p2491 = scmp.le.s32.totalorder 2, %s26
      // Predicated region
      $region77: #{tsti_encoder_forward.7} parent=5 // pred_check
        %p2492 = pneg %p2491
      $region78: #{tsti_encoder_forward.7} parent=5 // pred_check_branch
        %2494 = sbr.rel (%p2492) target = $region80
      $region79: #{tsti_encoder_forward.7} parent=5 // pred_region
        %s2495 = ssub.s32 %s26, 2
        // Predicated region
        $region81: #{tsti_encoder_forward.7} parent=79 // pred_check
          %p2496 = pneg %p186
        $region82: #{tsti_encoder_forward.7} parent=79 // pred_check_branch
          %2498 = sbr.rel (%p2496) target = $region84
        $region83: #{tsti_encoder_forward.7} parent=79 // pred_region
          %s2499 = sand.u32 %s171, 1
          %s2500 = scalar_lea.sflag [#allocation4], %s2499
          %s2501 = sand.u32 %s171, 1
          %s2502 = smul.addr %s2501, 32
          %s2503 = scalar_lea.vmem [#allocation13], %s2502
          %2504 = dma.done %s2500, 512
        $region84: #{tsti_encoder_forward.7} parent=79 // pred_fallthru
          _
        // Predicated region
        $region85: #{tsti_encoder_forward.7} parent=79 // pred_check
          %p2505 = pneg %p212
        $region86: #{tsti_encoder_forward.7} parent=79 // pred_check_branch
          %2507 = sbr.rel (%p2505) target = $region88
        $region87: #{tsti_encoder_forward.7} parent=79 // pred_region
          %s2508 = sand.u32 %s197, 1
          %s2509 = scalar_lea.sflag [#allocation15], %s2508
          %s2510 = sand.u32 %s197, 1
          %s2511 = smul.addr %s2510, 2
          %s2512 = scalar_lea.vmem [#allocation14], %s2511
          %2513 = dma.done %s2509, 32
        $region88: #{tsti_encoder_forward.7} parent=79 // pred_fallthru
          _
      $region80: #{tsti_encoder_forward.7} parent=5 // pred_fallthru
        _
    $region6: #{tsti_encoder_forward.7} parent=1 // loop_footer
      %s30 = sadd.s32 1, %s26
    $region7: #{tsti_encoder_forward.7} parent=1 // loop_footer_branch
      %25 = sbr.rel target = $region3
    $region8: #{tsti_encoder_forward.7} parent=1 // loop_exit
      _
    %2514 = vsyncpa [#allocation3], 1
    %s2515 = scalar_lea.sflag [#allocation3], 1
    %2516 = vsyncpa %s2515, 1
    %2517 = vsyncpa [#allocation6], 1
    %2518 = vsyncpa [#allocation9], 1
    %2519 = vsyncpa [#allocation12], 1
    %2520 = vsyncpa [#allocation4], 1
    %s2521 = scalar_lea.sflag [#allocation4], 1
    %2522 = vsyncpa %s2521, 1
    %2523 = vsyncpa [#allocation15], 1
    %s2524 = scalar_lea.sflag [#allocation15], 1
    %2525 = vsyncpa %s2524, 1

// kernel: tsti_encoder_forward.9
$region0: #{tsti_encoder_forward.9}
  #allocation0 [shape = 'u32[]', space=smem, size = 0x4, offset = 0x4, fixed_abs, tag = 'smem constant byte address 0x4 - core index']
  #allocation1 [shape = 'u32[144,128]{1,0:T(1,128)}', space=vmem, size = 0x12000, scoped, tag = 'internal scratch']
  %s0 = inlined_call_operand.hbm [shape: f32[6,16,32], index: 0, kind: input, shape index: {}]
  %s1 = inlined_call_operand.hbm [shape: f32[4,32], index: 1, kind: input, shape index: {}]
  %s2 = inlined_call_operand.hbm [shape: bf16[32,96], index: 2, kind: input, shape index: {}]
  %s3 = inlined_call_operand.hbm [shape: f32[1,96], index: 3, kind: input, shape index: {}]
  %s4 = inlined_call_operand.hbm [shape: bf16[32,32], index: 4, kind: input, shape index: {}]
  %s5 = inlined_call_operand.hbm [shape: f32[1,32], index: 5, kind: input, shape index: {}]
  %s6 = inlined_call_operand.hbm [shape: f32[4,2,8,8], index: 6, kind: input, shape index: {}]
  %s7 = inlined_call_operand.hbm [shape: f32[6,16,32], index: 7, kind: output, shape index: {0}]
  %s8 = inlined_call_operand.hbm [shape: f32[3,2,32], index: 8, kind: output, shape index: {1}]
  %9 = xla_tuple %s7, %s8
  %s10 = sld [smem:[#allocation0]]
  $region97: #{tsti_encoder_forward.9} parent=0
    _
  %s12 = ssub.s32 1, %s10
  %s13 = scalar_select 0, %s12, %s10
  $region1: #{tsti_encoder_forward.9} parent=0
    #allocation2 [shape = 'u8[32768]{0}', space=vmem, size = 0x8000, scoped, tag = 'input window, operand 0']
    #allocation3 [shape = 's32[2]{0}', space=sflag, size = 0x8, scoped, tag = 'scoped memory for tsti_encoder_forward.9']
    #allocation4 [shape = 's32[2]{0}', space=sflag, size = 0x8, scoped, tag = 'scoped memory for tsti_encoder_forward.9']
    #allocation5 [shape = 'u8[2048]{0}', space=vmem, size = 0x800, scoped, tag = 'input window, operand 1, single buffered']
    #allocation6 [shape = 's32[1]{0}', space=sflag, size = 0x4, scoped, tag = 'scoped memory for tsti_encoder_forward.9']
    #allocation7 [shape = 'u8[8192]{0}', space=vmem, size = 0x2000, scoped, tag = 'input window, operand 2, single buffered']
    #allocation8 [shape = 'u8[512]{0}', space=vmem, size = 0x400, scoped, tag = 'input window, operand 3, single buffered']
    #allocation9 [shape = 's32[1]{0}', space=sflag, size = 0x4, scoped, tag = 'scoped memory for tsti_encoder_forward.9']
    #allocation10 [shape = 'u8[8192]{0}', space=vmem, size = 0x2000, scoped, tag = 'input window, operand 4, single buffered']
    #allocation11 [shape = 'u8[512]{0}', space=vmem, size = 0x400, scoped, tag = 'input window, operand 5, single buffered']
    #allocation12 [shape = 's32[1]{0}', space=sflag, size = 0x4, scoped, tag = 'scoped memory for tsti_encoder_forward.9']
    #allocation13 [shape = 'u8[32768]{0}', space=vmem, size = 0x8000, scoped, tag = 'input window, operand 6, single buffered']
    #allocation14 [shape = 'u8[32768]{0}', space=vmem, size = 0x8000, scoped, tag = 'output window, operand 0']
    #allocation15 [shape = 'u8[2048]{0}', space=vmem, size = 0x800, scoped, tag = 'output window, operand 1']
    #allocation16 [shape = 's32[2]{0}', space=sflag, size = 0x8, scoped, tag = 'scoped memory for tsti_encoder_forward.9']
    %14 = vsyncpa [#allocation3], 0
    %s15 = scalar_lea.sflag [#allocation3], 1
    %16 = vsyncpa %s15, 0
    %17 = vsyncpa [#allocation6], 0
    %18 = vsyncpa [#allocation9], 0
    %19 = vsyncpa [#allocation12], 0
    %20 = vsyncpa [#allocation4], 0
    %s21 = scalar_lea.sflag [#allocation4], 1
    %22 = vsyncpa %s21, 0
    %23 = vsyncpa [#allocation16], 0
    %s24 = scalar_lea.sflag [#allocation16], 1
    %25 = vsyncpa %s24, 0
    loop: start=0, step=1, limit=5
    $region2: #{tsti_encoder_forward.9} parent=1 // loop_pre_header
      _
    $region3: #{tsti_encoder_forward.9} parent=1 // loop_header
      %s27 = sphi 0, %s31
      %p28 = scmp.ge.s32.totalorder %s27, 5
      %s37 = sphi 0, %s39
      %s40 = sphi 0, %s37
      %s41 = sphi 0, %s40
      %s57 = sphi 0, %s41
      %s61 = sphi 0, %s61
      %s63 = sphi 0, %s61
      %s64 = sphi 0, %s63
      %s78 = sphi 0, %s64
      %s82 = sphi 0, %s82
      %s84 = sphi 0, %s82
      %s85 = sphi 0, %s84
      %s99 = sphi 0, %s85
      %s103 = sphi 0, %s103
      %s105 = sphi 0, %s103
      %s106 = sphi 0, %s105
      %s120 = sphi 0, %s106
      %s124 = sphi 0, %s124
      %s126 = sphi 0, %s124
      %s127 = sphi 0, %s126
      %s141 = sphi 0, %s127
      %s145 = sphi 0, %s145
      %s147 = sphi 0, %s145
      %s148 = sphi 0, %s147
      %s162 = sphi 0, %s148
      %s166 = sphi 0, %s166
      %s168 = sphi 0, %s166
      %s169 = sphi 0, %s168
      %s183 = sphi 0, %s169
      %s189 = sphi 0, %s191
      %s192 = sphi 0, %s189
      %s193 = sphi 0, %s192
      %s209 = sphi 0, %s193
      %s215 = sphi 0, %s217
      %s218 = sphi 0, %s215
      %s219 = sphi 0, %s218
      %s235 = sphi 0, %s219
    $region4: #{tsti_encoder_forward.9} parent=1 // loop_header_branch
      %30 = sbr.rel (%p28) target = $region8
    $region5: #{tsti_encoder_forward.9} parent=1 // loop_body
      %s32 = ssub.s32 %s27, 1
      %s33 = ssub.s32 %s27, 2
      %s34 = sadd.s32 %s27, 1
      %s35 = ssub.s32 %s27, %s34
      %p36 = scmp.eq.s32.totalorder %s35, 0
      %s38 = sadd.s32 %s37, 1
      %s39 = scalar_select %p36, %s37, %s38
      %p42 = pneg %p36
      %p43 = scmp.eq.s32.totalorder %s27, 2
      %p44 = por %p42, %p43
      %p45 = scmp.ne.s32.totalorder %s37, %s40
      %p46 = scmp.eq.s32.totalorder %s27, 0
      %p47 = por %p45, %p46
      %p48 = scmp.ne.s32.totalorder %s37, %s40
      %p49 = scmp.eq.s32.totalorder %s32, 2
      %p50 = por %p48, %p49
      %p51 = scmp.ne.s32.totalorder %s40, %s41
      %p52 = scmp.eq.s32.totalorder %s32, 0
      %p53 = por %p51, %p52
      %p54 = scmp.ne.s32.totalorder %s40, %s41
      %p55 = scmp.eq.s32.totalorder %s33, 2
      %p56 = por %p54, %p55
      %p58 = scmp.ne.s32.totalorder %s41, %s57
      %p59 = scmp.eq.s32.totalorder %s33, 0
      %p60 = por %p58, %p59
      %s62 = sadd.s32 %s61, 1
      %p65 = scmp.eq.s32.totalorder %s27, 2
      %p66 = scmp.ne.s32.totalorder %s61, %s63
      %p67 = scmp.eq.s32.totalorder %s27, 0
      %p68 = por %p66, %p67
      %p69 = scmp.ne.s32.totalorder %s61, %s63
      %p70 = scmp.eq.s32.totalorder %s32, 2
      %p71 = por %p69, %p70
      %p72 = scmp.ne.s32.totalorder %s63, %s64
      %p73 = scmp.eq.s32.totalorder %s32, 0
      %p74 = por %p72, %p73
      %p75 = scmp.ne.s32.totalorder %s63, %s64
      %p76 = scmp.eq.s32.totalorder %s33, 2
      %p77 = por %p75, %p76
      %p79 = scmp.ne.s32.totalorder %s64, %s78
      %p80 = scmp.eq.s32.totalorder %s33, 0
      %p81 = por %p79, %p80
      %s83 = sadd.s32 %s82, 1
      %p86 = scmp.eq.s32.totalorder %s27, 2
      %p87 = scmp.ne.s32.totalorder %s82, %s84
      %p88 = scmp.eq.s32.totalorder %s27, 0
      %p89 = por %p87, %p88
      %p90 = scmp.ne.s32.totalorder %s82, %s84
      %p91 = scmp.eq.s32.totalorder %s32, 2
      %p92 = por %p90, %p91
      %p93 = scmp.ne.s32.totalorder %s84, %s85
      %p94 = scmp.eq.s32.totalorder %s32, 0
      %p95 = por %p93, %p94
      %p96 = scmp.ne.s32.totalorder %s84, %s85
      %p97 = scmp.eq.s32.totalorder %s33, 2
      %p98 = por %p96, %p97
      %p100 = scmp.ne.s32.totalorder %s85, %s99
      %p101 = scmp.eq.s32.totalorder %s33, 0
      %p102 = por %p100, %p101
      %s104 = sadd.s32 %s103, 1
      %p107 = scmp.eq.s32.totalorder %s27, 2
      %p108 = scmp.ne.s32.totalorder %s103, %s105
      %p109 = scmp.eq.s32.totalorder %s27, 0
      %p110 = por %p108, %p109
      %p111 = scmp.ne.s32.totalorder %s103, %s105
      %p112 = scmp.eq.s32.totalorder %s32, 2
      %p113 = por %p111, %p112
      %p114 = scmp.ne.s32.totalorder %s105, %s106
      %p115 = scmp.eq.s32.totalorder %s32, 0
      %p116 = por %p114, %p115
      %p117 = scmp.ne.s32.totalorder %s105, %s106
      %p118 = scmp.eq.s32.totalorder %s33, 2
      %p119 = por %p117, %p118
      %p121 = scmp.ne.s32.totalorder %s106, %s120
      %p122 = scmp.eq.s32.totalorder %s33, 0
      %p123 = por %p121, %p122
      %s125 = sadd.s32 %s124, 1
      %p128 = scmp.eq.s32.totalorder %s27, 2
      %p129 = scmp.ne.s32.totalorder %s124, %s126
      %p130 = scmp.eq.s32.totalorder %s27, 0
      %p131 = por %p129, %p130
      %p132 = scmp.ne.s32.totalorder %s124, %s126
      %p133 = scmp.eq.s32.totalorder %s32, 2
      %p134 = por %p132, %p133
      %p135 = scmp.ne.s32.totalorder %s126, %s127
      %p136 = scmp.eq.s32.totalorder %s32, 0
      %p137 = por %p135, %p136
      %p138 = scmp.ne.s32.totalorder %s126, %s127
      %p139 = scmp.eq.s32.totalorder %s33, 2
      %p140 = por %p138, %p139
      %p142 = scmp.ne.s32.totalorder %s127, %s141
      %p143 = scmp.eq.s32.totalorder %s33, 0
      %p144 = por %p142, %p143
      %s146 = sadd.s32 %s145, 1
      %p149 = scmp.eq.s32.totalorder %s27, 2
      %p150 = scmp.ne.s32.totalorder %s145, %s147
      %p151 = scmp.eq.s32.totalorder %s27, 0
      %p152 = por %p150, %p151
      %p153 = scmp.ne.s32.totalorder %s145, %s147
      %p154 = scmp.eq.s32.totalorder %s32, 2
      %p155 = por %p153, %p154
      %p156 = scmp.ne.s32.totalorder %s147, %s148
      %p157 = scmp.eq.s32.totalorder %s32, 0
      %p158 = por %p156, %p157
      %p159 = scmp.ne.s32.totalorder %s147, %s148
      %p160 = scmp.eq.s32.totalorder %s33, 2
      %p161 = por %p159, %p160
      %p163 = scmp.ne.s32.totalorder %s148, %s162
      %p164 = scmp.eq.s32.totalorder %s33, 0
      %p165 = por %p163, %p164
      %s167 = sadd.s32 %s166, 1
      %p170 = scmp.eq.s32.totalorder %s27, 2
      %p171 = scmp.ne.s32.totalorder %s166, %s168
      %p172 = scmp.eq.s32.totalorder %s27, 0
      %p173 = por %p171, %p172
      %p174 = scmp.ne.s32.totalorder %s166, %s168
      %p175 = scmp.eq.s32.totalorder %s32, 2
      %p176 = por %p174, %p175
      %p177 = scmp.ne.s32.totalorder %s168, %s169
      %p178 = scmp.eq.s32.totalorder %s32, 0
      %p179 = por %p177, %p178
      %p180 = scmp.ne.s32.totalorder %s168, %s169
      %p181 = scmp.eq.s32.totalorder %s33, 2
      %p182 = por %p180, %p181
      %p184 = scmp.ne.s32.totalorder %s169, %s183
      %p185 = scmp.eq.s32.totalorder %s33, 0
      %p186 = por %p184, %p185
      %s187 = ssub.s32 %s27, %s34
      %p188 = scmp.eq.s32.totalorder %s187, 0
      %s190 = sadd.s32 %s189, 1
      %s191 = scalar_select %p188, %s189, %s190
      %p194 = pneg %p188
      %p195 = scmp.eq.s32.totalorder %s27, 2
      %p196 = por %p194, %p195
      %p197 = scmp.ne.s32.totalorder %s189, %s192
      %p198 = scmp.eq.s32.totalorder %s27, 0
      %p199 = por %p197, %p198
      %p200 = scmp.ne.s32.totalorder %s189, %s192
      %p201 = scmp.eq.s32.totalorder %s32, 2
      %p202 = por %p200, %p201
      %p203 = scmp.ne.s32.totalorder %s192, %s193
      %p204 = scmp.eq.s32.totalorder %s32, 0
      %p205 = por %p203, %p204
      %p206 = scmp.ne.s32.totalorder %s192, %s193
      %p207 = scmp.eq.s32.totalorder %s33, 2
      %p208 = por %p206, %p207
      %p210 = scmp.ne.s32.totalorder %s193, %s209
      %p211 = scmp.eq.s32.totalorder %s33, 0
      %p212 = por %p210, %p211
      %s213 = ssub.s32 %s27, %s34
      %p214 = scmp.eq.s32.totalorder %s213, 0
      %s216 = sadd.s32 %s215, 1
      %s217 = scalar_select %p214, %s215, %s216
      %p220 = pneg %p214
      %p221 = scmp.eq.s32.totalorder %s27, 2
      %p222 = por %p220, %p221
      %p223 = scmp.ne.s32.totalorder %s215, %s218
      %p224 = scmp.eq.s32.totalorder %s27, 0
      %p225 = por %p223, %p224
      %p226 = scmp.ne.s32.totalorder %s215, %s218
      %p227 = scmp.eq.s32.totalorder %s32, 2
      %p228 = por %p226, %p227
      %p229 = scmp.ne.s32.totalorder %s218, %s219
      %p230 = scmp.eq.s32.totalorder %s32, 0
      %p231 = por %p229, %p230
      %p232 = scmp.ne.s32.totalorder %s218, %s219
      %p233 = scmp.eq.s32.totalorder %s33, 2
      %p234 = por %p232, %p233
      %p236 = scmp.ne.s32.totalorder %s219, %s235
      %p237 = scmp.eq.s32.totalorder %s33, 0
      %p238 = por %p236, %p237
      %p239 = scmp.le.s32.totalorder 1, %s27
      %p240 = scmp.lt.s32.totalorder %s27, 4
      %p241 = pnand %p239, %p240
      %p242 = pneg %p241
      // Predicated region
      $region9: #{tsti_encoder_forward.9} parent=5 // pred_check
        _
      $region10: #{tsti_encoder_forward.9} parent=5 // pred_check_branch
        %244 = sbr.rel (%p241) target = $region12
      $region11: #{tsti_encoder_forward.9} parent=5 // pred_region
        %s245 = ssub.s32 %s27, 1
        // Predicated region
        $region13: #{tsti_encoder_forward.9} parent=11 // pred_check
          %p246 = pneg %p74
        $region14: #{tsti_encoder_forward.9} parent=11 // pred_check_branch
          %248 = sbr.rel (%p246) target = $region16
        $region15: #{tsti_encoder_forward.9} parent=11 // pred_region
          %s250 = ssub.s32 64, 64
          %251 = vsyncadd [#allocation6], %s250
          %s253 = sshll.u32 [#allocation5], 4
          %s254 = int_to_ptr.vmem [resolvable:$true] %s253
          %256 = dma.hbm_to_vmem [thread:$0]  %s1, 64, %s254, [#allocation6]
        $region16: #{tsti_encoder_forward.9} parent=11 // pred_fallthru
          _
        // Predicated region
        $region17: #{tsti_encoder_forward.9} parent=11 // pred_check
          %p257 = pneg %p95
        $region18: #{tsti_encoder_forward.9} parent=11 // pred_check_branch
          %259 = sbr.rel (%p257) target = $region20
        $region19: #{tsti_encoder_forward.9} parent=11 // pred_region
          %s261 = ssub.s32 256, 256
          %262 = vsyncadd [#allocation6], %s261
          %s263 = sshll.u32 [#allocation7], 4
          %s264 = int_to_ptr.vmem [resolvable:$true] %s263
          %269 = dma.hbm_to_vmem [thread:$0]  %s2, 256, %s264, [#allocation6], 64, 64, 4
        $region20: #{tsti_encoder_forward.9} parent=11 // pred_fallthru
          _
        // Predicated region
        $region21: #{tsti_encoder_forward.9} parent=11 // pred_check
          %p270 = pneg %p116
        $region22: #{tsti_encoder_forward.9} parent=11 // pred_check_branch
          %272 = sbr.rel (%p270) target = $region24
        $region23: #{tsti_encoder_forward.9} parent=11 // pred_region
          %s274 = ssub.s32 16, 16
          %275 = vsyncadd [#allocation9], %s274
          %s277 = sshll.u32 [#allocation8], 4
          %s278 = int_to_ptr.vmem [resolvable:$true] %s277
          %280 = dma.hbm_to_vmem [thread:$0]  %s3, 16, %s278, [#allocation9]
        $region24: #{tsti_encoder_forward.9} parent=11 // pred_fallthru
          _
        // Predicated region
        $region25: #{tsti_encoder_forward.9} parent=11 // pred_check
          %p281 = pneg %p137
        $region26: #{tsti_encoder_forward.9} parent=11 // pred_check_branch
          %283 = sbr.rel (%p281) target = $region28
        $region27: #{tsti_encoder_forward.9} parent=11 // pred_region
          %s285 = ssub.s32 256, 256
          %286 = vsyncadd [#allocation9], %s285
          %s287 = sshll.u32 [#allocation10], 4
          %s288 = int_to_ptr.vmem [resolvable:$true] %s287
          %293 = dma.hbm_to_vmem [thread:$0]  %s4, 256, %s288, [#allocation9], 64, 64, 4
        $region28: #{tsti_encoder_forward.9} parent=11 // pred_fallthru
          _
        // Predicated region
        $region29: #{tsti_encoder_forward.9} parent=11 // pred_check
          %p294 = pneg %p158
        $region30: #{tsti_encoder_forward.9} parent=11 // pred_check_branch
          %296 = sbr.rel (%p294) target = $region32
        $region31: #{tsti_encoder_forward.9} parent=11 // pred_region
          %s298 = ssub.s32 16, 16
          %299 = vsyncadd [#allocation12], %s298
          %s301 = sshll.u32 [#allocation11], 4
          %s302 = int_to_ptr.vmem [resolvable:$true] %s301
          %304 = dma.hbm_to_vmem [thread:$0]  %s5, 16, %s302, [#allocation12]
        $region32: #{tsti_encoder_forward.9} parent=11 // pred_fallthru
          _
        // Predicated region
        $region33: #{tsti_encoder_forward.9} parent=11 // pred_check
          %p305 = pneg %p179
        $region34: #{tsti_encoder_forward.9} parent=11 // pred_check_branch
          %307 = sbr.rel (%p305) target = $region36
        $region35: #{tsti_encoder_forward.9} parent=11 // pred_region
          %s309 = ssub.s32 1024, 1024
          %310 = vsyncadd [#allocation12], %s309
          %s311 = sshll.u32 [#allocation13], 4
          %s312 = int_to_ptr.vmem [resolvable:$true] %s311
          %317 = dma.hbm_to_vmem [thread:$0]  %s6, 1024, %s312, [#allocation12], 128, 128, 8
        $region36: #{tsti_encoder_forward.9} parent=11 // pred_fallthru
          _
      $region12: #{tsti_encoder_forward.9} parent=5 // pred_fallthru
        _
      %p318 = scmp.lt.s32.totalorder %s27, 3
      // Predicated region
      $region37: #{tsti_encoder_forward.9} parent=5 // pred_check
        %p319 = pneg %p318
      $region38: #{tsti_encoder_forward.9} parent=5 // pred_check_branch
        %321 = sbr.rel (%p319) target = $region40
      $region39: #{tsti_encoder_forward.9} parent=5 // pred_region
        // Predicated region
        $region41: #{tsti_encoder_forward.9} parent=39 // pred_check
          %p322 = pneg %p47
        $region42: #{tsti_encoder_forward.9} parent=39 // pred_check_branch
          %324 = sbr.rel (%p322) target = $region44
        $region43: #{tsti_encoder_forward.9} parent=39 // pred_region
          %s325 = sand.u32 %s37, 1
          %s326 = scalar_lea.sflag [#allocation3], %s325
          %s327 = sand.u32 %s37, 1
          %s328 = smul.addr %s327, 32
          %s329 = scalar_lea.vmem [#allocation2], %s328
          %s330 = smul.u32 2, %s27
          %s332 = ssub.s32 512, 512
          %333 = vsyncadd %s326, %s332
          %s334 = smul.addr %s330, 2
          %s335 = smul.addr %s334, 128
          %s336 = scalar_lea.hbm %s0, %s335
          %s337 = sshll.u32 %s329, 4
          %s338 = int_to_ptr.vmem [resolvable:$true] %s337
          %343 = dma.hbm_to_vmem [thread:$0]  %s336, 512, %s338, %s326, 128, 128, 8
        $region44: #{tsti_encoder_forward.9} parent=39 // pred_fallthru
          _
      $region40: #{tsti_encoder_forward.9} parent=5 // pred_fallthru
        _
      %p344 = scmp.le.s32.totalorder 1, %s27
      %p345 = scmp.lt.s32.totalorder %s27, 4
      %p346 = pnand %p344, %p345
      %p347 = pneg %p346
      // Predicated region
      $region45: #{tsti_encoder_forward.9} parent=5 // pred_check
        _
      $region46: #{tsti_encoder_forward.9} parent=5 // pred_check_branch
        %349 = sbr.rel (%p346) target = $region48
      $region47: #{tsti_encoder_forward.9} parent=5 // pred_region
        %s350 = ssub.s32 %s27, 1
        %s351 = sand.u32 %s40, 1
        %s352 = scalar_lea.sflag [#allocation3], %s351
        %s353 = sand.u32 %s40, 1
        %s354 = smul.addr %s353, 32
        %s355 = scalar_lea.vmem [#allocation2], %s354
        // Predicated region
        $region49: #{tsti_encoder_forward.9} parent=47 // pred_check
          %p356 = pneg %p53
        $region50: #{tsti_encoder_forward.9} parent=47 // pred_check_branch
          %358 = sbr.rel (%p356) target = $region52
        $region51: #{tsti_encoder_forward.9} parent=47 // pred_region
          %359 = dma.done %s352, 512
        $region52: #{tsti_encoder_forward.9} parent=47 // pred_fallthru
          _
        // Predicated region
        $region53: #{tsti_encoder_forward.9} parent=47 // pred_check
          %p360 = pneg %p74
        $region54: #{tsti_encoder_forward.9} parent=47 // pred_check_branch
          %362 = sbr.rel (%p360) target = $region56
        $region55: #{tsti_encoder_forward.9} parent=47 // pred_region
          %363 = dma.done [#allocation6], 64
        $region56: #{tsti_encoder_forward.9} parent=47 // pred_fallthru
          _
        // Predicated region
        $region57: #{tsti_encoder_forward.9} parent=47 // pred_check
          %p364 = pneg %p95
        $region58: #{tsti_encoder_forward.9} parent=47 // pred_check_branch
          %366 = sbr.rel (%p364) target = $region60
        $region59: #{tsti_encoder_forward.9} parent=47 // pred_region
          %367 = dma.done [#allocation6], 256
        $region60: #{tsti_encoder_forward.9} parent=47 // pred_fallthru
          _
        // Predicated region
        $region61: #{tsti_encoder_forward.9} parent=47 // pred_check
          %p368 = pneg %p116
        $region62: #{tsti_encoder_forward.9} parent=47 // pred_check_branch
          %370 = sbr.rel (%p368) target = $region64
        $region63: #{tsti_encoder_forward.9} parent=47 // pred_region
          %371 = dma.done [#allocation9], 16
        $region64: #{tsti_encoder_forward.9} parent=47 // pred_fallthru
          _
        // Predicated region
        $region65: #{tsti_encoder_forward.9} parent=47 // pred_check
          %p372 = pneg %p137
        $region66: #{tsti_encoder_forward.9} parent=47 // pred_check_branch
          %374 = sbr.rel (%p372) target = $region68
        $region67: #{tsti_encoder_forward.9} parent=47 // pred_region
          %375 = dma.done [#allocation9], 256
        $region68: #{tsti_encoder_forward.9} parent=47 // pred_fallthru
          _
        // Predicated region
        $region69: #{tsti_encoder_forward.9} parent=47 // pred_check
          %p376 = pneg %p158
        $region70: #{tsti_encoder_forward.9} parent=47 // pred_check_branch
          %378 = sbr.rel (%p376) target = $region72
        $region71: #{tsti_encoder_forward.9} parent=47 // pred_region
          %379 = dma.done [#allocation12], 16
        $region72: #{tsti_encoder_forward.9} parent=47 // pred_fallthru
          _
        // Predicated region
        $region73: #{tsti_encoder_forward.9} parent=47 // pred_check
          %p380 = pneg %p179
        $region74: #{tsti_encoder_forward.9} parent=47 // pred_check_branch
          %382 = sbr.rel (%p380) target = $region76
        $region75: #{tsti_encoder_forward.9} parent=47 // pred_region
          %383 = dma.done [#allocation12], 1024
        $region76: #{tsti_encoder_forward.9} parent=47 // pred_fallthru
          _
        %s384 = sand.u32 %s40, 1
        %s385 = scalar_lea.sflag [#allocation3], %s384
        %s386 = sand.u32 %s40, 1
        %s387 = smul.addr %s386, 32
        %s388 = scalar_lea.vmem [#allocation2], %s387
        %p389 = pneg %p53
        %p390 = pneg %p50
        %p391 = pneg %p74
        %p392 = pneg %p71
        %p393 = pneg %p95
        %p394 = pneg %p92
        %p395 = pneg %p116
        %p396 = pneg %p113
        %p397 = pneg %p137
        %p398 = pneg %p134
        %p399 = pneg %p158
        %p400 = pneg %p155
        %p401 = pneg %p179
        %p402 = pneg %p176
        %p403 = pneg %p205
        %p404 = pneg %p202
        %s405 = sand.u32 %s192, 1
        %s406 = scalar_lea.sflag [#allocation4], %s405
        %s407 = sand.u32 %s192, 1
        %s408 = smul.addr %s407, 32
        %s409 = scalar_lea.vmem [#allocation14], %s408
        %p410 = pneg %p231
        %p411 = pneg %p228
        %s412 = sand.u32 %s218, 1
        %s413 = scalar_lea.sflag [#allocation16], %s412
        %s414 = sand.u32 %s218, 1
        %s415 = smul.addr %s414, 2
        %s416 = scalar_lea.vmem [#allocation15], %s415
        %s417 = smul.u32 2, %s32
        %s418 = smul.u32 2, %s32
        %v420 = vld [vmem:[%s355] sm:$0xff]
        %v421 = vld [vmem:[%s355 + $0x8] sm:$0xff]
        %v422 = vld [vmem:[%s355 + $0x10] sm:$0xff]
        %v423 = vld [vmem:[%s355 + $0x18] sm:$0xff]
        %v424 = vld [vmem:[#allocation5] sm:$0xf]
        %v425 = vlaneseq
        %v426 = vshrl.u32 %v425, 7
        %v427 = vsub.s32 0, %v426
        %v428 = vrot.slane %v424, %v427
        %v429 = vsub.f32 %v420, %v428
        %v430 = vsub.f32 %v421, %v428
        %v431 = vsub.f32 %v422, %v428
        %v432 = vsub.f32 %v423, %v428
        %v433 = vlaneseq
        %v434 = vshrl.u32 %v433, 7
        %v435 = vsub.s32 1, %v434
        %v436 = vrot.slane %v424, %v435
        %v437 = vmul.f32 %v429, %v436
        %v438 = vmul.f32 %v430, %v436
        %v439 = vmul.f32 %v431, %v436
        %v440 = vmul.f32 %v432, %v436
        %v441 = vlaneseq
        %v442 = vshrl.u32 %v441, 7
        %v443 = vsub.s32 2, %v442
        %v444 = vrot.slane %v424, %v443
        %v445 = vmul.f32 %v437, %v444
        %v446 = vmul.f32 %v438, %v444
        %v447 = vmul.f32 %v439, %v444
        %v448 = vmul.f32 %v440, %v444
        %v449 = vlaneseq
        %v450 = vshrl.u32 %v449, 7
        %v451 = vsub.s32 3, %v450
        %v452 = vrot.slane %v424, %v451
        %v453 = vadd.f32 %v445, %v452
        %v454 = vadd.f32 %v446, %v452
        %v455 = vadd.f32 %v447, %v452
        %v456 = vadd.f32 %v448, %v452
        %v457 = vld [vmem:[#allocation7] sm:$0xf]
        %v458 = vld [vmem:[#allocation7 + $0x4] sm:$0xf]
        %v459 = vld [vmem:[#allocation7 + $0x8] sm:$0xf]
        %v460 = vld [vmem:[#allocation7 + $0xc] sm:$0xf]
        %v461 = vld [vmem:[#allocation8] sm:$0x1]
        %v462 = vld [vmem:[#allocation10] sm:$0xf]
        %v463 = vld [vmem:[#allocation10 + $0x4] sm:$0xf]
        %v464 = vld [vmem:[#allocation10 + $0x8] sm:$0xf]
        %v465 = vld [vmem:[#allocation10 + $0xc] sm:$0xf]
        %v466 = vld [vmem:[#allocation11] sm:$0x1]
        %v467 = vld [vmem:[#allocation13] sm:$0xff]
        %v468 = vld [vmem:[#allocation13 + $0x8] sm:$0xff]
        %v469 = vld [vmem:[#allocation13 + $0x10] sm:$0xff]
        %v470 = vld [vmem:[#allocation13 + $0x18] sm:$0xff]
        %v471 = vld [vmem:[#allocation13 + $0x20] sm:$0xff]
        %v472 = vld [vmem:[#allocation13 + $0x28] sm:$0xff]
        %v473 = vld [vmem:[#allocation13 + $0x30] sm:$0xff]
        %v474 = vld [vmem:[#allocation13 + $0x38] sm:$0xff]
        %v475 = vpack.c.bf16 %v454, %v453
        %v476 = vpack.c.bf16 %v456, %v455
        %v478 = vlaneseq
        %v479 = vshrl.u32 %v478, 7
        %v480 = vsub.s32 0, %v479
        %v481 = vrot.slane %v461, %v480
        %v487 = vunpack.c.l.b16 %v457
        %v488 = vunpack.c.l.b16 %v458
        %v489 = vunpack.c.l.b16 %v459
        %v490 = vunpack.c.l.b16 %v460
        %v491 = vpack.c.b16 %v488, %v487
        %v492 = vpack.c.b16 %v490, %v489
        %vm495 = vcmask 261120
        %v497 = vsel %vm495, %v475, 0
        %v500 = vsel %vm495, %v476, 0
        %502 = vmatprep.subr.bf16.mxu0 0
        %503 = vmatpush1.bf16.msra.mxu0 %v491
        %504 = vmatprep.subr.bf16.mxu0 0
        %505 = vmatpush1.bf16.msra.mxu0 %v492
        %506 = vmatprep.subr.bf16.mxu0 0
        %507 = vmatpush1.bf16.msra.mxu0 0
        %508 = vmatprep.subr.bf16.mxu0 0
        %509 = vmatpush1.bf16.msra.mxu0 0
        %510 = vmatprep.subr.bf16.mxu0 0
        %511 = vmatpush1.bf16.msra.mxu0 0
        %512 = vmatprep.subr.bf16.mxu0 0
        %513 = vmatpush1.bf16.msra.mxu0 0
        %514 = vmatprep.subr.bf16.mxu0 0
        %515 = vmatpush1.bf16.msra.mxu0 0
        %516 = vmatprep.subr.bf16.mxu0 0
        %517 = vmatpush1.bf16.msra.mxu0 0
        %518 = vmatprep.subr.bf16.mxu0 0
        %519 = vmatpush1.bf16.msra.mxu0 0
        %520 = vmatprep.subr.bf16.mxu0 0
        %521 = vmatpush1.bf16.msra.mxu0 0
        %522 = vmatprep.subr.bf16.mxu0 0
        %523 = vmatpush1.bf16.msra.mxu0 0
        %524 = vmatprep.subr.bf16.mxu0 0
        %525 = vmatpush1.bf16.msra.mxu0 0
        %526 = vmatprep.subr.bf16.mxu0 0
        %527 = vmatpush1.bf16.msra.mxu0 0
        %528 = vmatprep.subr.bf16.mxu0 0
        %529 = vmatpush1.bf16.msra.mxu0 0
        %530 = vmatprep.subr.bf16.mxu0 0
        %531 = vmatpush1.bf16.msra.mxu0 0
        %532 = vmatprep.subr.bf16.mxu0 0
        %533 = vmatpush1.bf16.msra.mxu0 0
        %534 = vmatprep.mubr.bf16.mxu0 0
        %535 = vmatmul.mubr.bf16.gmra.mrb[0].mxu0 %v497
        %v536 = vpop.f32.mrb[0].mxu0
        %v537 = vadd.f32 %v481, %v536
        %v538 = vpop.f32.mrb[0].mxu0
        %v539 = vpop.f32.mrb[0].mxu0
        %v540 = vadd.f32 %v481, %v539
        %v541 = vpop.f32.mrb[0].mxu0
        %542 = vmatprep.mubr.bf16.mxu0 0
        %543 = vmatmul.mubr.bf16.gmra.mrb[0].mxu0 %v500
        %v544 = vpop.f32.mrb[0].mxu0
        %v545 = vadd.f32 %v481, %v544
        %v546 = vpop.f32.mrb[0].mxu0
        %v547 = vpop.f32.mrb[0].mxu0
        %v548 = vadd.f32 %v481, %v547
        %v549 = vpop.f32.mrb[0].mxu0
        %550 = vdwg.mxu0
        %v551 = vpack.c.bf16 %v540, %v537
        %v552 = vpack.c.bf16 %v548, %v545
        %v555 = vunpack.c.l.b16 %v551
        %v556 = vunpack.c.h.b16 %v551
        %v557 = vunpack.c.l.b16 %v552
        %v558 = vunpack.c.h.b16 %v552
        %v559 = vpack.c.b16 %v555, %v555
        %v560 = vpack.c.b16 %v556, %v556
        %v561 = vpack.c.b16 %v557, %v557
        %v562 = vpack.c.b16 %v558, %v558
        %563 = vrot.lane.b32.xlu0 %v559, 96
        %v564 = vpop.permute.xlu0 %563
        %vm565 = vcmask 64512
        %v567 = vsel %vm565, %v559, 0
        %v570 = vsel %vm565, %v564, 0
        %572 = vmatprep.subr.bf16.mxu0 0
        %573 = vmatpush1.bf16.xpose.msra.mxu0 %v570
        %574 = vmatprep.subr.bf16.mxu0 0
        %575 = vmatpush1.bf16.xpose.msra.mxu0 0
        %576 = vmatprep.subr.bf16.mxu0 0
        %577 = vmatpush1.bf16.xpose.msra.mxu0 0
        %578 = vmatprep.subr.bf16.mxu0 0
        %579 = vmatpush1.bf16.xpose.msra.mxu0 0
        %580 = vmatprep.subr.bf16.mxu0 0
        %581 = vmatpush1.bf16.xpose.msra.mxu0 0
        %582 = vmatprep.subr.bf16.mxu0 0
        %583 = vmatpush1.bf16.xpose.msra.mxu0 0
        %584 = vmatprep.subr.bf16.mxu0 0
        %585 = vmatpush1.bf16.xpose.msra.mxu0 0
        %586 = vmatprep.subr.bf16.mxu0 0
        %587 = vmatpush1.bf16.xpose.msra.mxu0 0
        %588 = vmatprep.subr.bf16.mxu0 0
        %589 = vmatpush1.bf16.xpose.msra.mxu0 0
        %590 = vmatprep.subr.bf16.mxu0 0
        %591 = vmatpush1.bf16.xpose.msra.mxu0 0
        %592 = vmatprep.subr.bf16.mxu0 0
        %593 = vmatpush1.bf16.xpose.msra.mxu0 0
        %594 = vmatprep.subr.bf16.mxu0 0
        %595 = vmatpush1.bf16.xpose.msra.mxu0 0
        %596 = vmatprep.subr.bf16.mxu0 0
        %597 = vmatpush1.bf16.xpose.msra.mxu0 0
        %598 = vmatprep.subr.bf16.mxu0 0
        %599 = vmatpush1.bf16.xpose.msra.mxu0 0
        %600 = vmatprep.subr.bf16.mxu0 0
        %601 = vmatpush1.bf16.xpose.msra.mxu0 0
        %602 = vmatprep.subr.bf16.mxu0 0
        %603 = vmatpush1.bf16.xpose.msra.mxu0 0
        %604 = vmatprep.mubr.bf16.mxu0 0
        %605 = vmatmul.mubr.bf16.gmra.mrb[0].mxu0 %v567
        %v606 = vpop.f32.mrb[0].mxu0
        %v607 = vadd.f32 0.0, %v606
        %v608 = vpop.f32.mrb[0].mxu0
        %v609 = vpop.f32.mrb[0].mxu0
        %v610 = vpop.f32.mrb[0].mxu0
        %611 = vdwg.mxu0
        %612 = vrot.lane.b32.xlu0 %v560, 96
        %v613 = vpop.permute.xlu0 %612
        %v615 = vsel %vm565, %v560, 0
        %v618 = vsel %vm565, %v613, 0
        %620 = vmatprep.subr.bf16.mxu0 0
        %621 = vmatpush1.bf16.xpose.msra.mxu0 %v618
        %622 = vmatprep.subr.bf16.mxu0 0
        %623 = vmatpush1.bf16.xpose.msra.mxu0 0
        %624 = vmatprep.subr.bf16.mxu0 0
        %625 = vmatpush1.bf16.xpose.msra.mxu0 0
        %626 = vmatprep.subr.bf16.mxu0 0
        %627 = vmatpush1.bf16.xpose.msra.mxu0 0
        %628 = vmatprep.subr.bf16.mxu0 0
        %629 = vmatpush1.bf16.xpose.msra.mxu0 0
        %630 = vmatprep.subr.bf16.mxu0 0
        %631 = vmatpush1.bf16.xpose.msra.mxu0 0
        %632 = vmatprep.subr.bf16.mxu0 0
        %633 = vmatpush1.bf16.xpose.msra.mxu0 0
        %634 = vmatprep.subr.bf16.mxu0 0
        %635 = vmatpush1.bf16.xpose.msra.mxu0 0
        %636 = vmatprep.subr.bf16.mxu0 0
        %637 = vmatpush1.bf16.xpose.msra.mxu0 0
        %638 = vmatprep.subr.bf16.mxu0 0
        %639 = vmatpush1.bf16.xpose.msra.mxu0 0
        %640 = vmatprep.subr.bf16.mxu0 0
        %641 = vmatpush1.bf16.xpose.msra.mxu0 0
        %642 = vmatprep.subr.bf16.mxu0 0
        %643 = vmatpush1.bf16.xpose.msra.mxu0 0
        %644 = vmatprep.subr.bf16.mxu0 0
        %645 = vmatpush1.bf16.xpose.msra.mxu0 0
        %646 = vmatprep.subr.bf16.mxu0 0
        %647 = vmatpush1.bf16.xpose.msra.mxu0 0
        %648 = vmatprep.subr.bf16.mxu0 0
        %649 = vmatpush1.bf16.xpose.msra.mxu0 0
        %650 = vmatprep.subr.bf16.mxu0 0
        %651 = vmatpush1.bf16.xpose.msra.mxu0 0
        %652 = vmatprep.mubr.bf16.mxu0 0
        %653 = vmatmul.mubr.bf16.gmra.mrb[0].mxu0 %v615
        %v654 = vpop.f32.mrb[0].mxu0
        %v655 = vadd.f32 0.0, %v654
        %v656 = vpop.f32.mrb[0].mxu0
        %v657 = vpop.f32.mrb[0].mxu0
        %v658 = vpop.f32.mrb[0].mxu0
        %659 = vdwg.mxu0
        %660 = vrot.lane.b32.xlu0 %v561, 96
        %v661 = vpop.permute.xlu0 %660
        %v663 = vsel %vm565, %v561, 0
        %v666 = vsel %vm565, %v661, 0
        %668 = vmatprep.subr.bf16.mxu0 0
        %669 = vmatpush1.bf16.xpose.msra.mxu0 %v666
        %670 = vmatprep.subr.bf16.mxu0 0
        %671 = vmatpush1.bf16.xpose.msra.mxu0 0
        %672 = vmatprep.subr.bf16.mxu0 0
        %673 = vmatpush1.bf16.xpose.msra.mxu0 0
        %674 = vmatprep.subr.bf16.mxu0 0
        %675 = vmatpush1.bf16.xpose.msra.mxu0 0
        %676 = vmatprep.subr.bf16.mxu0 0
        %677 = vmatpush1.bf16.xpose.msra.mxu0 0
        %678 = vmatprep.subr.bf16.mxu0 0
        %679 = vmatpush1.bf16.xpose.msra.mxu0 0
        %680 = vmatprep.subr.bf16.mxu0 0
        %681 = vmatpush1.bf16.xpose.msra.mxu0 0
        %682 = vmatprep.subr.bf16.mxu0 0
        %683 = vmatpush1.bf16.xpose.msra.mxu0 0
        %684 = vmatprep.subr.bf16.mxu0 0
        %685 = vmatpush1.bf16.xpose.msra.mxu0 0
        %686 = vmatprep.subr.bf16.mxu0 0
        %687 = vmatpush1.bf16.xpose.msra.mxu0 0
        %688 = vmatprep.subr.bf16.mxu0 0
        %689 = vmatpush1.bf16.xpose.msra.mxu0 0
        %690 = vmatprep.subr.bf16.mxu0 0
        %691 = vmatpush1.bf16.xpose.msra.mxu0 0
        %692 = vmatprep.subr.bf16.mxu0 0
        %693 = vmatpush1.bf16.xpose.msra.mxu0 0
        %694 = vmatprep.subr.bf16.mxu0 0
        %695 = vmatpush1.bf16.xpose.msra.mxu0 0
        %696 = vmatprep.subr.bf16.mxu0 0
        %697 = vmatpush1.bf16.xpose.msra.mxu0 0
        %698 = vmatprep.subr.bf16.mxu0 0
        %699 = vmatpush1.bf16.xpose.msra.mxu0 0
        %700 = vmatprep.mubr.bf16.mxu0 0
        %701 = vmatmul.mubr.bf16.gmra.mrb[0].mxu0 %v663
        %v702 = vpop.f32.mrb[0].mxu0
        %v703 = vadd.f32 0.0, %v702
        %v704 = vpop.f32.mrb[0].mxu0
        %v705 = vpop.f32.mrb[0].mxu0
        %v706 = vpop.f32.mrb[0].mxu0
        %707 = vdwg.mxu0
        %708 = vrot.lane.b32.xlu0 %v562, 96
        %v709 = vpop.permute.xlu0 %708
        %v711 = vsel %vm565, %v562, 0
        %v714 = vsel %vm565, %v709, 0
        %716 = vmatprep.subr.bf16.mxu0 0
        %717 = vmatpush1.bf16.xpose.msra.mxu0 %v714
        %718 = vmatprep.subr.bf16.mxu0 0
        %719 = vmatpush1.bf16.xpose.msra.mxu0 0
        %720 = vmatprep.subr.bf16.mxu0 0
        %721 = vmatpush1.bf16.xpose.msra.mxu0 0
        %722 = vmatprep.subr.bf16.mxu0 0
        %723 = vmatpush1.bf16.xpose.msra.mxu0 0
        %724 = vmatprep.subr.bf16.mxu0 0
        %725 = vmatpush1.bf16.xpose.msra.mxu0 0
        %726 = vmatprep.subr.bf16.mxu0 0
        %727 = vmatpush1.bf16.xpose.msra.mxu0 0
        %728 = vmatprep.subr.bf16.mxu0 0
        %729 = vmatpush1.bf16.xpose.msra.mxu0 0
        %730 = vmatprep.subr.bf16.mxu0 0
        %731 = vmatpush1.bf16.xpose.msra.mxu0 0
        %732 = vmatprep.subr.bf16.mxu0 0
        %733 = vmatpush1.bf16.xpose.msra.mxu0 0
        %734 = vmatprep.subr.bf16.mxu0 0
        %735 = vmatpush1.bf16.xpose.msra.mxu0 0
        %736 = vmatprep.subr.bf16.mxu0 0
        %737 = vmatpush1.bf16.xpose.msra.mxu0 0
        %738 = vmatprep.subr.bf16.mxu0 0
        %739 = vmatpush1.bf16.xpose.msra.mxu0 0
        %740 = vmatprep.subr.bf16.mxu0 0
        %741 = vmatpush1.bf16.xpose.msra.mxu0 0
        %742 = vmatprep.subr.bf16.mxu0 0
        %743 = vmatpush1.bf16.xpose.msra.mxu0 0
        %744 = vmatprep.subr.bf16.mxu0 0
        %745 = vmatpush1.bf16.xpose.msra.mxu0 0
        %746 = vmatprep.subr.bf16.mxu0 0
        %747 = vmatpush1.bf16.xpose.msra.mxu0 0
        %748 = vmatprep.mubr.bf16.mxu0 0
        %749 = vmatmul.mubr.bf16.gmra.mrb[0].mxu0 %v711
        %v750 = vpop.f32.mrb[0].mxu0
        %v751 = vadd.f32 0.0, %v750
        %v752 = vpop.f32.mrb[0].mxu0
        %v753 = vpop.f32.mrb[0].mxu0
        %v754 = vpop.f32.mrb[0].mxu0
        %755 = vdwg.mxu0
        %v756 = vmul.f32 %v607, 0.35355338
        %v757 = vmul.f32 %v655, 0.35355338
        %v758 = vmul.f32 %v703, 0.35355338
        %v759 = vmul.f32 %v751, 0.35355338
        %v760 = vadd.f32 %v756, %v467
        %v761 = vadd.f32 %v757, %v468
        %v762 = vadd.f32 %v758, %v467
        %v763 = vadd.f32 %v759, %v468
        %v764 = vsel %vm565, %v760, -inf
        %765 = vmax.xlane.f32.xlu0 %v764
        %v766 = vpop.xlane.xlu0 %765
        %v767 = vsel %vm565, %v761, -inf
        %768 = vmax.xlane.f32.xlu0 %v767
        %v769 = vpop.xlane.xlu0 %768
        %v770 = vsel %vm565, %v762, -inf
        %771 = vmax.xlane.f32.xlu0 %v770
        %v772 = vpop.xlane.xlu0 %771
        %v773 = vsel %vm565, %v763, -inf
        %774 = vmax.xlane.f32.xlu0 %v773
        %v775 = vpop.xlane.xlu0 %774
        %v776 = vsub.f32 %v760, %v766
        %v777 = vsub.f32 %v761, %v769
        %v778 = vsub.f32 %v762, %v772
        %v779 = vsub.f32 %v763, %v775
        %v780 = vmul.f32 %v776, 1.442695
        %v781 = vpow.pop %v780
        %v782 = vmul.f32 %v777, 1.442695
        %v783 = vpow.pop %v782
        %v784 = vmul.f32 %v778, 1.442695
        %v785 = vpow.pop %v784
        %v786 = vmul.f32 %v779, 1.442695
        %v787 = vpow.pop %v786
        %v788 = vsel %vm565, %v781, 0.0
        %789 = vadd.xlane.f32.xlu0 %v788
        %v790 = vpop.xlane.xlu0 %789
        %v791 = vsel %vm565, %v783, 0.0
        %792 = vadd.xlane.f32.xlu0 %v791
        %v793 = vpop.xlane.xlu0 %792
        %v794 = vsel %vm565, %v785, 0.0
        %795 = vadd.xlane.f32.xlu0 %v794
        %v796 = vpop.xlane.xlu0 %795
        %v797 = vsel %vm565, %v787, 0.0
        %798 = vadd.xlane.f32.xlu0 %v797
        %v799 = vpop.xlane.xlu0 %798
        %v800 = vrcp.pop %v790
        %v801 = vmul.f32 %v781, %v800
        %v802 = vrcp.pop %v793
        %v803 = vmul.f32 %v783, %v802
        %v804 = vrcp.pop %v796
        %v805 = vmul.f32 %v785, %v804
        %v806 = vrcp.pop %v799
        %v807 = vmul.f32 %v787, %v806
        %v808 = vpack.c.bf16 %v801, %v801
        %v809 = vpack.c.bf16 %v803, %v803
        %v810 = vpack.c.bf16 %v805, %v805
        %v811 = vpack.c.bf16 %v807, %v807
        %812 = vrot.lane.b32.xlu0 %v559, 64
        %v813 = vpop.permute.xlu0 %812
        %v815 = vsel %vm565, %v808, 0
        %vm817 = vcmask 1043456
        %v819 = vsel %vm817, %v813, 0
        %821 = vmatprep.subr.bf16.mxu0 0
        %822 = vmatpush1.bf16.msra.mxu0 %v819
        %823 = vmatprep.subr.bf16.mxu0 0
        %824 = vmatpush1.bf16.msra.mxu0 0
        %825 = vmatprep.subr.bf16.mxu0 0
        %826 = vmatpush1.bf16.msra.mxu0 0
        %827 = vmatprep.subr.bf16.mxu0 0
        %828 = vmatpush1.bf16.msra.mxu0 0
        %829 = vmatprep.subr.bf16.mxu0 0
        %830 = vmatpush1.bf16.msra.mxu0 0
        %831 = vmatprep.subr.bf16.mxu0 0
        %832 = vmatpush1.bf16.msra.mxu0 0
        %833 = vmatprep.subr.bf16.mxu0 0
        %834 = vmatpush1.bf16.msra.mxu0 0
        %835 = vmatprep.subr.bf16.mxu0 0
        %836 = vmatpush1.bf16.msra.mxu0 0
        %837 = vmatprep.subr.bf16.mxu0 0
        %838 = vmatpush1.bf16.msra.mxu0 0
        %839 = vmatprep.subr.bf16.mxu0 0
        %840 = vmatpush1.bf16.msra.mxu0 0
        %841 = vmatprep.subr.bf16.mxu0 0
        %842 = vmatpush1.bf16.msra.mxu0 0
        %843 = vmatprep.subr.bf16.mxu0 0
        %844 = vmatpush1.bf16.msra.mxu0 0
        %845 = vmatprep.subr.bf16.mxu0 0
        %846 = vmatpush1.bf16.msra.mxu0 0
        %847 = vmatprep.subr.bf16.mxu0 0
        %848 = vmatpush1.bf16.msra.mxu0 0
        %849 = vmatprep.subr.bf16.mxu0 0
        %850 = vmatpush1.bf16.msra.mxu0 0
        %851 = vmatprep.subr.bf16.mxu0 0
        %852 = vmatpush1.bf16.msra.mxu0 0
        %853 = vmatprep.mubr.bf16.mxu0 0
        %854 = vmatmul.mubr.bf16.gmra.mrb[0].mxu0 %v815
        %v855 = vpop.f32.mrb[0].mxu0
        %v856 = vadd.f32 0.0, %v855
        %v857 = vpop.f32.mrb[0].mxu0
        %v858 = vpop.f32.mrb[0].mxu0
        %v859 = vpop.f32.mrb[0].mxu0
        %860 = vdwg.mxu0
        %861 = vrot.lane.b32.xlu0 %v560, 64
        %v862 = vpop.permute.xlu0 %861
        %v864 = vsel %vm565, %v809, 0
        %v867 = vsel %vm817, %v862, 0
        %869 = vmatprep.subr.bf16.mxu0 0
        %870 = vmatpush1.bf16.msra.mxu0 %v867
        %871 = vmatprep.subr.bf16.mxu0 0
        %872 = vmatpush1.bf16.msra.mxu0 0
        %873 = vmatprep.subr.bf16.mxu0 0
        %874 = vmatpush1.bf16.msra.mxu0 0
        %875 = vmatprep.subr.bf16.mxu0 0
        %876 = vmatpush1.bf16.msra.mxu0 0
        %877 = vmatprep.subr.bf16.mxu0 0
        %878 = vmatpush1.bf16.msra.mxu0 0
        %879 = vmatprep.subr.bf16.mxu0 0
        %880 = vmatpush1.bf16.msra.mxu0 0
        %881 = vmatprep.subr.bf16.mxu0 0
        %882 = vmatpush1.bf16.msra.mxu0 0
        %883 = vmatprep.subr.bf16.mxu0 0
        %884 = vmatpush1.bf16.msra.mxu0 0
        %885 = vmatprep.subr.bf16.mxu0 0
        %886 = vmatpush1.bf16.msra.mxu0 0
        %887 = vmatprep.subr.bf16.mxu0 0
        %888 = vmatpush1.bf16.msra.mxu0 0
        %889 = vmatprep.subr.bf16.mxu0 0
        %890 = vmatpush1.bf16.msra.mxu0 0
        %891 = vmatprep.subr.bf16.mxu0 0
        %892 = vmatpush1.bf16.msra.mxu0 0
        %893 = vmatprep.subr.bf16.mxu0 0
        %894 = vmatpush1.bf16.msra.mxu0 0
        %895 = vmatprep.subr.bf16.mxu0 0
        %896 = vmatpush1.bf16.msra.mxu0 0
        %897 = vmatprep.subr.bf16.mxu0 0
        %898 = vmatpush1.bf16.msra.mxu0 0
        %899 = vmatprep.subr.bf16.mxu0 0
        %900 = vmatpush1.bf16.msra.mxu0 0
        %901 = vmatprep.mubr.bf16.mxu0 0
        %902 = vmatmul.mubr.bf16.gmra.mrb[0].mxu0 %v864
        %v903 = vpop.f32.mrb[0].mxu0
        %v904 = vadd.f32 0.0, %v903
        %v905 = vpop.f32.mrb[0].mxu0
        %v906 = vpop.f32.mrb[0].mxu0
        %v907 = vpop.f32.mrb[0].mxu0
        %908 = vdwg.mxu0
        %909 = vrot.lane.b32.xlu0 %v561, 64
        %v910 = vpop.permute.xlu0 %909
        %v912 = vsel %vm565, %v810, 0
        %v915 = vsel %vm817, %v910, 0
        %917 = vmatprep.subr.bf16.mxu0 0
        %918 = vmatpush1.bf16.msra.mxu0 %v915
        %919 = vmatprep.subr.bf16.mxu0 0
        %920 = vmatpush1.bf16.msra.mxu0 0
        %921 = vmatprep.subr.bf16.mxu0 0
        %922 = vmatpush1.bf16.msra.mxu0 0
        %923 = vmatprep.subr.bf16.mxu0 0
        %924 = vmatpush1.bf16.msra.mxu0 0
        %925 = vmatprep.subr.bf16.mxu0 0
        %926 = vmatpush1.bf16.msra.mxu0 0
        %927 = vmatprep.subr.bf16.mxu0 0
        %928 = vmatpush1.bf16.msra.mxu0 0
        %929 = vmatprep.subr.bf16.mxu0 0
        %930 = vmatpush1.bf16.msra.mxu0 0
        %931 = vmatprep.subr.bf16.mxu0 0
        %932 = vmatpush1.bf16.msra.mxu0 0
        %933 = vmatprep.subr.bf16.mxu0 0
        %934 = vmatpush1.bf16.msra.mxu0 0
        %935 = vmatprep.subr.bf16.mxu0 0
        %936 = vmatpush1.bf16.msra.mxu0 0
        %937 = vmatprep.subr.bf16.mxu0 0
        %938 = vmatpush1.bf16.msra.mxu0 0
        %939 = vmatprep.subr.bf16.mxu0 0
        %940 = vmatpush1.bf16.msra.mxu0 0
        %941 = vmatprep.subr.bf16.mxu0 0
        %942 = vmatpush1.bf16.msra.mxu0 0
        %943 = vmatprep.subr.bf16.mxu0 0
        %944 = vmatpush1.bf16.msra.mxu0 0
        %945 = vmatprep.subr.bf16.mxu0 0
        %946 = vmatpush1.bf16.msra.mxu0 0
        %947 = vmatprep.subr.bf16.mxu0 0
        %948 = vmatpush1.bf16.msra.mxu0 0
        %949 = vmatprep.mubr.bf16.mxu0 0
        %950 = vmatmul.mubr.bf16.gmra.mrb[0].mxu0 %v912
        %v951 = vpop.f32.mrb[0].mxu0
        %v952 = vadd.f32 0.0, %v951
        %v953 = vpop.f32.mrb[0].mxu0
        %v954 = vpop.f32.mrb[0].mxu0
        %v955 = vpop.f32.mrb[0].mxu0
        %956 = vdwg.mxu0
        %957 = vrot.lane.b32.xlu0 %v562, 64
        %v958 = vpop.permute.xlu0 %957
        %v960 = vsel %vm565, %v811, 0
        %v963 = vsel %vm817, %v958, 0
        %965 = vmatprep.subr.bf16.mxu0 0
        %966 = vmatpush1.bf16.msra.mxu0 %v963
        %967 = vmatprep.subr.bf16.mxu0 0
        %968 = vmatpush1.bf16.msra.mxu0 0
        %969 = vmatprep.subr.bf16.mxu0 0
        %970 = vmatpush1.bf16.msra.mxu0 0
        %971 = vmatprep.subr.bf16.mxu0 0
        %972 = vmatpush1.bf16.msra.mxu0 0
        %973 = vmatprep.subr.bf16.mxu0 0
        %974 = vmatpush1.bf16.msra.mxu0 0
        %975 = vmatprep.subr.bf16.mxu0 0
        %976 = vmatpush1.bf16.msra.mxu0 0
        %977 = vmatprep.subr.bf16.mxu0 0
        %978 = vmatpush1.bf16.msra.mxu0 0
        %979 = vmatprep.subr.bf16.mxu0 0
        %980 = vmatpush1.bf16.msra.mxu0 0
        %981 = vmatprep.subr.bf16.mxu0 0
        %982 = vmatpush1.bf16.msra.mxu0 0
        %983 = vmatprep.subr.bf16.mxu0 0
        %984 = vmatpush1.bf16.msra.mxu0 0
        %985 = vmatprep.subr.bf16.mxu0 0
        %986 = vmatpush1.bf16.msra.mxu0 0
        %987 = vmatprep.subr.bf16.mxu0 0
        %988 = vmatpush1.bf16.msra.mxu0 0
        %989 = vmatprep.subr.bf16.mxu0 0
        %990 = vmatpush1.bf16.msra.mxu0 0
        %991 = vmatprep.subr.bf16.mxu0 0
        %992 = vmatpush1.bf16.msra.mxu0 0
        %993 = vmatprep.subr.bf16.mxu0 0
        %994 = vmatpush1.bf16.msra.mxu0 0
        %995 = vmatprep.subr.bf16.mxu0 0
        %996 = vmatpush1.bf16.msra.mxu0 0
        %997 = vmatprep.mubr.bf16.mxu0 0
        %998 = vmatmul.mubr.bf16.gmra.mrb[0].mxu0 %v960
        %v999 = vpop.f32.mrb[0].mxu0
        %v1000 = vadd.f32 0.0, %v999
        %v1001 = vpop.f32.mrb[0].mxu0
        %v1002 = vpop.f32.mrb[0].mxu0
        %v1003 = vpop.f32.mrb[0].mxu0
        %1004 = vdwg.mxu0
        %1005 = vrot.lane.b32.xlu0 %v559, 120
        %v1006 = vpop.permute.xlu0 %1005
        %1007 = vrot.lane.b32.xlu0 %v559, 88
        %v1008 = vpop.permute.xlu0 %1007
        %v1010 = vsel %vm565, %v1006, 0
        %v1013 = vsel %vm565, %v1008, 0
        %1015 = vmatprep.subr.bf16.mxu0 0
        %1016 = vmatpush1.bf16.xpose.msra.mxu0 %v1013
        %1017 = vmatprep.subr.bf16.mxu0 0
        %1018 = vmatpush1.bf16.xpose.msra.mxu0 0
        %1019 = vmatprep.subr.bf16.mxu0 0
        %1020 = vmatpush1.bf16.xpose.msra.mxu0 0
        %1021 = vmatprep.subr.bf16.mxu0 0
        %1022 = vmatpush1.bf16.xpose.msra.mxu0 0
        %1023 = vmatprep.subr.bf16.mxu0 0
        %1024 = vmatpush1.bf16.xpose.msra.mxu0 0
        %1025 = vmatprep.subr.bf16.mxu0 0
        %1026 = vmatpush1.bf16.xpose.msra.mxu0 0
        %1027 = vmatprep.subr.bf16.mxu0 0
        %1028 = vmatpush1.bf16.xpose.msra.mxu0 0
        %1029 = vmatprep.subr.bf16.mxu0 0
        %1030 = vmatpush1.bf16.xpose.msra.mxu0 0
        %1031 = vmatprep.subr.bf16.mxu0 0
        %1032 = vmatpush1.bf16.xpose.msra.mxu0 0
        %1033 = vmatprep.subr.bf16.mxu0 0
        %1034 = vmatpush1.bf16.xpose.msra.mxu0 0
        %1035 = vmatprep.subr.bf16.mxu0 0
        %1036 = vmatpush1.bf16.xpose.msra.mxu0 0
        %1037 = vmatprep.subr.bf16.mxu0 0
        %1038 = vmatpush1.bf16.xpose.msra.mxu0 0
        %1039 = vmatprep.subr.bf16.mxu0 0
        %1040 = vmatpush1.bf16.xpose.msra.mxu0 0
        %1041 = vmatprep.subr.bf16.mxu0 0
        %1042 = vmatpush1.bf16.xpose.msra.mxu0 0
        %1043 = vmatprep.subr.bf16.mxu0 0
        %1044 = vmatpush1.bf16.xpose.msra.mxu0 0
        %1045 = vmatprep.subr.bf16.mxu0 0
        %1046 = vmatpush1.bf16.xpose.msra.mxu0 0
        %1047 = vmatprep.mubr.bf16.mxu0 0
        %1048 = vmatmul.mubr.bf16.gmra.mrb[0].mxu0 %v1010
        %v1049 = vpop.f32.mrb[0].mxu0
        %v1050 = vadd.f32 0.0, %v1049
        %v1051 = vpop.f32.mrb[0].mxu0
        %v1052 = vpop.f32.mrb[0].mxu0
        %v1053 = vpop.f32.mrb[0].mxu0
        %1054 = vdwg.mxu0
        %1055 = vrot.lane.b32.xlu0 %v560, 120
        %v1056 = vpop.permute.xlu0 %1055
        %1057 = vrot.lane.b32.xlu0 %v560, 88
        %v1058 = vpop.permute.xlu0 %1057
        %v1060 = vsel %vm565, %v1056, 0
        %v1063 = vsel %vm565, %v1058, 0
        %1065 = vmatprep.subr.bf16.mxu0 0
        %1066 = vmatpush1.bf16.xpose.msra.mxu0 %v1063
        %1067 = vmatprep.subr.bf16.mxu0 0
        %1068 = vmatpush1.bf16.xpose.msra.mxu0 0
        %1069 = vmatprep.subr.bf16.mxu0 0
        %1070 = vmatpush1.bf16.xpose.msra.mxu0 0
        %1071 = vmatprep.subr.bf16.mxu0 0
        %1072 = vmatpush1.bf16.xpose.msra.mxu0 0
        %1073 = vmatprep.subr.bf16.mxu0 0
        %1074 = vmatpush1.bf16.xpose.msra.mxu0 0
        %1075 = vmatprep.subr.bf16.mxu0 0
        %1076 = vmatpush1.bf16.xpose.msra.mxu0 0
        %1077 = vmatprep.subr.bf16.mxu0 0
        %1078 = vmatpush1.bf16.xpose.msra.mxu0 0
        %1079 = vmatprep.subr.bf16.mxu0 0
        %1080 = vmatpush1.bf16.xpose.msra.mxu0 0
        %1081 = vmatprep.subr.bf16.mxu0 0
        %1082 = vmatpush1.bf16.xpose.msra.mxu0 0
        %1083 = vmatprep.subr.bf16.mxu0 0
        %1084 = vmatpush1.bf16.xpose.msra.mxu0 0
        %1085 = vmatprep.subr.bf16.mxu0 0
        %1086 = vmatpush1.bf16.xpose.msra.mxu0 0
        %1087 = vmatprep.subr.bf16.mxu0 0
        %1088 = vmatpush1.bf16.xpose.msra.mxu0 0
        %1089 = vmatprep.subr.bf16.mxu0 0
        %1090 = vmatpush1.bf16.xpose.msra.mxu0 0
        %1091 = vmatprep.subr.bf16.mxu0 0
        %1092 = vmatpush1.bf16.xpose.msra.mxu0 0
        %1093 = vmatprep.subr.bf16.mxu0 0
        %1094 = vmatpush1.bf16.xpose.msra.mxu0 0
        %1095 = vmatprep.subr.bf16.mxu0 0
        %1096 = vmatpush1.bf16.xpose.msra.mxu0 0
        %1097 = vmatprep.mubr.bf16.mxu0 0
        %1098 = vmatmul.mubr.bf16.gmra.mrb[0].mxu0 %v1060
        %v1099 = vpop.f32.mrb[0].mxu0
        %v1100 = vadd.f32 0.0, %v1099
        %v1101 = vpop.f32.mrb[0].mxu0
        %v1102 = vpop.f32.mrb[0].mxu0
        %v1103 = vpop.f32.mrb[0].mxu0
        %1104 = vdwg.mxu0
        %1105 = vrot.lane.b32.xlu0 %v561, 120
        %v1106 = vpop.permute.xlu0 %1105
        %1107 = vrot.lane.b32.xlu0 %v561, 88
        %v1108 = vpop.permute.xlu0 %1107
        %v1110 = vsel %vm565, %v1106, 0
        %v1113 = vsel %vm565, %v1108, 0
        %1115 = vmatprep.subr.bf16.mxu0 0
        %1116 = vmatpush1.bf16.xpose.msra.mxu0 %v1113
        %1117 = vmatprep.subr.bf16.mxu0 0
        %1118 = vmatpush1.bf16.xpose.msra.mxu0 0
        %1119 = vmatprep.subr.bf16.mxu0 0
        %1120 = vmatpush1.bf16.xpose.msra.mxu0 0
        %1121 = vmatprep.subr.bf16.mxu0 0
        %1122 = vmatpush1.bf16.xpose.msra.mxu0 0
        %1123 = vmatprep.subr.bf16.mxu0 0
        %1124 = vmatpush1.bf16.xpose.msra.mxu0 0
        %1125 = vmatprep.subr.bf16.mxu0 0
        %1126 = vmatpush1.bf16.xpose.msra.mxu0 0
        %1127 = vmatprep.subr.bf16.mxu0 0
        %1128 = vmatpush1.bf16.xpose.msra.mxu0 0
        %1129 = vmatprep.subr.bf16.mxu0 0
        %1130 = vmatpush1.bf16.xpose.msra.mxu0 0
        %1131 = vmatprep.subr.bf16.mxu0 0
        %1132 = vmatpush1.bf16.xpose.msra.mxu0 0
        %1133 = vmatprep.subr.bf16.mxu0 0
        %1134 = vmatpush1.bf16.xpose.msra.mxu0 0
        %1135 = vmatprep.subr.bf16.mxu0 0
        %1136 = vmatpush1.bf16.xpose.msra.mxu0 0
        %1137 = vmatprep.subr.bf16.mxu0 0
        %1138 = vmatpush1.bf16.xpose.msra.mxu0 0
        %1139 = vmatprep.subr.bf16.mxu0 0
        %1140 = vmatpush1.bf16.xpose.msra.mxu0 0
        %1141 = vmatprep.subr.bf16.mxu0 0
        %1142 = vmatpush1.bf16.xpose.msra.mxu0 0
        %1143 = vmatprep.subr.bf16.mxu0 0
        %1144 = vmatpush1.bf16.xpose.msra.mxu0 0
        %1145 = vmatprep.subr.bf16.mxu0 0
        %1146 = vmatpush1.bf16.xpose.msra.mxu0 0
        %1147 = vmatprep.mubr.bf16.mxu0 0
        %1148 = vmatmul.mubr.bf16.gmra.mrb[0].mxu0 %v1110
        %v1149 = vpop.f32.mrb[0].mxu0
        %v1150 = vadd.f32 0.0, %v1149
        %v1151 = vpop.f32.mrb[0].mxu0
        %v1152 = vpop.f32.mrb[0].mxu0
        %v1153 = vpop.f32.mrb[0].mxu0
        %1154 = vdwg.mxu0
        %1155 = vrot.lane.b32.xlu0 %v562, 120
        %v1156 = vpop.permute.xlu0 %1155
        %1157 = vrot.lane.b32.xlu0 %v562, 88
        %v1158 = vpop.permute.xlu0 %1157
        %v1160 = vsel %vm565, %v1156, 0
        %v1163 = vsel %vm565, %v1158, 0
        %1165 = vmatprep.subr.bf16.mxu0 0
        %1166 = vmatpush1.bf16.xpose.msra.mxu0 %v1163
        %1167 = vmatprep.subr.bf16.mxu0 0
        %1168 = vmatpush1.bf16.xpose.msra.mxu0 0
        %1169 = vmatprep.subr.bf16.mxu0 0
        %1170 = vmatpush1.bf16.xpose.msra.mxu0 0
        %1171 = vmatprep.subr.bf16.mxu0 0
        %1172 = vmatpush1.bf16.xpose.msra.mxu0 0
        %1173 = vmatprep.subr.bf16.mxu0 0
        %1174 = vmatpush1.bf16.xpose.msra.mxu0 0
        %1175 = vmatprep.subr.bf16.mxu0 0
        %1176 = vmatpush1.bf16.xpose.msra.mxu0 0
        %1177 = vmatprep.subr.bf16.mxu0 0
        %1178 = vmatpush1.bf16.xpose.msra.mxu0 0
        %1179 = vmatprep.subr.bf16.mxu0 0
        %1180 = vmatpush1.bf16.xpose.msra.mxu0 0
        %1181 = vmatprep.subr.bf16.mxu0 0
        %1182 = vmatpush1.bf16.xpose.msra.mxu0 0
        %1183 = vmatprep.subr.bf16.mxu0 0
        %1184 = vmatpush1.bf16.xpose.msra.mxu0 0
        %1185 = vmatprep.subr.bf16.mxu0 0
        %1186 = vmatpush1.bf16.xpose.msra.mxu0 0
        %1187 = vmatprep.subr.bf16.mxu0 0
        %1188 = vmatpush1.bf16.xpose.msra.mxu0 0
        %1189 = vmatprep.subr.bf16.mxu0 0
        %1190 = vmatpush1.bf16.xpose.msra.mxu0 0
        %1191 = vmatprep.subr.bf16.mxu0 0
        %1192 = vmatpush1.bf16.xpose.msra.mxu0 0
        %1193 = vmatprep.subr.bf16.mxu0 0
        %1194 = vmatpush1.bf16.xpose.msra.mxu0 0
        %1195 = vmatprep.subr.bf16.mxu0 0
        %1196 = vmatpush1.bf16.xpose.msra.mxu0 0
        %1197 = vmatprep.mubr.bf16.mxu0 0
        %1198 = vmatmul.mubr.bf16.gmra.mrb[0].mxu0 %v1160
        %v1199 = vpop.f32.mrb[0].mxu0
        %v1200 = vadd.f32 0.0, %v1199
        %v1201 = vpop.f32.mrb[0].mxu0
        %v1202 = vpop.f32.mrb[0].mxu0
        %v1203 = vpop.f32.mrb[0].mxu0
        %1204 = vdwg.mxu0
        %v1205 = vmul.f32 %v1050, 0.35355338
        %v1206 = vmul.f32 %v1100, 0.35355338
        %v1207 = vmul.f32 %v1150, 0.35355338
        %v1208 = vmul.f32 %v1200, 0.35355338
        %v1209 = vadd.f32 %v1205, %v469
        %v1210 = vadd.f32 %v1206, %v470
        %v1211 = vadd.f32 %v1207, %v469
        %v1212 = vadd.f32 %v1208, %v470
        %v1213 = vsel %vm565, %v1209, -inf
        %1214 = vmax.xlane.f32.xlu0 %v1213
        %v1215 = vpop.xlane.xlu0 %1214
        %v1216 = vsel %vm565, %v1210, -inf
        %1217 = vmax.xlane.f32.xlu0 %v1216
        %v1218 = vpop.xlane.xlu0 %1217
        %v1219 = vsel %vm565, %v1211, -inf
        %1220 = vmax.xlane.f32.xlu0 %v1219
        %v1221 = vpop.xlane.xlu0 %1220
        %v1222 = vsel %vm565, %v1212, -inf
        %1223 = vmax.xlane.f32.xlu0 %v1222
        %v1224 = vpop.xlane.xlu0 %1223
        %v1225 = vsub.f32 %v1209, %v1215
        %v1226 = vsub.f32 %v1210, %v1218
        %v1227 = vsub.f32 %v1211, %v1221
        %v1228 = vsub.f32 %v1212, %v1224
        %v1229 = vmul.f32 %v1225, 1.442695
        %v1230 = vpow.pop %v1229
        %v1231 = vmul.f32 %v1226, 1.442695
        %v1232 = vpow.pop %v1231
        %v1233 = vmul.f32 %v1227, 1.442695
        %v1234 = vpow.pop %v1233
        %v1235 = vmul.f32 %v1228, 1.442695
        %v1236 = vpow.pop %v1235
        %v1237 = vsel %vm565, %v1230, 0.0
        %1238 = vadd.xlane.f32.xlu0 %v1237
        %v1239 = vpop.xlane.xlu0 %1238
        %v1240 = vsel %vm565, %v1232, 0.0
        %1241 = vadd.xlane.f32.xlu0 %v1240
        %v1242 = vpop.xlane.xlu0 %1241
        %v1243 = vsel %vm565, %v1234, 0.0
        %1244 = vadd.xlane.f32.xlu0 %v1243
        %v1245 = vpop.xlane.xlu0 %1244
        %v1246 = vsel %vm565, %v1236, 0.0
        %1247 = vadd.xlane.f32.xlu0 %v1246
        %v1248 = vpop.xlane.xlu0 %1247
        %v1249 = vrcp.pop %v1239
        %v1250 = vmul.f32 %v1230, %v1249
        %v1251 = vrcp.pop %v1242
        %v1252 = vmul.f32 %v1232, %v1251
        %v1253 = vrcp.pop %v1245
        %v1254 = vmul.f32 %v1234, %v1253
        %v1255 = vrcp.pop %v1248
        %v1256 = vmul.f32 %v1236, %v1255
        %v1257 = vpack.c.bf16 %v1250, %v1250
        %v1258 = vpack.c.bf16 %v1252, %v1252
        %v1259 = vpack.c.bf16 %v1254, %v1254
        %v1260 = vpack.c.bf16 %v1256, %v1256
        %1261 = vrot.lane.b32.xlu0 %v559, 56
        %v1262 = vpop.permute.xlu0 %1261
        %v1264 = vsel %vm565, %v1257, 0
        %v1267 = vsel %vm817, %v1262, 0
        %1269 = vmatprep.subr.bf16.mxu0 0
        %1270 = vmatpush1.bf16.msra.mxu0 %v1267
        %1271 = vmatprep.subr.bf16.mxu0 0
        %1272 = vmatpush1.bf16.msra.mxu0 0
        %1273 = vmatprep.subr.bf16.mxu0 0
        %1274 = vmatpush1.bf16.msra.mxu0 0
        %1275 = vmatprep.subr.bf16.mxu0 0
        %1276 = vmatpush1.bf16.msra.mxu0 0
        %1277 = vmatprep.subr.bf16.mxu0 0
        %1278 = vmatpush1.bf16.msra.mxu0 0
        %1279 = vmatprep.subr.bf16.mxu0 0
        %1280 = vmatpush1.bf16.msra.mxu0 0
        %1281 = vmatprep.subr.bf16.mxu0 0
        %1282 = vmatpush1.bf16.msra.mxu0 0
        %1283 = vmatprep.subr.bf16.mxu0 0
        %1284 = vmatpush1.bf16.msra.mxu0 0
        %1285 = vmatprep.subr.bf16.mxu0 0
        %1286 = vmatpush1.bf16.msra.mxu0 0
        %1287 = vmatprep.subr.bf16.mxu0 0
        %1288 = vmatpush1.bf16.msra.mxu0 0
        %1289 = vmatprep.subr.bf16.mxu0 0
        %1290 = vmatpush1.bf16.msra.mxu0 0
        %1291 = vmatprep.subr.bf16.mxu0 0
        %1292 = vmatpush1.bf16.msra.mxu0 0
        %1293 = vmatprep.subr.bf16.mxu0 0
        %1294 = vmatpush1.bf16.msra.mxu0 0
        %1295 = vmatprep.subr.bf16.mxu0 0
        %1296 = vmatpush1.bf16.msra.mxu0 0
        %1297 = vmatprep.subr.bf16.mxu0 0
        %1298 = vmatpush1.bf16.msra.mxu0 0
        %1299 = vmatprep.subr.bf16.mxu0 0
        %1300 = vmatpush1.bf16.msra.mxu0 0
        %1301 = vmatprep.mubr.bf16.mxu0 0
        %1302 = vmatmul.mubr.bf16.gmra.mrb[0].mxu0 %v1264
        %v1303 = vpop.f32.mrb[0].mxu0
        %v1304 = vadd.f32 0.0, %v1303
        %v1305 = vpop.f32.mrb[0].mxu0
        %v1306 = vpop.f32.mrb[0].mxu0
        %v1307 = vpop.f32.mrb[0].mxu0
        %1308 = vdwg.mxu0
        %1309 = vrot.lane.b32.xlu0 %v560, 56
        %v1310 = vpop.permute.xlu0 %1309
        %v1312 = vsel %vm565, %v1258, 0
        %v1315 = vsel %vm817, %v1310, 0
        %1317 = vmatprep.subr.bf16.mxu0 0
        %1318 = vmatpush1.bf16.msra.mxu0 %v1315
        %1319 = vmatprep.subr.bf16.mxu0 0
        %1320 = vmatpush1.bf16.msra.mxu0 0
        %1321 = vmatprep.subr.bf16.mxu0 0
        %1322 = vmatpush1.bf16.msra.mxu0 0
        %1323 = vmatprep.subr.bf16.mxu0 0
        %1324 = vmatpush1.bf16.msra.mxu0 0
        %1325 = vmatprep.subr.bf16.mxu0 0
        %1326 = vmatpush1.bf16.msra.mxu0 0
        %1327 = vmatprep.subr.bf16.mxu0 0
        %1328 = vmatpush1.bf16.msra.mxu0 0
        %1329 = vmatprep.subr.bf16.mxu0 0
        %1330 = vmatpush1.bf16.msra.mxu0 0
        %1331 = vmatprep.subr.bf16.mxu0 0
        %1332 = vmatpush1.bf16.msra.mxu0 0
        %1333 = vmatprep.subr.bf16.mxu0 0
        %1334 = vmatpush1.bf16.msra.mxu0 0
        %1335 = vmatprep.subr.bf16.mxu0 0
        %1336 = vmatpush1.bf16.msra.mxu0 0
        %1337 = vmatprep.subr.bf16.mxu0 0
        %1338 = vmatpush1.bf16.msra.mxu0 0
        %1339 = vmatprep.subr.bf16.mxu0 0
        %1340 = vmatpush1.bf16.msra.mxu0 0
        %1341 = vmatprep.subr.bf16.mxu0 0
        %1342 = vmatpush1.bf16.msra.mxu0 0
        %1343 = vmatprep.subr.bf16.mxu0 0
        %1344 = vmatpush1.bf16.msra.mxu0 0
        %1345 = vmatprep.subr.bf16.mxu0 0
        %1346 = vmatpush1.bf16.msra.mxu0 0
        %1347 = vmatprep.subr.bf16.mxu0 0
        %1348 = vmatpush1.bf16.msra.mxu0 0
        %1349 = vmatprep.mubr.bf16.mxu0 0
        %1350 = vmatmul.mubr.bf16.gmra.mrb[0].mxu0 %v1312
        %v1351 = vpop.f32.mrb[0].mxu0
        %v1352 = vadd.f32 0.0, %v1351
        %v1353 = vpop.f32.mrb[0].mxu0
        %v1354 = vpop.f32.mrb[0].mxu0
        %v1355 = vpop.f32.mrb[0].mxu0
        %1356 = vdwg.mxu0
        %1357 = vrot.lane.b32.xlu0 %v561, 56
        %v1358 = vpop.permute.xlu0 %1357
        %v1360 = vsel %vm565, %v1259, 0
        %v1363 = vsel %vm817, %v1358, 0
        %1365 = vmatprep.subr.bf16.mxu0 0
        %1366 = vmatpush1.bf16.msra.mxu0 %v1363
        %1367 = vmatprep.subr.bf16.mxu0 0
        %1368 = vmatpush1.bf16.msra.mxu0 0
        %1369 = vmatprep.subr.bf16.mxu0 0
        %1370 = vmatpush1.bf16.msra.mxu0 0
        %1371 = vmatprep.subr.bf16.mxu0 0
        %1372 = vmatpush1.bf16.msra.mxu0 0
        %1373 = vmatprep.subr.bf16.mxu0 0
        %1374 = vmatpush1.bf16.msra.mxu0 0
        %1375 = vmatprep.subr.bf16.mxu0 0
        %1376 = vmatpush1.bf16.msra.mxu0 0
        %1377 = vmatprep.subr.bf16.mxu0 0
        %1378 = vmatpush1.bf16.msra.mxu0 0
        %1379 = vmatprep.subr.bf16.mxu0 0
        %1380 = vmatpush1.bf16.msra.mxu0 0
        %1381 = vmatprep.subr.bf16.mxu0 0
        %1382 = vmatpush1.bf16.msra.mxu0 0
        %1383 = vmatprep.subr.bf16.mxu0 0
        %1384 = vmatpush1.bf16.msra.mxu0 0
        %1385 = vmatprep.subr.bf16.mxu0 0
        %1386 = vmatpush1.bf16.msra.mxu0 0
        %1387 = vmatprep.subr.bf16.mxu0 0
        %1388 = vmatpush1.bf16.msra.mxu0 0
        %1389 = vmatprep.subr.bf16.mxu0 0
        %1390 = vmatpush1.bf16.msra.mxu0 0
        %1391 = vmatprep.subr.bf16.mxu0 0
        %1392 = vmatpush1.bf16.msra.mxu0 0
        %1393 = vmatprep.subr.bf16.mxu0 0
        %1394 = vmatpush1.bf16.msra.mxu0 0
        %1395 = vmatprep.subr.bf16.mxu0 0
        %1396 = vmatpush1.bf16.msra.mxu0 0
        %1397 = vmatprep.mubr.bf16.mxu0 0
        %1398 = vmatmul.mubr.bf16.gmra.mrb[0].mxu0 %v1360
        %v1399 = vpop.f32.mrb[0].mxu0
        %v1400 = vadd.f32 0.0, %v1399
        %v1401 = vpop.f32.mrb[0].mxu0
        %v1402 = vpop.f32.mrb[0].mxu0
        %v1403 = vpop.f32.mrb[0].mxu0
        %1404 = vdwg.mxu0
        %1405 = vrot.lane.b32.xlu0 %v562, 56
        %v1406 = vpop.permute.xlu0 %1405
        %v1408 = vsel %vm565, %v1260, 0
        %v1411 = vsel %vm817, %v1406, 0
        %1413 = vmatprep.subr.bf16.mxu0 0
        %1414 = vmatpush1.bf16.msra.mxu0 %v1411
        %1415 = vmatprep.subr.bf16.mxu0 0
        %1416 = vmatpush1.bf16.msra.mxu0 0
        %1417 = vmatprep.subr.bf16.mxu0 0
        %1418 = vmatpush1.bf16.msra.mxu0 0
        %1419 = vmatprep.subr.bf16.mxu0 0
        %1420 = vmatpush1.bf16.msra.mxu0 0
        %1421 = vmatprep.subr.bf16.mxu0 0
        %1422 = vmatpush1.bf16.msra.mxu0 0
        %1423 = vmatprep.subr.bf16.mxu0 0
        %1424 = vmatpush1.bf16.msra.mxu0 0
        %1425 = vmatprep.subr.bf16.mxu0 0
        %1426 = vmatpush1.bf16.msra.mxu0 0
        %1427 = vmatprep.subr.bf16.mxu0 0
        %1428 = vmatpush1.bf16.msra.mxu0 0
        %1429 = vmatprep.subr.bf16.mxu0 0
        %1430 = vmatpush1.bf16.msra.mxu0 0
        %1431 = vmatprep.subr.bf16.mxu0 0
        %1432 = vmatpush1.bf16.msra.mxu0 0
        %1433 = vmatprep.subr.bf16.mxu0 0
        %1434 = vmatpush1.bf16.msra.mxu0 0
        %1435 = vmatprep.subr.bf16.mxu0 0
        %1436 = vmatpush1.bf16.msra.mxu0 0
        %1437 = vmatprep.subr.bf16.mxu0 0
        %1438 = vmatpush1.bf16.msra.mxu0 0
        %1439 = vmatprep.subr.bf16.mxu0 0
        %1440 = vmatpush1.bf16.msra.mxu0 0
        %1441 = vmatprep.subr.bf16.mxu0 0
        %1442 = vmatpush1.bf16.msra.mxu0 0
        %1443 = vmatprep.subr.bf16.mxu0 0
        %1444 = vmatpush1.bf16.msra.mxu0 0
        %1445 = vmatprep.mubr.bf16.mxu0 0
        %1446 = vmatmul.mubr.bf16.gmra.mrb[0].mxu0 %v1408
        %v1447 = vpop.f32.mrb[0].mxu0
        %v1448 = vadd.f32 0.0, %v1447
        %v1449 = vpop.f32.mrb[0].mxu0
        %v1450 = vpop.f32.mrb[0].mxu0
        %v1451 = vpop.f32.mrb[0].mxu0
        %1452 = vdwg.mxu0
        %1453 = vrot.lane.b32.xlu0 %v559, 112
        %v1454 = vpop.permute.xlu0 %1453
        %1455 = vrot.lane.b32.xlu0 %v559, 80
        %v1456 = vpop.permute.xlu0 %1455
        %v1458 = vsel %vm565, %v1454, 0
        %v1461 = vsel %vm565, %v1456, 0
        %1463 = vmatprep.subr.bf16.mxu0 0
        %1464 = vmatpush1.bf16.xpose.msra.mxu0 %v1461
        %1465 = vmatprep.subr.bf16.mxu0 0
        %1466 = vmatpush1.bf16.xpose.msra.mxu0 0
        %1467 = vmatprep.subr.bf16.mxu0 0
        %1468 = vmatpush1.bf16.xpose.msra.mxu0 0
        %1469 = vmatprep.subr.bf16.mxu0 0
        %1470 = vmatpush1.bf16.xpose.msra.mxu0 0
        %1471 = vmatprep.subr.bf16.mxu0 0
        %1472 = vmatpush1.bf16.xpose.msra.mxu0 0
        %1473 = vmatprep.subr.bf16.mxu0 0
        %1474 = vmatpush1.bf16.xpose.msra.mxu0 0
        %1475 = vmatprep.subr.bf16.mxu0 0
        %1476 = vmatpush1.bf16.xpose.msra.mxu0 0
        %1477 = vmatprep.subr.bf16.mxu0 0
        %1478 = vmatpush1.bf16.xpose.msra.mxu0 0
        %1479 = vmatprep.subr.bf16.mxu0 0
        %1480 = vmatpush1.bf16.xpose.msra.mxu0 0
        %1481 = vmatprep.subr.bf16.mxu0 0
        %1482 = vmatpush1.bf16.xpose.msra.mxu0 0
        %1483 = vmatprep.subr.bf16.mxu0 0
        %1484 = vmatpush1.bf16.xpose.msra.mxu0 0
        %1485 = vmatprep.subr.bf16.mxu0 0
        %1486 = vmatpush1.bf16.xpose.msra.mxu0 0
        %1487 = vmatprep.subr.bf16.mxu0 0
        %1488 = vmatpush1.bf16.xpose.msra.mxu0 0
        %1489 = vmatprep.subr.bf16.mxu0 0
        %1490 = vmatpush1.bf16.xpose.msra.mxu0 0
        %1491 = vmatprep.subr.bf16.mxu0 0
        %1492 = vmatpush1.bf16.xpose.msra.mxu0 0
        %1493 = vmatprep.subr.bf16.mxu0 0
        %1494 = vmatpush1.bf16.xpose.msra.mxu0 0
        %1495 = vmatprep.mubr.bf16.mxu0 0
        %1496 = vmatmul.mubr.bf16.gmra.mrb[0].mxu0 %v1458
        %v1497 = vpop.f32.mrb[0].mxu0
        %v1498 = vadd.f32 0.0, %v1497
        %v1499 = vpop.f32.mrb[0].mxu0
        %v1500 = vpop.f32.mrb[0].mxu0
        %v1501 = vpop.f32.mrb[0].mxu0
        %1502 = vdwg.mxu0
        %1503 = vrot.lane.b32.xlu0 %v560, 112
        %v1504 = vpop.permute.xlu0 %1503
        %1505 = vrot.lane.b32.xlu0 %v560, 80
        %v1506 = vpop.permute.xlu0 %1505
        %v1508 = vsel %vm565, %v1504, 0
        %v1511 = vsel %vm565, %v1506, 0
        %1513 = vmatprep.subr.bf16.mxu0 0
        %1514 = vmatpush1.bf16.xpose.msra.mxu0 %v1511
        %1515 = vmatprep.subr.bf16.mxu0 0
        %1516 = vmatpush1.bf16.xpose.msra.mxu0 0
        %1517 = vmatprep.subr.bf16.mxu0 0
        %1518 = vmatpush1.bf16.xpose.msra.mxu0 0
        %1519 = vmatprep.subr.bf16.mxu0 0
        %1520 = vmatpush1.bf16.xpose.msra.mxu0 0
        %1521 = vmatprep.subr.bf16.mxu0 0
        %1522 = vmatpush1.bf16.xpose.msra.mxu0 0
        %1523 = vmatprep.subr.bf16.mxu0 0
        %1524 = vmatpush1.bf16.xpose.msra.mxu0 0
        %1525 = vmatprep.subr.bf16.mxu0 0
        %1526 = vmatpush1.bf16.xpose.msra.mxu0 0
        %1527 = vmatprep.subr.bf16.mxu0 0
        %1528 = vmatpush1.bf16.xpose.msra.mxu0 0
        %1529 = vmatprep.subr.bf16.mxu0 0
        %1530 = vmatpush1.bf16.xpose.msra.mxu0 0
        %1531 = vmatprep.subr.bf16.mxu0 0
        %1532 = vmatpush1.bf16.xpose.msra.mxu0 0
        %1533 = vmatprep.subr.bf16.mxu0 0
        %1534 = vmatpush1.bf16.xpose.msra.mxu0 0
        %1535 = vmatprep.subr.bf16.mxu0 0
        %1536 = vmatpush1.bf16.xpose.msra.mxu0 0
        %1537 = vmatprep.subr.bf16.mxu0 0
        %1538 = vmatpush1.bf16.xpose.msra.mxu0 0
        %1539 = vmatprep.subr.bf16.mxu0 0
        %1540 = vmatpush1.bf16.xpose.msra.mxu0 0
        %1541 = vmatprep.subr.bf16.mxu0 0
        %1542 = vmatpush1.bf16.xpose.msra.mxu0 0
        %1543 = vmatprep.subr.bf16.mxu0 0
        %1544 = vmatpush1.bf16.xpose.msra.mxu0 0
        %1545 = vmatprep.mubr.bf16.mxu0 0
        %1546 = vmatmul.mubr.bf16.gmra.mrb[0].mxu0 %v1508
        %v1547 = vpop.f32.mrb[0].mxu0
        %v1548 = vadd.f32 0.0, %v1547
        %v1549 = vpop.f32.mrb[0].mxu0
        %v1550 = vpop.f32.mrb[0].mxu0
        %v1551 = vpop.f32.mrb[0].mxu0
        %1552 = vdwg.mxu0
        %1553 = vrot.lane.b32.xlu0 %v561, 112
        %v1554 = vpop.permute.xlu0 %1553
        %1555 = vrot.lane.b32.xlu0 %v561, 80
        %v1556 = vpop.permute.xlu0 %1555
        %v1558 = vsel %vm565, %v1554, 0
        %v1561 = vsel %vm565, %v1556, 0
        %1563 = vmatprep.subr.bf16.mxu0 0
        %1564 = vmatpush1.bf16.xpose.msra.mxu0 %v1561
        %1565 = vmatprep.subr.bf16.mxu0 0
        %1566 = vmatpush1.bf16.xpose.msra.mxu0 0
        %1567 = vmatprep.subr.bf16.mxu0 0
        %1568 = vmatpush1.bf16.xpose.msra.mxu0 0
        %1569 = vmatprep.subr.bf16.mxu0 0
        %1570 = vmatpush1.bf16.xpose.msra.mxu0 0
        %1571 = vmatprep.subr.bf16.mxu0 0
        %1572 = vmatpush1.bf16.xpose.msra.mxu0 0
        %1573 = vmatprep.subr.bf16.mxu0 0
        %1574 = vmatpush1.bf16.xpose.msra.mxu0 0
        %1575 = vmatprep.subr.bf16.mxu0 0
        %1576 = vmatpush1.bf16.xpose.msra.mxu0 0
        %1577 = vmatprep.subr.bf16.mxu0 0
        %1578 = vmatpush1.bf16.xpose.msra.mxu0 0
        %1579 = vmatprep.subr.bf16.mxu0 0
        %1580 = vmatpush1.bf16.xpose.msra.mxu0 0
        %1581 = vmatprep.subr.bf16.mxu0 0
        %1582 = vmatpush1.bf16.xpose.msra.mxu0 0
        %1583 = vmatprep.subr.bf16.mxu0 0
        %1584 = vmatpush1.bf16.xpose.msra.mxu0 0
        %1585 = vmatprep.subr.bf16.mxu0 0
        %1586 = vmatpush1.bf16.xpose.msra.mxu0 0
        %1587 = vmatprep.subr.bf16.mxu0 0
        %1588 = vmatpush1.bf16.xpose.msra.mxu0 0
        %1589 = vmatprep.subr.bf16.mxu0 0
        %1590 = vmatpush1.bf16.xpose.msra.mxu0 0
        %1591 = vmatprep.subr.bf16.mxu0 0
        %1592 = vmatpush1.bf16.xpose.msra.mxu0 0
        %1593 = vmatprep.subr.bf16.mxu0 0
        %1594 = vmatpush1.bf16.xpose.msra.mxu0 0
        %1595 = vmatprep.mubr.bf16.mxu0 0
        %1596 = vmatmul.mubr.bf16.gmra.mrb[0].mxu0 %v1558
        %v1597 = vpop.f32.mrb[0].mxu0
        %v1598 = vadd.f32 0.0, %v1597
        %v1599 = vpop.f32.mrb[0].mxu0
        %v1600 = vpop.f32.mrb[0].mxu0
        %v1601 = vpop.f32.mrb[0].mxu0
        %1602 = vdwg.mxu0
        %1603 = vrot.lane.b32.xlu0 %v562, 112
        %v1604 = vpop.permute.xlu0 %1603
        %1605 = vrot.lane.b32.xlu0 %v562, 80
        %v1606 = vpop.permute.xlu0 %1605
        %v1608 = vsel %vm565, %v1604, 0
        %v1611 = vsel %vm565, %v1606, 0
        %1613 = vmatprep.subr.bf16.mxu0 0
        %1614 = vmatpush1.bf16.xpose.msra.mxu0 %v1611
        %1615 = vmatprep.subr.bf16.mxu0 0
        %1616 = vmatpush1.bf16.xpose.msra.mxu0 0
        %1617 = vmatprep.subr.bf16.mxu0 0
        %1618 = vmatpush1.bf16.xpose.msra.mxu0 0
        %1619 = vmatprep.subr.bf16.mxu0 0
        %1620 = vmatpush1.bf16.xpose.msra.mxu0 0
        %1621 = vmatprep.subr.bf16.mxu0 0
        %1622 = vmatpush1.bf16.xpose.msra.mxu0 0
        %1623 = vmatprep.subr.bf16.mxu0 0
        %1624 = vmatpush1.bf16.xpose.msra.mxu0 0
        %1625 = vmatprep.subr.bf16.mxu0 0
        %1626 = vmatpush1.bf16.xpose.msra.mxu0 0
        %1627 = vmatprep.subr.bf16.mxu0 0
        %1628 = vmatpush1.bf16.xpose.msra.mxu0 0
        %1629 = vmatprep.subr.bf16.mxu0 0
        %1630 = vmatpush1.bf16.xpose.msra.mxu0 0
        %1631 = vmatprep.subr.bf16.mxu0 0
        %1632 = vmatpush1.bf16.xpose.msra.mxu0 0
        %1633 = vmatprep.subr.bf16.mxu0 0
        %1634 = vmatpush1.bf16.xpose.msra.mxu0 0
        %1635 = vmatprep.subr.bf16.mxu0 0
        %1636 = vmatpush1.bf16.xpose.msra.mxu0 0
        %1637 = vmatprep.subr.bf16.mxu0 0
        %1638 = vmatpush1.bf16.xpose.msra.mxu0 0
        %1639 = vmatprep.subr.bf16.mxu0 0
        %1640 = vmatpush1.bf16.xpose.msra.mxu0 0
        %1641 = vmatprep.subr.bf16.mxu0 0
        %1642 = vmatpush1.bf16.xpose.msra.mxu0 0
        %1643 = vmatprep.subr.bf16.mxu0 0
        %1644 = vmatpush1.bf16.xpose.msra.mxu0 0
        %1645 = vmatprep.mubr.bf16.mxu0 0
        %1646 = vmatmul.mubr.bf16.gmra.mrb[0].mxu0 %v1608
        %v1647 = vpop.f32.mrb[0].mxu0
        %v1648 = vadd.f32 0.0, %v1647
        %v1649 = vpop.f32.mrb[0].mxu0
        %v1650 = vpop.f32.mrb[0].mxu0
        %v1651 = vpop.f32.mrb[0].mxu0
        %1652 = vdwg.mxu0
        %v1653 = vmul.f32 %v1498, 0.35355338
        %v1654 = vmul.f32 %v1548, 0.35355338
        %v1655 = vmul.f32 %v1598, 0.35355338
        %v1656 = vmul.f32 %v1648, 0.35355338
        %v1657 = vadd.f32 %v1653, %v471
        %v1658 = vadd.f32 %v1654, %v472
        %v1659 = vadd.f32 %v1655, %v471
        %v1660 = vadd.f32 %v1656, %v472
        %v1661 = vsel %vm565, %v1657, -inf
        %1662 = vmax.xlane.f32.xlu0 %v1661
        %v1663 = vpop.xlane.xlu0 %1662
        %v1664 = vsel %vm565, %v1658, -inf
        %1665 = vmax.xlane.f32.xlu0 %v1664
        %v1666 = vpop.xlane.xlu0 %1665
        %v1667 = vsel %vm565, %v1659, -inf
        %1668 = vmax.xlane.f32.xlu0 %v1667
        %v1669 = vpop.xlane.xlu0 %1668
        %v1670 = vsel %vm565, %v1660, -inf
        %1671 = vmax.xlane.f32.xlu0 %v1670
        %v1672 = vpop.xlane.xlu0 %1671
        %v1673 = vsub.f32 %v1657, %v1663
        %v1674 = vsub.f32 %v1658, %v1666
        %v1675 = vsub.f32 %v1659, %v1669
        %v1676 = vsub.f32 %v1660, %v1672
        %v1677 = vmul.f32 %v1673, 1.442695
        %v1678 = vpow.pop %v1677
        %v1679 = vmul.f32 %v1674, 1.442695
        %v1680 = vpow.pop %v1679
        %v1681 = vmul.f32 %v1675, 1.442695
        %v1682 = vpow.pop %v1681
        %v1683 = vmul.f32 %v1676, 1.442695
        %v1684 = vpow.pop %v1683
        %v1685 = vsel %vm565, %v1678, 0.0
        %1686 = vadd.xlane.f32.xlu0 %v1685
        %v1687 = vpop.xlane.xlu0 %1686
        %v1688 = vsel %vm565, %v1680, 0.0
        %1689 = vadd.xlane.f32.xlu0 %v1688
        %v1690 = vpop.xlane.xlu0 %1689
        %v1691 = vsel %vm565, %v1682, 0.0
        %1692 = vadd.xlane.f32.xlu0 %v1691
        %v1693 = vpop.xlane.xlu0 %1692
        %v1694 = vsel %vm565, %v1684, 0.0
        %1695 = vadd.xlane.f32.xlu0 %v1694
        %v1696 = vpop.xlane.xlu0 %1695
        %v1697 = vrcp.pop %v1687
        %v1698 = vmul.f32 %v1678, %v1697
        %v1699 = vrcp.pop %v1690
        %v1700 = vmul.f32 %v1680, %v1699
        %v1701 = vrcp.pop %v1693
        %v1702 = vmul.f32 %v1682, %v1701
        %v1703 = vrcp.pop %v1696
        %v1704 = vmul.f32 %v1684, %v1703
        %v1705 = vpack.c.bf16 %v1698, %v1698
        %v1706 = vpack.c.bf16 %v1700, %v1700
        %v1707 = vpack.c.bf16 %v1702, %v1702
        %v1708 = vpack.c.bf16 %v1704, %v1704
        %1709 = vrot.lane.b32.xlu0 %v559, 48
        %v1710 = vpop.permute.xlu0 %1709
        %v1712 = vsel %vm565, %v1705, 0
        %v1715 = vsel %vm817, %v1710, 0
        %1717 = vmatprep.subr.bf16.mxu0 0
        %1718 = vmatpush1.bf16.msra.mxu0 %v1715
        %1719 = vmatprep.subr.bf16.mxu0 0
        %1720 = vmatpush1.bf16.msra.mxu0 0
        %1721 = vmatprep.subr.bf16.mxu0 0
        %1722 = vmatpush1.bf16.msra.mxu0 0
        %1723 = vmatprep.subr.bf16.mxu0 0
        %1724 = vmatpush1.bf16.msra.mxu0 0
        %1725 = vmatprep.subr.bf16.mxu0 0
        %1726 = vmatpush1.bf16.msra.mxu0 0
        %1727 = vmatprep.subr.bf16.mxu0 0
        %1728 = vmatpush1.bf16.msra.mxu0 0
        %1729 = vmatprep.subr.bf16.mxu0 0
        %1730 = vmatpush1.bf16.msra.mxu0 0
        %1731 = vmatprep.subr.bf16.mxu0 0
        %1732 = vmatpush1.bf16.msra.mxu0 0
        %1733 = vmatprep.subr.bf16.mxu0 0
        %1734 = vmatpush1.bf16.msra.mxu0 0
        %1735 = vmatprep.subr.bf16.mxu0 0
        %1736 = vmatpush1.bf16.msra.mxu0 0
        %1737 = vmatprep.subr.bf16.mxu0 0
        %1738 = vmatpush1.bf16.msra.mxu0 0
        %1739 = vmatprep.subr.bf16.mxu0 0
        %1740 = vmatpush1.bf16.msra.mxu0 0
        %1741 = vmatprep.subr.bf16.mxu0 0
        %1742 = vmatpush1.bf16.msra.mxu0 0
        %1743 = vmatprep.subr.bf16.mxu0 0
        %1744 = vmatpush1.bf16.msra.mxu0 0
        %1745 = vmatprep.subr.bf16.mxu0 0
        %1746 = vmatpush1.bf16.msra.mxu0 0
        %1747 = vmatprep.subr.bf16.mxu0 0
        %1748 = vmatpush1.bf16.msra.mxu0 0
        %1749 = vmatprep.mubr.bf16.mxu0 0
        %1750 = vmatmul.mubr.bf16.gmra.mrb[0].mxu0 %v1712
        %v1751 = vpop.f32.mrb[0].mxu0
        %v1752 = vadd.f32 0.0, %v1751
        %v1753 = vpop.f32.mrb[0].mxu0
        %v1754 = vpop.f32.mrb[0].mxu0
        %v1755 = vpop.f32.mrb[0].mxu0
        %1756 = vdwg.mxu0
        %1757 = vrot.lane.b32.xlu0 %v560, 48
        %v1758 = vpop.permute.xlu0 %1757
        %v1760 = vsel %vm565, %v1706, 0
        %v1763 = vsel %vm817, %v1758, 0
        %1765 = vmatprep.subr.bf16.mxu0 0
        %1766 = vmatpush1.bf16.msra.mxu0 %v1763
        %1767 = vmatprep.subr.bf16.mxu0 0
        %1768 = vmatpush1.bf16.msra.mxu0 0
        %1769 = vmatprep.subr.bf16.mxu0 0
        %1770 = vmatpush1.bf16.msra.mxu0 0
        %1771 = vmatprep.subr.bf16.mxu0 0
        %1772 = vmatpush1.bf16.msra.mxu0 0
        %1773 = vmatprep.subr.bf16.mxu0 0
        %1774 = vmatpush1.bf16.msra.mxu0 0
        %1775 = vmatprep.subr.bf16.mxu0 0
        %1776 = vmatpush1.bf16.msra.mxu0 0
        %1777 = vmatprep.subr.bf16.mxu0 0
        %1778 = vmatpush1.bf16.msra.mxu0 0
        %1779 = vmatprep.subr.bf16.mxu0 0
        %1780 = vmatpush1.bf16.msra.mxu0 0
        %1781 = vmatprep.subr.bf16.mxu0 0
        %1782 = vmatpush1.bf16.msra.mxu0 0
        %1783 = vmatprep.subr.bf16.mxu0 0
        %1784 = vmatpush1.bf16.msra.mxu0 0
        %1785 = vmatprep.subr.bf16.mxu0 0
        %1786 = vmatpush1.bf16.msra.mxu0 0
        %1787 = vmatprep.subr.bf16.mxu0 0
        %1788 = vmatpush1.bf16.msra.mxu0 0
        %1789 = vmatprep.subr.bf16.mxu0 0
        %1790 = vmatpush1.bf16.msra.mxu0 0
        %1791 = vmatprep.subr.bf16.mxu0 0
        %1792 = vmatpush1.bf16.msra.mxu0 0
        %1793 = vmatprep.subr.bf16.mxu0 0
        %1794 = vmatpush1.bf16.msra.mxu0 0
        %1795 = vmatprep.subr.bf16.mxu0 0
        %1796 = vmatpush1.bf16.msra.mxu0 0
        %1797 = vmatprep.mubr.bf16.mxu0 0
        %1798 = vmatmul.mubr.bf16.gmra.mrb[0].mxu0 %v1760
        %v1799 = vpop.f32.mrb[0].mxu0
        %v1800 = vadd.f32 0.0, %v1799
        %v1801 = vpop.f32.mrb[0].mxu0
        %v1802 = vpop.f32.mrb[0].mxu0
        %v1803 = vpop.f32.mrb[0].mxu0
        %1804 = vdwg.mxu0
        %1805 = vrot.lane.b32.xlu0 %v561, 48
        %v1806 = vpop.permute.xlu0 %1805
        %v1808 = vsel %vm565, %v1707, 0
        %v1811 = vsel %vm817, %v1806, 0
        %1813 = vmatprep.subr.bf16.mxu0 0
        %1814 = vmatpush1.bf16.msra.mxu0 %v1811
        %1815 = vmatprep.subr.bf16.mxu0 0
        %1816 = vmatpush1.bf16.msra.mxu0 0
        %1817 = vmatprep.subr.bf16.mxu0 0
        %1818 = vmatpush1.bf16.msra.mxu0 0
        %1819 = vmatprep.subr.bf16.mxu0 0
        %1820 = vmatpush1.bf16.msra.mxu0 0
        %1821 = vmatprep.subr.bf16.mxu0 0
        %1822 = vmatpush1.bf16.msra.mxu0 0
        %1823 = vmatprep.subr.bf16.mxu0 0
        %1824 = vmatpush1.bf16.msra.mxu0 0
        %1825 = vmatprep.subr.bf16.mxu0 0
        %1826 = vmatpush1.bf16.msra.mxu0 0
        %1827 = vmatprep.subr.bf16.mxu0 0
        %1828 = vmatpush1.bf16.msra.mxu0 0
        %1829 = vmatprep.subr.bf16.mxu0 0
        %1830 = vmatpush1.bf16.msra.mxu0 0
        %1831 = vmatprep.subr.bf16.mxu0 0
        %1832 = vmatpush1.bf16.msra.mxu0 0
        %1833 = vmatprep.subr.bf16.mxu0 0
        %1834 = vmatpush1.bf16.msra.mxu0 0
        %1835 = vmatprep.subr.bf16.mxu0 0
        %1836 = vmatpush1.bf16.msra.mxu0 0
        %1837 = vmatprep.subr.bf16.mxu0 0
        %1838 = vmatpush1.bf16.msra.mxu0 0
        %1839 = vmatprep.subr.bf16.mxu0 0
        %1840 = vmatpush1.bf16.msra.mxu0 0
        %1841 = vmatprep.subr.bf16.mxu0 0
        %1842 = vmatpush1.bf16.msra.mxu0 0
        %1843 = vmatprep.subr.bf16.mxu0 0
        %1844 = vmatpush1.bf16.msra.mxu0 0
        %1845 = vmatprep.mubr.bf16.mxu0 0
        %1846 = vmatmul.mubr.bf16.gmra.mrb[0].mxu0 %v1808
        %v1847 = vpop.f32.mrb[0].mxu0
        %v1848 = vadd.f32 0.0, %v1847
        %v1849 = vpop.f32.mrb[0].mxu0
        %v1850 = vpop.f32.mrb[0].mxu0
        %v1851 = vpop.f32.mrb[0].mxu0
        %1852 = vdwg.mxu0
        %1853 = vrot.lane.b32.xlu0 %v562, 48
        %v1854 = vpop.permute.xlu0 %1853
        %v1856 = vsel %vm565, %v1708, 0
        %v1859 = vsel %vm817, %v1854, 0
        %1861 = vmatprep.subr.bf16.mxu0 0
        %1862 = vmatpush1.bf16.msra.mxu0 %v1859
        %1863 = vmatprep.subr.bf16.mxu0 0
        %1864 = vmatpush1.bf16.msra.mxu0 0
        %1865 = vmatprep.subr.bf16.mxu0 0
        %1866 = vmatpush1.bf16.msra.mxu0 0
        %1867 = vmatprep.subr.bf16.mxu0 0
        %1868 = vmatpush1.bf16.msra.mxu0 0
        %1869 = vmatprep.subr.bf16.mxu0 0
        %1870 = vmatpush1.bf16.msra.mxu0 0
        %1871 = vmatprep.subr.bf16.mxu0 0
        %1872 = vmatpush1.bf16.msra.mxu0 0
        %1873 = vmatprep.subr.bf16.mxu0 0
        %1874 = vmatpush1.bf16.msra.mxu0 0
        %1875 = vmatprep.subr.bf16.mxu0 0
        %1876 = vmatpush1.bf16.msra.mxu0 0
        %1877 = vmatprep.subr.bf16.mxu0 0
        %1878 = vmatpush1.bf16.msra.mxu0 0
        %1879 = vmatprep.subr.bf16.mxu0 0
        %1880 = vmatpush1.bf16.msra.mxu0 0
        %1881 = vmatprep.subr.bf16.mxu0 0
        %1882 = vmatpush1.bf16.msra.mxu0 0
        %1883 = vmatprep.subr.bf16.mxu0 0
        %1884 = vmatpush1.bf16.msra.mxu0 0
        %1885 = vmatprep.subr.bf16.mxu0 0
        %1886 = vmatpush1.bf16.msra.mxu0 0
        %1887 = vmatprep.subr.bf16.mxu0 0
        %1888 = vmatpush1.bf16.msra.mxu0 0
        %1889 = vmatprep.subr.bf16.mxu0 0
        %1890 = vmatpush1.bf16.msra.mxu0 0
        %1891 = vmatprep.subr.bf16.mxu0 0
        %1892 = vmatpush1.bf16.msra.mxu0 0
        %1893 = vmatprep.mubr.bf16.mxu0 0
        %1894 = vmatmul.mubr.bf16.gmra.mrb[0].mxu0 %v1856
        %v1895 = vpop.f32.mrb[0].mxu0
        %v1896 = vadd.f32 0.0, %v1895
        %v1897 = vpop.f32.mrb[0].mxu0
        %v1898 = vpop.f32.mrb[0].mxu0
        %v1899 = vpop.f32.mrb[0].mxu0
        %1900 = vdwg.mxu0
        %1901 = vrot.lane.b32.xlu0 %v559, 104
        %v1902 = vpop.permute.xlu0 %1901
        %1903 = vrot.lane.b32.xlu0 %v559, 72
        %v1904 = vpop.permute.xlu0 %1903
        %v1906 = vsel %vm565, %v1902, 0
        %v1909 = vsel %vm565, %v1904, 0
        %1911 = vmatprep.subr.bf16.mxu0 0
        %1912 = vmatpush1.bf16.xpose.msra.mxu0 %v1909
        %1913 = vmatprep.subr.bf16.mxu0 0
        %1914 = vmatpush1.bf16.xpose.msra.mxu0 0
        %1915 = vmatprep.subr.bf16.mxu0 0
        %1916 = vmatpush1.bf16.xpose.msra.mxu0 0
        %1917 = vmatprep.subr.bf16.mxu0 0
        %1918 = vmatpush1.bf16.xpose.msra.mxu0 0
        %1919 = vmatprep.subr.bf16.mxu0 0
        %1920 = vmatpush1.bf16.xpose.msra.mxu0 0
        %1921 = vmatprep.subr.bf16.mxu0 0
        %1922 = vmatpush1.bf16.xpose.msra.mxu0 0
        %1923 = vmatprep.subr.bf16.mxu0 0
        %1924 = vmatpush1.bf16.xpose.msra.mxu0 0
        %1925 = vmatprep.subr.bf16.mxu0 0
        %1926 = vmatpush1.bf16.xpose.msra.mxu0 0
        %1927 = vmatprep.subr.bf16.mxu0 0
        %1928 = vmatpush1.bf16.xpose.msra.mxu0 0
        %1929 = vmatprep.subr.bf16.mxu0 0
        %1930 = vmatpush1.bf16.xpose.msra.mxu0 0
        %1931 = vmatprep.subr.bf16.mxu0 0
        %1932 = vmatpush1.bf16.xpose.msra.mxu0 0
        %1933 = vmatprep.subr.bf16.mxu0 0
        %1934 = vmatpush1.bf16.xpose.msra.mxu0 0
        %1935 = vmatprep.subr.bf16.mxu0 0
        %1936 = vmatpush1.bf16.xpose.msra.mxu0 0
        %1937 = vmatprep.subr.bf16.mxu0 0
        %1938 = vmatpush1.bf16.xpose.msra.mxu0 0
        %1939 = vmatprep.subr.bf16.mxu0 0
        %1940 = vmatpush1.bf16.xpose.msra.mxu0 0
        %1941 = vmatprep.subr.bf16.mxu0 0
        %1942 = vmatpush1.bf16.xpose.msra.mxu0 0
        %1943 = vmatprep.mubr.bf16.mxu0 0
        %1944 = vmatmul.mubr.bf16.gmra.mrb[0].mxu0 %v1906
        %v1945 = vpop.f32.mrb[0].mxu0
        %v1946 = vadd.f32 0.0, %v1945
        %v1947 = vpop.f32.mrb[0].mxu0
        %v1948 = vpop.f32.mrb[0].mxu0
        %v1949 = vpop.f32.mrb[0].mxu0
        %1950 = vdwg.mxu0
        %1951 = vrot.lane.b32.xlu0 %v560, 104
        %v1952 = vpop.permute.xlu0 %1951
        %1953 = vrot.lane.b32.xlu0 %v560, 72
        %v1954 = vpop.permute.xlu0 %1953
        %v1956 = vsel %vm565, %v1952, 0
        %v1959 = vsel %vm565, %v1954, 0
        %1961 = vmatprep.subr.bf16.mxu0 0
        %1962 = vmatpush1.bf16.xpose.msra.mxu0 %v1959
        %1963 = vmatprep.subr.bf16.mxu0 0
        %1964 = vmatpush1.bf16.xpose.msra.mxu0 0
        %1965 = vmatprep.subr.bf16.mxu0 0
        %1966 = vmatpush1.bf16.xpose.msra.mxu0 0
        %1967 = vmatprep.subr.bf16.mxu0 0
        %1968 = vmatpush1.bf16.xpose.msra.mxu0 0
        %1969 = vmatprep.subr.bf16.mxu0 0
        %1970 = vmatpush1.bf16.xpose.msra.mxu0 0
        %1971 = vmatprep.subr.bf16.mxu0 0
        %1972 = vmatpush1.bf16.xpose.msra.mxu0 0
        %1973 = vmatprep.subr.bf16.mxu0 0
        %1974 = vmatpush1.bf16.xpose.msra.mxu0 0
        %1975 = vmatprep.subr.bf16.mxu0 0
        %1976 = vmatpush1.bf16.xpose.msra.mxu0 0
        %1977 = vmatprep.subr.bf16.mxu0 0
        %1978 = vmatpush1.bf16.xpose.msra.mxu0 0
        %1979 = vmatprep.subr.bf16.mxu0 0
        %1980 = vmatpush1.bf16.xpose.msra.mxu0 0
        %1981 = vmatprep.subr.bf16.mxu0 0
        %1982 = vmatpush1.bf16.xpose.msra.mxu0 0
        %1983 = vmatprep.subr.bf16.mxu0 0
        %1984 = vmatpush1.bf16.xpose.msra.mxu0 0
        %1985 = vmatprep.subr.bf16.mxu0 0
        %1986 = vmatpush1.bf16.xpose.msra.mxu0 0
        %1987 = vmatprep.subr.bf16.mxu0 0
        %1988 = vmatpush1.bf16.xpose.msra.mxu0 0
        %1989 = vmatprep.subr.bf16.mxu0 0
        %1990 = vmatpush1.bf16.xpose.msra.mxu0 0
        %1991 = vmatprep.subr.bf16.mxu0 0
        %1992 = vmatpush1.bf16.xpose.msra.mxu0 0
        %1993 = vmatprep.mubr.bf16.mxu0 0
        %1994 = vmatmul.mubr.bf16.gmra.mrb[0].mxu0 %v1956
        %v1995 = vpop.f32.mrb[0].mxu0
        %v1996 = vadd.f32 0.0, %v1995
        %v1997 = vpop.f32.mrb[0].mxu0
        %v1998 = vpop.f32.mrb[0].mxu0
        %v1999 = vpop.f32.mrb[0].mxu0
        %2000 = vdwg.mxu0
        %2001 = vrot.lane.b32.xlu0 %v561, 104
        %v2002 = vpop.permute.xlu0 %2001
        %2003 = vrot.lane.b32.xlu0 %v561, 72
        %v2004 = vpop.permute.xlu0 %2003
        %v2006 = vsel %vm565, %v2002, 0
        %v2009 = vsel %vm565, %v2004, 0
        %2011 = vmatprep.subr.bf16.mxu0 0
        %2012 = vmatpush1.bf16.xpose.msra.mxu0 %v2009
        %2013 = vmatprep.subr.bf16.mxu0 0
        %2014 = vmatpush1.bf16.xpose.msra.mxu0 0
        %2015 = vmatprep.subr.bf16.mxu0 0
        %2016 = vmatpush1.bf16.xpose.msra.mxu0 0
        %2017 = vmatprep.subr.bf16.mxu0 0
        %2018 = vmatpush1.bf16.xpose.msra.mxu0 0
        %2019 = vmatprep.subr.bf16.mxu0 0
        %2020 = vmatpush1.bf16.xpose.msra.mxu0 0
        %2021 = vmatprep.subr.bf16.mxu0 0
        %2022 = vmatpush1.bf16.xpose.msra.mxu0 0
        %2023 = vmatprep.subr.bf16.mxu0 0
        %2024 = vmatpush1.bf16.xpose.msra.mxu0 0
        %2025 = vmatprep.subr.bf16.mxu0 0
        %2026 = vmatpush1.bf16.xpose.msra.mxu0 0
        %2027 = vmatprep.subr.bf16.mxu0 0
        %2028 = vmatpush1.bf16.xpose.msra.mxu0 0
        %2029 = vmatprep.subr.bf16.mxu0 0
        %2030 = vmatpush1.bf16.xpose.msra.mxu0 0
        %2031 = vmatprep.subr.bf16.mxu0 0
        %2032 = vmatpush1.bf16.xpose.msra.mxu0 0
        %2033 = vmatprep.subr.bf16.mxu0 0
        %2034 = vmatpush1.bf16.xpose.msra.mxu0 0
        %2035 = vmatprep.subr.bf16.mxu0 0
        %2036 = vmatpush1.bf16.xpose.msra.mxu0 0
        %2037 = vmatprep.subr.bf16.mxu0 0
        %2038 = vmatpush1.bf16.xpose.msra.mxu0 0
        %2039 = vmatprep.subr.bf16.mxu0 0
        %2040 = vmatpush1.bf16.xpose.msra.mxu0 0
        %2041 = vmatprep.subr.bf16.mxu0 0
        %2042 = vmatpush1.bf16.xpose.msra.mxu0 0
        %2043 = vmatprep.mubr.bf16.mxu0 0
        %2044 = vmatmul.mubr.bf16.gmra.mrb[0].mxu0 %v2006
        %v2045 = vpop.f32.mrb[0].mxu0
        %v2046 = vadd.f32 0.0, %v2045
        %v2047 = vpop.f32.mrb[0].mxu0
        %v2048 = vpop.f32.mrb[0].mxu0
        %v2049 = vpop.f32.mrb[0].mxu0
        %2050 = vdwg.mxu0
        %2051 = vrot.lane.b32.xlu0 %v562, 104
        %v2052 = vpop.permute.xlu0 %2051
        %2053 = vrot.lane.b32.xlu0 %v562, 72
        %v2054 = vpop.permute.xlu0 %2053
        %v2056 = vsel %vm565, %v2052, 0
        %v2059 = vsel %vm565, %v2054, 0
        %2061 = vmatprep.subr.bf16.mxu0 0
        %2062 = vmatpush1.bf16.xpose.msra.mxu0 %v2059
        %2063 = vmatprep.subr.bf16.mxu0 0
        %2064 = vmatpush1.bf16.xpose.msra.mxu0 0
        %2065 = vmatprep.subr.bf16.mxu0 0
        %2066 = vmatpush1.bf16.xpose.msra.mxu0 0
        %2067 = vmatprep.subr.bf16.mxu0 0
        %2068 = vmatpush1.bf16.xpose.msra.mxu0 0
        %2069 = vmatprep.subr.bf16.mxu0 0
        %2070 = vmatpush1.bf16.xpose.msra.mxu0 0
        %2071 = vmatprep.subr.bf16.mxu0 0
        %2072 = vmatpush1.bf16.xpose.msra.mxu0 0
        %2073 = vmatprep.subr.bf16.mxu0 0
        %2074 = vmatpush1.bf16.xpose.msra.mxu0 0
        %2075 = vmatprep.subr.bf16.mxu0 0
        %2076 = vmatpush1.bf16.xpose.msra.mxu0 0
        %2077 = vmatprep.subr.bf16.mxu0 0
        %2078 = vmatpush1.bf16.xpose.msra.mxu0 0
        %2079 = vmatprep.subr.bf16.mxu0 0
        %2080 = vmatpush1.bf16.xpose.msra.mxu0 0
        %2081 = vmatprep.subr.bf16.mxu0 0
        %2082 = vmatpush1.bf16.xpose.msra.mxu0 0
        %2083 = vmatprep.subr.bf16.mxu0 0
        %2084 = vmatpush1.bf16.xpose.msra.mxu0 0
        %2085 = vmatprep.subr.bf16.mxu0 0
        %2086 = vmatpush1.bf16.xpose.msra.mxu0 0
        %2087 = vmatprep.subr.bf16.mxu0 0
        %2088 = vmatpush1.bf16.xpose.msra.mxu0 0
        %2089 = vmatprep.subr.bf16.mxu0 0
        %2090 = vmatpush1.bf16.xpose.msra.mxu0 0
        %2091 = vmatprep.subr.bf16.mxu0 0
        %2092 = vmatpush1.bf16.xpose.msra.mxu0 0
        %2093 = vmatprep.mubr.bf16.mxu0 0
        %2094 = vmatmul.mubr.bf16.gmra.mrb[0].mxu0 %v2056
        %v2095 = vpop.f32.mrb[0].mxu0
        %v2096 = vadd.f32 0.0, %v2095
        %v2097 = vpop.f32.mrb[0].mxu0
        %v2098 = vpop.f32.mrb[0].mxu0
        %v2099 = vpop.f32.mrb[0].mxu0
        %2100 = vdwg.mxu0
        %v2101 = vmul.f32 %v1946, 0.35355338
        %v2102 = vmul.f32 %v1996, 0.35355338
        %v2103 = vmul.f32 %v2046, 0.35355338
        %v2104 = vmul.f32 %v2096, 0.35355338
        %v2105 = vadd.f32 %v2101, %v473
        %v2106 = vadd.f32 %v2102, %v474
        %v2107 = vadd.f32 %v2103, %v473
        %v2108 = vadd.f32 %v2104, %v474
        %v2109 = vsel %vm565, %v2105, -inf
        %2110 = vmax.xlane.f32.xlu0 %v2109
        %v2111 = vpop.xlane.xlu0 %2110
        %v2112 = vsel %vm565, %v2106, -inf
        %2113 = vmax.xlane.f32.xlu0 %v2112
        %v2114 = vpop.xlane.xlu0 %2113
        %v2115 = vsel %vm565, %v2107, -inf
        %2116 = vmax.xlane.f32.xlu0 %v2115
        %v2117 = vpop.xlane.xlu0 %2116
        %v2118 = vsel %vm565, %v2108, -inf
        %2119 = vmax.xlane.f32.xlu0 %v2118
        %v2120 = vpop.xlane.xlu0 %2119
        %v2121 = vsub.f32 %v2105, %v2111
        %v2122 = vsub.f32 %v2106, %v2114
        %v2123 = vsub.f32 %v2107, %v2117
        %v2124 = vsub.f32 %v2108, %v2120
        %v2125 = vmul.f32 %v2121, 1.442695
        %v2126 = vpow.pop %v2125
        %v2127 = vmul.f32 %v2122, 1.442695
        %v2128 = vpow.pop %v2127
        %v2129 = vmul.f32 %v2123, 1.442695
        %v2130 = vpow.pop %v2129
        %v2131 = vmul.f32 %v2124, 1.442695
        %v2132 = vpow.pop %v2131
        %v2133 = vsel %vm565, %v2126, 0.0
        %2134 = vadd.xlane.f32.xlu0 %v2133
        %v2135 = vpop.xlane.xlu0 %2134
        %v2136 = vsel %vm565, %v2128, 0.0
        %2137 = vadd.xlane.f32.xlu0 %v2136
        %v2138 = vpop.xlane.xlu0 %2137
        %v2139 = vsel %vm565, %v2130, 0.0
        %2140 = vadd.xlane.f32.xlu0 %v2139
        %v2141 = vpop.xlane.xlu0 %2140
        %v2142 = vsel %vm565, %v2132, 0.0
        %2143 = vadd.xlane.f32.xlu0 %v2142
        %v2144 = vpop.xlane.xlu0 %2143
        %v2145 = vrcp.pop %v2135
        %v2146 = vmul.f32 %v2126, %v2145
        %v2147 = vrcp.pop %v2138
        %v2148 = vmul.f32 %v2128, %v2147
        %v2149 = vrcp.pop %v2141
        %v2150 = vmul.f32 %v2130, %v2149
        %v2151 = vrcp.pop %v2144
        %v2152 = vmul.f32 %v2132, %v2151
        %v2153 = vpack.c.bf16 %v2146, %v2146
        %v2154 = vpack.c.bf16 %v2148, %v2148
        %v2155 = vpack.c.bf16 %v2150, %v2150
        %v2156 = vpack.c.bf16 %v2152, %v2152
        %2157 = vrot.lane.b32.xlu0 %v559, 40
        %v2158 = vpop.permute.xlu0 %2157
        %v2160 = vsel %vm565, %v2153, 0
        %v2163 = vsel %vm817, %v2158, 0
        %2165 = vmatprep.subr.bf16.mxu0 0
        %2166 = vmatpush1.bf16.msra.mxu0 %v2163
        %2167 = vmatprep.subr.bf16.mxu0 0
        %2168 = vmatpush1.bf16.msra.mxu0 0
        %2169 = vmatprep.subr.bf16.mxu0 0
        %2170 = vmatpush1.bf16.msra.mxu0 0
        %2171 = vmatprep.subr.bf16.mxu0 0
        %2172 = vmatpush1.bf16.msra.mxu0 0
        %2173 = vmatprep.subr.bf16.mxu0 0
        %2174 = vmatpush1.bf16.msra.mxu0 0
        %2175 = vmatprep.subr.bf16.mxu0 0
        %2176 = vmatpush1.bf16.msra.mxu0 0
        %2177 = vmatprep.subr.bf16.mxu0 0
        %2178 = vmatpush1.bf16.msra.mxu0 0
        %2179 = vmatprep.subr.bf16.mxu0 0
        %2180 = vmatpush1.bf16.msra.mxu0 0
        %2181 = vmatprep.subr.bf16.mxu0 0
        %2182 = vmatpush1.bf16.msra.mxu0 0
        %2183 = vmatprep.subr.bf16.mxu0 0
        %2184 = vmatpush1.bf16.msra.mxu0 0
        %2185 = vmatprep.subr.bf16.mxu0 0
        %2186 = vmatpush1.bf16.msra.mxu0 0
        %2187 = vmatprep.subr.bf16.mxu0 0
        %2188 = vmatpush1.bf16.msra.mxu0 0
        %2189 = vmatprep.subr.bf16.mxu0 0
        %2190 = vmatpush1.bf16.msra.mxu0 0
        %2191 = vmatprep.subr.bf16.mxu0 0
        %2192 = vmatpush1.bf16.msra.mxu0 0
        %2193 = vmatprep.subr.bf16.mxu0 0
        %2194 = vmatpush1.bf16.msra.mxu0 0
        %2195 = vmatprep.subr.bf16.mxu0 0
        %2196 = vmatpush1.bf16.msra.mxu0 0
        %2197 = vmatprep.mubr.bf16.mxu0 0
        %2198 = vmatmul.mubr.bf16.gmra.mrb[0].mxu0 %v2160
        %v2199 = vpop.f32.mrb[0].mxu0
        %v2200 = vadd.f32 0.0, %v2199
        %v2201 = vpop.f32.mrb[0].mxu0
        %v2202 = vpop.f32.mrb[0].mxu0
        %v2203 = vpop.f32.mrb[0].mxu0
        %2204 = vdwg.mxu0
        %2205 = vrot.lane.b32.xlu0 %v560, 40
        %v2206 = vpop.permute.xlu0 %2205
        %v2208 = vsel %vm565, %v2154, 0
        %v2211 = vsel %vm817, %v2206, 0
        %2213 = vmatprep.subr.bf16.mxu0 0
        %2214 = vmatpush1.bf16.msra.mxu0 %v2211
        %2215 = vmatprep.subr.bf16.mxu0 0
        %2216 = vmatpush1.bf16.msra.mxu0 0
        %2217 = vmatprep.subr.bf16.mxu0 0
        %2218 = vmatpush1.bf16.msra.mxu0 0
        %2219 = vmatprep.subr.bf16.mxu0 0
        %2220 = vmatpush1.bf16.msra.mxu0 0
        %2221 = vmatprep.subr.bf16.mxu0 0
        %2222 = vmatpush1.bf16.msra.mxu0 0
        %2223 = vmatprep.subr.bf16.mxu0 0
        %2224 = vmatpush1.bf16.msra.mxu0 0
        %2225 = vmatprep.subr.bf16.mxu0 0
        %2226 = vmatpush1.bf16.msra.mxu0 0
        %2227 = vmatprep.subr.bf16.mxu0 0
        %2228 = vmatpush1.bf16.msra.mxu0 0
        %2229 = vmatprep.subr.bf16.mxu0 0
        %2230 = vmatpush1.bf16.msra.mxu0 0
        %2231 = vmatprep.subr.bf16.mxu0 0
        %2232 = vmatpush1.bf16.msra.mxu0 0
        %2233 = vmatprep.subr.bf16.mxu0 0
        %2234 = vmatpush1.bf16.msra.mxu0 0
        %2235 = vmatprep.subr.bf16.mxu0 0
        %2236 = vmatpush1.bf16.msra.mxu0 0
        %2237 = vmatprep.subr.bf16.mxu0 0
        %2238 = vmatpush1.bf16.msra.mxu0 0
        %2239 = vmatprep.subr.bf16.mxu0 0
        %2240 = vmatpush1.bf16.msra.mxu0 0
        %2241 = vmatprep.subr.bf16.mxu0 0
        %2242 = vmatpush1.bf16.msra.mxu0 0
        %2243 = vmatprep.subr.bf16.mxu0 0
        %2244 = vmatpush1.bf16.msra.mxu0 0
        %2245 = vmatprep.mubr.bf16.mxu0 0
        %2246 = vmatmul.mubr.bf16.gmra.mrb[0].mxu0 %v2208
        %v2247 = vpop.f32.mrb[0].mxu0
        %v2248 = vadd.f32 0.0, %v2247
        %v2249 = vpop.f32.mrb[0].mxu0
        %v2250 = vpop.f32.mrb[0].mxu0
        %v2251 = vpop.f32.mrb[0].mxu0
        %2252 = vdwg.mxu0
        %2253 = vrot.lane.b32.xlu0 %v561, 40
        %v2254 = vpop.permute.xlu0 %2253
        %v2256 = vsel %vm565, %v2155, 0
        %v2259 = vsel %vm817, %v2254, 0
        %2261 = vmatprep.subr.bf16.mxu0 0
        %2262 = vmatpush1.bf16.msra.mxu0 %v2259
        %2263 = vmatprep.subr.bf16.mxu0 0
        %2264 = vmatpush1.bf16.msra.mxu0 0
        %2265 = vmatprep.subr.bf16.mxu0 0
        %2266 = vmatpush1.bf16.msra.mxu0 0
        %2267 = vmatprep.subr.bf16.mxu0 0
        %2268 = vmatpush1.bf16.msra.mxu0 0
        %2269 = vmatprep.subr.bf16.mxu0 0
        %2270 = vmatpush1.bf16.msra.mxu0 0
        %2271 = vmatprep.subr.bf16.mxu0 0
        %2272 = vmatpush1.bf16.msra.mxu0 0
        %2273 = vmatprep.subr.bf16.mxu0 0
        %2274 = vmatpush1.bf16.msra.mxu0 0
        %2275 = vmatprep.subr.bf16.mxu0 0
        %2276 = vmatpush1.bf16.msra.mxu0 0
        %2277 = vmatprep.subr.bf16.mxu0 0
        %2278 = vmatpush1.bf16.msra.mxu0 0
        %2279 = vmatprep.subr.bf16.mxu0 0
        %2280 = vmatpush1.bf16.msra.mxu0 0
        %2281 = vmatprep.subr.bf16.mxu0 0
        %2282 = vmatpush1.bf16.msra.mxu0 0
        %2283 = vmatprep.subr.bf16.mxu0 0
        %2284 = vmatpush1.bf16.msra.mxu0 0
        %2285 = vmatprep.subr.bf16.mxu0 0
        %2286 = vmatpush1.bf16.msra.mxu0 0
        %2287 = vmatprep.subr.bf16.mxu0 0
        %2288 = vmatpush1.bf16.msra.mxu0 0
        %2289 = vmatprep.subr.bf16.mxu0 0
        %2290 = vmatpush1.bf16.msra.mxu0 0
        %2291 = vmatprep.subr.bf16.mxu0 0
        %2292 = vmatpush1.bf16.msra.mxu0 0
        %2293 = vmatprep.mubr.bf16.mxu0 0
        %2294 = vmatmul.mubr.bf16.gmra.mrb[0].mxu0 %v2256
        %v2295 = vpop.f32.mrb[0].mxu0
        %v2296 = vadd.f32 0.0, %v2295
        %v2297 = vpop.f32.mrb[0].mxu0
        %v2298 = vpop.f32.mrb[0].mxu0
        %v2299 = vpop.f32.mrb[0].mxu0
        %2300 = vdwg.mxu0
        %2301 = vrot.lane.b32.xlu0 %v562, 40
        %v2302 = vpop.permute.xlu0 %2301
        %v2304 = vsel %vm565, %v2156, 0
        %v2307 = vsel %vm817, %v2302, 0
        %2309 = vmatprep.subr.bf16.mxu0 0
        %2310 = vmatpush1.bf16.msra.mxu0 %v2307
        %2311 = vmatprep.subr.bf16.mxu0 0
        %2312 = vmatpush1.bf16.msra.mxu0 0
        %2313 = vmatprep.subr.bf16.mxu0 0
        %2314 = vmatpush1.bf16.msra.mxu0 0
        %2315 = vmatprep.subr.bf16.mxu0 0
        %2316 = vmatpush1.bf16.msra.mxu0 0
        %2317 = vmatprep.subr.bf16.mxu0 0
        %2318 = vmatpush1.bf16.msra.mxu0 0
        %2319 = vmatprep.subr.bf16.mxu0 0
        %2320 = vmatpush1.bf16.msra.mxu0 0
        %2321 = vmatprep.subr.bf16.mxu0 0
        %2322 = vmatpush1.bf16.msra.mxu0 0
        %2323 = vmatprep.subr.bf16.mxu0 0
        %2324 = vmatpush1.bf16.msra.mxu0 0
        %2325 = vmatprep.subr.bf16.mxu0 0
        %2326 = vmatpush1.bf16.msra.mxu0 0
        %2327 = vmatprep.subr.bf16.mxu0 0
        %2328 = vmatpush1.bf16.msra.mxu0 0
        %2329 = vmatprep.subr.bf16.mxu0 0
        %2330 = vmatpush1.bf16.msra.mxu0 0
        %2331 = vmatprep.subr.bf16.mxu0 0
        %2332 = vmatpush1.bf16.msra.mxu0 0
        %2333 = vmatprep.subr.bf16.mxu0 0
        %2334 = vmatpush1.bf16.msra.mxu0 0
        %2335 = vmatprep.subr.bf16.mxu0 0
        %2336 = vmatpush1.bf16.msra.mxu0 0
        %2337 = vmatprep.subr.bf16.mxu0 0
        %2338 = vmatpush1.bf16.msra.mxu0 0
        %2339 = vmatprep.subr.bf16.mxu0 0
        %2340 = vmatpush1.bf16.msra.mxu0 0
        %2341 = vmatprep.mubr.bf16.mxu0 0
        %2342 = vmatmul.mubr.bf16.gmra.mrb[0].mxu0 %v2304
        %v2343 = vpop.f32.mrb[0].mxu0
        %v2344 = vadd.f32 0.0, %v2343
        %v2345 = vpop.f32.mrb[0].mxu0
        %v2346 = vpop.f32.mrb[0].mxu0
        %v2347 = vpop.f32.mrb[0].mxu0
        %2348 = vdwg.mxu0
        %2353 = vrot.lane.b32.xlu0 %v1304, 8
        %v2354 = vpop.permute.xlu0 %2353
        %2355 = vrot.lane.b32.xlu0 %v1352, 8
        %v2356 = vpop.permute.xlu0 %2355
        %2357 = vrot.lane.b32.xlu0 %v1400, 8
        %v2358 = vpop.permute.xlu0 %2357
        %2359 = vrot.lane.b32.xlu0 %v1448, 8
        %v2360 = vpop.permute.xlu0 %2359
        %2369 = vrot.lane.b32.xlu0 %v1752, 16
        %v2370 = vpop.permute.xlu0 %2369
        %2371 = vrot.lane.b32.xlu0 %v1800, 16
        %v2372 = vpop.permute.xlu0 %2371
        %2373 = vrot.lane.b32.xlu0 %v1848, 16
        %v2374 = vpop.permute.xlu0 %2373
        %2375 = vrot.lane.b32.xlu0 %v1896, 16
        %v2376 = vpop.permute.xlu0 %2375
        %2385 = vrot.lane.b32.xlu0 %v2200, 24
        %v2386 = vpop.permute.xlu0 %2385
        %2387 = vrot.lane.b32.xlu0 %v2248, 24
        %v2388 = vpop.permute.xlu0 %2387
        %2389 = vrot.lane.b32.xlu0 %v2296, 24
        %v2390 = vpop.permute.xlu0 %2389
        %2391 = vrot.lane.b32.xlu0 %v2344, 24
        %v2392 = vpop.permute.xlu0 %2391
        %v2397 = vsel %vm565, %v856, %v2354
        %v2398 = vsel %vm565, %v904, %v2356
        %v2399 = vsel %vm565, %v952, %v2358
        %v2400 = vsel %vm565, %v1000, %v2360
        %vm2401 = vcmask 130048
        %v2402 = vsel %vm2401, %v2397, %v2370
        %v2403 = vsel %vm2401, %v2398, %v2372
        %v2404 = vsel %vm2401, %v2399, %v2374
        %v2405 = vsel %vm2401, %v2400, %v2376
        %vm2406 = vcmask 195584
        %v2407 = vsel %vm2406, %v2402, %v2386
        %v2408 = vsel %vm2406, %v2403, %v2388
        %v2409 = vsel %vm2406, %v2404, %v2390
        %v2410 = vsel %vm2406, %v2405, %v2392
        %v2411 = vpack.c.bf16 %v2408, %v2407
        %v2412 = vpack.c.bf16 %v2410, %v2409
        %v2414 = vlaneseq
        %v2415 = vshrl.u32 %v2414, 7
        %v2416 = vsub.s32 0, %v2415
        %v2417 = vrot.slane %v466, %v2416
        %v2423 = vunpack.c.l.b16 %v462
        %v2424 = vunpack.c.l.b16 %v463
        %v2425 = vunpack.c.l.b16 %v464
        %v2426 = vunpack.c.l.b16 %v465
        %v2427 = vpack.c.b16 %v2424, %v2423
        %v2428 = vpack.c.b16 %v2426, %v2425
        %v2432 = vsel %vm495, %v2411, 0
        %v2435 = vsel %vm495, %v2412, 0
        %2437 = vmatprep.subr.bf16.mxu0 0
        %2438 = vmatpush1.bf16.msra.mxu0 %v2427
        %2439 = vmatprep.subr.bf16.mxu0 0
        %2440 = vmatpush1.bf16.msra.mxu0 %v2428
        %2441 = vmatprep.subr.bf16.mxu0 0
        %2442 = vmatpush1.bf16.msra.mxu0 0
        %2443 = vmatprep.subr.bf16.mxu0 0
        %2444 = vmatpush1.bf16.msra.mxu0 0
        %2445 = vmatprep.subr.bf16.mxu0 0
        %2446 = vmatpush1.bf16.msra.mxu0 0
        %2447 = vmatprep.subr.bf16.mxu0 0
        %2448 = vmatpush1.bf16.msra.mxu0 0
        %2449 = vmatprep.subr.bf16.mxu0 0
        %2450 = vmatpush1.bf16.msra.mxu0 0
        %2451 = vmatprep.subr.bf16.mxu0 0
        %2452 = vmatpush1.bf16.msra.mxu0 0
        %2453 = vmatprep.subr.bf16.mxu0 0
        %2454 = vmatpush1.bf16.msra.mxu0 0
        %2455 = vmatprep.subr.bf16.mxu0 0
        %2456 = vmatpush1.bf16.msra.mxu0 0
        %2457 = vmatprep.subr.bf16.mxu0 0
        %2458 = vmatpush1.bf16.msra.mxu0 0
        %2459 = vmatprep.subr.bf16.mxu0 0
        %2460 = vmatpush1.bf16.msra.mxu0 0
        %2461 = vmatprep.subr.bf16.mxu0 0
        %2462 = vmatpush1.bf16.msra.mxu0 0
        %2463 = vmatprep.subr.bf16.mxu0 0
        %2464 = vmatpush1.bf16.msra.mxu0 0
        %2465 = vmatprep.subr.bf16.mxu0 0
        %2466 = vmatpush1.bf16.msra.mxu0 0
        %2467 = vmatprep.subr.bf16.mxu0 0
        %2468 = vmatpush1.bf16.msra.mxu0 0
        %2469 = vmatprep.mubr.bf16.mxu0 0
        %2470 = vmatmul.mubr.bf16.gmra.mrb[0].mxu0 %v2432
        %v2471 = vpop.f32.mrb[0].mxu0
        %v2472 = vadd.f32 %v2417, %v2471
        %v2473 = vpop.f32.mrb[0].mxu0
        %v2474 = vpop.f32.mrb[0].mxu0
        %v2475 = vadd.f32 %v2417, %v2474
        %v2476 = vpop.f32.mrb[0].mxu0
        %2477 = vmatprep.mubr.bf16.mxu0 0
        %2478 = vmatmul.mubr.bf16.gmra.mrb[0].mxu0 %v2435
        %v2479 = vpop.f32.mrb[0].mxu0
        %v2480 = vadd.f32 %v2417, %v2479
        %v2481 = vpop.f32.mrb[0].mxu0
        %v2482 = vpop.f32.mrb[0].mxu0
        %v2483 = vadd.f32 %v2417, %v2482
        %v2484 = vpop.f32.mrb[0].mxu0
        %2485 = vdwg.mxu0
        %v2486 = vadd.f32 %v453, %v2472
        %v2487 = vadd.f32 %v454, %v2475
        %v2488 = vadd.f32 %v455, %v2480
        %v2489 = vadd.f32 %v456, %v2483
        %2490 = vst.msk [vmem:[%s409] sm:$0xff] %vm495, %v2486
        %2491 = vst.msk [vmem:[%s409 + $0x8] sm:$0xff] %vm495, %v2487
        %2492 = vst.msk [vmem:[%s409 + $0x10] sm:$0xff] %vm495, %v2488
        %2493 = vst.msk [vmem:[%s409 + $0x18] sm:$0xff] %vm495, %v2489
        %v2494 = vsel %vm495, %v2486, 0.0
        %v2495 = vsel %vm495, %v2487, 0.0
        %v2496 = vadd.f32 %v2494, %v2495
        %v2497 = vsel %vm495, %v2488, 0.0
        %v2498 = vadd.f32 %v2496, %v2497
        %v2499 = vsel %vm495, %v2489, 0.0
        %v2500 = vadd.f32 %v2498, %v2499
        %v2501 = vrot.slane %v2500, 4
        %v2502 = vadd.f32 %v2500, %v2501
        %v2503 = vrot.slane %v2502, 2
        %v2504 = vadd.f32 %v2502, %v2503
        %v2505 = vrot.slane %v2504, 1
        %v2506 = vadd.f32 %v2504, %v2505
        %vm2507 = vcmask 253952
        %2508 = vst.msk [vmem:[%s416] sm:$0x1] %vm2507, %v2506
        %v2509 = vmul.f32 %v2486, %v2486
        %v2510 = vmul.f32 %v2487, %v2487
        %v2511 = vmul.f32 %v2488, %v2488
        %v2512 = vmul.f32 %v2489, %v2489
        %v2513 = vsel %vm495, %v2509, 0.0
        %v2514 = vsel %vm495, %v2510, 0.0
        %v2515 = vadd.f32 %v2513, %v2514
        %v2516 = vsel %vm495, %v2511, 0.0
        %v2517 = vadd.f32 %v2515, %v2516
        %v2518 = vsel %vm495, %v2512, 0.0
        %v2519 = vadd.f32 %v2517, %v2518
        %v2520 = vrot.slane %v2519, 4
        %v2521 = vadd.f32 %v2519, %v2520
        %v2522 = vrot.slane %v2521, 2
        %v2523 = vadd.f32 %v2521, %v2522
        %v2524 = vrot.slane %v2523, 1
        %v2525 = vadd.f32 %v2523, %v2524
        %2526 = vst.msk [vmem:[%s416 + $0x1] sm:$0x1] %vm2507, %v2525
        %s2527 = sand.u32 %s192, 1
        %s2528 = scalar_lea.sflag [#allocation4], %s2527
        %s2529 = sand.u32 %s192, 1
        %s2530 = smul.addr %s2529, 32
        %s2531 = scalar_lea.vmem [#allocation14], %s2530
        %s2532 = sand.u32 %s218, 1
        %s2533 = scalar_lea.sflag [#allocation16], %s2532
        %s2534 = sand.u32 %s218, 1
        %s2535 = smul.addr %s2534, 2
        %s2536 = scalar_lea.vmem [#allocation15], %s2535
        // Predicated region
        $region77: #{tsti_encoder_forward.9} parent=47 // pred_check
          %p2537 = pneg %p202
        $region78: #{tsti_encoder_forward.9} parent=47 // pred_check_branch
          %2539 = sbr.rel (%p2537) target = $region80
        $region79: #{tsti_encoder_forward.9} parent=47 // pred_region
          %s2540 = smul.u32 2, %s32
          %s2542 = ssub.s32 512, 512
          %2543 = vsyncadd %s2528, %s2542
          %s2544 = smul.addr %s2540, 2
          %s2545 = smul.addr %s2544, 128
          %s2546 = scalar_lea.hbm %s7, %s2545
          %s2547 = sshll.u32 %s2531, 4
          %s2548 = int_to_ptr.vmem [resolvable:$true] %s2547
          %2553 = dma.vmem_to_hbm [thread:$0]  %s2548, 512, %s2546, %s2528, 128, 128, 8
        $region80: #{tsti_encoder_forward.9} parent=47 // pred_fallthru
          _
        // Predicated region
        $region81: #{tsti_encoder_forward.9} parent=47 // pred_check
          %p2554 = pneg %p228
        $region82: #{tsti_encoder_forward.9} parent=47 // pred_check_branch
          %2556 = sbr.rel (%p2554) target = $region84
        $region83: #{tsti_encoder_forward.9} parent=47 // pred_region
          %s2558 = ssub.s32 32, 32
          %2559 = vsyncadd %s2533, %s2558
          %s2560 = smul.addr %s32, 32
          %s2561 = scalar_lea.hbm %s8, %s2560
          %s2563 = sshll.u32 %s2536, 4
          %s2564 = int_to_ptr.vmem [resolvable:$true] %s2563
          %2566 = dma.vmem_to_hbm [thread:$0]  %s2564, 32, %s2561, %s2533
        $region84: #{tsti_encoder_forward.9} parent=47 // pred_fallthru
          _
      $region48: #{tsti_encoder_forward.9} parent=5 // pred_fallthru
        _
      %p2567 = scmp.le.s32.totalorder 2, %s27
      // Predicated region
      $region85: #{tsti_encoder_forward.9} parent=5 // pred_check
        %p2568 = pneg %p2567
      $region86: #{tsti_encoder_forward.9} parent=5 // pred_check_branch
        %2570 = sbr.rel (%p2568) target = $region88
      $region87: #{tsti_encoder_forward.9} parent=5 // pred_region
        %s2571 = ssub.s32 %s27, 2
        // Predicated region
        $region89: #{tsti_encoder_forward.9} parent=87 // pred_check
          %p2572 = pneg %p208
        $region90: #{tsti_encoder_forward.9} parent=87 // pred_check_branch
          %2574 = sbr.rel (%p2572) target = $region92
        $region91: #{tsti_encoder_forward.9} parent=87 // pred_region
          %s2575 = sand.u32 %s193, 1
          %s2576 = scalar_lea.sflag [#allocation4], %s2575
          %s2577 = sand.u32 %s193, 1
          %s2578 = smul.addr %s2577, 32
          %s2579 = scalar_lea.vmem [#allocation14], %s2578
          %2580 = dma.done %s2576, 512
        $region92: #{tsti_encoder_forward.9} parent=87 // pred_fallthru
          _
        // Predicated region
        $region93: #{tsti_encoder_forward.9} parent=87 // pred_check
          %p2581 = pneg %p234
        $region94: #{tsti_encoder_forward.9} parent=87 // pred_check_branch
          %2583 = sbr.rel (%p2581) target = $region96
        $region95: #{tsti_encoder_forward.9} parent=87 // pred_region
          %s2584 = sand.u32 %s219, 1
          %s2585 = scalar_lea.sflag [#allocation16], %s2584
          %s2586 = sand.u32 %s219, 1
          %s2587 = smul.addr %s2586, 2
          %s2588 = scalar_lea.vmem [#allocation15], %s2587
          %2589 = dma.done %s2585, 32
        $region96: #{tsti_encoder_forward.9} parent=87 // pred_fallthru
          _
      $region88: #{tsti_encoder_forward.9} parent=5 // pred_fallthru
        _
    $region6: #{tsti_encoder_forward.9} parent=1 // loop_footer
      %s31 = sadd.s32 1, %s27
    $region7: #{tsti_encoder_forward.9} parent=1 // loop_footer_branch
      %26 = sbr.rel target = $region3
    $region8: #{tsti_encoder_forward.9} parent=1 // loop_exit
      _
    %2590 = vsyncpa [#allocation3], 1
    %s2591 = scalar_lea.sflag [#allocation3], 1
    %2592 = vsyncpa %s2591, 1
    %2593 = vsyncpa [#allocation6], 1
    %2594 = vsyncpa [#allocation9], 1
    %2595 = vsyncpa [#allocation12], 1
    %2596 = vsyncpa [#allocation4], 1
    %s2597 = scalar_lea.sflag [#allocation4], 1
    %2598 = vsyncpa %s2597, 1
    %2599 = vsyncpa [#allocation16], 1
    %s2600 = scalar_lea.sflag [#allocation16], 1
    %2601 = vsyncpa %s2600, 1

</llo_original>
